<compile_context>
chip_gen: v5e
topology: v5e:2x2
jax: 0.10.0
libtpu: 0.0.40
codegen_flags: <defaults>
</compile_context>

<pallas_src>
import functools

import jax
import jax.numpy as jnp
from jax.experimental import pallas as pl
from jax.experimental.pallas import tpu as pltpu


# --------------------------------------------------------------------------
# Fused kernel: whole Net forward for NB samples per grid step.
# --------------------------------------------------------------------------

def _fused_net_kernel(x_ref, w1_ref, b1_ref, w2_ref, b2_ref,
                      w3_ref, b3_ref, w4_ref, b4_ref, o_ref, *,
                      nb, k1, c1out, k2, c2out, h_in, w_in, k1_pad):
    # x_ref : (nb, H, W, Cin) f32        w1_ref: (k1*k1*Cin + pad, c1out) bf16
    # w2_ref: (k2*k2*c1out, c2out) bf16  w3_ref: (c2out, Hid) bf16
    # w4_ref: (1, Hid) f32               o_ref : (1, 1, nb) f32
    ho1, wo1 = h_in - k1 + 1, w_in - k1 + 1          # conv1 output
    hp1, wp1 = ho1 // 2, wo1 // 2                    # after 2x2 pool (floor)
    ho2, wo2 = hp1 - k2 + 1, wp1 - k2 + 1            # conv2 output
    hc2, wc2 = (ho2 // 2) * 2, (wo2 // 2) * 2        # floor-crop region

    # ---- conv1: in-VMEM im2col, one big-K MXU matmul -------------------------
    xb = x_ref[...].astype(jnp.bfloat16)             # cast once (hoisted)
    taps = [xb[:, i:i + ho1, j:j + wo1, :]
            for i in range(k1) for j in range(k1)]   # (i, j, c) ordering
    if k1_pad:
        taps.append(jnp.zeros((nb, ho1, wo1, k1_pad), jnp.bfloat16))
    patch1 = jnp.concatenate(taps, axis=-1).reshape(nb * ho1 * wo1, -1)
    c1 = jnp.dot(patch1, w1_ref[...], preferred_element_type=jnp.float32)
    c1 = c1 + b1_ref[...]                                              # (M, c1out)
    conv1 = c1.reshape(nb, ho1, wo1, c1out)[:, :2 * hp1, :2 * wp1, :]

    # ---- fused MaxPool2d(2,2) (floor): two 2-way max passes ------------------
    t = conv1.reshape(nb, hp1, 2, 2 * wp1, c1out)
    t = jnp.maximum(t[:, :, 0], t[:, :, 1])          # row pairs
    t = t.reshape(nb, hp1, wp1, 2, c1out)
    hid = jnp.maximum(t[:, :, :, 0], t[:, :, :, 1])  # (nb, hp1, wp1, c1out) f32

    # ---- conv2: in-VMEM im2col, K = k2*k2*c1out matmul ------------------------
    hb = hid.astype(jnp.bfloat16)                    # cast once
    taps2 = [hb[:, i:i + ho2, j:j + wo2, :]
             for i in range(k2) for j in range(k2)]
    patch2 = jnp.concatenate(taps2, axis=-1).reshape(nb * ho2 * wo2, -1)
    c2 = jnp.dot(patch2, w2_ref[...], preferred_element_type=jnp.float32)
    c2 = c2 + b2_ref[...]
    conv2 = c2.reshape(nb, ho2, wo2, c2out)[:, :hc2, :wc2, :]

    # ---- MaxPool2d(2,2) + AdaptiveMaxPool2d((1,1)) == global max over crop ---
    feat = jnp.max(conv2, axis=(1, 2))               # (nb, c2out)

    # ---- MLP head: linear1 -> relu -> linear2 -> sigmoid ----------------------
    h1 = jnp.dot(feat.astype(jnp.bfloat16), w3_ref[...],
                 preferred_element_type=jnp.float32) + b3_ref[...]     # (nb, Hid)
    h1 = jnp.maximum(h1, 0.0)
    z = jnp.sum(h1 * w4_ref[...], axis=1, keepdims=True) + b4_ref[...] # (nb, 1)
    o_ref[...] = jax.nn.sigmoid(z).reshape(1, 1, nb)


def _pick_nb(batch):
    # Largest per-step batch <= 8 that divides B while keeping grid length >= 2
    # (so the "parallel" batch axis still shards across both v7x TensorCores).
    upper = max(1, min(8, batch // 2))
    for nb in range(upper, 0, -1):
        if batch % nb == 0:
            return nb
    return 1


def _net_pallas(x, w1, b1, w2, b2, w3, b3, w4, b4, *, nb, k1, k2, k1_pad):
    B, H, W, Cin = x.shape
    c1out = w1.shape[1]
    c2out = w2.shape[1]
    hid = w3.shape[1]
    num_steps = B // nb

    ho1, wo1 = H - k1 + 1, W - k1 + 1
    hp1, wp1 = ho1 // 2, wo1 // 2
    ho2, wo2 = hp1 - k2 + 1, wp1 - k2 + 1

    kernel = functools.partial(
        _fused_net_kernel, nb=nb, k1=k1, c1out=c1out, k2=k2, c2out=c2out,
        h_in=H, w_in=W, k1_pad=k1_pad)

    flops = 2 * B * (ho1 * wo1 * k1 * k1 * Cin * c1out
                     + ho2 * wo2 * k2 * k2 * c1out * c2out
                     + c2out * hid + hid)
    bytes_accessed = int(x.size * 4 + w1.size * 2 + b1.size * 4
                         + w2.size * 2 + b2.size * 4 + w3.size * 2
                         + b3.size * 4 + w4.size * 4 + b4.size * 4 + B * 4)

    out = pl.pallas_call(
        kernel,
        out_shape=jax.ShapeDtypeStruct((num_steps, 1, nb), jnp.float32),
        grid=(num_steps,),
        in_specs=[
            pl.BlockSpec((nb, H, W, Cin), lambda b: (b, 0, 0, 0)),
            pl.BlockSpec(w1.shape, lambda b: (0, 0)),
            pl.BlockSpec(b1.shape, lambda b: (0, 0)),
            pl.BlockSpec(w2.shape, lambda b: (0, 0)),
            pl.BlockSpec(b2.shape, lambda b: (0, 0)),
            pl.BlockSpec(w3.shape, lambda b: (0, 0)),
            pl.BlockSpec(b3.shape, lambda b: (0, 0)),
            pl.BlockSpec(w4.shape, lambda b: (0, 0)),
            pl.BlockSpec(b4.shape, lambda b: (0, 0)),
        ],
        out_specs=pl.BlockSpec((1, 1, nb), lambda b: (b, 0, 0)),
        compiler_params=pltpu.CompilerParams(dimension_semantics=("parallel",)),
        cost_estimate=pl.CostEstimate(flops=flops, transcendentals=2 * B,
                                      bytes_accessed=bytes_accessed),
    )(x, w1, b1, w2, b2, w3, b3, w4, b4)
    return out.reshape(B, 1)


# --------------------------------------------------------------------------
# Parameters (PyTorch-like shapes: conv OIHW, linear stored as (in, out)).
# --------------------------------------------------------------------------

def init_params(key):
    ks = jax.random.split(key, 8)

    def uniform(k, shape, fan_in):
        bound = 1.0 / jnp.sqrt(fan_in)
        return jax.random.uniform(k, shape, jnp.float32, -bound, bound)

    return {
        "conv1_w": uniform(ks[0], (32, 3, 3, 3), 3 * 3 * 3),     # OIHW
        "conv1_b": uniform(ks[1], (32,), 3 * 3 * 3),
        "conv2_w": uniform(ks[2], (64, 32, 5, 5), 32 * 5 * 5),   # OIHW
        "conv2_b": uniform(ks[3], (64,), 32 * 5 * 5),
        "lin1_w": uniform(ks[4], (64, 32), 64),                  # (in, out)
        "lin1_b": uniform(ks[5], (32,), 64),
        "lin2_w": uniform(ks[6], (32, 1), 32),                   # (in, out)
        "lin2_b": uniform(ks[7], (1,), 32),
    }


# --------------------------------------------------------------------------
# Forward pass (weight layout prep is tiny XLA glue, constant-folded under jit).
# --------------------------------------------------------------------------

def net_forward(params, x_nchw):
    """Forward pass of Net. x: (B, 3, H, W) float32 NCHW. Output: (B, 1) in [0,1]."""
    x = jnp.transpose(x_nchw, (0, 2, 3, 1)).astype(jnp.float32)   # NCHW -> NHWC
    B = x.shape[0]

    # conv1 weight: OIHW -> (kh, kw, Cin, Cout) -> (kh*kw*Cin, Cout), pad K 27->32.
    w1 = jnp.transpose(params["conv1_w"], (2, 3, 1, 0))
    kh1, kw1, cin, c1out = w1.shape
    k1_flat = kh1 * kw1 * cin
    k1p = ((k1_flat + 7) // 8) * 8
    w1 = w1.reshape(k1_flat, c1out)
    if k1p != k1_flat:
        w1 = jnp.pad(w1, ((0, k1p - k1_flat), (0, 0)))
    w1 = w1.astype(jnp.bfloat16)
    b1 = params["conv1_b"].reshape(1, -1).astype(jnp.float32)

    # conv2 weight: OIHW -> (kh, kw, Cin, Cout) -> (kh*kw*Cin, Cout) = (800, 64).
    w2 = jnp.transpose(params["conv2_w"], (2, 3, 1, 0))
    kh2 = w2.shape[0]
    w2 = w2.reshape(-1, w2.shape[-1]).astype(jnp.bfloat16)
    b2 = params["conv2_b"].reshape(1, -1).astype(jnp.float32)

    w3 = params["lin1_w"].astype(jnp.bfloat16)                     # (64, 32)
    b3 = params["lin1_b"].reshape(1, -1).astype(jnp.float32)
    w4 = params["lin2_w"].reshape(1, -1).astype(jnp.float32)       # (1, 32)
    b4 = params["lin2_b"].reshape(1, 1).astype(jnp.float32)

    nb = _pick_nb(B)
    return _net_pallas(x, w1, b1, w2, b2, w3, b3, w4, b4,
                       nb=nb, k1=kh1, k2=kh2, k1_pad=k1p - k1_flat)


if __name__ == "__main__":
    key = jax.random.PRNGKey(0)
    k_param, k_x = jax.random.split(key)
    params = init_params(k_param)

    # batch=2, 3 channels, 32x32 spatial: conv1 k3 -> 30, pool -> 15,
    # conv2 k5 -> 11, pool -> 5, adaptive max -> 1x1 -> 64 -> MLP head -> (2, 1).
    x = jax.random.normal(k_x, (2, 3, 32, 32), dtype=jnp.float32)

    y = jax.block_until_ready(jax.jit(net_forward)(params, x))
    assert y.shape == (2, 1), y.shape
    assert bool(jnp.all((y >= 0.0) & (y <= 1.0))), y
    print("KERNEL_OK")
</pallas_src>

<mosaic_0001>
module attributes {stable_mosaic.version = 11 : i64} {
  func.func @_fused_net_kernel(%arg0: i32, %arg1: memref<1x32x32x3xf32, #tpu.memory_space<vmem>>, %arg2: memref<32x32xbf16, #tpu.memory_space<vmem>>, %arg3: memref<1x32xf32, #tpu.memory_space<vmem>>, %arg4: memref<800x64xbf16, #tpu.memory_space<vmem>>, %arg5: memref<1x64xf32, #tpu.memory_space<vmem>>, %arg6: memref<64x32xbf16, #tpu.memory_space<vmem>>, %arg7: memref<1x32xf32, #tpu.memory_space<vmem>>, %arg8: memref<1x32xf32, #tpu.memory_space<vmem>>, %arg9: memref<1x1xf32, #tpu.memory_space<vmem>>, %arg10: memref<1x1x1xf32, #tpu.memory_space<vmem>>) attributes {dimension_semantics = [#tpu.dimension_semantics<parallel>], iteration_bounds = array<i64: 2>, scalar_prefetch = 0 : i64, scratch_operands = 0 : i64, tpu.core_type = #tpu.core_type<tc>, window_params = [{transform_indices = @transform_0, window_bounds = array<i64: 1, 32, 32, 3>}, {pipeline_mode = #tpu.pipeline_mode<synchronous>, transform_indices = @transform_1, window_bounds = array<i64: 32, 32>}, {pipeline_mode = #tpu.pipeline_mode<synchronous>, transform_indices = @transform_2, window_bounds = array<i64: 1, 32>}, {pipeline_mode = #tpu.pipeline_mode<synchronous>, transform_indices = @transform_3, window_bounds = array<i64: 800, 64>}, {pipeline_mode = #tpu.pipeline_mode<synchronous>, transform_indices = @transform_4, window_bounds = array<i64: 1, 64>}, {pipeline_mode = #tpu.pipeline_mode<synchronous>, transform_indices = @transform_5, window_bounds = array<i64: 64, 32>}, {pipeline_mode = #tpu.pipeline_mode<synchronous>, transform_indices = @transform_6, window_bounds = array<i64: 1, 32>}, {pipeline_mode = #tpu.pipeline_mode<synchronous>, transform_indices = @transform_7, window_bounds = array<i64: 1, 32>}, {pipeline_mode = #tpu.pipeline_mode<synchronous>, transform_indices = @transform_8, window_bounds = array<i64: 1, 1>}, {transform_indices = @transform_9, window_bounds = array<i64: 1, 1, 1>}]} {
    %c0 = arith.constant 0 : index
    %c0_0 = arith.constant 0 : index
    %c0_1 = arith.constant 0 : index
    %c0_2 = arith.constant 0 : index
    %0 = vector.load %arg1[%c0, %c0_0, %c0_1, %c0_2] : memref<1x32x32x3xf32, #tpu.memory_space<vmem>>, vector<1x32x32x3xf32>
    %1 = arith.truncf %0 : vector<1x32x32x3xf32> to vector<1x32x32x3xbf16>
    %2 = vector.extract_strided_slice %1 {offsets = [0, 0, 0, 0], sizes = [1, 30, 30, 3], strides = [1, 1, 1, 1]} : vector<1x32x32x3xbf16> to vector<1x30x30x3xbf16>
    %3 = vector.extract_strided_slice %1 {offsets = [0, 0, 1, 0], sizes = [1, 30, 30, 3], strides = [1, 1, 1, 1]} : vector<1x32x32x3xbf16> to vector<1x30x30x3xbf16>
    %4 = vector.extract_strided_slice %1 {offsets = [0, 0, 2, 0], sizes = [1, 30, 30, 3], strides = [1, 1, 1, 1]} : vector<1x32x32x3xbf16> to vector<1x30x30x3xbf16>
    %5 = vector.extract_strided_slice %1 {offsets = [0, 1, 0, 0], sizes = [1, 30, 30, 3], strides = [1, 1, 1, 1]} : vector<1x32x32x3xbf16> to vector<1x30x30x3xbf16>
    %6 = vector.extract_strided_slice %1 {offsets = [0, 1, 1, 0], sizes = [1, 30, 30, 3], strides = [1, 1, 1, 1]} : vector<1x32x32x3xbf16> to vector<1x30x30x3xbf16>
    %7 = vector.extract_strided_slice %1 {offsets = [0, 1, 2, 0], sizes = [1, 30, 30, 3], strides = [1, 1, 1, 1]} : vector<1x32x32x3xbf16> to vector<1x30x30x3xbf16>
    %8 = vector.extract_strided_slice %1 {offsets = [0, 2, 0, 0], sizes = [1, 30, 30, 3], strides = [1, 1, 1, 1]} : vector<1x32x32x3xbf16> to vector<1x30x30x3xbf16>
    %9 = vector.extract_strided_slice %1 {offsets = [0, 2, 1, 0], sizes = [1, 30, 30, 3], strides = [1, 1, 1, 1]} : vector<1x32x32x3xbf16> to vector<1x30x30x3xbf16>
    %10 = vector.extract_strided_slice %1 {offsets = [0, 2, 2, 0], sizes = [1, 30, 30, 3], strides = [1, 1, 1, 1]} : vector<1x32x32x3xbf16> to vector<1x30x30x3xbf16>
    %cst = arith.constant 0.000000e+00 : bf16
    %11 = vector.broadcast %cst : bf16 to vector<1x30x30x5xbf16>
    %12 = tpu.concatenate %2, %3, %4, %5, %6, %7, %8, %9, %10, %11 in 3 : vector<1x30x30x3xbf16>, vector<1x30x30x3xbf16>, vector<1x30x30x3xbf16>, vector<1x30x30x3xbf16>, vector<1x30x30x3xbf16>, vector<1x30x30x3xbf16>, vector<1x30x30x3xbf16>, vector<1x30x30x3xbf16>, vector<1x30x30x3xbf16>, vector<1x30x30x5xbf16> -> vector<1x30x30x32xbf16>
    %13 = vector.shape_cast %12 : vector<1x30x30x32xbf16> to vector<900x32xbf16>
    %c0_3 = arith.constant 0 : index
    %c0_4 = arith.constant 0 : index
    %14 = vector.load %arg2[%c0_3, %c0_4] : memref<32x32xbf16, #tpu.memory_space<vmem>>, vector<32x32xbf16>
    %cst_5 = arith.constant dense<0.000000e+00> : vector<900x32xf32>
    %15 = tpu.matmul %13, %14, %cst_5 {dimension_numbers = #tpu.dot_dimension_numbers<[1], [0], [0], [1], [0, 0, 1, 1], [], []>} : vector<900x32xbf16>, vector<32x32xbf16>, vector<900x32xf32> -> vector<900x32xf32>
    %c0_6 = arith.constant 0 : index
    %c0_7 = arith.constant 0 : index
    %16 = vector.load %arg3[%c0_6, %c0_7] : memref<1x32xf32, #tpu.memory_space<vmem>>, vector<1x32xf32>
    %17 = vector.broadcast %16 : vector<1x32xf32> to vector<900x32xf32>
    %18 = arith.addf %15, %17 : vector<900x32xf32>
    %19 = vector.shape_cast %18 : vector<900x32xf32> to vector<1x30x30x32xf32>
    %20 = vector.shape_cast %19 : vector<1x30x30x32xf32> to vector<1x15x2x30x32xf32>
    %21 = vector.extract_strided_slice %20 {offsets = [0, 0, 0, 0, 0], sizes = [1, 15, 1, 30, 32], strides = [1, 1, 1, 1, 1]} : vector<1x15x2x30x32xf32> to vector<1x15x1x30x32xf32>
    %22 = vector.shape_cast %21 : vector<1x15x1x30x32xf32> to vector<1x15x30x32xf32>
    %23 = vector.extract_strided_slice %20 {offsets = [0, 0, 1, 0, 0], sizes = [1, 15, 1, 30, 32], strides = [1, 1, 1, 1, 1]} : vector<1x15x2x30x32xf32> to vector<1x15x1x30x32xf32>
    %24 = vector.shape_cast %23 : vector<1x15x1x30x32xf32> to vector<1x15x30x32xf32>
    %25 = arith.maximumf %22, %24 : vector<1x15x30x32xf32>
    %26 = vector.shape_cast %25 : vector<1x15x30x32xf32> to vector<1x15x15x2x32xf32>
    %27 = vector.extract_strided_slice %26 {offsets = [0, 0, 0, 0, 0], sizes = [1, 15, 15, 1, 32], strides = [1, 1, 1, 1, 1]} : vector<1x15x15x2x32xf32> to vector<1x15x15x1x32xf32>
    %28 = vector.shape_cast %27 : vector<1x15x15x1x32xf32> to vector<1x15x15x32xf32>
    %29 = vector.extract_strided_slice %26 {offsets = [0, 0, 0, 1, 0], sizes = [1, 15, 15, 1, 32], strides = [1, 1, 1, 1, 1]} : vector<1x15x15x2x32xf32> to vector<1x15x15x1x32xf32>
    %30 = vector.shape_cast %29 : vector<1x15x15x1x32xf32> to vector<1x15x15x32xf32>
    %31 = arith.maximumf %28, %30 : vector<1x15x15x32xf32>
    %32 = arith.truncf %31 : vector<1x15x15x32xf32> to vector<1x15x15x32xbf16>
    %33 = vector.extract_strided_slice %32 {offsets = [0, 0, 0, 0], sizes = [1, 11, 11, 32], strides = [1, 1, 1, 1]} : vector<1x15x15x32xbf16> to vector<1x11x11x32xbf16>
    %34 = vector.extract_strided_slice %32 {offsets = [0, 0, 1, 0], sizes = [1, 11, 11, 32], strides = [1, 1, 1, 1]} : vector<1x15x15x32xbf16> to vector<1x11x11x32xbf16>
    %35 = vector.extract_strided_slice %32 {offsets = [0, 0, 2, 0], sizes = [1, 11, 11, 32], strides = [1, 1, 1, 1]} : vector<1x15x15x32xbf16> to vector<1x11x11x32xbf16>
    %36 = vector.extract_strided_slice %32 {offsets = [0, 0, 3, 0], sizes = [1, 11, 11, 32], strides = [1, 1, 1, 1]} : vector<1x15x15x32xbf16> to vector<1x11x11x32xbf16>
    %37 = vector.extract_strided_slice %32 {offsets = [0, 0, 4, 0], sizes = [1, 11, 11, 32], strides = [1, 1, 1, 1]} : vector<1x15x15x32xbf16> to vector<1x11x11x32xbf16>
    %38 = vector.extract_strided_slice %32 {offsets = [0, 1, 0, 0], sizes = [1, 11, 11, 32], strides = [1, 1, 1, 1]} : vector<1x15x15x32xbf16> to vector<1x11x11x32xbf16>
    %39 = vector.extract_strided_slice %32 {offsets = [0, 1, 1, 0], sizes = [1, 11, 11, 32], strides = [1, 1, 1, 1]} : vector<1x15x15x32xbf16> to vector<1x11x11x32xbf16>
    %40 = vector.extract_strided_slice %32 {offsets = [0, 1, 2, 0], sizes = [1, 11, 11, 32], strides = [1, 1, 1, 1]} : vector<1x15x15x32xbf16> to vector<1x11x11x32xbf16>
    %41 = vector.extract_strided_slice %32 {offsets = [0, 1, 3, 0], sizes = [1, 11, 11, 32], strides = [1, 1, 1, 1]} : vector<1x15x15x32xbf16> to vector<1x11x11x32xbf16>
    %42 = vector.extract_strided_slice %32 {offsets = [0, 1, 4, 0], sizes = [1, 11, 11, 32], strides = [1, 1, 1, 1]} : vector<1x15x15x32xbf16> to vector<1x11x11x32xbf16>
    %43 = vector.extract_strided_slice %32 {offsets = [0, 2, 0, 0], sizes = [1, 11, 11, 32], strides = [1, 1, 1, 1]} : vector<1x15x15x32xbf16> to vector<1x11x11x32xbf16>
    %44 = vector.extract_strided_slice %32 {offsets = [0, 2, 1, 0], sizes = [1, 11, 11, 32], strides = [1, 1, 1, 1]} : vector<1x15x15x32xbf16> to vector<1x11x11x32xbf16>
    %45 = vector.extract_strided_slice %32 {offsets = [0, 2, 2, 0], sizes = [1, 11, 11, 32], strides = [1, 1, 1, 1]} : vector<1x15x15x32xbf16> to vector<1x11x11x32xbf16>
    %46 = vector.extract_strided_slice %32 {offsets = [0, 2, 3, 0], sizes = [1, 11, 11, 32], strides = [1, 1, 1, 1]} : vector<1x15x15x32xbf16> to vector<1x11x11x32xbf16>
    %47 = vector.extract_strided_slice %32 {offsets = [0, 2, 4, 0], sizes = [1, 11, 11, 32], strides = [1, 1, 1, 1]} : vector<1x15x15x32xbf16> to vector<1x11x11x32xbf16>
    %48 = vector.extract_strided_slice %32 {offsets = [0, 3, 0, 0], sizes = [1, 11, 11, 32], strides = [1, 1, 1, 1]} : vector<1x15x15x32xbf16> to vector<1x11x11x32xbf16>
    %49 = vector.extract_strided_slice %32 {offsets = [0, 3, 1, 0], sizes = [1, 11, 11, 32], strides = [1, 1, 1, 1]} : vector<1x15x15x32xbf16> to vector<1x11x11x32xbf16>
    %50 = vector.extract_strided_slice %32 {offsets = [0, 3, 2, 0], sizes = [1, 11, 11, 32], strides = [1, 1, 1, 1]} : vector<1x15x15x32xbf16> to vector<1x11x11x32xbf16>
    %51 = vector.extract_strided_slice %32 {offsets = [0, 3, 3, 0], sizes = [1, 11, 11, 32], strides = [1, 1, 1, 1]} : vector<1x15x15x32xbf16> to vector<1x11x11x32xbf16>
    %52 = vector.extract_strided_slice %32 {offsets = [0, 3, 4, 0], sizes = [1, 11, 11, 32], strides = [1, 1, 1, 1]} : vector<1x15x15x32xbf16> to vector<1x11x11x32xbf16>
    %53 = vector.extract_strided_slice %32 {offsets = [0, 4, 0, 0], sizes = [1, 11, 11, 32], strides = [1, 1, 1, 1]} : vector<1x15x15x32xbf16> to vector<1x11x11x32xbf16>
    %54 = vector.extract_strided_slice %32 {offsets = [0, 4, 1, 0], sizes = [1, 11, 11, 32], strides = [1, 1, 1, 1]} : vector<1x15x15x32xbf16> to vector<1x11x11x32xbf16>
    %55 = vector.extract_strided_slice %32 {offsets = [0, 4, 2, 0], sizes = [1, 11, 11, 32], strides = [1, 1, 1, 1]} : vector<1x15x15x32xbf16> to vector<1x11x11x32xbf16>
    %56 = vector.extract_strided_slice %32 {offsets = [0, 4, 3, 0], sizes = [1, 11, 11, 32], strides = [1, 1, 1, 1]} : vector<1x15x15x32xbf16> to vector<1x11x11x32xbf16>
    %57 = vector.extract_strided_slice %32 {offsets = [0, 4, 4, 0], sizes = [1, 11, 11, 32], strides = [1, 1, 1, 1]} : vector<1x15x15x32xbf16> to vector<1x11x11x32xbf16>
    %58 = tpu.concatenate %33, %34, %35, %36, %37, %38, %39, %40, %41, %42, %43, %44, %45, %46, %47, %48 in 3 : vector<1x11x11x32xbf16>, vector<1x11x11x32xbf16>, vector<1x11x11x32xbf16>, vector<1x11x11x32xbf16>, vector<1x11x11x32xbf16>, vector<1x11x11x32xbf16>, vector<1x11x11x32xbf16>, vector<1x11x11x32xbf16>, vector<1x11x11x32xbf16>, vector<1x11x11x32xbf16>, vector<1x11x11x32xbf16>, vector<1x11x11x32xbf16>, vector<1x11x11x32xbf16>, vector<1x11x11x32xbf16>, vector<1x11x11x32xbf16>, vector<1x11x11x32xbf16> -> vector<1x11x11x512xbf16>
    %59 = tpu.concatenate %49, %50, %51, %52, %53, %54, %55, %56, %57 in 3 : vector<1x11x11x32xbf16>, vector<1x11x11x32xbf16>, vector<1x11x11x32xbf16>, vector<1x11x11x32xbf16>, vector<1x11x11x32xbf16>, vector<1x11x11x32xbf16>, vector<1x11x11x32xbf16>, vector<1x11x11x32xbf16>, vector<1x11x11x32xbf16> -> vector<1x11x11x288xbf16>
    %60 = tpu.concatenate %58, %59 in 3 : vector<1x11x11x512xbf16>, vector<1x11x11x288xbf16> -> vector<1x11x11x800xbf16>
    %61 = vector.shape_cast %60 : vector<1x11x11x800xbf16> to vector<121x800xbf16>
    %c0_8 = arith.constant 0 : index
    %c0_9 = arith.constant 0 : index
    %62 = vector.load %arg4[%c0_8, %c0_9] : memref<800x64xbf16, #tpu.memory_space<vmem>>, vector<800x64xbf16>
    %cst_10 = arith.constant dense<0.000000e+00> : vector<121x64xf32>
    %63 = tpu.matmul %61, %62, %cst_10 {dimension_numbers = #tpu.dot_dimension_numbers<[1], [0], [0], [1], [0, 0, 1, 1], [], []>} : vector<121x800xbf16>, vector<800x64xbf16>, vector<121x64xf32> -> vector<121x64xf32>
    %c0_11 = arith.constant 0 : index
    %c0_12 = arith.constant 0 : index
    %64 = vector.load %arg5[%c0_11, %c0_12] : memref<1x64xf32, #tpu.memory_space<vmem>>, vector<1x64xf32>
    %65 = vector.broadcast %64 : vector<1x64xf32> to vector<121x64xf32>
    %66 = arith.addf %63, %65 : vector<121x64xf32>
    %67 = vector.shape_cast %66 : vector<121x64xf32> to vector<1x11x11x64xf32>
    %68 = vector.extract_strided_slice %67 {offsets = [0, 0, 0, 0], sizes = [1, 10, 10, 64], strides = [1, 1, 1, 1]} : vector<1x11x11x64xf32> to vector<1x10x10x64xf32>
    %cst_13 = arith.constant dense<0xFF800000> : vector<1x64xf32>
    %69 = vector.multi_reduction <maximumf>, %68, %cst_13 [1, 2] : vector<1x10x10x64xf32> to vector<1x64xf32>
    %70 = arith.truncf %69 : vector<1x64xf32> to vector<1x64xbf16>
    %c0_14 = arith.constant 0 : index
    %c0_15 = arith.constant 0 : index
    %71 = vector.load %arg6[%c0_14, %c0_15] : memref<64x32xbf16, #tpu.memory_space<vmem>>, vector<64x32xbf16>
    %cst_16 = arith.constant dense<0.000000e+00> : vector<1x32xf32>
    %72 = tpu.matmul %70, %71, %cst_16 {dimension_numbers = #tpu.dot_dimension_numbers<[1], [0], [0], [1], [0, 0, 1, 1], [], []>} : vector<1x64xbf16>, vector<64x32xbf16>, vector<1x32xf32> -> vector<1x32xf32>
    %c0_17 = arith.constant 0 : index
    %c0_18 = arith.constant 0 : index
    %73 = vector.load %arg7[%c0_17, %c0_18] : memref<1x32xf32, #tpu.memory_space<vmem>>, vector<1x32xf32>
    %74 = arith.addf %72, %73 : vector<1x32xf32>
    %cst_19 = arith.constant 0.000000e+00 : f32
    %75 = vector.broadcast %cst_19 : f32 to vector<1x32xf32>
    %76 = arith.maximumf %74, %75 : vector<1x32xf32>
    %c0_20 = arith.constant 0 : index
    %c0_21 = arith.constant 0 : index
    %77 = vector.load %arg8[%c0_20, %c0_21] : memref<1x32xf32, #tpu.memory_space<vmem>>, vector<1x32xf32>
    %78 = arith.mulf %76, %77 : vector<1x32xf32>
    %cst_22 = arith.constant dense<0.000000e+00> : vector<1xf32>
    %79 = vector.multi_reduction <add>, %78, %cst_22 [1] : vector<1x32xf32> to vector<1xf32>
    %80 = vector.shape_cast %79 : vector<1xf32> to vector<1x1xf32>
    %c0_23 = arith.constant 0 : index
    %c0_24 = arith.constant 0 : index
    %81 = vector.load %arg9[%c0_23, %c0_24] : memref<1x1xf32, #tpu.memory_space<vmem>>, vector<1x1xf32>
    %82 = arith.addf %80, %81 : vector<1x1xf32>
    %83 = arith.negf %82 : vector<1x1xf32>
    %84 = math.exp %83 : vector<1x1xf32>
    %cst_25 = arith.constant 1.000000e+00 : f32
    %85 = vector.broadcast %cst_25 : f32 to vector<1x1xf32>
    %86 = arith.addf %85, %84 : vector<1x1xf32>
    %87 = arith.divf %85, %86 : vector<1x1xf32>
    %88 = vector.shape_cast %87 : vector<1x1xf32> to vector<1x1x1xf32>
    %c0_26 = arith.constant 0 : index
    %c0_27 = arith.constant 0 : index
    %c0_28 = arith.constant 0 : index
    %89 = vector.load %arg10[%c0_26, %c0_27, %c0_28] : memref<1x1x1xf32, #tpu.memory_space<vmem>>, vector<1x1x1xf32>
    tpu.vector_store %arg10[%c0_26, %c0_27, %c0_28], %88 {strides = array<i32>} : memref<1x1x1xf32, #tpu.memory_space<vmem>>, vector<1x1x1xf32>,
    return
  }
  func.func @transform_0(%arg0: i32) -> (i32, i32, i32, i32) {
    %c0_i32 = arith.constant 0 : i32
    %c0_i32_0 = arith.constant 0 : i32
    %c0_i32_1 = arith.constant 0 : i32
    %c0_i32_2 = arith.constant 0 : i32
    return %arg0, %c0_i32, %c0_i32_0, %c0_i32_1 : i32, i32, i32, i32
  }
  func.func @transform_1(%arg0: i32) -> (i32, i32) {
    %c0_i32 = arith.constant 0 : i32
    %c0_i32_0 = arith.constant 0 : i32
    %c0_i32_1 = arith.constant 0 : i32
    return %c0_i32, %c0_i32_0 : i32, i32
  }
  func.func @transform_2(%arg0: i32) -> (i32, i32) {
    %c0_i32 = arith.constant 0 : i32
    %c0_i32_0 = arith.constant 0 : i32
    %c0_i32_1 = arith.constant 0 : i32
    return %c0_i32, %c0_i32_0 : i32, i32
  }
  func.func @transform_3(%arg0: i32) -> (i32, i32) {
    %c0_i32 = arith.constant 0 : i32
    %c0_i32_0 = arith.constant 0 : i32
    %c0_i32_1 = arith.constant 0 : i32
    return %c0_i32, %c0_i32_0 : i32, i32
  }
  func.func @transform_4(%arg0: i32) -> (i32, i32) {
    %c0_i32 = arith.constant 0 : i32
    %c0_i32_0 = arith.constant 0 : i32
    %c0_i32_1 = arith.constant 0 : i32
    return %c0_i32, %c0_i32_0 : i32, i32
  }
  func.func @transform_5(%arg0: i32) -> (i32, i32) {
    %c0_i32 = arith.constant 0 : i32
    %c0_i32_0 = arith.constant 0 : i32
    %c0_i32_1 = arith.constant 0 : i32
    return %c0_i32, %c0_i32_0 : i32, i32
  }
  func.func @transform_6(%arg0: i32) -> (i32, i32) {
    %c0_i32 = arith.constant 0 : i32
    %c0_i32_0 = arith.constant 0 : i32
    %c0_i32_1 = arith.constant 0 : i32
    return %c0_i32, %c0_i32_0 : i32, i32
  }
  func.func @transform_7(%arg0: i32) -> (i32, i32) {
    %c0_i32 = arith.constant 0 : i32
    %c0_i32_0 = arith.constant 0 : i32
    %c0_i32_1 = arith.constant 0 : i32
    return %c0_i32, %c0_i32_0 : i32, i32
  }
  func.func @transform_8(%arg0: i32) -> (i32, i32) {
    %c0_i32 = arith.constant 0 : i32
    %c0_i32_0 = arith.constant 0 : i32
    %c0_i32_1 = arith.constant 0 : i32
    return %c0_i32, %c0_i32_0 : i32, i32
  }
  func.func @transform_9(%arg0: i32) -> (i32, i32, i32) {
    %c0_i32 = arith.constant 0 : i32
    %c0_i32_0 = arith.constant 0 : i32
    %c0_i32_1 = arith.constant 0 : i32
    return %arg0, %c0_i32, %c0_i32_0 : i32, i32, i32
  }
}

</mosaic_0001>

<llo_original>
// kernel: net_forward.1
$region0: #{net_forward.1}
  #allocation0 [shape = 'u32[]', space=smem, size = 0x4, offset = 0x4, fixed_abs, tag = 'smem constant byte address 0x4 - core index']
  #allocation1 [shape = 'u32[72,128]{1,0:T(1,128)}', space=vmem, size = 0x9000, scoped, tag = 'internal scratch']
  #allocation2 [shape = 'f32[1,1]{1,0:T(1,128)S(1)}', space=vmem, size = 0x200, scoped, tag = 'scoped memory for net_forward.1']
  %s0 = inlined_call_operand.vmem [shape: f32[2,32,32,3], index: 0, kind: input, shape index: {}]
  %s1 = inlined_call_operand.vmem [shape: bf16[32,32], index: 1, kind: input, shape index: {}]
  %s2 = inlined_call_operand.vmem [shape: f32[1,32], index: 2, kind: input, shape index: {}]
  %s3 = inlined_call_operand.vmem [shape: bf16[800,64], index: 3, kind: input, shape index: {}]
  %s4 = inlined_call_operand.vmem [shape: f32[1,64], index: 4, kind: input, shape index: {}]
  %s5 = inlined_call_operand.vmem [shape: bf16[64,32], index: 5, kind: input, shape index: {}]
  %s6 = inlined_call_operand.vmem [shape: f32[1,32], index: 6, kind: input, shape index: {}]
  %s7 = inlined_call_operand.vmem [shape: f32[1,32], index: 7, kind: input, shape index: {}]
  %s8 = inlined_call_operand.<no memory space> [shape: f32[1,1], index: 8, kind: input, shape index: {}]
  %s9 = inlined_call_operand.vmem [shape: f32[2,1,1], index: 9, kind: output, shape index: {}]
  %s10 = sld [smem:[#allocation0]]
  $region69: #{net_forward.1} parent=0
    _
  %s12 = ssub.s32 1, %s10
  %s13 = scalar_select 0, %s12, %s10
  %v14 = vstv %s8
  %15 = vst [vmem:[#allocation2] sm:$0x1] %v14
  loop: start=0, step=1, limit=4
  $region2: #{net_forward.1} parent=0 // loop_pre_header
    _
  $region3: #{net_forward.1} parent=0 // loop_header
    %s17 = sphi 0, %s21
    %p18 = scmp.ge.s32.totalorder %s17, 4
    %s27 = sphi 0, %s29
    %s30 = sphi 0, %s27
    %s31 = sphi 0, %s30
    %s47 = sphi 0, %s31
    %s51 = sphi 0, %s51
    %s53 = sphi 0, %s51
    %s54 = sphi 0, %s53
    %s68 = sphi 0, %s54
    %s72 = sphi 0, %s72
    %s74 = sphi 0, %s72
    %s75 = sphi 0, %s74
    %s89 = sphi 0, %s75
    %s93 = sphi 0, %s93
    %s95 = sphi 0, %s93
    %s96 = sphi 0, %s95
    %s110 = sphi 0, %s96
    %s114 = sphi 0, %s114
    %s116 = sphi 0, %s114
    %s117 = sphi 0, %s116
    %s131 = sphi 0, %s117
    %s135 = sphi 0, %s135
    %s137 = sphi 0, %s135
    %s138 = sphi 0, %s137
    %s152 = sphi 0, %s138
    %s156 = sphi 0, %s156
    %s158 = sphi 0, %s156
    %s159 = sphi 0, %s158
    %s173 = sphi 0, %s159
    %s177 = sphi 0, %s177
    %s179 = sphi 0, %s177
    %s180 = sphi 0, %s179
    %s194 = sphi 0, %s180
    %s198 = sphi 0, %s198
    %s200 = sphi 0, %s198
    %s201 = sphi 0, %s200
    %s215 = sphi 0, %s201
    %s221 = sphi 0, %s223
    %s224 = sphi 0, %s221
    %s225 = sphi 0, %s224
    %s241 = sphi 0, %s225
  $region4: #{net_forward.1} parent=0 // loop_header_branch
    %20 = sbr.rel (%p18) target = $region8
  $region5: #{net_forward.1} parent=0 // loop_body
    %s22 = ssub.s32 %s17, 1
    %s23 = ssub.s32 %s17, 2
    %s24 = sadd.s32 %s17, 1
    %s25 = ssub.s32 %s17, %s24
    %p26 = scmp.eq.s32.totalorder %s25, 0
    %s28 = sadd.s32 %s27, 1
    %s29 = scalar_select %p26, %s27, %s28
    %p32 = pneg %p26
    %p33 = scmp.eq.s32.totalorder %s17, 1
    %p34 = por %p32, %p33
    %p35 = scmp.ne.s32.totalorder %s27, %s30
    %p36 = scmp.eq.s32.totalorder %s17, 0
    %p37 = por %p35, %p36
    %p38 = scmp.ne.s32.totalorder %s27, %s30
    %p39 = scmp.eq.s32.totalorder %s22, 1
    %p40 = por %p38, %p39
    %p41 = scmp.ne.s32.totalorder %s30, %s31
    %p42 = scmp.eq.s32.totalorder %s22, 0
    %p43 = por %p41, %p42
    %p44 = scmp.ne.s32.totalorder %s30, %s31
    %p45 = scmp.eq.s32.totalorder %s23, 1
    %p46 = por %p44, %p45
    %p48 = scmp.ne.s32.totalorder %s31, %s47
    %p49 = scmp.eq.s32.totalorder %s23, 0
    %p50 = por %p48, %p49
    %s52 = sadd.s32 %s51, 1
    %p55 = scmp.eq.s32.totalorder %s17, 1
    %p56 = scmp.ne.s32.totalorder %s51, %s53
    %p57 = scmp.eq.s32.totalorder %s17, 0
    %p58 = por %p56, %p57
    %p59 = scmp.ne.s32.totalorder %s51, %s53
    %p60 = scmp.eq.s32.totalorder %s22, 1
    %p61 = por %p59, %p60
    %p62 = scmp.ne.s32.totalorder %s53, %s54
    %p63 = scmp.eq.s32.totalorder %s22, 0
    %p64 = por %p62, %p63
    %p65 = scmp.ne.s32.totalorder %s53, %s54
    %p66 = scmp.eq.s32.totalorder %s23, 1
    %p67 = por %p65, %p66
    %p69 = scmp.ne.s32.totalorder %s54, %s68
    %p70 = scmp.eq.s32.totalorder %s23, 0
    %p71 = por %p69, %p70
    %s73 = sadd.s32 %s72, 1
    %p76 = scmp.eq.s32.totalorder %s17, 1
    %p77 = scmp.ne.s32.totalorder %s72, %s74
    %p78 = scmp.eq.s32.totalorder %s17, 0
    %p79 = por %p77, %p78
    %p80 = scmp.ne.s32.totalorder %s72, %s74
    %p81 = scmp.eq.s32.totalorder %s22, 1
    %p82 = por %p80, %p81
    %p83 = scmp.ne.s32.totalorder %s74, %s75
    %p84 = scmp.eq.s32.totalorder %s22, 0
    %p85 = por %p83, %p84
    %p86 = scmp.ne.s32.totalorder %s74, %s75
    %p87 = scmp.eq.s32.totalorder %s23, 1
    %p88 = por %p86, %p87
    %p90 = scmp.ne.s32.totalorder %s75, %s89
    %p91 = scmp.eq.s32.totalorder %s23, 0
    %p92 = por %p90, %p91
    %s94 = sadd.s32 %s93, 1
    %p97 = scmp.eq.s32.totalorder %s17, 1
    %p98 = scmp.ne.s32.totalorder %s93, %s95
    %p99 = scmp.eq.s32.totalorder %s17, 0
    %p100 = por %p98, %p99
    %p101 = scmp.ne.s32.totalorder %s93, %s95
    %p102 = scmp.eq.s32.totalorder %s22, 1
    %p103 = por %p101, %p102
    %p104 = scmp.ne.s32.totalorder %s95, %s96
    %p105 = scmp.eq.s32.totalorder %s22, 0
    %p106 = por %p104, %p105
    %p107 = scmp.ne.s32.totalorder %s95, %s96
    %p108 = scmp.eq.s32.totalorder %s23, 1
    %p109 = por %p107, %p108
    %p111 = scmp.ne.s32.totalorder %s96, %s110
    %p112 = scmp.eq.s32.totalorder %s23, 0
    %p113 = por %p111, %p112
    %s115 = sadd.s32 %s114, 1
    %p118 = scmp.eq.s32.totalorder %s17, 1
    %p119 = scmp.ne.s32.totalorder %s114, %s116
    %p120 = scmp.eq.s32.totalorder %s17, 0
    %p121 = por %p119, %p120
    %p122 = scmp.ne.s32.totalorder %s114, %s116
    %p123 = scmp.eq.s32.totalorder %s22, 1
    %p124 = por %p122, %p123
    %p125 = scmp.ne.s32.totalorder %s116, %s117
    %p126 = scmp.eq.s32.totalorder %s22, 0
    %p127 = por %p125, %p126
    %p128 = scmp.ne.s32.totalorder %s116, %s117
    %p129 = scmp.eq.s32.totalorder %s23, 1
    %p130 = por %p128, %p129
    %p132 = scmp.ne.s32.totalorder %s117, %s131
    %p133 = scmp.eq.s32.totalorder %s23, 0
    %p134 = por %p132, %p133
    %s136 = sadd.s32 %s135, 1
    %p139 = scmp.eq.s32.totalorder %s17, 1
    %p140 = scmp.ne.s32.totalorder %s135, %s137
    %p141 = scmp.eq.s32.totalorder %s17, 0
    %p142 = por %p140, %p141
    %p143 = scmp.ne.s32.totalorder %s135, %s137
    %p144 = scmp.eq.s32.totalorder %s22, 1
    %p145 = por %p143, %p144
    %p146 = scmp.ne.s32.totalorder %s137, %s138
    %p147 = scmp.eq.s32.totalorder %s22, 0
    %p148 = por %p146, %p147
    %p149 = scmp.ne.s32.totalorder %s137, %s138
    %p150 = scmp.eq.s32.totalorder %s23, 1
    %p151 = por %p149, %p150
    %p153 = scmp.ne.s32.totalorder %s138, %s152
    %p154 = scmp.eq.s32.totalorder %s23, 0
    %p155 = por %p153, %p154
    %s157 = sadd.s32 %s156, 1
    %p160 = scmp.eq.s32.totalorder %s17, 1
    %p161 = scmp.ne.s32.totalorder %s156, %s158
    %p162 = scmp.eq.s32.totalorder %s17, 0
    %p163 = por %p161, %p162
    %p164 = scmp.ne.s32.totalorder %s156, %s158
    %p165 = scmp.eq.s32.totalorder %s22, 1
    %p166 = por %p164, %p165
    %p167 = scmp.ne.s32.totalorder %s158, %s159
    %p168 = scmp.eq.s32.totalorder %s22, 0
    %p169 = por %p167, %p168
    %p170 = scmp.ne.s32.totalorder %s158, %s159
    %p171 = scmp.eq.s32.totalorder %s23, 1
    %p172 = por %p170, %p171
    %p174 = scmp.ne.s32.totalorder %s159, %s173
    %p175 = scmp.eq.s32.totalorder %s23, 0
    %p176 = por %p174, %p175
    %s178 = sadd.s32 %s177, 1
    %p181 = scmp.eq.s32.totalorder %s17, 1
    %p182 = scmp.ne.s32.totalorder %s177, %s179
    %p183 = scmp.eq.s32.totalorder %s17, 0
    %p184 = por %p182, %p183
    %p185 = scmp.ne.s32.totalorder %s177, %s179
    %p186 = scmp.eq.s32.totalorder %s22, 1
    %p187 = por %p185, %p186
    %p188 = scmp.ne.s32.totalorder %s179, %s180
    %p189 = scmp.eq.s32.totalorder %s22, 0
    %p190 = por %p188, %p189
    %p191 = scmp.ne.s32.totalorder %s179, %s180
    %p192 = scmp.eq.s32.totalorder %s23, 1
    %p193 = por %p191, %p192
    %p195 = scmp.ne.s32.totalorder %s180, %s194
    %p196 = scmp.eq.s32.totalorder %s23, 0
    %p197 = por %p195, %p196
    %s199 = sadd.s32 %s198, 1
    %p202 = scmp.eq.s32.totalorder %s17, 1
    %p203 = scmp.ne.s32.totalorder %s198, %s200
    %p204 = scmp.eq.s32.totalorder %s17, 0
    %p205 = por %p203, %p204
    %p206 = scmp.ne.s32.totalorder %s198, %s200
    %p207 = scmp.eq.s32.totalorder %s22, 1
    %p208 = por %p206, %p207
    %p209 = scmp.ne.s32.totalorder %s200, %s201
    %p210 = scmp.eq.s32.totalorder %s22, 0
    %p211 = por %p209, %p210
    %p212 = scmp.ne.s32.totalorder %s200, %s201
    %p213 = scmp.eq.s32.totalorder %s23, 1
    %p214 = por %p212, %p213
    %p216 = scmp.ne.s32.totalorder %s201, %s215
    %p217 = scmp.eq.s32.totalorder %s23, 0
    %p218 = por %p216, %p217
    %s219 = ssub.s32 %s17, %s24
    %p220 = scmp.eq.s32.totalorder %s219, 0
    %s222 = sadd.s32 %s221, 1
    %s223 = scalar_select %p220, %s221, %s222
    %p226 = pneg %p220
    %p227 = scmp.eq.s32.totalorder %s17, 1
    %p228 = por %p226, %p227
    %p229 = scmp.ne.s32.totalorder %s221, %s224
    %p230 = scmp.eq.s32.totalorder %s17, 0
    %p231 = por %p229, %p230
    %p232 = scmp.ne.s32.totalorder %s221, %s224
    %p233 = scmp.eq.s32.totalorder %s22, 1
    %p234 = por %p232, %p233
    %p235 = scmp.ne.s32.totalorder %s224, %s225
    %p236 = scmp.eq.s32.totalorder %s22, 0
    %p237 = por %p235, %p236
    %p238 = scmp.ne.s32.totalorder %s224, %s225
    %p239 = scmp.eq.s32.totalorder %s23, 1
    %p240 = por %p238, %p239
    %p242 = scmp.ne.s32.totalorder %s225, %s241
    %p243 = scmp.eq.s32.totalorder %s23, 0
    %p244 = por %p242, %p243
    %p245 = scmp.le.s32.totalorder 1, %s17
    %p246 = scmp.lt.s32.totalorder %s17, 3
    %p247 = pnand %p245, %p246
    %p248 = pneg %p247
    // Predicated region
    $region9: #{net_forward.1} parent=5 // pred_check
      _
    $region10: #{net_forward.1} parent=5 // pred_check_branch
      %250 = sbr.rel (%p247) target = $region12
    $region11: #{net_forward.1} parent=5 // pred_region
      %s251 = ssub.s32 %s17, 1
      // Predicated region
      $region13: #{net_forward.1} parent=11 // pred_check
        %p252 = pneg %p64
      $region14: #{net_forward.1} parent=11 // pred_check_branch
        %254 = sbr.rel (%p252) target = $region16
      $region15: #{net_forward.1} parent=11 // pred_region
        _
      $region16: #{net_forward.1} parent=11 // pred_fallthru
        _
      // Predicated region
      $region17: #{net_forward.1} parent=11 // pred_check
        %p255 = pneg %p85
      $region18: #{net_forward.1} parent=11 // pred_check_branch
        %257 = sbr.rel (%p255) target = $region20
      $region19: #{net_forward.1} parent=11 // pred_region
        _
      $region20: #{net_forward.1} parent=11 // pred_fallthru
        _
      // Predicated region
      $region21: #{net_forward.1} parent=11 // pred_check
        %p258 = pneg %p106
      $region22: #{net_forward.1} parent=11 // pred_check_branch
        %260 = sbr.rel (%p258) target = $region24
      $region23: #{net_forward.1} parent=11 // pred_region
        _
      $region24: #{net_forward.1} parent=11 // pred_fallthru
        _
      // Predicated region
      $region25: #{net_forward.1} parent=11 // pred_check
        %p261 = pneg %p127
      $region26: #{net_forward.1} parent=11 // pred_check_branch
        %263 = sbr.rel (%p261) target = $region28
      $region27: #{net_forward.1} parent=11 // pred_region
        _
      $region28: #{net_forward.1} parent=11 // pred_fallthru
        _
      // Predicated region
      $region29: #{net_forward.1} parent=11 // pred_check
        %p264 = pneg %p148
      $region30: #{net_forward.1} parent=11 // pred_check_branch
        %266 = sbr.rel (%p264) target = $region32
      $region31: #{net_forward.1} parent=11 // pred_region
        _
      $region32: #{net_forward.1} parent=11 // pred_fallthru
        _
      // Predicated region
      $region33: #{net_forward.1} parent=11 // pred_check
        %p267 = pneg %p169
      $region34: #{net_forward.1} parent=11 // pred_check_branch
        %269 = sbr.rel (%p267) target = $region36
      $region35: #{net_forward.1} parent=11 // pred_region
        _
      $region36: #{net_forward.1} parent=11 // pred_fallthru
        _
      // Predicated region
      $region37: #{net_forward.1} parent=11 // pred_check
        %p270 = pneg %p190
      $region38: #{net_forward.1} parent=11 // pred_check_branch
        %272 = sbr.rel (%p270) target = $region40
      $region39: #{net_forward.1} parent=11 // pred_region
        _
      $region40: #{net_forward.1} parent=11 // pred_fallthru
        _
      // Predicated region
      $region41: #{net_forward.1} parent=11 // pred_check
        %p273 = pneg %p211
      $region42: #{net_forward.1} parent=11 // pred_check_branch
        %275 = sbr.rel (%p273) target = $region44
      $region43: #{net_forward.1} parent=11 // pred_region
        _
      $region44: #{net_forward.1} parent=11 // pred_fallthru
        _
    $region12: #{net_forward.1} parent=5 // pred_fallthru
      _
    %p276 = scmp.lt.s32.totalorder %s17, 2
    // Predicated region
    $region45: #{net_forward.1} parent=5 // pred_check
      %p277 = pneg %p276
    $region46: #{net_forward.1} parent=5 // pred_check_branch
      %279 = sbr.rel (%p277) target = $region48
    $region47: #{net_forward.1} parent=5 // pred_region
      // Predicated region
      $region49: #{net_forward.1} parent=47 // pred_check
        %p280 = pneg %p37
      $region50: #{net_forward.1} parent=47 // pred_check_branch
        %282 = sbr.rel (%p280) target = $region52
      $region51: #{net_forward.1} parent=47 // pred_region
        %p283 = scmp.lt.s32.totalorder %s17, 1
        %s284 = scalar_select %p283, %s17, 1
        %s285 = smul.addr %s284, 128
        %s286 = smul.addr %s285, 8
        %s287 = scalar_lea.vmem %s0, %s286
      $region52: #{net_forward.1} parent=47 // pred_fallthru
        _
    $region48: #{net_forward.1} parent=5 // pred_fallthru
      _
    %p288 = scmp.le.s32.totalorder 1, %s17
    %p289 = scmp.lt.s32.totalorder %s17, 3
    %p290 = pnand %p288, %p289
    %p291 = pneg %p290
    // Predicated region
    $region53: #{net_forward.1} parent=5 // pred_check
      _
    $region54: #{net_forward.1} parent=5 // pred_check_branch
      %293 = sbr.rel (%p290) target = $region56
    $region55: #{net_forward.1} parent=5 // pred_region
      %s294 = ssub.s32 %s17, 1
      %p295 = scmp.lt.s32.totalorder %s22, 1
      %s296 = scalar_select %p295, %s22, 1
      %s297 = smul.addr %s296, 128
      %s298 = smul.addr %s297, 8
      %s299 = scalar_lea.vmem %s0, %s298
      %p300 = pneg %p43
      %p301 = pneg %p40
      %p302 = pneg %p64
      %p303 = pneg %p61
      %p304 = pneg %p85
      %p305 = pneg %p82
      %p306 = pneg %p106
      %p307 = pneg %p103
      %p308 = pneg %p127
      %p309 = pneg %p124
      %p310 = pneg %p148
      %p311 = pneg %p145
      %p312 = pneg %p169
      %p313 = pneg %p166
      %p314 = pneg %p190
      %p315 = pneg %p187
      %p316 = pneg %p211
      %p317 = pneg %p208
      %p318 = pneg %p237
      %p319 = pneg %p234
      %p320 = scmp.lt.s32.totalorder %s22, 1
      %s321 = scalar_select %p320, %s22, 1
      %s322 = scalar_lea.vmem %s9, %s321
      %p323 = scmp.lt.s32.totalorder %s22, 1
      %s324 = scalar_select %p323, %s22, 1
      %s325 = smul.addr %s324, 128
      %s326 = smul.addr %s325, 8
      %s327 = scalar_lea.vmem %s0, %s326
      %p328 = scmp.lt.s32.totalorder %s22, 1
      %s329 = scalar_select %p328, %s22, 1
      %s330 = scalar_lea.vmem %s9, %s329
      %v332 = vld [vmem:[%s327] sm:$0xff]
      %v333 = vld [vmem:[%s327 + $0x8] sm:$0xff]
      %v334 = vld [vmem:[%s327 + $0x10] sm:$0xff]
      %v335 = vld [vmem:[%s327 + $0x18] sm:$0xff]
      %v336 = vld [vmem:[%s327 + $0x20] sm:$0xff]
      %v337 = vld [vmem:[%s327 + $0x28] sm:$0xff]
      %v338 = vld [vmem:[%s327 + $0x30] sm:$0xff]
      %v339 = vld [vmem:[%s327 + $0x38] sm:$0xff]
      %v340 = vld [vmem:[%s327 + $0x40] sm:$0xff]
      %v341 = vld [vmem:[%s327 + $0x48] sm:$0xff]
      %v342 = vld [vmem:[%s327 + $0x50] sm:$0xff]
      %v343 = vld [vmem:[%s327 + $0x58] sm:$0xff]
      %v344 = vld [vmem:[%s327 + $0x60] sm:$0xff]
      %v345 = vld [vmem:[%s327 + $0x68] sm:$0xff]
      %v346 = vld [vmem:[%s327 + $0x70] sm:$0xff]
      %v347 = vld [vmem:[%s327 + $0x78] sm:$0xff]
      %v348 = vld [vmem:[%s327 + $0x80] sm:$0xff]
      %v349 = vld [vmem:[%s327 + $0x88] sm:$0xff]
      %v350 = vld [vmem:[%s327 + $0x90] sm:$0xff]
      %v351 = vld [vmem:[%s327 + $0x98] sm:$0xff]
      %v352 = vld [vmem:[%s327 + $0xa0] sm:$0xff]
      %v353 = vld [vmem:[%s327 + $0xa8] sm:$0xff]
      %v354 = vld [vmem:[%s327 + $0xb0] sm:$0xff]
      %v355 = vld [vmem:[%s327 + $0xb8] sm:$0xff]
      %v356 = vld [vmem:[%s327 + $0xc0] sm:$0xff]
      %v357 = vld [vmem:[%s327 + $0xc8] sm:$0xff]
      %v358 = vld [vmem:[%s327 + $0xd0] sm:$0xff]
      %v359 = vld [vmem:[%s327 + $0xd8] sm:$0xff]
      %v360 = vld [vmem:[%s327 + $0xe0] sm:$0xff]
      %v361 = vld [vmem:[%s327 + $0xe8] sm:$0xff]
      %v362 = vld [vmem:[%s327 + $0xf0] sm:$0xff]
      %v363 = vld [vmem:[%s327 + $0xf8] sm:$0xff]
      %v364 = vld [vmem:[%s327 + $0x100] sm:$0xff]
      %v365 = vld [vmem:[%s327 + $0x108] sm:$0xff]
      %v366 = vld [vmem:[%s327 + $0x110] sm:$0xff]
      %v367 = vld [vmem:[%s327 + $0x118] sm:$0xff]
      %v368 = vld [vmem:[%s327 + $0x120] sm:$0xff]
      %v369 = vld [vmem:[%s327 + $0x128] sm:$0xff]
      %v370 = vld [vmem:[%s327 + $0x130] sm:$0xff]
      %v371 = vld [vmem:[%s327 + $0x138] sm:$0xff]
      %v372 = vld [vmem:[%s327 + $0x140] sm:$0xff]
      %v373 = vld [vmem:[%s327 + $0x148] sm:$0xff]
      %v374 = vld [vmem:[%s327 + $0x150] sm:$0xff]
      %v375 = vld [vmem:[%s327 + $0x158] sm:$0xff]
      %v376 = vld [vmem:[%s327 + $0x160] sm:$0xff]
      %v377 = vld [vmem:[%s327 + $0x168] sm:$0xff]
      %v378 = vld [vmem:[%s327 + $0x170] sm:$0xff]
      %v379 = vld [vmem:[%s327 + $0x178] sm:$0xff]
      %v380 = vld [vmem:[%s327 + $0x180] sm:$0xff]
      %v381 = vld [vmem:[%s327 + $0x188] sm:$0xff]
      %v382 = vld [vmem:[%s327 + $0x190] sm:$0xff]
      %v383 = vld [vmem:[%s327 + $0x198] sm:$0xff]
      %v384 = vld [vmem:[%s327 + $0x1a0] sm:$0xff]
      %v385 = vld [vmem:[%s327 + $0x1a8] sm:$0xff]
      %v386 = vld [vmem:[%s327 + $0x1b0] sm:$0xff]
      %v387 = vld [vmem:[%s327 + $0x1b8] sm:$0xff]
      %v388 = vld [vmem:[%s327 + $0x1c0] sm:$0xff]
      %v389 = vld [vmem:[%s327 + $0x1c8] sm:$0xff]
      %v390 = vld [vmem:[%s327 + $0x1d0] sm:$0xff]
      %v391 = vld [vmem:[%s327 + $0x1d8] sm:$0xff]
      %v392 = vld [vmem:[%s327 + $0x1e0] sm:$0xff]
      %v393 = vld [vmem:[%s327 + $0x1e8] sm:$0xff]
      %v394 = vld [vmem:[%s327 + $0x1f0] sm:$0xff]
      %v395 = vld [vmem:[%s327 + $0x1f8] sm:$0xff]
      %v396 = vld [vmem:[%s327 + $0x200] sm:$0xff]
      %v397 = vld [vmem:[%s327 + $0x208] sm:$0xff]
      %v398 = vld [vmem:[%s327 + $0x210] sm:$0xff]
      %v399 = vld [vmem:[%s327 + $0x218] sm:$0xff]
      %v400 = vld [vmem:[%s327 + $0x220] sm:$0xff]
      %v401 = vld [vmem:[%s327 + $0x228] sm:$0xff]
      %v402 = vld [vmem:[%s327 + $0x230] sm:$0xff]
      %v403 = vld [vmem:[%s327 + $0x238] sm:$0xff]
      %v404 = vld [vmem:[%s327 + $0x240] sm:$0xff]
      %v405 = vld [vmem:[%s327 + $0x248] sm:$0xff]
      %v406 = vld [vmem:[%s327 + $0x250] sm:$0xff]
      %v407 = vld [vmem:[%s327 + $0x258] sm:$0xff]
      %v408 = vld [vmem:[%s327 + $0x260] sm:$0xff]
      %v409 = vld [vmem:[%s327 + $0x268] sm:$0xff]
      %v410 = vld [vmem:[%s327 + $0x270] sm:$0xff]
      %v411 = vld [vmem:[%s327 + $0x278] sm:$0xff]
      %v412 = vld [vmem:[%s327 + $0x280] sm:$0xff]
      %v413 = vld [vmem:[%s327 + $0x288] sm:$0xff]
      %v414 = vld [vmem:[%s327 + $0x290] sm:$0xff]
      %v415 = vld [vmem:[%s327 + $0x298] sm:$0xff]
      %v416 = vld [vmem:[%s327 + $0x2a0] sm:$0xff]
      %v417 = vld [vmem:[%s327 + $0x2a8] sm:$0xff]
      %v418 = vld [vmem:[%s327 + $0x2b0] sm:$0xff]
      %v419 = vld [vmem:[%s327 + $0x2b8] sm:$0xff]
      %v420 = vld [vmem:[%s327 + $0x2c0] sm:$0xff]
      %v421 = vld [vmem:[%s327 + $0x2c8] sm:$0xff]
      %v422 = vld [vmem:[%s327 + $0x2d0] sm:$0xff]
      %v423 = vld [vmem:[%s327 + $0x2d8] sm:$0xff]
      %v424 = vld [vmem:[%s327 + $0x2e0] sm:$0xff]
      %v425 = vld [vmem:[%s327 + $0x2e8] sm:$0xff]
      %v426 = vld [vmem:[%s327 + $0x2f0] sm:$0xff]
      %v427 = vld [vmem:[%s327 + $0x2f8] sm:$0xff]
      %v428 = vld [vmem:[%s327 + $0x300] sm:$0xff]
      %v429 = vld [vmem:[%s327 + $0x308] sm:$0xff]
      %v430 = vld [vmem:[%s327 + $0x310] sm:$0xff]
      %v431 = vld [vmem:[%s327 + $0x318] sm:$0xff]
      %v432 = vld [vmem:[%s327 + $0x320] sm:$0xff]
      %v433 = vld [vmem:[%s327 + $0x328] sm:$0xff]
      %v434 = vld [vmem:[%s327 + $0x330] sm:$0xff]
      %v435 = vld [vmem:[%s327 + $0x338] sm:$0xff]
      %v436 = vld [vmem:[%s327 + $0x340] sm:$0xff]
      %v437 = vld [vmem:[%s327 + $0x348] sm:$0xff]
      %v438 = vld [vmem:[%s327 + $0x350] sm:$0xff]
      %v439 = vld [vmem:[%s327 + $0x358] sm:$0xff]
      %v440 = vld [vmem:[%s327 + $0x360] sm:$0xff]
      %v441 = vld [vmem:[%s327 + $0x368] sm:$0xff]
      %v442 = vld [vmem:[%s327 + $0x370] sm:$0xff]
      %v443 = vld [vmem:[%s327 + $0x378] sm:$0xff]
      %v444 = vld [vmem:[%s327 + $0x380] sm:$0xff]
      %v445 = vld [vmem:[%s327 + $0x388] sm:$0xff]
      %v446 = vld [vmem:[%s327 + $0x390] sm:$0xff]
      %v447 = vld [vmem:[%s327 + $0x398] sm:$0xff]
      %v448 = vld [vmem:[%s327 + $0x3a0] sm:$0xff]
      %v449 = vld [vmem:[%s327 + $0x3a8] sm:$0xff]
      %v450 = vld [vmem:[%s327 + $0x3b0] sm:$0xff]
      %v451 = vld [vmem:[%s327 + $0x3b8] sm:$0xff]
      %v452 = vld [vmem:[%s327 + $0x3c0] sm:$0xff]
      %v453 = vld [vmem:[%s327 + $0x3c8] sm:$0xff]
      %v454 = vld [vmem:[%s327 + $0x3d0] sm:$0xff]
      %v455 = vld [vmem:[%s327 + $0x3d8] sm:$0xff]
      %v456 = vld [vmem:[%s327 + $0x3e0] sm:$0xff]
      %v457 = vld [vmem:[%s327 + $0x3e8] sm:$0xff]
      %v458 = vld [vmem:[%s327 + $0x3f0] sm:$0xff]
      %v459 = vld [vmem:[%s327 + $0x3f8] sm:$0xff]
      %v460 = vpack.c.bf16 %v332, %v332
      %v461 = vpack.c.bf16 %v333, %v333
      %v462 = vpack.c.bf16 %v334, %v334
      %v463 = vpack.c.bf16 %v335, %v335
      %v464 = vpack.c.bf16 %v336, %v336
      %v465 = vpack.c.bf16 %v337, %v337
      %v466 = vpack.c.bf16 %v338, %v338
      %v467 = vpack.c.bf16 %v339, %v339
      %v468 = vpack.c.bf16 %v340, %v340
      %v469 = vpack.c.bf16 %v341, %v341
      %v470 = vpack.c.bf16 %v342, %v342
      %v471 = vpack.c.bf16 %v343, %v343
      %v472 = vpack.c.bf16 %v344, %v344
      %v473 = vpack.c.bf16 %v345, %v345
      %v474 = vpack.c.bf16 %v346, %v346
      %v475 = vpack.c.bf16 %v347, %v347
      %v476 = vpack.c.bf16 %v348, %v348
      %v477 = vpack.c.bf16 %v349, %v349
      %v478 = vpack.c.bf16 %v350, %v350
      %v479 = vpack.c.bf16 %v351, %v351
      %v480 = vpack.c.bf16 %v352, %v352
      %v481 = vpack.c.bf16 %v353, %v353
      %v482 = vpack.c.bf16 %v354, %v354
      %v483 = vpack.c.bf16 %v355, %v355
      %v484 = vpack.c.bf16 %v356, %v356
      %v485 = vpack.c.bf16 %v357, %v357
      %v486 = vpack.c.bf16 %v358, %v358
      %v487 = vpack.c.bf16 %v359, %v359
      %v488 = vpack.c.bf16 %v360, %v360
      %v489 = vpack.c.bf16 %v361, %v361
      %v490 = vpack.c.bf16 %v362, %v362
      %v491 = vpack.c.bf16 %v363, %v363
      %v492 = vpack.c.bf16 %v364, %v364
      %v493 = vpack.c.bf16 %v365, %v365
      %v494 = vpack.c.bf16 %v366, %v366
      %v495 = vpack.c.bf16 %v367, %v367
      %v496 = vpack.c.bf16 %v368, %v368
      %v497 = vpack.c.bf16 %v369, %v369
      %v498 = vpack.c.bf16 %v370, %v370
      %v499 = vpack.c.bf16 %v371, %v371
      %v500 = vpack.c.bf16 %v372, %v372
      %v501 = vpack.c.bf16 %v373, %v373
      %v502 = vpack.c.bf16 %v374, %v374
      %v503 = vpack.c.bf16 %v375, %v375
      %v504 = vpack.c.bf16 %v376, %v376
      %v505 = vpack.c.bf16 %v377, %v377
      %v506 = vpack.c.bf16 %v378, %v378
      %v507 = vpack.c.bf16 %v379, %v379
      %v508 = vpack.c.bf16 %v380, %v380
      %v509 = vpack.c.bf16 %v381, %v381
      %v510 = vpack.c.bf16 %v382, %v382
      %v511 = vpack.c.bf16 %v383, %v383
      %v512 = vpack.c.bf16 %v384, %v384
      %v513 = vpack.c.bf16 %v385, %v385
      %v514 = vpack.c.bf16 %v386, %v386
      %v515 = vpack.c.bf16 %v387, %v387
      %v516 = vpack.c.bf16 %v388, %v388
      %v517 = vpack.c.bf16 %v389, %v389
      %v518 = vpack.c.bf16 %v390, %v390
      %v519 = vpack.c.bf16 %v391, %v391
      %v520 = vpack.c.bf16 %v392, %v392
      %v521 = vpack.c.bf16 %v393, %v393
      %v522 = vpack.c.bf16 %v394, %v394
      %v523 = vpack.c.bf16 %v395, %v395
      %v524 = vpack.c.bf16 %v396, %v396
      %v525 = vpack.c.bf16 %v397, %v397
      %v526 = vpack.c.bf16 %v398, %v398
      %v527 = vpack.c.bf16 %v399, %v399
      %v528 = vpack.c.bf16 %v400, %v400
      %v529 = vpack.c.bf16 %v401, %v401
      %v530 = vpack.c.bf16 %v402, %v402
      %v531 = vpack.c.bf16 %v403, %v403
      %v532 = vpack.c.bf16 %v404, %v404
      %v533 = vpack.c.bf16 %v405, %v405
      %v534 = vpack.c.bf16 %v406, %v406
      %v535 = vpack.c.bf16 %v407, %v407
      %v536 = vpack.c.bf16 %v408, %v408
      %v537 = vpack.c.bf16 %v409, %v409
      %v538 = vpack.c.bf16 %v410, %v410
      %v539 = vpack.c.bf16 %v411, %v411
      %v540 = vpack.c.bf16 %v412, %v412
      %v541 = vpack.c.bf16 %v413, %v413
      %v542 = vpack.c.bf16 %v414, %v414
      %v543 = vpack.c.bf16 %v415, %v415
      %v544 = vpack.c.bf16 %v416, %v416
      %v545 = vpack.c.bf16 %v417, %v417
      %v546 = vpack.c.bf16 %v418, %v418
      %v547 = vpack.c.bf16 %v419, %v419
      %v548 = vpack.c.bf16 %v420, %v420
      %v549 = vpack.c.bf16 %v421, %v421
      %v550 = vpack.c.bf16 %v422, %v422
      %v551 = vpack.c.bf16 %v423, %v423
      %v552 = vpack.c.bf16 %v424, %v424
      %v553 = vpack.c.bf16 %v425, %v425
      %v554 = vpack.c.bf16 %v426, %v426
      %v555 = vpack.c.bf16 %v427, %v427
      %v556 = vpack.c.bf16 %v428, %v428
      %v557 = vpack.c.bf16 %v429, %v429
      %v558 = vpack.c.bf16 %v430, %v430
      %v559 = vpack.c.bf16 %v431, %v431
      %v560 = vpack.c.bf16 %v432, %v432
      %v561 = vpack.c.bf16 %v433, %v433
      %v562 = vpack.c.bf16 %v434, %v434
      %v563 = vpack.c.bf16 %v435, %v435
      %v564 = vpack.c.bf16 %v436, %v436
      %v565 = vpack.c.bf16 %v437, %v437
      %v566 = vpack.c.bf16 %v438, %v438
      %v567 = vpack.c.bf16 %v439, %v439
      %v568 = vpack.c.bf16 %v440, %v440
      %v569 = vpack.c.bf16 %v441, %v441
      %v570 = vpack.c.bf16 %v442, %v442
      %v571 = vpack.c.bf16 %v443, %v443
      %v572 = vpack.c.bf16 %v444, %v444
      %v573 = vpack.c.bf16 %v445, %v445
      %v574 = vpack.c.bf16 %v446, %v446
      %v575 = vpack.c.bf16 %v447, %v447
      %v576 = vpack.c.bf16 %v448, %v448
      %v577 = vpack.c.bf16 %v449, %v449
      %v578 = vpack.c.bf16 %v450, %v450
      %v579 = vpack.c.bf16 %v451, %v451
      %v580 = vpack.c.bf16 %v452, %v452
      %v581 = vpack.c.bf16 %v453, %v453
      %v582 = vpack.c.bf16 %v454, %v454
      %v583 = vpack.c.bf16 %v455, %v455
      %v584 = vpack.c.bf16 %v456, %v456
      %v585 = vpack.c.bf16 %v457, %v457
      %v586 = vpack.c.bf16 %v458, %v458
      %v587 = vpack.c.bf16 %v459, %v459
      %v708 = vunpack.c.l.b16 %v460
      %v709 = vunpack.c.l.b16 %v461
      %v710 = vunpack.c.l.b16 %v462
      %v711 = vunpack.c.l.b16 %v463
      %v712 = vunpack.c.l.b16 %v464
      %v713 = vunpack.c.l.b16 %v465
      %v714 = vunpack.c.l.b16 %v466
      %v715 = vunpack.c.l.b16 %v467
      %v716 = vunpack.c.l.b16 %v468
      %v717 = vunpack.c.l.b16 %v469
      %v718 = vunpack.c.l.b16 %v470
      %v719 = vunpack.c.l.b16 %v471
      %v720 = vunpack.c.l.b16 %v472
      %v721 = vunpack.c.l.b16 %v473
      %v722 = vunpack.c.l.b16 %v474
      %v723 = vunpack.c.l.b16 %v475
      %v724 = vunpack.c.l.b16 %v476
      %v725 = vunpack.c.l.b16 %v477
      %v726 = vunpack.c.l.b16 %v478
      %v727 = vunpack.c.l.b16 %v479
      %v728 = vunpack.c.l.b16 %v480
      %v729 = vunpack.c.l.b16 %v481
      %v730 = vunpack.c.l.b16 %v482
      %v731 = vunpack.c.l.b16 %v483
      %v732 = vunpack.c.l.b16 %v484
      %v733 = vunpack.c.l.b16 %v485
      %v734 = vunpack.c.l.b16 %v486
      %v735 = vunpack.c.l.b16 %v487
      %v736 = vunpack.c.l.b16 %v488
      %v737 = vunpack.c.l.b16 %v489
      %v738 = vunpack.c.l.b16 %v490
      %v739 = vunpack.c.l.b16 %v491
      %v740 = vunpack.c.l.b16 %v492
      %v741 = vunpack.c.l.b16 %v493
      %v742 = vunpack.c.l.b16 %v494
      %v743 = vunpack.c.l.b16 %v495
      %v744 = vunpack.c.l.b16 %v496
      %v745 = vunpack.c.l.b16 %v497
      %v746 = vunpack.c.l.b16 %v498
      %v747 = vunpack.c.l.b16 %v499
      %v748 = vunpack.c.l.b16 %v500
      %v749 = vunpack.c.l.b16 %v501
      %v750 = vunpack.c.l.b16 %v502
      %v751 = vunpack.c.l.b16 %v503
      %v752 = vunpack.c.l.b16 %v504
      %v753 = vunpack.c.l.b16 %v505
      %v754 = vunpack.c.l.b16 %v506
      %v755 = vunpack.c.l.b16 %v507
      %v756 = vunpack.c.l.b16 %v508
      %v757 = vunpack.c.l.b16 %v509
      %v758 = vunpack.c.l.b16 %v510
      %v759 = vunpack.c.l.b16 %v511
      %v760 = vunpack.c.l.b16 %v512
      %v761 = vunpack.c.l.b16 %v513
      %v762 = vunpack.c.l.b16 %v514
      %v763 = vunpack.c.l.b16 %v515
      %v764 = vunpack.c.l.b16 %v516
      %v765 = vunpack.c.l.b16 %v517
      %v766 = vunpack.c.l.b16 %v518
      %v767 = vunpack.c.l.b16 %v519
      %v768 = vunpack.c.l.b16 %v520
      %v769 = vunpack.c.l.b16 %v521
      %v770 = vunpack.c.l.b16 %v522
      %v771 = vunpack.c.l.b16 %v523
      %v772 = vunpack.c.l.b16 %v524
      %v773 = vunpack.c.l.b16 %v525
      %v774 = vunpack.c.l.b16 %v526
      %v775 = vunpack.c.l.b16 %v527
      %v776 = vunpack.c.l.b16 %v528
      %v777 = vunpack.c.l.b16 %v529
      %v778 = vunpack.c.l.b16 %v530
      %v779 = vunpack.c.l.b16 %v531
      %v780 = vunpack.c.l.b16 %v532
      %v781 = vunpack.c.l.b16 %v533
      %v782 = vunpack.c.l.b16 %v534
      %v783 = vunpack.c.l.b16 %v535
      %v784 = vunpack.c.l.b16 %v536
      %v785 = vunpack.c.l.b16 %v537
      %v786 = vunpack.c.l.b16 %v538
      %v787 = vunpack.c.l.b16 %v539
      %v788 = vunpack.c.l.b16 %v540
      %v789 = vunpack.c.l.b16 %v541
      %v790 = vunpack.c.l.b16 %v542
      %v791 = vunpack.c.l.b16 %v543
      %v792 = vunpack.c.l.b16 %v544
      %v793 = vunpack.c.l.b16 %v545
      %v794 = vunpack.c.l.b16 %v546
      %v795 = vunpack.c.l.b16 %v547
      %v796 = vunpack.c.l.b16 %v548
      %v797 = vunpack.c.l.b16 %v549
      %v798 = vunpack.c.l.b16 %v550
      %v799 = vunpack.c.l.b16 %v551
      %v800 = vunpack.c.l.b16 %v552
      %v801 = vunpack.c.l.b16 %v553
      %v802 = vunpack.c.l.b16 %v554
      %v803 = vunpack.c.l.b16 %v555
      %v804 = vunpack.c.l.b16 %v556
      %v805 = vunpack.c.l.b16 %v557
      %v806 = vunpack.c.l.b16 %v558
      %v807 = vunpack.c.l.b16 %v559
      %v808 = vunpack.c.l.b16 %v560
      %v809 = vunpack.c.l.b16 %v561
      %v810 = vunpack.c.l.b16 %v562
      %v811 = vunpack.c.l.b16 %v563
      %v812 = vunpack.c.l.b16 %v564
      %v813 = vunpack.c.l.b16 %v565
      %v814 = vunpack.c.l.b16 %v566
      %v815 = vunpack.c.l.b16 %v567
      %v816 = vunpack.c.l.b16 %v568
      %v817 = vunpack.c.l.b16 %v569
      %v818 = vunpack.c.l.b16 %v570
      %v819 = vunpack.c.l.b16 %v571
      %v820 = vunpack.c.l.b16 %v572
      %v821 = vunpack.c.l.b16 %v573
      %v822 = vunpack.c.l.b16 %v574
      %v823 = vunpack.c.l.b16 %v575
      %v824 = vunpack.c.l.b16 %v576
      %v825 = vunpack.c.l.b16 %v577
      %v826 = vunpack.c.l.b16 %v578
      %v827 = vunpack.c.l.b16 %v579
      %v828 = vpack.c.b16 %v709, %v708
      %v829 = vpack.c.b16 %v711, %v710
      %v830 = vpack.c.b16 %v713, %v712
      %v831 = vpack.c.b16 %v715, %v714
      %v832 = vpack.c.b16 %v717, %v716
      %v833 = vpack.c.b16 %v719, %v718
      %v834 = vpack.c.b16 %v721, %v720
      %v835 = vpack.c.b16 %v723, %v722
      %v836 = vpack.c.b16 %v725, %v724
      %v837 = vpack.c.b16 %v727, %v726
      %v838 = vpack.c.b16 %v729, %v728
      %v839 = vpack.c.b16 %v731, %v730
      %v840 = vpack.c.b16 %v733, %v732
      %v841 = vpack.c.b16 %v735, %v734
      %v842 = vpack.c.b16 %v737, %v736
      %v843 = vpack.c.b16 %v739, %v738
      %v844 = vpack.c.b16 %v741, %v740
      %v845 = vpack.c.b16 %v743, %v742
      %v846 = vpack.c.b16 %v745, %v744
      %v847 = vpack.c.b16 %v747, %v746
      %v848 = vpack.c.b16 %v749, %v748
      %v849 = vpack.c.b16 %v751, %v750
      %v850 = vpack.c.b16 %v753, %v752
      %v851 = vpack.c.b16 %v755, %v754
      %v852 = vpack.c.b16 %v757, %v756
      %v853 = vpack.c.b16 %v759, %v758
      %v854 = vpack.c.b16 %v761, %v760
      %v855 = vpack.c.b16 %v763, %v762
      %v856 = vpack.c.b16 %v765, %v764
      %v857 = vpack.c.b16 %v767, %v766
      %v858 = vpack.c.b16 %v769, %v768
      %v859 = vpack.c.b16 %v771, %v770
      %v860 = vpack.c.b16 %v773, %v772
      %v861 = vpack.c.b16 %v775, %v774
      %v862 = vpack.c.b16 %v777, %v776
      %v863 = vpack.c.b16 %v779, %v778
      %v864 = vpack.c.b16 %v781, %v780
      %v865 = vpack.c.b16 %v783, %v782
      %v866 = vpack.c.b16 %v785, %v784
      %v867 = vpack.c.b16 %v787, %v786
      %v868 = vpack.c.b16 %v789, %v788
      %v869 = vpack.c.b16 %v791, %v790
      %v870 = vpack.c.b16 %v793, %v792
      %v871 = vpack.c.b16 %v795, %v794
      %v872 = vpack.c.b16 %v797, %v796
      %v873 = vpack.c.b16 %v799, %v798
      %v874 = vpack.c.b16 %v801, %v800
      %v875 = vpack.c.b16 %v803, %v802
      %v876 = vpack.c.b16 %v805, %v804
      %v877 = vpack.c.b16 %v807, %v806
      %v878 = vpack.c.b16 %v809, %v808
      %v879 = vpack.c.b16 %v811, %v810
      %v880 = vpack.c.b16 %v813, %v812
      %v881 = vpack.c.b16 %v815, %v814
      %v882 = vpack.c.b16 %v817, %v816
      %v883 = vpack.c.b16 %v819, %v818
      %v884 = vpack.c.b16 %v821, %v820
      %v885 = vpack.c.b16 %v823, %v822
      %v886 = vpack.c.b16 %v825, %v824
      %v887 = vpack.c.b16 %v827, %v826
      %vm888 = vsmask.f32 7424
      %v890 = vshrl.u32 %v828, 16
      %v892 = vshll.u32 %v828, 16
      %v894 = vrot.slane %v892, 1
      %v895 = vor.u32 %v890, %v894
      %v897 = vshll.u32 %v829, 16
      %v899 = vrot.slane %v897, 1
      %v900 = vsel %vm888, %v895, %v899
      %v901 = vshrl.u32 %v829, 16
      %v903 = vor.u32 %v901, %v899
      %v905 = vshrl.u32 %v830, 16
      %v907 = vshll.u32 %v830, 16
      %v909 = vrot.slane %v907, 1
      %v910 = vor.u32 %v905, %v909
      %v912 = vshll.u32 %v831, 16
      %v914 = vrot.slane %v912, 1
      %v915 = vsel %vm888, %v910, %v914
      %v916 = vshrl.u32 %v831, 16
      %v918 = vor.u32 %v916, %v914
      %v920 = vshrl.u32 %v832, 16
      %v922 = vshll.u32 %v832, 16
      %v924 = vrot.slane %v922, 1
      %v925 = vor.u32 %v920, %v924
      %v927 = vshll.u32 %v833, 16
      %v929 = vrot.slane %v927, 1
      %v930 = vsel %vm888, %v925, %v929
      %v931 = vshrl.u32 %v833, 16
      %v933 = vor.u32 %v931, %v929
      %v935 = vshrl.u32 %v834, 16
      %v937 = vshll.u32 %v834, 16
      %v939 = vrot.slane %v937, 1
      %v940 = vor.u32 %v935, %v939
      %v942 = vshll.u32 %v835, 16
      %v944 = vrot.slane %v942, 1
      %v945 = vsel %vm888, %v940, %v944
      %v946 = vshrl.u32 %v835, 16
      %v948 = vor.u32 %v946, %v944
      %v950 = vshrl.u32 %v836, 16
      %v952 = vshll.u32 %v836, 16
      %v954 = vrot.slane %v952, 1
      %v955 = vor.u32 %v950, %v954
      %v957 = vshll.u32 %v837, 16
      %v959 = vrot.slane %v957, 1
      %v960 = vsel %vm888, %v955, %v959
      %v961 = vshrl.u32 %v837, 16
      %v963 = vor.u32 %v961, %v959
      %v965 = vshrl.u32 %v838, 16
      %v967 = vshll.u32 %v838, 16
      %v969 = vrot.slane %v967, 1
      %v970 = vor.u32 %v965, %v969
      %v972 = vshll.u32 %v839, 16
      %v974 = vrot.slane %v972, 1
      %v975 = vsel %vm888, %v970, %v974
      %v976 = vshrl.u32 %v839, 16
      %v978 = vor.u32 %v976, %v974
      %v980 = vshrl.u32 %v840, 16
      %v982 = vshll.u32 %v840, 16
      %v984 = vrot.slane %v982, 1
      %v985 = vor.u32 %v980, %v984
      %v987 = vshll.u32 %v841, 16
      %v989 = vrot.slane %v987, 1
      %v990 = vsel %vm888, %v985, %v989
      %v991 = vshrl.u32 %v841, 16
      %v993 = vor.u32 %v991, %v989
      %v995 = vshrl.u32 %v842, 16
      %v997 = vshll.u32 %v842, 16
      %v999 = vrot.slane %v997, 1
      %v1000 = vor.u32 %v995, %v999
      %v1002 = vshll.u32 %v843, 16
      %v1004 = vrot.slane %v1002, 1
      %v1005 = vsel %vm888, %v1000, %v1004
      %v1006 = vshrl.u32 %v843, 16
      %v1008 = vor.u32 %v1006, %v1004
      %v1010 = vshrl.u32 %v844, 16
      %v1012 = vshll.u32 %v844, 16
      %v1014 = vrot.slane %v1012, 1
      %v1015 = vor.u32 %v1010, %v1014
      %v1017 = vshll.u32 %v845, 16
      %v1019 = vrot.slane %v1017, 1
      %v1020 = vsel %vm888, %v1015, %v1019
      %v1021 = vshrl.u32 %v845, 16
      %v1023 = vor.u32 %v1021, %v1019
      %v1025 = vshrl.u32 %v846, 16
      %v1027 = vshll.u32 %v846, 16
      %v1029 = vrot.slane %v1027, 1
      %v1030 = vor.u32 %v1025, %v1029
      %v1032 = vshll.u32 %v847, 16
      %v1034 = vrot.slane %v1032, 1
      %v1035 = vsel %vm888, %v1030, %v1034
      %v1036 = vshrl.u32 %v847, 16
      %v1038 = vor.u32 %v1036, %v1034
      %v1040 = vshrl.u32 %v848, 16
      %v1042 = vshll.u32 %v848, 16
      %v1044 = vrot.slane %v1042, 1
      %v1045 = vor.u32 %v1040, %v1044
      %v1047 = vshll.u32 %v849, 16
      %v1049 = vrot.slane %v1047, 1
      %v1050 = vsel %vm888, %v1045, %v1049
      %v1051 = vshrl.u32 %v849, 16
      %v1053 = vor.u32 %v1051, %v1049
      %v1055 = vshrl.u32 %v850, 16
      %v1057 = vshll.u32 %v850, 16
      %v1059 = vrot.slane %v1057, 1
      %v1060 = vor.u32 %v1055, %v1059
      %v1062 = vshll.u32 %v851, 16
      %v1064 = vrot.slane %v1062, 1
      %v1065 = vsel %vm888, %v1060, %v1064
      %v1066 = vshrl.u32 %v851, 16
      %v1068 = vor.u32 %v1066, %v1064
      %v1070 = vshrl.u32 %v852, 16
      %v1072 = vshll.u32 %v852, 16
      %v1074 = vrot.slane %v1072, 1
      %v1075 = vor.u32 %v1070, %v1074
      %v1077 = vshll.u32 %v853, 16
      %v1079 = vrot.slane %v1077, 1
      %v1080 = vsel %vm888, %v1075, %v1079
      %v1081 = vshrl.u32 %v853, 16
      %v1083 = vor.u32 %v1081, %v1079
      %v1085 = vshrl.u32 %v854, 16
      %v1087 = vshll.u32 %v854, 16
      %v1089 = vrot.slane %v1087, 1
      %v1090 = vor.u32 %v1085, %v1089
      %v1092 = vshll.u32 %v855, 16
      %v1094 = vrot.slane %v1092, 1
      %v1095 = vsel %vm888, %v1090, %v1094
      %v1096 = vshrl.u32 %v855, 16
      %v1098 = vor.u32 %v1096, %v1094
      %v1100 = vshrl.u32 %v856, 16
      %v1102 = vshll.u32 %v856, 16
      %v1104 = vrot.slane %v1102, 1
      %v1105 = vor.u32 %v1100, %v1104
      %v1107 = vshll.u32 %v857, 16
      %v1109 = vrot.slane %v1107, 1
      %v1110 = vsel %vm888, %v1105, %v1109
      %v1111 = vshrl.u32 %v857, 16
      %v1113 = vor.u32 %v1111, %v1109
      %v1115 = vshrl.u32 %v858, 16
      %v1117 = vshll.u32 %v858, 16
      %v1119 = vrot.slane %v1117, 1
      %v1120 = vor.u32 %v1115, %v1119
      %v1122 = vshll.u32 %v859, 16
      %v1124 = vrot.slane %v1122, 1
      %v1125 = vsel %vm888, %v1120, %v1124
      %v1126 = vshrl.u32 %v859, 16
      %v1128 = vor.u32 %v1126, %v1124
      %v1130 = vshrl.u32 %v860, 16
      %v1132 = vshll.u32 %v860, 16
      %v1134 = vrot.slane %v1132, 1
      %v1135 = vor.u32 %v1130, %v1134
      %v1137 = vshll.u32 %v861, 16
      %v1139 = vrot.slane %v1137, 1
      %v1140 = vsel %vm888, %v1135, %v1139
      %v1141 = vshrl.u32 %v861, 16
      %v1143 = vor.u32 %v1141, %v1139
      %v1145 = vshrl.u32 %v862, 16
      %v1147 = vshll.u32 %v862, 16
      %v1149 = vrot.slane %v1147, 1
      %v1150 = vor.u32 %v1145, %v1149
      %v1152 = vshll.u32 %v863, 16
      %v1154 = vrot.slane %v1152, 1
      %v1155 = vsel %vm888, %v1150, %v1154
      %v1156 = vshrl.u32 %v863, 16
      %v1158 = vor.u32 %v1156, %v1154
      %v1160 = vshrl.u32 %v864, 16
      %v1162 = vshll.u32 %v864, 16
      %v1164 = vrot.slane %v1162, 1
      %v1165 = vor.u32 %v1160, %v1164
      %v1167 = vshll.u32 %v865, 16
      %v1169 = vrot.slane %v1167, 1
      %v1170 = vsel %vm888, %v1165, %v1169
      %v1171 = vshrl.u32 %v865, 16
      %v1173 = vor.u32 %v1171, %v1169
      %v1175 = vshrl.u32 %v866, 16
      %v1177 = vshll.u32 %v866, 16
      %v1179 = vrot.slane %v1177, 1
      %v1180 = vor.u32 %v1175, %v1179
      %v1182 = vshll.u32 %v867, 16
      %v1184 = vrot.slane %v1182, 1
      %v1185 = vsel %vm888, %v1180, %v1184
      %v1186 = vshrl.u32 %v867, 16
      %v1188 = vor.u32 %v1186, %v1184
      %v1190 = vshrl.u32 %v868, 16
      %v1192 = vshll.u32 %v868, 16
      %v1194 = vrot.slane %v1192, 1
      %v1195 = vor.u32 %v1190, %v1194
      %v1197 = vshll.u32 %v869, 16
      %v1199 = vrot.slane %v1197, 1
      %v1200 = vsel %vm888, %v1195, %v1199
      %v1201 = vshrl.u32 %v869, 16
      %v1203 = vor.u32 %v1201, %v1199
      %v1205 = vshrl.u32 %v870, 16
      %v1207 = vshll.u32 %v870, 16
      %v1209 = vrot.slane %v1207, 1
      %v1210 = vor.u32 %v1205, %v1209
      %v1212 = vshll.u32 %v871, 16
      %v1214 = vrot.slane %v1212, 1
      %v1215 = vsel %vm888, %v1210, %v1214
      %v1216 = vshrl.u32 %v871, 16
      %v1218 = vor.u32 %v1216, %v1214
      %v1220 = vshrl.u32 %v872, 16
      %v1222 = vshll.u32 %v872, 16
      %v1224 = vrot.slane %v1222, 1
      %v1225 = vor.u32 %v1220, %v1224
      %v1227 = vshll.u32 %v873, 16
      %v1229 = vrot.slane %v1227, 1
      %v1230 = vsel %vm888, %v1225, %v1229
      %v1231 = vshrl.u32 %v873, 16
      %v1233 = vor.u32 %v1231, %v1229
      %v1235 = vshrl.u32 %v874, 16
      %v1237 = vshll.u32 %v874, 16
      %v1239 = vrot.slane %v1237, 1
      %v1240 = vor.u32 %v1235, %v1239
      %v1242 = vshll.u32 %v875, 16
      %v1244 = vrot.slane %v1242, 1
      %v1245 = vsel %vm888, %v1240, %v1244
      %v1246 = vshrl.u32 %v875, 16
      %v1248 = vor.u32 %v1246, %v1244
      %v1250 = vshrl.u32 %v876, 16
      %v1252 = vshll.u32 %v876, 16
      %v1254 = vrot.slane %v1252, 1
      %v1255 = vor.u32 %v1250, %v1254
      %v1257 = vshll.u32 %v877, 16
      %v1259 = vrot.slane %v1257, 1
      %v1260 = vsel %vm888, %v1255, %v1259
      %v1261 = vshrl.u32 %v877, 16
      %v1263 = vor.u32 %v1261, %v1259
      %v1265 = vshrl.u32 %v878, 16
      %v1267 = vshll.u32 %v878, 16
      %v1269 = vrot.slane %v1267, 1
      %v1270 = vor.u32 %v1265, %v1269
      %v1272 = vshll.u32 %v879, 16
      %v1274 = vrot.slane %v1272, 1
      %v1275 = vsel %vm888, %v1270, %v1274
      %v1276 = vshrl.u32 %v879, 16
      %v1278 = vor.u32 %v1276, %v1274
      %v1280 = vshrl.u32 %v880, 16
      %v1282 = vshll.u32 %v880, 16
      %v1284 = vrot.slane %v1282, 1
      %v1285 = vor.u32 %v1280, %v1284
      %v1287 = vshll.u32 %v881, 16
      %v1289 = vrot.slane %v1287, 1
      %v1290 = vsel %vm888, %v1285, %v1289
      %v1291 = vshrl.u32 %v881, 16
      %v1293 = vor.u32 %v1291, %v1289
      %v1295 = vshrl.u32 %v882, 16
      %v1297 = vshll.u32 %v882, 16
      %v1299 = vrot.slane %v1297, 1
      %v1300 = vor.u32 %v1295, %v1299
      %v1302 = vshll.u32 %v883, 16
      %v1304 = vrot.slane %v1302, 1
      %v1305 = vsel %vm888, %v1300, %v1304
      %v1306 = vshrl.u32 %v883, 16
      %v1308 = vor.u32 %v1306, %v1304
      %v1310 = vshrl.u32 %v884, 16
      %v1312 = vshll.u32 %v884, 16
      %v1314 = vrot.slane %v1312, 1
      %v1315 = vor.u32 %v1310, %v1314
      %v1317 = vshll.u32 %v885, 16
      %v1319 = vrot.slane %v1317, 1
      %v1320 = vsel %vm888, %v1315, %v1319
      %v1321 = vshrl.u32 %v885, 16
      %v1323 = vor.u32 %v1321, %v1319
      %v1325 = vshrl.u32 %v886, 16
      %v1327 = vshll.u32 %v886, 16
      %v1329 = vrot.slane %v1327, 1
      %v1330 = vor.u32 %v1325, %v1329
      %v1332 = vshll.u32 %v887, 16
      %v1334 = vrot.slane %v1332, 1
      %v1335 = vsel %vm888, %v1330, %v1334
      %v1336 = vshrl.u32 %v887, 16
      %v1338 = vor.u32 %v1336, %v1334
      %1339 = vrot.lane.b32.xlu0 %v900, 3
      %v1340 = vpop.permute.xlu0 %1339
      %1341 = vrot.lane.b32.xlu0 %v903, 3
      %v1342 = vpop.permute.xlu0 %1341
      %1343 = vrot.lane.b32.xlu0 %v915, 3
      %v1344 = vpop.permute.xlu0 %1343
      %1345 = vrot.lane.b32.xlu0 %v918, 3
      %v1346 = vpop.permute.xlu0 %1345
      %1347 = vrot.lane.b32.xlu0 %v930, 3
      %v1348 = vpop.permute.xlu0 %1347
      %1349 = vrot.lane.b32.xlu0 %v933, 3
      %v1350 = vpop.permute.xlu0 %1349
      %1351 = vrot.lane.b32.xlu0 %v945, 3
      %v1352 = vpop.permute.xlu0 %1351
      %1353 = vrot.lane.b32.xlu0 %v948, 3
      %v1354 = vpop.permute.xlu0 %1353
      %1355 = vrot.lane.b32.xlu0 %v960, 3
      %v1356 = vpop.permute.xlu0 %1355
      %1357 = vrot.lane.b32.xlu0 %v963, 3
      %v1358 = vpop.permute.xlu0 %1357
      %1359 = vrot.lane.b32.xlu0 %v975, 3
      %v1360 = vpop.permute.xlu0 %1359
      %1361 = vrot.lane.b32.xlu0 %v978, 3
      %v1362 = vpop.permute.xlu0 %1361
      %1363 = vrot.lane.b32.xlu0 %v990, 3
      %v1364 = vpop.permute.xlu0 %1363
      %1365 = vrot.lane.b32.xlu0 %v993, 3
      %v1366 = vpop.permute.xlu0 %1365
      %1367 = vrot.lane.b32.xlu0 %v1005, 3
      %v1368 = vpop.permute.xlu0 %1367
      %1369 = vrot.lane.b32.xlu0 %v1008, 3
      %v1370 = vpop.permute.xlu0 %1369
      %1371 = vrot.lane.b32.xlu0 %v1020, 3
      %v1372 = vpop.permute.xlu0 %1371
      %1373 = vrot.lane.b32.xlu0 %v1023, 3
      %v1374 = vpop.permute.xlu0 %1373
      %1375 = vrot.lane.b32.xlu0 %v1035, 3
      %v1376 = vpop.permute.xlu0 %1375
      %1377 = vrot.lane.b32.xlu0 %v1038, 3
      %v1378 = vpop.permute.xlu0 %1377
      %1379 = vrot.lane.b32.xlu0 %v1050, 3
      %v1380 = vpop.permute.xlu0 %1379
      %1381 = vrot.lane.b32.xlu0 %v1053, 3
      %v1382 = vpop.permute.xlu0 %1381
      %1383 = vrot.lane.b32.xlu0 %v1065, 3
      %v1384 = vpop.permute.xlu0 %1383
      %1385 = vrot.lane.b32.xlu0 %v1068, 3
      %v1386 = vpop.permute.xlu0 %1385
      %1387 = vrot.lane.b32.xlu0 %v1080, 3
      %v1388 = vpop.permute.xlu0 %1387
      %1389 = vrot.lane.b32.xlu0 %v1083, 3
      %v1390 = vpop.permute.xlu0 %1389
      %1391 = vrot.lane.b32.xlu0 %v1095, 3
      %v1392 = vpop.permute.xlu0 %1391
      %1393 = vrot.lane.b32.xlu0 %v1098, 3
      %v1394 = vpop.permute.xlu0 %1393
      %1395 = vrot.lane.b32.xlu0 %v1110, 3
      %v1396 = vpop.permute.xlu0 %1395
      %1397 = vrot.lane.b32.xlu0 %v1113, 3
      %v1398 = vpop.permute.xlu0 %1397
      %1399 = vrot.lane.b32.xlu0 %v1125, 3
      %v1400 = vpop.permute.xlu0 %1399
      %1401 = vrot.lane.b32.xlu0 %v1128, 3
      %v1402 = vpop.permute.xlu0 %1401
      %1403 = vrot.lane.b32.xlu0 %v1140, 3
      %v1404 = vpop.permute.xlu0 %1403
      %1405 = vrot.lane.b32.xlu0 %v1143, 3
      %v1406 = vpop.permute.xlu0 %1405
      %1407 = vrot.lane.b32.xlu0 %v1155, 3
      %v1408 = vpop.permute.xlu0 %1407
      %1409 = vrot.lane.b32.xlu0 %v1158, 3
      %v1410 = vpop.permute.xlu0 %1409
      %1411 = vrot.lane.b32.xlu0 %v1170, 3
      %v1412 = vpop.permute.xlu0 %1411
      %1413 = vrot.lane.b32.xlu0 %v1173, 3
      %v1414 = vpop.permute.xlu0 %1413
      %1415 = vrot.lane.b32.xlu0 %v1185, 3
      %v1416 = vpop.permute.xlu0 %1415
      %1417 = vrot.lane.b32.xlu0 %v1188, 3
      %v1418 = vpop.permute.xlu0 %1417
      %1419 = vrot.lane.b32.xlu0 %v1200, 3
      %v1420 = vpop.permute.xlu0 %1419
      %1421 = vrot.lane.b32.xlu0 %v1203, 3
      %v1422 = vpop.permute.xlu0 %1421
      %1423 = vrot.lane.b32.xlu0 %v1215, 3
      %v1424 = vpop.permute.xlu0 %1423
      %1425 = vrot.lane.b32.xlu0 %v1218, 3
      %v1426 = vpop.permute.xlu0 %1425
      %1427 = vrot.lane.b32.xlu0 %v1230, 3
      %v1428 = vpop.permute.xlu0 %1427
      %1429 = vrot.lane.b32.xlu0 %v1233, 3
      %v1430 = vpop.permute.xlu0 %1429
      %1431 = vrot.lane.b32.xlu0 %v1245, 3
      %v1432 = vpop.permute.xlu0 %1431
      %1433 = vrot.lane.b32.xlu0 %v1248, 3
      %v1434 = vpop.permute.xlu0 %1433
      %1435 = vrot.lane.b32.xlu0 %v1260, 3
      %v1436 = vpop.permute.xlu0 %1435
      %1437 = vrot.lane.b32.xlu0 %v1263, 3
      %v1438 = vpop.permute.xlu0 %1437
      %1439 = vrot.lane.b32.xlu0 %v1275, 3
      %v1440 = vpop.permute.xlu0 %1439
      %1441 = vrot.lane.b32.xlu0 %v1278, 3
      %v1442 = vpop.permute.xlu0 %1441
      %1443 = vrot.lane.b32.xlu0 %v1290, 3
      %v1444 = vpop.permute.xlu0 %1443
      %1445 = vrot.lane.b32.xlu0 %v1293, 3
      %v1446 = vpop.permute.xlu0 %1445
      %1447 = vrot.lane.b32.xlu0 %v1305, 3
      %v1448 = vpop.permute.xlu0 %1447
      %1449 = vrot.lane.b32.xlu0 %v1308, 3
      %v1450 = vpop.permute.xlu0 %1449
      %1451 = vrot.lane.b32.xlu0 %v1320, 3
      %v1452 = vpop.permute.xlu0 %1451
      %1453 = vrot.lane.b32.xlu0 %v1323, 3
      %v1454 = vpop.permute.xlu0 %1453
      %1455 = vrot.lane.b32.xlu0 %v1335, 3
      %v1456 = vpop.permute.xlu0 %1455
      %1457 = vrot.lane.b32.xlu0 %v1338, 3
      %v1458 = vpop.permute.xlu0 %1457
      %vm1459 = vcmask 1046528
      %v1460 = vrot.slane %v828, 1
      %v1461 = vrot.slane %v829, 1
      %v1462 = vsel %vm1459, %v1460, %v1461
      %v1463 = vrot.slane %v830, 1
      %v1464 = vrot.slane %v831, 1
      %v1465 = vsel %vm1459, %v1463, %v1464
      %v1466 = vrot.slane %v832, 1
      %v1467 = vrot.slane %v833, 1
      %v1468 = vsel %vm1459, %v1466, %v1467
      %v1469 = vrot.slane %v834, 1
      %v1470 = vrot.slane %v835, 1
      %v1471 = vsel %vm1459, %v1469, %v1470
      %v1472 = vrot.slane %v836, 1
      %v1473 = vrot.slane %v837, 1
      %v1474 = vsel %vm1459, %v1472, %v1473
      %v1475 = vrot.slane %v838, 1
      %v1476 = vrot.slane %v839, 1
      %v1477 = vsel %vm1459, %v1475, %v1476
      %v1478 = vrot.slane %v840, 1
      %v1479 = vrot.slane %v841, 1
      %v1480 = vsel %vm1459, %v1478, %v1479
      %v1481 = vrot.slane %v842, 1
      %v1482 = vrot.slane %v843, 1
      %v1483 = vsel %vm1459, %v1481, %v1482
      %v1484 = vrot.slane %v844, 1
      %v1485 = vrot.slane %v845, 1
      %v1486 = vsel %vm1459, %v1484, %v1485
      %v1487 = vrot.slane %v846, 1
      %v1488 = vrot.slane %v847, 1
      %v1489 = vsel %vm1459, %v1487, %v1488
      %v1490 = vrot.slane %v848, 1
      %v1491 = vrot.slane %v849, 1
      %v1492 = vsel %vm1459, %v1490, %v1491
      %v1493 = vrot.slane %v850, 1
      %v1494 = vrot.slane %v851, 1
      %v1495 = vsel %vm1459, %v1493, %v1494
      %v1496 = vrot.slane %v852, 1
      %v1497 = vrot.slane %v853, 1
      %v1498 = vsel %vm1459, %v1496, %v1497
      %v1499 = vrot.slane %v854, 1
      %v1500 = vrot.slane %v855, 1
      %v1501 = vsel %vm1459, %v1499, %v1500
      %v1502 = vrot.slane %v856, 1
      %v1503 = vrot.slane %v857, 1
      %v1504 = vsel %vm1459, %v1502, %v1503
      %v1505 = vrot.slane %v858, 1
      %v1506 = vrot.slane %v859, 1
      %v1507 = vsel %vm1459, %v1505, %v1506
      %v1508 = vrot.slane %v860, 1
      %v1509 = vrot.slane %v861, 1
      %v1510 = vsel %vm1459, %v1508, %v1509
      %v1511 = vrot.slane %v862, 1
      %v1512 = vrot.slane %v863, 1
      %v1513 = vsel %vm1459, %v1511, %v1512
      %v1514 = vrot.slane %v864, 1
      %v1515 = vrot.slane %v865, 1
      %v1516 = vsel %vm1459, %v1514, %v1515
      %v1517 = vrot.slane %v866, 1
      %v1518 = vrot.slane %v867, 1
      %v1519 = vsel %vm1459, %v1517, %v1518
      %v1520 = vrot.slane %v868, 1
      %v1521 = vrot.slane %v869, 1
      %v1522 = vsel %vm1459, %v1520, %v1521
      %v1523 = vrot.slane %v870, 1
      %v1524 = vrot.slane %v871, 1
      %v1525 = vsel %vm1459, %v1523, %v1524
      %v1526 = vrot.slane %v872, 1
      %v1527 = vrot.slane %v873, 1
      %v1528 = vsel %vm1459, %v1526, %v1527
      %v1529 = vrot.slane %v874, 1
      %v1530 = vrot.slane %v875, 1
      %v1531 = vsel %vm1459, %v1529, %v1530
      %v1532 = vrot.slane %v876, 1
      %v1533 = vrot.slane %v877, 1
      %v1534 = vsel %vm1459, %v1532, %v1533
      %v1535 = vrot.slane %v878, 1
      %v1536 = vrot.slane %v879, 1
      %v1537 = vsel %vm1459, %v1535, %v1536
      %v1538 = vrot.slane %v880, 1
      %v1539 = vrot.slane %v881, 1
      %v1540 = vsel %vm1459, %v1538, %v1539
      %v1541 = vrot.slane %v882, 1
      %v1542 = vrot.slane %v883, 1
      %v1543 = vsel %vm1459, %v1541, %v1542
      %v1544 = vrot.slane %v884, 1
      %v1545 = vrot.slane %v885, 1
      %v1546 = vsel %vm1459, %v1544, %v1545
      %v1547 = vrot.slane %v886, 1
      %v1548 = vrot.slane %v887, 1
      %v1549 = vsel %vm1459, %v1547, %v1548
      %1550 = vrot.lane.b32.xlu0 %v1462, 6
      %v1551 = vpop.permute.xlu0 %1550
      %1552 = vrot.lane.b32.xlu0 %v1461, 6
      %v1553 = vpop.permute.xlu0 %1552
      %1554 = vrot.lane.b32.xlu0 %v1465, 6
      %v1555 = vpop.permute.xlu0 %1554
      %1556 = vrot.lane.b32.xlu0 %v1464, 6
      %v1557 = vpop.permute.xlu0 %1556
      %1558 = vrot.lane.b32.xlu0 %v1468, 6
      %v1559 = vpop.permute.xlu0 %1558
      %1560 = vrot.lane.b32.xlu0 %v1467, 6
      %v1561 = vpop.permute.xlu0 %1560
      %1562 = vrot.lane.b32.xlu0 %v1471, 6
      %v1563 = vpop.permute.xlu0 %1562
      %1564 = vrot.lane.b32.xlu0 %v1470, 6
      %v1565 = vpop.permute.xlu0 %1564
      %1566 = vrot.lane.b32.xlu0 %v1474, 6
      %v1567 = vpop.permute.xlu0 %1566
      %1568 = vrot.lane.b32.xlu0 %v1473, 6
      %v1569 = vpop.permute.xlu0 %1568
      %1570 = vrot.lane.b32.xlu0 %v1477, 6
      %v1571 = vpop.permute.xlu0 %1570
      %1572 = vrot.lane.b32.xlu0 %v1476, 6
      %v1573 = vpop.permute.xlu0 %1572
      %1574 = vrot.lane.b32.xlu0 %v1480, 6
      %v1575 = vpop.permute.xlu0 %1574
      %1576 = vrot.lane.b32.xlu0 %v1479, 6
      %v1577 = vpop.permute.xlu0 %1576
      %1578 = vrot.lane.b32.xlu0 %v1483, 6
      %v1579 = vpop.permute.xlu0 %1578
      %1580 = vrot.lane.b32.xlu0 %v1482, 6
      %v1581 = vpop.permute.xlu0 %1580
      %1582 = vrot.lane.b32.xlu0 %v1486, 6
      %v1583 = vpop.permute.xlu0 %1582
      %1584 = vrot.lane.b32.xlu0 %v1485, 6
      %v1585 = vpop.permute.xlu0 %1584
      %1586 = vrot.lane.b32.xlu0 %v1489, 6
      %v1587 = vpop.permute.xlu0 %1586
      %1588 = vrot.lane.b32.xlu0 %v1488, 6
      %v1589 = vpop.permute.xlu0 %1588
      %1590 = vrot.lane.b32.xlu0 %v1492, 6
      %v1591 = vpop.permute.xlu0 %1590
      %1592 = vrot.lane.b32.xlu0 %v1491, 6
      %v1593 = vpop.permute.xlu0 %1592
      %1594 = vrot.lane.b32.xlu0 %v1495, 6
      %v1595 = vpop.permute.xlu0 %1594
      %1596 = vrot.lane.b32.xlu0 %v1494, 6
      %v1597 = vpop.permute.xlu0 %1596
      %1598 = vrot.lane.b32.xlu0 %v1498, 6
      %v1599 = vpop.permute.xlu0 %1598
      %1600 = vrot.lane.b32.xlu0 %v1497, 6
      %v1601 = vpop.permute.xlu0 %1600
      %1602 = vrot.lane.b32.xlu0 %v1501, 6
      %v1603 = vpop.permute.xlu0 %1602
      %1604 = vrot.lane.b32.xlu0 %v1500, 6
      %v1605 = vpop.permute.xlu0 %1604
      %1606 = vrot.lane.b32.xlu0 %v1504, 6
      %v1607 = vpop.permute.xlu0 %1606
      %1608 = vrot.lane.b32.xlu0 %v1503, 6
      %v1609 = vpop.permute.xlu0 %1608
      %1610 = vrot.lane.b32.xlu0 %v1507, 6
      %v1611 = vpop.permute.xlu0 %1610
      %1612 = vrot.lane.b32.xlu0 %v1506, 6
      %v1613 = vpop.permute.xlu0 %1612
      %1614 = vrot.lane.b32.xlu0 %v1510, 6
      %v1615 = vpop.permute.xlu0 %1614
      %1616 = vrot.lane.b32.xlu0 %v1509, 6
      %v1617 = vpop.permute.xlu0 %1616
      %1618 = vrot.lane.b32.xlu0 %v1513, 6
      %v1619 = vpop.permute.xlu0 %1618
      %1620 = vrot.lane.b32.xlu0 %v1512, 6
      %v1621 = vpop.permute.xlu0 %1620
      %1622 = vrot.lane.b32.xlu0 %v1516, 6
      %v1623 = vpop.permute.xlu0 %1622
      %1624 = vrot.lane.b32.xlu0 %v1515, 6
      %v1625 = vpop.permute.xlu0 %1624
      %1626 = vrot.lane.b32.xlu0 %v1519, 6
      %v1627 = vpop.permute.xlu0 %1626
      %1628 = vrot.lane.b32.xlu0 %v1518, 6
      %v1629 = vpop.permute.xlu0 %1628
      %1630 = vrot.lane.b32.xlu0 %v1522, 6
      %v1631 = vpop.permute.xlu0 %1630
      %1632 = vrot.lane.b32.xlu0 %v1521, 6
      %v1633 = vpop.permute.xlu0 %1632
      %1634 = vrot.lane.b32.xlu0 %v1525, 6
      %v1635 = vpop.permute.xlu0 %1634
      %1636 = vrot.lane.b32.xlu0 %v1524, 6
      %v1637 = vpop.permute.xlu0 %1636
      %1638 = vrot.lane.b32.xlu0 %v1528, 6
      %v1639 = vpop.permute.xlu0 %1638
      %1640 = vrot.lane.b32.xlu0 %v1527, 6
      %v1641 = vpop.permute.xlu0 %1640
      %1642 = vrot.lane.b32.xlu0 %v1531, 6
      %v1643 = vpop.permute.xlu0 %1642
      %1644 = vrot.lane.b32.xlu0 %v1530, 6
      %v1645 = vpop.permute.xlu0 %1644
      %1646 = vrot.lane.b32.xlu0 %v1534, 6
      %v1647 = vpop.permute.xlu0 %1646
      %1648 = vrot.lane.b32.xlu0 %v1533, 6
      %v1649 = vpop.permute.xlu0 %1648
      %1650 = vrot.lane.b32.xlu0 %v1537, 6
      %v1651 = vpop.permute.xlu0 %1650
      %1652 = vrot.lane.b32.xlu0 %v1536, 6
      %v1653 = vpop.permute.xlu0 %1652
      %1654 = vrot.lane.b32.xlu0 %v1540, 6
      %v1655 = vpop.permute.xlu0 %1654
      %1656 = vrot.lane.b32.xlu0 %v1539, 6
      %v1657 = vpop.permute.xlu0 %1656
      %1658 = vrot.lane.b32.xlu0 %v1543, 6
      %v1659 = vpop.permute.xlu0 %1658
      %1660 = vrot.lane.b32.xlu0 %v1542, 6
      %v1661 = vpop.permute.xlu0 %1660
      %1662 = vrot.lane.b32.xlu0 %v1546, 6
      %v1663 = vpop.permute.xlu0 %1662
      %1664 = vrot.lane.b32.xlu0 %v1545, 6
      %v1665 = vpop.permute.xlu0 %1664
      %1666 = vrot.lane.b32.xlu0 %v1549, 6
      %v1667 = vpop.permute.xlu0 %1666
      %1668 = vrot.lane.b32.xlu0 %v1548, 6
      %v1669 = vpop.permute.xlu0 %1668
      %v1674 = vunpack.c.l.b16 %v580
      %v1675 = vunpack.c.l.b16 %v581
      %v1676 = vunpack.c.l.b16 %v582
      %v1677 = vunpack.c.l.b16 %v583
      %v1678 = vpack.c.b16 %v1675, %v1674
      %v1679 = vpack.c.b16 %v1677, %v1676
      %1680 = vrot.lane.b32.xlu0 %v830, 9
      %v1681 = vpop.permute.xlu0 %1680
      %1682 = vrot.lane.b32.xlu0 %v831, 9
      %v1683 = vpop.permute.xlu0 %1682
      %1684 = vrot.lane.b32.xlu0 %v832, 9
      %v1685 = vpop.permute.xlu0 %1684
      %1686 = vrot.lane.b32.xlu0 %v833, 9
      %v1687 = vpop.permute.xlu0 %1686
      %1688 = vrot.lane.b32.xlu0 %v834, 9
      %v1689 = vpop.permute.xlu0 %1688
      %1690 = vrot.lane.b32.xlu0 %v835, 9
      %v1691 = vpop.permute.xlu0 %1690
      %1692 = vrot.lane.b32.xlu0 %v836, 9
      %v1693 = vpop.permute.xlu0 %1692
      %1694 = vrot.lane.b32.xlu0 %v837, 9
      %v1695 = vpop.permute.xlu0 %1694
      %1696 = vrot.lane.b32.xlu0 %v838, 9
      %v1697 = vpop.permute.xlu0 %1696
      %1698 = vrot.lane.b32.xlu0 %v839, 9
      %v1699 = vpop.permute.xlu0 %1698
      %1700 = vrot.lane.b32.xlu0 %v840, 9
      %v1701 = vpop.permute.xlu0 %1700
      %1702 = vrot.lane.b32.xlu0 %v841, 9
      %v1703 = vpop.permute.xlu0 %1702
      %1704 = vrot.lane.b32.xlu0 %v842, 9
      %v1705 = vpop.permute.xlu0 %1704
      %1706 = vrot.lane.b32.xlu0 %v843, 9
      %v1707 = vpop.permute.xlu0 %1706
      %1708 = vrot.lane.b32.xlu0 %v844, 9
      %v1709 = vpop.permute.xlu0 %1708
      %1710 = vrot.lane.b32.xlu0 %v845, 9
      %v1711 = vpop.permute.xlu0 %1710
      %1712 = vrot.lane.b32.xlu0 %v846, 9
      %v1713 = vpop.permute.xlu0 %1712
      %1714 = vrot.lane.b32.xlu0 %v847, 9
      %v1715 = vpop.permute.xlu0 %1714
      %1716 = vrot.lane.b32.xlu0 %v848, 9
      %v1717 = vpop.permute.xlu0 %1716
      %1718 = vrot.lane.b32.xlu0 %v849, 9
      %v1719 = vpop.permute.xlu0 %1718
      %1720 = vrot.lane.b32.xlu0 %v850, 9
      %v1721 = vpop.permute.xlu0 %1720
      %1722 = vrot.lane.b32.xlu0 %v851, 9
      %v1723 = vpop.permute.xlu0 %1722
      %1724 = vrot.lane.b32.xlu0 %v852, 9
      %v1725 = vpop.permute.xlu0 %1724
      %1726 = vrot.lane.b32.xlu0 %v853, 9
      %v1727 = vpop.permute.xlu0 %1726
      %1728 = vrot.lane.b32.xlu0 %v854, 9
      %v1729 = vpop.permute.xlu0 %1728
      %1730 = vrot.lane.b32.xlu0 %v855, 9
      %v1731 = vpop.permute.xlu0 %1730
      %1732 = vrot.lane.b32.xlu0 %v856, 9
      %v1733 = vpop.permute.xlu0 %1732
      %1734 = vrot.lane.b32.xlu0 %v857, 9
      %v1735 = vpop.permute.xlu0 %1734
      %1736 = vrot.lane.b32.xlu0 %v858, 9
      %v1737 = vpop.permute.xlu0 %1736
      %1738 = vrot.lane.b32.xlu0 %v859, 9
      %v1739 = vpop.permute.xlu0 %1738
      %1740 = vrot.lane.b32.xlu0 %v860, 9
      %v1741 = vpop.permute.xlu0 %1740
      %1742 = vrot.lane.b32.xlu0 %v861, 9
      %v1743 = vpop.permute.xlu0 %1742
      %1744 = vrot.lane.b32.xlu0 %v862, 9
      %v1745 = vpop.permute.xlu0 %1744
      %1746 = vrot.lane.b32.xlu0 %v863, 9
      %v1747 = vpop.permute.xlu0 %1746
      %1748 = vrot.lane.b32.xlu0 %v864, 9
      %v1749 = vpop.permute.xlu0 %1748
      %1750 = vrot.lane.b32.xlu0 %v865, 9
      %v1751 = vpop.permute.xlu0 %1750
      %1752 = vrot.lane.b32.xlu0 %v866, 9
      %v1753 = vpop.permute.xlu0 %1752
      %1754 = vrot.lane.b32.xlu0 %v867, 9
      %v1755 = vpop.permute.xlu0 %1754
      %1756 = vrot.lane.b32.xlu0 %v868, 9
      %v1757 = vpop.permute.xlu0 %1756
      %1758 = vrot.lane.b32.xlu0 %v869, 9
      %v1759 = vpop.permute.xlu0 %1758
      %1760 = vrot.lane.b32.xlu0 %v870, 9
      %v1761 = vpop.permute.xlu0 %1760
      %1762 = vrot.lane.b32.xlu0 %v871, 9
      %v1763 = vpop.permute.xlu0 %1762
      %1764 = vrot.lane.b32.xlu0 %v872, 9
      %v1765 = vpop.permute.xlu0 %1764
      %1766 = vrot.lane.b32.xlu0 %v873, 9
      %v1767 = vpop.permute.xlu0 %1766
      %1768 = vrot.lane.b32.xlu0 %v874, 9
      %v1769 = vpop.permute.xlu0 %1768
      %1770 = vrot.lane.b32.xlu0 %v875, 9
      %v1771 = vpop.permute.xlu0 %1770
      %1772 = vrot.lane.b32.xlu0 %v876, 9
      %v1773 = vpop.permute.xlu0 %1772
      %1774 = vrot.lane.b32.xlu0 %v877, 9
      %v1775 = vpop.permute.xlu0 %1774
      %1776 = vrot.lane.b32.xlu0 %v878, 9
      %v1777 = vpop.permute.xlu0 %1776
      %1778 = vrot.lane.b32.xlu0 %v879, 9
      %v1779 = vpop.permute.xlu0 %1778
      %1780 = vrot.lane.b32.xlu0 %v880, 9
      %v1781 = vpop.permute.xlu0 %1780
      %1782 = vrot.lane.b32.xlu0 %v881, 9
      %v1783 = vpop.permute.xlu0 %1782
      %1784 = vrot.lane.b32.xlu0 %v882, 9
      %v1785 = vpop.permute.xlu0 %1784
      %1786 = vrot.lane.b32.xlu0 %v883, 9
      %v1787 = vpop.permute.xlu0 %1786
      %1788 = vrot.lane.b32.xlu0 %v884, 9
      %v1789 = vpop.permute.xlu0 %1788
      %1790 = vrot.lane.b32.xlu0 %v885, 9
      %v1791 = vpop.permute.xlu0 %1790
      %1792 = vrot.lane.b32.xlu0 %v886, 9
      %v1793 = vpop.permute.xlu0 %1792
      %1794 = vrot.lane.b32.xlu0 %v887, 9
      %v1795 = vpop.permute.xlu0 %1794
      %1796 = vrot.lane.b32.xlu0 %v1678, 9
      %v1797 = vpop.permute.xlu0 %1796
      %1798 = vrot.lane.b32.xlu0 %v1679, 9
      %v1799 = vpop.permute.xlu0 %1798
      %v1801 = vshrl.u32 %v1678, 16
      %v1803 = vshll.u32 %v1678, 16
      %v1805 = vrot.slane %v1803, 1
      %v1806 = vor.u32 %v1801, %v1805
      %v1808 = vshll.u32 %v1679, 16
      %v1810 = vrot.slane %v1808, 1
      %v1811 = vsel %vm888, %v1806, %v1810
      %v1812 = vshrl.u32 %v1679, 16
      %v1814 = vor.u32 %v1812, %v1810
      %1815 = vrot.lane.b32.xlu0 %v915, 12
      %v1816 = vpop.permute.xlu0 %1815
      %1817 = vrot.lane.b32.xlu0 %v918, 12
      %v1818 = vpop.permute.xlu0 %1817
      %1819 = vrot.lane.b32.xlu0 %v930, 12
      %v1820 = vpop.permute.xlu0 %1819
      %1821 = vrot.lane.b32.xlu0 %v933, 12
      %v1822 = vpop.permute.xlu0 %1821
      %1823 = vrot.lane.b32.xlu0 %v945, 12
      %v1824 = vpop.permute.xlu0 %1823
      %1825 = vrot.lane.b32.xlu0 %v948, 12
      %v1826 = vpop.permute.xlu0 %1825
      %1827 = vrot.lane.b32.xlu0 %v960, 12
      %v1828 = vpop.permute.xlu0 %1827
      %1829 = vrot.lane.b32.xlu0 %v963, 12
      %v1830 = vpop.permute.xlu0 %1829
      %1831 = vrot.lane.b32.xlu0 %v975, 12
      %v1832 = vpop.permute.xlu0 %1831
      %1833 = vrot.lane.b32.xlu0 %v978, 12
      %v1834 = vpop.permute.xlu0 %1833
      %1835 = vrot.lane.b32.xlu0 %v990, 12
      %v1836 = vpop.permute.xlu0 %1835
      %1837 = vrot.lane.b32.xlu0 %v993, 12
      %v1838 = vpop.permute.xlu0 %1837
      %1839 = vrot.lane.b32.xlu0 %v1005, 12
      %v1840 = vpop.permute.xlu0 %1839
      %1841 = vrot.lane.b32.xlu0 %v1008, 12
      %v1842 = vpop.permute.xlu0 %1841
      %1843 = vrot.lane.b32.xlu0 %v1020, 12
      %v1844 = vpop.permute.xlu0 %1843
      %1845 = vrot.lane.b32.xlu0 %v1023, 12
      %v1846 = vpop.permute.xlu0 %1845
      %1847 = vrot.lane.b32.xlu0 %v1035, 12
      %v1848 = vpop.permute.xlu0 %1847
      %1849 = vrot.lane.b32.xlu0 %v1038, 12
      %v1850 = vpop.permute.xlu0 %1849
      %1851 = vrot.lane.b32.xlu0 %v1050, 12
      %v1852 = vpop.permute.xlu0 %1851
      %1853 = vrot.lane.b32.xlu0 %v1053, 12
      %v1854 = vpop.permute.xlu0 %1853
      %1855 = vrot.lane.b32.xlu0 %v1065, 12
      %v1856 = vpop.permute.xlu0 %1855
      %1857 = vrot.lane.b32.xlu0 %v1068, 12
      %v1858 = vpop.permute.xlu0 %1857
      %1859 = vrot.lane.b32.xlu0 %v1080, 12
      %v1860 = vpop.permute.xlu0 %1859
      %1861 = vrot.lane.b32.xlu0 %v1083, 12
      %v1862 = vpop.permute.xlu0 %1861
      %1863 = vrot.lane.b32.xlu0 %v1095, 12
      %v1864 = vpop.permute.xlu0 %1863
      %1865 = vrot.lane.b32.xlu0 %v1098, 12
      %v1866 = vpop.permute.xlu0 %1865
      %1867 = vrot.lane.b32.xlu0 %v1110, 12
      %v1868 = vpop.permute.xlu0 %1867
      %1869 = vrot.lane.b32.xlu0 %v1113, 12
      %v1870 = vpop.permute.xlu0 %1869
      %1871 = vrot.lane.b32.xlu0 %v1125, 12
      %v1872 = vpop.permute.xlu0 %1871
      %1873 = vrot.lane.b32.xlu0 %v1128, 12
      %v1874 = vpop.permute.xlu0 %1873
      %1875 = vrot.lane.b32.xlu0 %v1140, 12
      %v1876 = vpop.permute.xlu0 %1875
      %1877 = vrot.lane.b32.xlu0 %v1143, 12
      %v1878 = vpop.permute.xlu0 %1877
      %1879 = vrot.lane.b32.xlu0 %v1155, 12
      %v1880 = vpop.permute.xlu0 %1879
      %1881 = vrot.lane.b32.xlu0 %v1158, 12
      %v1882 = vpop.permute.xlu0 %1881
      %1883 = vrot.lane.b32.xlu0 %v1170, 12
      %v1884 = vpop.permute.xlu0 %1883
      %1885 = vrot.lane.b32.xlu0 %v1173, 12
      %v1886 = vpop.permute.xlu0 %1885
      %1887 = vrot.lane.b32.xlu0 %v1185, 12
      %v1888 = vpop.permute.xlu0 %1887
      %1889 = vrot.lane.b32.xlu0 %v1188, 12
      %v1890 = vpop.permute.xlu0 %1889
      %1891 = vrot.lane.b32.xlu0 %v1200, 12
      %v1892 = vpop.permute.xlu0 %1891
      %1893 = vrot.lane.b32.xlu0 %v1203, 12
      %v1894 = vpop.permute.xlu0 %1893
      %1895 = vrot.lane.b32.xlu0 %v1215, 12
      %v1896 = vpop.permute.xlu0 %1895
      %1897 = vrot.lane.b32.xlu0 %v1218, 12
      %v1898 = vpop.permute.xlu0 %1897
      %1899 = vrot.lane.b32.xlu0 %v1230, 12
      %v1900 = vpop.permute.xlu0 %1899
      %1901 = vrot.lane.b32.xlu0 %v1233, 12
      %v1902 = vpop.permute.xlu0 %1901
      %1903 = vrot.lane.b32.xlu0 %v1245, 12
      %v1904 = vpop.permute.xlu0 %1903
      %1905 = vrot.lane.b32.xlu0 %v1248, 12
      %v1906 = vpop.permute.xlu0 %1905
      %1907 = vrot.lane.b32.xlu0 %v1260, 12
      %v1908 = vpop.permute.xlu0 %1907
      %1909 = vrot.lane.b32.xlu0 %v1263, 12
      %v1910 = vpop.permute.xlu0 %1909
      %1911 = vrot.lane.b32.xlu0 %v1275, 12
      %v1912 = vpop.permute.xlu0 %1911
      %1913 = vrot.lane.b32.xlu0 %v1278, 12
      %v1914 = vpop.permute.xlu0 %1913
      %1915 = vrot.lane.b32.xlu0 %v1290, 12
      %v1916 = vpop.permute.xlu0 %1915
      %1917 = vrot.lane.b32.xlu0 %v1293, 12
      %v1918 = vpop.permute.xlu0 %1917
      %1919 = vrot.lane.b32.xlu0 %v1305, 12
      %v1920 = vpop.permute.xlu0 %1919
      %1921 = vrot.lane.b32.xlu0 %v1308, 12
      %v1922 = vpop.permute.xlu0 %1921
      %1923 = vrot.lane.b32.xlu0 %v1320, 12
      %v1924 = vpop.permute.xlu0 %1923
      %1925 = vrot.lane.b32.xlu0 %v1323, 12
      %v1926 = vpop.permute.xlu0 %1925
      %1927 = vrot.lane.b32.xlu0 %v1335, 12
      %v1928 = vpop.permute.xlu0 %1927
      %1929 = vrot.lane.b32.xlu0 %v1338, 12
      %v1930 = vpop.permute.xlu0 %1929
      %1931 = vrot.lane.b32.xlu0 %v1811, 12
      %v1932 = vpop.permute.xlu0 %1931
      %1933 = vrot.lane.b32.xlu0 %v1814, 12
      %v1934 = vpop.permute.xlu0 %1933
      %v1935 = vrot.slane %v1678, 1
      %v1936 = vrot.slane %v1679, 1
      %v1937 = vsel %vm1459, %v1935, %v1936
      %1938 = vrot.lane.b32.xlu0 %v1465, 15
      %v1939 = vpop.permute.xlu0 %1938
      %1940 = vrot.lane.b32.xlu0 %v1464, 15
      %v1941 = vpop.permute.xlu0 %1940
      %1942 = vrot.lane.b32.xlu0 %v1468, 15
      %v1943 = vpop.permute.xlu0 %1942
      %1944 = vrot.lane.b32.xlu0 %v1467, 15
      %v1945 = vpop.permute.xlu0 %1944
      %1946 = vrot.lane.b32.xlu0 %v1471, 15
      %v1947 = vpop.permute.xlu0 %1946
      %1948 = vrot.lane.b32.xlu0 %v1470, 15
      %v1949 = vpop.permute.xlu0 %1948
      %1950 = vrot.lane.b32.xlu0 %v1474, 15
      %v1951 = vpop.permute.xlu0 %1950
      %1952 = vrot.lane.b32.xlu0 %v1473, 15
      %v1953 = vpop.permute.xlu0 %1952
      %1954 = vrot.lane.b32.xlu0 %v1477, 15
      %v1955 = vpop.permute.xlu0 %1954
      %1956 = vrot.lane.b32.xlu0 %v1476, 15
      %v1957 = vpop.permute.xlu0 %1956
      %1958 = vrot.lane.b32.xlu0 %v1480, 15
      %v1959 = vpop.permute.xlu0 %1958
      %1960 = vrot.lane.b32.xlu0 %v1479, 15
      %v1961 = vpop.permute.xlu0 %1960
      %1962 = vrot.lane.b32.xlu0 %v1483, 15
      %v1963 = vpop.permute.xlu0 %1962
      %1964 = vrot.lane.b32.xlu0 %v1482, 15
      %v1965 = vpop.permute.xlu0 %1964
      %1966 = vrot.lane.b32.xlu0 %v1486, 15
      %v1967 = vpop.permute.xlu0 %1966
      %1968 = vrot.lane.b32.xlu0 %v1485, 15
      %v1969 = vpop.permute.xlu0 %1968
      %1970 = vrot.lane.b32.xlu0 %v1489, 15
      %v1971 = vpop.permute.xlu0 %1970
      %1972 = vrot.lane.b32.xlu0 %v1488, 15
      %v1973 = vpop.permute.xlu0 %1972
      %1974 = vrot.lane.b32.xlu0 %v1492, 15
      %v1975 = vpop.permute.xlu0 %1974
      %1976 = vrot.lane.b32.xlu0 %v1491, 15
      %v1977 = vpop.permute.xlu0 %1976
      %1978 = vrot.lane.b32.xlu0 %v1495, 15
      %v1979 = vpop.permute.xlu0 %1978
      %1980 = vrot.lane.b32.xlu0 %v1494, 15
      %v1981 = vpop.permute.xlu0 %1980
      %1982 = vrot.lane.b32.xlu0 %v1498, 15
      %v1983 = vpop.permute.xlu0 %1982
      %1984 = vrot.lane.b32.xlu0 %v1497, 15
      %v1985 = vpop.permute.xlu0 %1984
      %1986 = vrot.lane.b32.xlu0 %v1501, 15
      %v1987 = vpop.permute.xlu0 %1986
      %1988 = vrot.lane.b32.xlu0 %v1500, 15
      %v1989 = vpop.permute.xlu0 %1988
      %1990 = vrot.lane.b32.xlu0 %v1504, 15
      %v1991 = vpop.permute.xlu0 %1990
      %1992 = vrot.lane.b32.xlu0 %v1503, 15
      %v1993 = vpop.permute.xlu0 %1992
      %1994 = vrot.lane.b32.xlu0 %v1507, 15
      %v1995 = vpop.permute.xlu0 %1994
      %1996 = vrot.lane.b32.xlu0 %v1506, 15
      %v1997 = vpop.permute.xlu0 %1996
      %1998 = vrot.lane.b32.xlu0 %v1510, 15
      %v1999 = vpop.permute.xlu0 %1998
      %2000 = vrot.lane.b32.xlu0 %v1509, 15
      %v2001 = vpop.permute.xlu0 %2000
      %2002 = vrot.lane.b32.xlu0 %v1513, 15
      %v2003 = vpop.permute.xlu0 %2002
      %2004 = vrot.lane.b32.xlu0 %v1512, 15
      %v2005 = vpop.permute.xlu0 %2004
      %2006 = vrot.lane.b32.xlu0 %v1516, 15
      %v2007 = vpop.permute.xlu0 %2006
      %2008 = vrot.lane.b32.xlu0 %v1515, 15
      %v2009 = vpop.permute.xlu0 %2008
      %2010 = vrot.lane.b32.xlu0 %v1519, 15
      %v2011 = vpop.permute.xlu0 %2010
      %2012 = vrot.lane.b32.xlu0 %v1518, 15
      %v2013 = vpop.permute.xlu0 %2012
      %2014 = vrot.lane.b32.xlu0 %v1522, 15
      %v2015 = vpop.permute.xlu0 %2014
      %2016 = vrot.lane.b32.xlu0 %v1521, 15
      %v2017 = vpop.permute.xlu0 %2016
      %2018 = vrot.lane.b32.xlu0 %v1525, 15
      %v2019 = vpop.permute.xlu0 %2018
      %2020 = vrot.lane.b32.xlu0 %v1524, 15
      %v2021 = vpop.permute.xlu0 %2020
      %2022 = vrot.lane.b32.xlu0 %v1528, 15
      %v2023 = vpop.permute.xlu0 %2022
      %2024 = vrot.lane.b32.xlu0 %v1527, 15
      %v2025 = vpop.permute.xlu0 %2024
      %2026 = vrot.lane.b32.xlu0 %v1531, 15
      %v2027 = vpop.permute.xlu0 %2026
      %2028 = vrot.lane.b32.xlu0 %v1530, 15
      %v2029 = vpop.permute.xlu0 %2028
      %2030 = vrot.lane.b32.xlu0 %v1534, 15
      %v2031 = vpop.permute.xlu0 %2030
      %2032 = vrot.lane.b32.xlu0 %v1533, 15
      %v2033 = vpop.permute.xlu0 %2032
      %2034 = vrot.lane.b32.xlu0 %v1537, 15
      %v2035 = vpop.permute.xlu0 %2034
      %2036 = vrot.lane.b32.xlu0 %v1536, 15
      %v2037 = vpop.permute.xlu0 %2036
      %2038 = vrot.lane.b32.xlu0 %v1540, 15
      %v2039 = vpop.permute.xlu0 %2038
      %2040 = vrot.lane.b32.xlu0 %v1539, 15
      %v2041 = vpop.permute.xlu0 %2040
      %2042 = vrot.lane.b32.xlu0 %v1543, 15
      %v2043 = vpop.permute.xlu0 %2042
      %2044 = vrot.lane.b32.xlu0 %v1542, 15
      %v2045 = vpop.permute.xlu0 %2044
      %2046 = vrot.lane.b32.xlu0 %v1546, 15
      %v2047 = vpop.permute.xlu0 %2046
      %2048 = vrot.lane.b32.xlu0 %v1545, 15
      %v2049 = vpop.permute.xlu0 %2048
      %2050 = vrot.lane.b32.xlu0 %v1549, 15
      %v2051 = vpop.permute.xlu0 %2050
      %2052 = vrot.lane.b32.xlu0 %v1548, 15
      %v2053 = vpop.permute.xlu0 %2052
      %2054 = vrot.lane.b32.xlu0 %v1937, 15
      %v2055 = vpop.permute.xlu0 %2054
      %2056 = vrot.lane.b32.xlu0 %v1936, 15
      %v2057 = vpop.permute.xlu0 %2056
      %v2062 = vunpack.c.l.b16 %v584
      %v2063 = vunpack.c.l.b16 %v585
      %v2064 = vunpack.c.l.b16 %v586
      %v2065 = vunpack.c.l.b16 %v587
      %v2066 = vpack.c.b16 %v2063, %v2062
      %v2067 = vpack.c.b16 %v2065, %v2064
      %2068 = vrot.lane.b32.xlu0 %v832, 18
      %v2069 = vpop.permute.xlu0 %2068
      %2070 = vrot.lane.b32.xlu0 %v833, 18
      %v2071 = vpop.permute.xlu0 %2070
      %2072 = vrot.lane.b32.xlu0 %v834, 18
      %v2073 = vpop.permute.xlu0 %2072
      %2074 = vrot.lane.b32.xlu0 %v835, 18
      %v2075 = vpop.permute.xlu0 %2074
      %2076 = vrot.lane.b32.xlu0 %v836, 18
      %v2077 = vpop.permute.xlu0 %2076
      %2078 = vrot.lane.b32.xlu0 %v837, 18
      %v2079 = vpop.permute.xlu0 %2078
      %2080 = vrot.lane.b32.xlu0 %v838, 18
      %v2081 = vpop.permute.xlu0 %2080
      %2082 = vrot.lane.b32.xlu0 %v839, 18
      %v2083 = vpop.permute.xlu0 %2082
      %2084 = vrot.lane.b32.xlu0 %v840, 18
      %v2085 = vpop.permute.xlu0 %2084
      %2086 = vrot.lane.b32.xlu0 %v841, 18
      %v2087 = vpop.permute.xlu0 %2086
      %2088 = vrot.lane.b32.xlu0 %v842, 18
      %v2089 = vpop.permute.xlu0 %2088
      %2090 = vrot.lane.b32.xlu0 %v843, 18
      %v2091 = vpop.permute.xlu0 %2090
      %2092 = vrot.lane.b32.xlu0 %v844, 18
      %v2093 = vpop.permute.xlu0 %2092
      %2094 = vrot.lane.b32.xlu0 %v845, 18
      %v2095 = vpop.permute.xlu0 %2094
      %2096 = vrot.lane.b32.xlu0 %v846, 18
      %v2097 = vpop.permute.xlu0 %2096
      %2098 = vrot.lane.b32.xlu0 %v847, 18
      %v2099 = vpop.permute.xlu0 %2098
      %2100 = vrot.lane.b32.xlu0 %v848, 18
      %v2101 = vpop.permute.xlu0 %2100
      %2102 = vrot.lane.b32.xlu0 %v849, 18
      %v2103 = vpop.permute.xlu0 %2102
      %2104 = vrot.lane.b32.xlu0 %v850, 18
      %v2105 = vpop.permute.xlu0 %2104
      %2106 = vrot.lane.b32.xlu0 %v851, 18
      %v2107 = vpop.permute.xlu0 %2106
      %2108 = vrot.lane.b32.xlu0 %v852, 18
      %v2109 = vpop.permute.xlu0 %2108
      %2110 = vrot.lane.b32.xlu0 %v853, 18
      %v2111 = vpop.permute.xlu0 %2110
      %2112 = vrot.lane.b32.xlu0 %v854, 18
      %v2113 = vpop.permute.xlu0 %2112
      %2114 = vrot.lane.b32.xlu0 %v855, 18
      %v2115 = vpop.permute.xlu0 %2114
      %2116 = vrot.lane.b32.xlu0 %v856, 18
      %v2117 = vpop.permute.xlu0 %2116
      %2118 = vrot.lane.b32.xlu0 %v857, 18
      %v2119 = vpop.permute.xlu0 %2118
      %2120 = vrot.lane.b32.xlu0 %v858, 18
      %v2121 = vpop.permute.xlu0 %2120
      %2122 = vrot.lane.b32.xlu0 %v859, 18
      %v2123 = vpop.permute.xlu0 %2122
      %2124 = vrot.lane.b32.xlu0 %v860, 18
      %v2125 = vpop.permute.xlu0 %2124
      %2126 = vrot.lane.b32.xlu0 %v861, 18
      %v2127 = vpop.permute.xlu0 %2126
      %2128 = vrot.lane.b32.xlu0 %v862, 18
      %v2129 = vpop.permute.xlu0 %2128
      %2130 = vrot.lane.b32.xlu0 %v863, 18
      %v2131 = vpop.permute.xlu0 %2130
      %2132 = vrot.lane.b32.xlu0 %v864, 18
      %v2133 = vpop.permute.xlu0 %2132
      %2134 = vrot.lane.b32.xlu0 %v865, 18
      %v2135 = vpop.permute.xlu0 %2134
      %2136 = vrot.lane.b32.xlu0 %v866, 18
      %v2137 = vpop.permute.xlu0 %2136
      %2138 = vrot.lane.b32.xlu0 %v867, 18
      %v2139 = vpop.permute.xlu0 %2138
      %2140 = vrot.lane.b32.xlu0 %v868, 18
      %v2141 = vpop.permute.xlu0 %2140
      %2142 = vrot.lane.b32.xlu0 %v869, 18
      %v2143 = vpop.permute.xlu0 %2142
      %2144 = vrot.lane.b32.xlu0 %v870, 18
      %v2145 = vpop.permute.xlu0 %2144
      %2146 = vrot.lane.b32.xlu0 %v871, 18
      %v2147 = vpop.permute.xlu0 %2146
      %2148 = vrot.lane.b32.xlu0 %v872, 18
      %v2149 = vpop.permute.xlu0 %2148
      %2150 = vrot.lane.b32.xlu0 %v873, 18
      %v2151 = vpop.permute.xlu0 %2150
      %2152 = vrot.lane.b32.xlu0 %v874, 18
      %v2153 = vpop.permute.xlu0 %2152
      %2154 = vrot.lane.b32.xlu0 %v875, 18
      %v2155 = vpop.permute.xlu0 %2154
      %2156 = vrot.lane.b32.xlu0 %v876, 18
      %v2157 = vpop.permute.xlu0 %2156
      %2158 = vrot.lane.b32.xlu0 %v877, 18
      %v2159 = vpop.permute.xlu0 %2158
      %2160 = vrot.lane.b32.xlu0 %v878, 18
      %v2161 = vpop.permute.xlu0 %2160
      %2162 = vrot.lane.b32.xlu0 %v879, 18
      %v2163 = vpop.permute.xlu0 %2162
      %2164 = vrot.lane.b32.xlu0 %v880, 18
      %v2165 = vpop.permute.xlu0 %2164
      %2166 = vrot.lane.b32.xlu0 %v881, 18
      %v2167 = vpop.permute.xlu0 %2166
      %2168 = vrot.lane.b32.xlu0 %v882, 18
      %v2169 = vpop.permute.xlu0 %2168
      %2170 = vrot.lane.b32.xlu0 %v883, 18
      %v2171 = vpop.permute.xlu0 %2170
      %2172 = vrot.lane.b32.xlu0 %v884, 18
      %v2173 = vpop.permute.xlu0 %2172
      %2174 = vrot.lane.b32.xlu0 %v885, 18
      %v2175 = vpop.permute.xlu0 %2174
      %2176 = vrot.lane.b32.xlu0 %v886, 18
      %v2177 = vpop.permute.xlu0 %2176
      %2178 = vrot.lane.b32.xlu0 %v887, 18
      %v2179 = vpop.permute.xlu0 %2178
      %2180 = vrot.lane.b32.xlu0 %v1678, 18
      %v2181 = vpop.permute.xlu0 %2180
      %2182 = vrot.lane.b32.xlu0 %v1679, 18
      %v2183 = vpop.permute.xlu0 %2182
      %2184 = vrot.lane.b32.xlu0 %v2066, 18
      %v2185 = vpop.permute.xlu0 %2184
      %2186 = vrot.lane.b32.xlu0 %v2067, 18
      %v2187 = vpop.permute.xlu0 %2186
      %v2189 = vshrl.u32 %v2066, 16
      %v2191 = vshll.u32 %v2066, 16
      %v2193 = vrot.slane %v2191, 1
      %v2194 = vor.u32 %v2189, %v2193
      %v2196 = vshll.u32 %v2067, 16
      %v2198 = vrot.slane %v2196, 1
      %v2199 = vsel %vm888, %v2194, %v2198
      %v2200 = vshrl.u32 %v2067, 16
      %v2202 = vor.u32 %v2200, %v2198
      %2203 = vrot.lane.b32.xlu0 %v930, 21
      %v2204 = vpop.permute.xlu0 %2203
      %2205 = vrot.lane.b32.xlu0 %v933, 21
      %v2206 = vpop.permute.xlu0 %2205
      %2207 = vrot.lane.b32.xlu0 %v945, 21
      %v2208 = vpop.permute.xlu0 %2207
      %2209 = vrot.lane.b32.xlu0 %v948, 21
      %v2210 = vpop.permute.xlu0 %2209
      %2211 = vrot.lane.b32.xlu0 %v960, 21
      %v2212 = vpop.permute.xlu0 %2211
      %2213 = vrot.lane.b32.xlu0 %v963, 21
      %v2214 = vpop.permute.xlu0 %2213
      %2215 = vrot.lane.b32.xlu0 %v975, 21
      %v2216 = vpop.permute.xlu0 %2215
      %2217 = vrot.lane.b32.xlu0 %v978, 21
      %v2218 = vpop.permute.xlu0 %2217
      %2219 = vrot.lane.b32.xlu0 %v990, 21
      %v2220 = vpop.permute.xlu0 %2219
      %2221 = vrot.lane.b32.xlu0 %v993, 21
      %v2222 = vpop.permute.xlu0 %2221
      %2223 = vrot.lane.b32.xlu0 %v1005, 21
      %v2224 = vpop.permute.xlu0 %2223
      %2225 = vrot.lane.b32.xlu0 %v1008, 21
      %v2226 = vpop.permute.xlu0 %2225
      %2227 = vrot.lane.b32.xlu0 %v1020, 21
      %v2228 = vpop.permute.xlu0 %2227
      %2229 = vrot.lane.b32.xlu0 %v1023, 21
      %v2230 = vpop.permute.xlu0 %2229
      %2231 = vrot.lane.b32.xlu0 %v1035, 21
      %v2232 = vpop.permute.xlu0 %2231
      %2233 = vrot.lane.b32.xlu0 %v1038, 21
      %v2234 = vpop.permute.xlu0 %2233
      %2235 = vrot.lane.b32.xlu0 %v1050, 21
      %v2236 = vpop.permute.xlu0 %2235
      %2237 = vrot.lane.b32.xlu0 %v1053, 21
      %v2238 = vpop.permute.xlu0 %2237
      %2239 = vrot.lane.b32.xlu0 %v1065, 21
      %v2240 = vpop.permute.xlu0 %2239
      %2241 = vrot.lane.b32.xlu0 %v1068, 21
      %v2242 = vpop.permute.xlu0 %2241
      %2243 = vrot.lane.b32.xlu0 %v1080, 21
      %v2244 = vpop.permute.xlu0 %2243
      %2245 = vrot.lane.b32.xlu0 %v1083, 21
      %v2246 = vpop.permute.xlu0 %2245
      %2247 = vrot.lane.b32.xlu0 %v1095, 21
      %v2248 = vpop.permute.xlu0 %2247
      %2249 = vrot.lane.b32.xlu0 %v1098, 21
      %v2250 = vpop.permute.xlu0 %2249
      %2251 = vrot.lane.b32.xlu0 %v1110, 21
      %v2252 = vpop.permute.xlu0 %2251
      %2253 = vrot.lane.b32.xlu0 %v1113, 21
      %v2254 = vpop.permute.xlu0 %2253
      %2255 = vrot.lane.b32.xlu0 %v1125, 21
      %v2256 = vpop.permute.xlu0 %2255
      %2257 = vrot.lane.b32.xlu0 %v1128, 21
      %v2258 = vpop.permute.xlu0 %2257
      %2259 = vrot.lane.b32.xlu0 %v1140, 21
      %v2260 = vpop.permute.xlu0 %2259
      %2261 = vrot.lane.b32.xlu0 %v1143, 21
      %v2262 = vpop.permute.xlu0 %2261
      %2263 = vrot.lane.b32.xlu0 %v1155, 21
      %v2264 = vpop.permute.xlu0 %2263
      %2265 = vrot.lane.b32.xlu0 %v1158, 21
      %v2266 = vpop.permute.xlu0 %2265
      %2267 = vrot.lane.b32.xlu0 %v1170, 21
      %v2268 = vpop.permute.xlu0 %2267
      %2269 = vrot.lane.b32.xlu0 %v1173, 21
      %v2270 = vpop.permute.xlu0 %2269
      %2271 = vrot.lane.b32.xlu0 %v1185, 21
      %v2272 = vpop.permute.xlu0 %2271
      %2273 = vrot.lane.b32.xlu0 %v1188, 21
      %v2274 = vpop.permute.xlu0 %2273
      %2275 = vrot.lane.b32.xlu0 %v1200, 21
      %v2276 = vpop.permute.xlu0 %2275
      %2277 = vrot.lane.b32.xlu0 %v1203, 21
      %v2278 = vpop.permute.xlu0 %2277
      %2279 = vrot.lane.b32.xlu0 %v1215, 21
      %v2280 = vpop.permute.xlu0 %2279
      %2281 = vrot.lane.b32.xlu0 %v1218, 21
      %v2282 = vpop.permute.xlu0 %2281
      %2283 = vrot.lane.b32.xlu0 %v1230, 21
      %v2284 = vpop.permute.xlu0 %2283
      %2285 = vrot.lane.b32.xlu0 %v1233, 21
      %v2286 = vpop.permute.xlu0 %2285
      %2287 = vrot.lane.b32.xlu0 %v1245, 21
      %v2288 = vpop.permute.xlu0 %2287
      %2289 = vrot.lane.b32.xlu0 %v1248, 21
      %v2290 = vpop.permute.xlu0 %2289
      %2291 = vrot.lane.b32.xlu0 %v1260, 21
      %v2292 = vpop.permute.xlu0 %2291
      %2293 = vrot.lane.b32.xlu0 %v1263, 21
      %v2294 = vpop.permute.xlu0 %2293
      %2295 = vrot.lane.b32.xlu0 %v1275, 21
      %v2296 = vpop.permute.xlu0 %2295
      %2297 = vrot.lane.b32.xlu0 %v1278, 21
      %v2298 = vpop.permute.xlu0 %2297
      %2299 = vrot.lane.b32.xlu0 %v1290, 21
      %v2300 = vpop.permute.xlu0 %2299
      %2301 = vrot.lane.b32.xlu0 %v1293, 21
      %v2302 = vpop.permute.xlu0 %2301
      %2303 = vrot.lane.b32.xlu0 %v1305, 21
      %v2304 = vpop.permute.xlu0 %2303
      %2305 = vrot.lane.b32.xlu0 %v1308, 21
      %v2306 = vpop.permute.xlu0 %2305
      %2307 = vrot.lane.b32.xlu0 %v1320, 21
      %v2308 = vpop.permute.xlu0 %2307
      %2309 = vrot.lane.b32.xlu0 %v1323, 21
      %v2310 = vpop.permute.xlu0 %2309
      %2311 = vrot.lane.b32.xlu0 %v1335, 21
      %v2312 = vpop.permute.xlu0 %2311
      %2313 = vrot.lane.b32.xlu0 %v1338, 21
      %v2314 = vpop.permute.xlu0 %2313
      %2315 = vrot.lane.b32.xlu0 %v1811, 21
      %v2316 = vpop.permute.xlu0 %2315
      %2317 = vrot.lane.b32.xlu0 %v1814, 21
      %v2318 = vpop.permute.xlu0 %2317
      %2319 = vrot.lane.b32.xlu0 %v2199, 21
      %v2320 = vpop.permute.xlu0 %2319
      %2321 = vrot.lane.b32.xlu0 %v2202, 21
      %v2322 = vpop.permute.xlu0 %2321
      %v2323 = vrot.slane %v2066, 1
      %v2324 = vrot.slane %v2067, 1
      %v2325 = vsel %vm1459, %v2323, %v2324
      %2326 = vrot.lane.b32.xlu0 %v1468, 24
      %v2327 = vpop.permute.xlu0 %2326
      %2328 = vrot.lane.b32.xlu0 %v1467, 24
      %v2329 = vpop.permute.xlu0 %2328
      %2330 = vrot.lane.b32.xlu0 %v1471, 24
      %v2331 = vpop.permute.xlu0 %2330
      %2332 = vrot.lane.b32.xlu0 %v1470, 24
      %v2333 = vpop.permute.xlu0 %2332
      %2334 = vrot.lane.b32.xlu0 %v1474, 24
      %v2335 = vpop.permute.xlu0 %2334
      %2336 = vrot.lane.b32.xlu0 %v1473, 24
      %v2337 = vpop.permute.xlu0 %2336
      %2338 = vrot.lane.b32.xlu0 %v1477, 24
      %v2339 = vpop.permute.xlu0 %2338
      %2340 = vrot.lane.b32.xlu0 %v1476, 24
      %v2341 = vpop.permute.xlu0 %2340
      %2342 = vrot.lane.b32.xlu0 %v1480, 24
      %v2343 = vpop.permute.xlu0 %2342
      %2344 = vrot.lane.b32.xlu0 %v1479, 24
      %v2345 = vpop.permute.xlu0 %2344
      %2346 = vrot.lane.b32.xlu0 %v1483, 24
      %v2347 = vpop.permute.xlu0 %2346
      %2348 = vrot.lane.b32.xlu0 %v1482, 24
      %v2349 = vpop.permute.xlu0 %2348
      %2350 = vrot.lane.b32.xlu0 %v1486, 24
      %v2351 = vpop.permute.xlu0 %2350
      %2352 = vrot.lane.b32.xlu0 %v1485, 24
      %v2353 = vpop.permute.xlu0 %2352
      %2354 = vrot.lane.b32.xlu0 %v1489, 24
      %v2355 = vpop.permute.xlu0 %2354
      %2356 = vrot.lane.b32.xlu0 %v1488, 24
      %v2357 = vpop.permute.xlu0 %2356
      %2358 = vrot.lane.b32.xlu0 %v1492, 24
      %v2359 = vpop.permute.xlu0 %2358
      %2360 = vrot.lane.b32.xlu0 %v1491, 24
      %v2361 = vpop.permute.xlu0 %2360
      %2362 = vrot.lane.b32.xlu0 %v1495, 24
      %v2363 = vpop.permute.xlu0 %2362
      %2364 = vrot.lane.b32.xlu0 %v1494, 24
      %v2365 = vpop.permute.xlu0 %2364
      %2366 = vrot.lane.b32.xlu0 %v1498, 24
      %v2367 = vpop.permute.xlu0 %2366
      %2368 = vrot.lane.b32.xlu0 %v1497, 24
      %v2369 = vpop.permute.xlu0 %2368
      %2370 = vrot.lane.b32.xlu0 %v1501, 24
      %v2371 = vpop.permute.xlu0 %2370
      %2372 = vrot.lane.b32.xlu0 %v1500, 24
      %v2373 = vpop.permute.xlu0 %2372
      %2374 = vrot.lane.b32.xlu0 %v1504, 24
      %v2375 = vpop.permute.xlu0 %2374
      %2376 = vrot.lane.b32.xlu0 %v1503, 24
      %v2377 = vpop.permute.xlu0 %2376
      %2378 = vrot.lane.b32.xlu0 %v1507, 24
      %v2379 = vpop.permute.xlu0 %2378
      %2380 = vrot.lane.b32.xlu0 %v1506, 24
      %v2381 = vpop.permute.xlu0 %2380
      %2382 = vrot.lane.b32.xlu0 %v1510, 24
      %v2383 = vpop.permute.xlu0 %2382
      %2384 = vrot.lane.b32.xlu0 %v1509, 24
      %v2385 = vpop.permute.xlu0 %2384
      %2386 = vrot.lane.b32.xlu0 %v1513, 24
      %v2387 = vpop.permute.xlu0 %2386
      %2388 = vrot.lane.b32.xlu0 %v1512, 24
      %v2389 = vpop.permute.xlu0 %2388
      %2390 = vrot.lane.b32.xlu0 %v1516, 24
      %v2391 = vpop.permute.xlu0 %2390
      %2392 = vrot.lane.b32.xlu0 %v1515, 24
      %v2393 = vpop.permute.xlu0 %2392
      %2394 = vrot.lane.b32.xlu0 %v1519, 24
      %v2395 = vpop.permute.xlu0 %2394
      %2396 = vrot.lane.b32.xlu0 %v1518, 24
      %v2397 = vpop.permute.xlu0 %2396
      %2398 = vrot.lane.b32.xlu0 %v1522, 24
      %v2399 = vpop.permute.xlu0 %2398
      %2400 = vrot.lane.b32.xlu0 %v1521, 24
      %v2401 = vpop.permute.xlu0 %2400
      %2402 = vrot.lane.b32.xlu0 %v1525, 24
      %v2403 = vpop.permute.xlu0 %2402
      %2404 = vrot.lane.b32.xlu0 %v1524, 24
      %v2405 = vpop.permute.xlu0 %2404
      %2406 = vrot.lane.b32.xlu0 %v1528, 24
      %v2407 = vpop.permute.xlu0 %2406
      %2408 = vrot.lane.b32.xlu0 %v1527, 24
      %v2409 = vpop.permute.xlu0 %2408
      %2410 = vrot.lane.b32.xlu0 %v1531, 24
      %v2411 = vpop.permute.xlu0 %2410
      %2412 = vrot.lane.b32.xlu0 %v1530, 24
      %v2413 = vpop.permute.xlu0 %2412
      %2414 = vrot.lane.b32.xlu0 %v1534, 24
      %v2415 = vpop.permute.xlu0 %2414
      %2416 = vrot.lane.b32.xlu0 %v1533, 24
      %v2417 = vpop.permute.xlu0 %2416
      %2418 = vrot.lane.b32.xlu0 %v1537, 24
      %v2419 = vpop.permute.xlu0 %2418
      %2420 = vrot.lane.b32.xlu0 %v1536, 24
      %v2421 = vpop.permute.xlu0 %2420
      %2422 = vrot.lane.b32.xlu0 %v1540, 24
      %v2423 = vpop.permute.xlu0 %2422
      %2424 = vrot.lane.b32.xlu0 %v1539, 24
      %v2425 = vpop.permute.xlu0 %2424
      %2426 = vrot.lane.b32.xlu0 %v1543, 24
      %v2427 = vpop.permute.xlu0 %2426
      %2428 = vrot.lane.b32.xlu0 %v1542, 24
      %v2429 = vpop.permute.xlu0 %2428
      %2430 = vrot.lane.b32.xlu0 %v1546, 24
      %v2431 = vpop.permute.xlu0 %2430
      %2432 = vrot.lane.b32.xlu0 %v1545, 24
      %v2433 = vpop.permute.xlu0 %2432
      %2434 = vrot.lane.b32.xlu0 %v1549, 24
      %v2435 = vpop.permute.xlu0 %2434
      %2436 = vrot.lane.b32.xlu0 %v1548, 24
      %v2437 = vpop.permute.xlu0 %2436
      %2438 = vrot.lane.b32.xlu0 %v1937, 24
      %v2439 = vpop.permute.xlu0 %2438
      %2440 = vrot.lane.b32.xlu0 %v1936, 24
      %v2441 = vpop.permute.xlu0 %2440
      %2442 = vrot.lane.b32.xlu0 %v2325, 24
      %v2443 = vpop.permute.xlu0 %2442
      %2444 = vrot.lane.b32.xlu0 %v2324, 24
      %v2445 = vpop.permute.xlu0 %2444
      %vm2446 = vcmask 23552
      %v2448 = vsel %vm2446, %v828, %v1340
      %v2450 = vsel %vm2446, %v829, %v1342
      %v2452 = vsel %vm2446, %v830, %v1344
      %v2454 = vsel %vm2446, %v831, %v1346
      %v2456 = vsel %vm2446, %v832, %v1348
      %v2458 = vsel %vm2446, %v833, %v1350
      %v2460 = vsel %vm2446, %v834, %v1352
      %v2462 = vsel %vm2446, %v835, %v1354
      %v2464 = vsel %vm2446, %v836, %v1356
      %v2466 = vsel %vm2446, %v837, %v1358
      %v2468 = vsel %vm2446, %v838, %v1360
      %v2470 = vsel %vm2446, %v839, %v1362
      %v2472 = vsel %vm2446, %v840, %v1364
      %v2474 = vsel %vm2446, %v841, %v1366
      %v2476 = vsel %vm2446, %v842, %v1368
      %v2478 = vsel %vm2446, %v843, %v1370
      %v2480 = vsel %vm2446, %v844, %v1372
      %v2482 = vsel %vm2446, %v845, %v1374
      %v2484 = vsel %vm2446, %v846, %v1376
      %v2486 = vsel %vm2446, %v847, %v1378
      %v2488 = vsel %vm2446, %v848, %v1380
      %v2490 = vsel %vm2446, %v849, %v1382
      %v2492 = vsel %vm2446, %v850, %v1384
      %v2494 = vsel %vm2446, %v851, %v1386
      %v2496 = vsel %vm2446, %v852, %v1388
      %v2498 = vsel %vm2446, %v853, %v1390
      %v2500 = vsel %vm2446, %v854, %v1392
      %v2502 = vsel %vm2446, %v855, %v1394
      %v2504 = vsel %vm2446, %v856, %v1396
      %v2506 = vsel %vm2446, %v857, %v1398
      %v2508 = vsel %vm2446, %v858, %v1400
      %v2510 = vsel %vm2446, %v859, %v1402
      %v2512 = vsel %vm2446, %v860, %v1404
      %v2514 = vsel %vm2446, %v861, %v1406
      %v2516 = vsel %vm2446, %v862, %v1408
      %v2518 = vsel %vm2446, %v863, %v1410
      %v2520 = vsel %vm2446, %v864, %v1412
      %v2522 = vsel %vm2446, %v865, %v1414
      %v2524 = vsel %vm2446, %v866, %v1416
      %v2526 = vsel %vm2446, %v867, %v1418
      %v2528 = vsel %vm2446, %v868, %v1420
      %v2530 = vsel %vm2446, %v869, %v1422
      %v2532 = vsel %vm2446, %v870, %v1424
      %v2534 = vsel %vm2446, %v871, %v1426
      %v2536 = vsel %vm2446, %v872, %v1428
      %v2538 = vsel %vm2446, %v873, %v1430
      %v2540 = vsel %vm2446, %v874, %v1432
      %v2542 = vsel %vm2446, %v875, %v1434
      %v2544 = vsel %vm2446, %v876, %v1436
      %v2546 = vsel %vm2446, %v877, %v1438
      %v2548 = vsel %vm2446, %v878, %v1440
      %v2550 = vsel %vm2446, %v879, %v1442
      %v2552 = vsel %vm2446, %v880, %v1444
      %v2554 = vsel %vm2446, %v881, %v1446
      %v2556 = vsel %vm2446, %v882, %v1448
      %v2558 = vsel %vm2446, %v883, %v1450
      %v2560 = vsel %vm2446, %v884, %v1452
      %v2562 = vsel %vm2446, %v885, %v1454
      %v2564 = vsel %vm2446, %v886, %v1456
      %v2566 = vsel %vm2446, %v887, %v1458
      %vm2567 = vcmask 48128
      %v2569 = vsel %vm2567, %v2448, %v1551
      %v2571 = vsel %vm2567, %v2450, %v1553
      %v2573 = vsel %vm2567, %v2452, %v1555
      %v2575 = vsel %vm2567, %v2454, %v1557
      %v2577 = vsel %vm2567, %v2456, %v1559
      %v2579 = vsel %vm2567, %v2458, %v1561
      %v2581 = vsel %vm2567, %v2460, %v1563
      %v2583 = vsel %vm2567, %v2462, %v1565
      %v2585 = vsel %vm2567, %v2464, %v1567
      %v2587 = vsel %vm2567, %v2466, %v1569
      %v2589 = vsel %vm2567, %v2468, %v1571
      %v2591 = vsel %vm2567, %v2470, %v1573
      %v2593 = vsel %vm2567, %v2472, %v1575
      %v2595 = vsel %vm2567, %v2474, %v1577
      %v2597 = vsel %vm2567, %v2476, %v1579
      %v2599 = vsel %vm2567, %v2478, %v1581
      %v2601 = vsel %vm2567, %v2480, %v1583
      %v2603 = vsel %vm2567, %v2482, %v1585
      %v2605 = vsel %vm2567, %v2484, %v1587
      %v2607 = vsel %vm2567, %v2486, %v1589
      %v2609 = vsel %vm2567, %v2488, %v1591
      %v2611 = vsel %vm2567, %v2490, %v1593
      %v2613 = vsel %vm2567, %v2492, %v1595
      %v2615 = vsel %vm2567, %v2494, %v1597
      %v2617 = vsel %vm2567, %v2496, %v1599
      %v2619 = vsel %vm2567, %v2498, %v1601
      %v2621 = vsel %vm2567, %v2500, %v1603
      %v2623 = vsel %vm2567, %v2502, %v1605
      %v2625 = vsel %vm2567, %v2504, %v1607
      %v2627 = vsel %vm2567, %v2506, %v1609
      %v2629 = vsel %vm2567, %v2508, %v1611
      %v2631 = vsel %vm2567, %v2510, %v1613
      %v2633 = vsel %vm2567, %v2512, %v1615
      %v2635 = vsel %vm2567, %v2514, %v1617
      %v2637 = vsel %vm2567, %v2516, %v1619
      %v2639 = vsel %vm2567, %v2518, %v1621
      %v2641 = vsel %vm2567, %v2520, %v1623
      %v2643 = vsel %vm2567, %v2522, %v1625
      %v2645 = vsel %vm2567, %v2524, %v1627
      %v2647 = vsel %vm2567, %v2526, %v1629
      %v2649 = vsel %vm2567, %v2528, %v1631
      %v2651 = vsel %vm2567, %v2530, %v1633
      %v2653 = vsel %vm2567, %v2532, %v1635
      %v2655 = vsel %vm2567, %v2534, %v1637
      %v2657 = vsel %vm2567, %v2536, %v1639
      %v2659 = vsel %vm2567, %v2538, %v1641
      %v2661 = vsel %vm2567, %v2540, %v1643
      %v2663 = vsel %vm2567, %v2542, %v1645
      %v2665 = vsel %vm2567, %v2544, %v1647
      %v2667 = vsel %vm2567, %v2546, %v1649
      %v2669 = vsel %vm2567, %v2548, %v1651
      %v2671 = vsel %vm2567, %v2550, %v1653
      %v2673 = vsel %vm2567, %v2552, %v1655
      %v2675 = vsel %vm2567, %v2554, %v1657
      %v2677 = vsel %vm2567, %v2556, %v1659
      %v2679 = vsel %vm2567, %v2558, %v1661
      %v2681 = vsel %vm2567, %v2560, %v1663
      %v2683 = vsel %vm2567, %v2562, %v1665
      %v2685 = vsel %vm2567, %v2564, %v1667
      %v2687 = vsel %vm2567, %v2566, %v1669
      %vm2688 = vcmask 72704
      %v2690 = vsel %vm2688, %v2569, %v1681
      %v2692 = vsel %vm2688, %v2571, %v1683
      %v2694 = vsel %vm2688, %v2573, %v1685
      %v2696 = vsel %vm2688, %v2575, %v1687
      %v2698 = vsel %vm2688, %v2577, %v1689
      %v2700 = vsel %vm2688, %v2579, %v1691
      %v2702 = vsel %vm2688, %v2581, %v1693
      %v2704 = vsel %vm2688, %v2583, %v1695
      %v2706 = vsel %vm2688, %v2585, %v1697
      %v2708 = vsel %vm2688, %v2587, %v1699
      %v2710 = vsel %vm2688, %v2589, %v1701
      %v2712 = vsel %vm2688, %v2591, %v1703
      %v2714 = vsel %vm2688, %v2593, %v1705
      %v2716 = vsel %vm2688, %v2595, %v1707
      %v2718 = vsel %vm2688, %v2597, %v1709
      %v2720 = vsel %vm2688, %v2599, %v1711
      %v2722 = vsel %vm2688, %v2601, %v1713
      %v2724 = vsel %vm2688, %v2603, %v1715
      %v2726 = vsel %vm2688, %v2605, %v1717
      %v2728 = vsel %vm2688, %v2607, %v1719
      %v2730 = vsel %vm2688, %v2609, %v1721
      %v2732 = vsel %vm2688, %v2611, %v1723
      %v2734 = vsel %vm2688, %v2613, %v1725
      %v2736 = vsel %vm2688, %v2615, %v1727
      %v2738 = vsel %vm2688, %v2617, %v1729
      %v2740 = vsel %vm2688, %v2619, %v1731
      %v2742 = vsel %vm2688, %v2621, %v1733
      %v2744 = vsel %vm2688, %v2623, %v1735
      %v2746 = vsel %vm2688, %v2625, %v1737
      %v2748 = vsel %vm2688, %v2627, %v1739
      %v2750 = vsel %vm2688, %v2629, %v1741
      %v2752 = vsel %vm2688, %v2631, %v1743
      %v2754 = vsel %vm2688, %v2633, %v1745
      %v2756 = vsel %vm2688, %v2635, %v1747
      %v2758 = vsel %vm2688, %v2637, %v1749
      %v2760 = vsel %vm2688, %v2639, %v1751
      %v2762 = vsel %vm2688, %v2641, %v1753
      %v2764 = vsel %vm2688, %v2643, %v1755
      %v2766 = vsel %vm2688, %v2645, %v1757
      %v2768 = vsel %vm2688, %v2647, %v1759
      %v2770 = vsel %vm2688, %v2649, %v1761
      %v2772 = vsel %vm2688, %v2651, %v1763
      %v2774 = vsel %vm2688, %v2653, %v1765
      %v2776 = vsel %vm2688, %v2655, %v1767
      %v2778 = vsel %vm2688, %v2657, %v1769
      %v2780 = vsel %vm2688, %v2659, %v1771
      %v2782 = vsel %vm2688, %v2661, %v1773
      %v2784 = vsel %vm2688, %v2663, %v1775
      %v2786 = vsel %vm2688, %v2665, %v1777
      %v2788 = vsel %vm2688, %v2667, %v1779
      %v2790 = vsel %vm2688, %v2669, %v1781
      %v2792 = vsel %vm2688, %v2671, %v1783
      %v2794 = vsel %vm2688, %v2673, %v1785
      %v2796 = vsel %vm2688, %v2675, %v1787
      %v2798 = vsel %vm2688, %v2677, %v1789
      %v2800 = vsel %vm2688, %v2679, %v1791
      %v2802 = vsel %vm2688, %v2681, %v1793
      %v2804 = vsel %vm2688, %v2683, %v1795
      %v2806 = vsel %vm2688, %v2685, %v1797
      %v2808 = vsel %vm2688, %v2687, %v1799
      %vm2809 = vcmask 97280
      %v2811 = vsel %vm2809, %v2690, %v1816
      %v2813 = vsel %vm2809, %v2692, %v1818
      %v2815 = vsel %vm2809, %v2694, %v1820
      %v2817 = vsel %vm2809, %v2696, %v1822
      %v2819 = vsel %vm2809, %v2698, %v1824
      %v2821 = vsel %vm2809, %v2700, %v1826
      %v2823 = vsel %vm2809, %v2702, %v1828
      %v2825 = vsel %vm2809, %v2704, %v1830
      %v2827 = vsel %vm2809, %v2706, %v1832
      %v2829 = vsel %vm2809, %v2708, %v1834
      %v2831 = vsel %vm2809, %v2710, %v1836
      %v2833 = vsel %vm2809, %v2712, %v1838
      %v2835 = vsel %vm2809, %v2714, %v1840
      %v2837 = vsel %vm2809, %v2716, %v1842
      %v2839 = vsel %vm2809, %v2718, %v1844
      %v2841 = vsel %vm2809, %v2720, %v1846
      %v2843 = vsel %vm2809, %v2722, %v1848
      %v2845 = vsel %vm2809, %v2724, %v1850
      %v2847 = vsel %vm2809, %v2726, %v1852
      %v2849 = vsel %vm2809, %v2728, %v1854
      %v2851 = vsel %vm2809, %v2730, %v1856
      %v2853 = vsel %vm2809, %v2732, %v1858
      %v2855 = vsel %vm2809, %v2734, %v1860
      %v2857 = vsel %vm2809, %v2736, %v1862
      %v2859 = vsel %vm2809, %v2738, %v1864
      %v2861 = vsel %vm2809, %v2740, %v1866
      %v2863 = vsel %vm2809, %v2742, %v1868
      %v2865 = vsel %vm2809, %v2744, %v1870
      %v2867 = vsel %vm2809, %v2746, %v1872
      %v2869 = vsel %vm2809, %v2748, %v1874
      %v2871 = vsel %vm2809, %v2750, %v1876
      %v2873 = vsel %vm2809, %v2752, %v1878
      %v2875 = vsel %vm2809, %v2754, %v1880
      %v2877 = vsel %vm2809, %v2756, %v1882
      %v2879 = vsel %vm2809, %v2758, %v1884
      %v2881 = vsel %vm2809, %v2760, %v1886
      %v2883 = vsel %vm2809, %v2762, %v1888
      %v2885 = vsel %vm2809, %v2764, %v1890
      %v2887 = vsel %vm2809, %v2766, %v1892
      %v2889 = vsel %vm2809, %v2768, %v1894
      %v2891 = vsel %vm2809, %v2770, %v1896
      %v2893 = vsel %vm2809, %v2772, %v1898
      %v2895 = vsel %vm2809, %v2774, %v1900
      %v2897 = vsel %vm2809, %v2776, %v1902
      %v2899 = vsel %vm2809, %v2778, %v1904
      %v2901 = vsel %vm2809, %v2780, %v1906
      %v2903 = vsel %vm2809, %v2782, %v1908
      %v2905 = vsel %vm2809, %v2784, %v1910
      %v2907 = vsel %vm2809, %v2786, %v1912
      %v2909 = vsel %vm2809, %v2788, %v1914
      %v2911 = vsel %vm2809, %v2790, %v1916
      %v2913 = vsel %vm2809, %v2792, %v1918
      %v2915 = vsel %vm2809, %v2794, %v1920
      %v2917 = vsel %vm2809, %v2796, %v1922
      %v2919 = vsel %vm2809, %v2798, %v1924
      %v2921 = vsel %vm2809, %v2800, %v1926
      %v2923 = vsel %vm2809, %v2802, %v1928
      %v2925 = vsel %vm2809, %v2804, %v1930
      %v2927 = vsel %vm2809, %v2806, %v1932
      %v2929 = vsel %vm2809, %v2808, %v1934
      %vm2930 = vcmask 121856
      %v2932 = vsel %vm2930, %v2811, %v1939
      %v2934 = vsel %vm2930, %v2813, %v1941
      %v2936 = vsel %vm2930, %v2815, %v1943
      %v2938 = vsel %vm2930, %v2817, %v1945
      %v2940 = vsel %vm2930, %v2819, %v1947
      %v2942 = vsel %vm2930, %v2821, %v1949
      %v2944 = vsel %vm2930, %v2823, %v1951
      %v2946 = vsel %vm2930, %v2825, %v1953
      %v2948 = vsel %vm2930, %v2827, %v1955
      %v2950 = vsel %vm2930, %v2829, %v1957
      %v2952 = vsel %vm2930, %v2831, %v1959
      %v2954 = vsel %vm2930, %v2833, %v1961
      %v2956 = vsel %vm2930, %v2835, %v1963
      %v2958 = vsel %vm2930, %v2837, %v1965
      %v2960 = vsel %vm2930, %v2839, %v1967
      %v2962 = vsel %vm2930, %v2841, %v1969
      %v2964 = vsel %vm2930, %v2843, %v1971
      %v2966 = vsel %vm2930, %v2845, %v1973
      %v2968 = vsel %vm2930, %v2847, %v1975
      %v2970 = vsel %vm2930, %v2849, %v1977
      %v2972 = vsel %vm2930, %v2851, %v1979
      %v2974 = vsel %vm2930, %v2853, %v1981
      %v2976 = vsel %vm2930, %v2855, %v1983
      %v2978 = vsel %vm2930, %v2857, %v1985
      %v2980 = vsel %vm2930, %v2859, %v1987
      %v2982 = vsel %vm2930, %v2861, %v1989
      %v2984 = vsel %vm2930, %v2863, %v1991
      %v2986 = vsel %vm2930, %v2865, %v1993
      %v2988 = vsel %vm2930, %v2867, %v1995
      %v2990 = vsel %vm2930, %v2869, %v1997
      %v2992 = vsel %vm2930, %v2871, %v1999
      %v2994 = vsel %vm2930, %v2873, %v2001
      %v2996 = vsel %vm2930, %v2875, %v2003
      %v2998 = vsel %vm2930, %v2877, %v2005
      %v3000 = vsel %vm2930, %v2879, %v2007
      %v3002 = vsel %vm2930, %v2881, %v2009
      %v3004 = vsel %vm2930, %v2883, %v2011
      %v3006 = vsel %vm2930, %v2885, %v2013
      %v3008 = vsel %vm2930, %v2887, %v2015
      %v3010 = vsel %vm2930, %v2889, %v2017
      %v3012 = vsel %vm2930, %v2891, %v2019
      %v3014 = vsel %vm2930, %v2893, %v2021
      %v3016 = vsel %vm2930, %v2895, %v2023
      %v3018 = vsel %vm2930, %v2897, %v2025
      %v3020 = vsel %vm2930, %v2899, %v2027
      %v3022 = vsel %vm2930, %v2901, %v2029
      %v3024 = vsel %vm2930, %v2903, %v2031
      %v3026 = vsel %vm2930, %v2905, %v2033
      %v3028 = vsel %vm2930, %v2907, %v2035
      %v3030 = vsel %vm2930, %v2909, %v2037
      %v3032 = vsel %vm2930, %v2911, %v2039
      %v3034 = vsel %vm2930, %v2913, %v2041
      %v3036 = vsel %vm2930, %v2915, %v2043
      %v3038 = vsel %vm2930, %v2917, %v2045
      %v3040 = vsel %vm2930, %v2919, %v2047
      %v3042 = vsel %vm2930, %v2921, %v2049
      %v3044 = vsel %vm2930, %v2923, %v2051
      %v3046 = vsel %vm2930, %v2925, %v2053
      %v3048 = vsel %vm2930, %v2927, %v2055
      %v3050 = vsel %vm2930, %v2929, %v2057
      %vm3051 = vcmask 146432
      %v3053 = vsel %vm3051, %v2932, %v2069
      %v3055 = vsel %vm3051, %v2934, %v2071
      %v3057 = vsel %vm3051, %v2936, %v2073
      %v3059 = vsel %vm3051, %v2938, %v2075
      %v3061 = vsel %vm3051, %v2940, %v2077
      %v3063 = vsel %vm3051, %v2942, %v2079
      %v3065 = vsel %vm3051, %v2944, %v2081
      %v3067 = vsel %vm3051, %v2946, %v2083
      %v3069 = vsel %vm3051, %v2948, %v2085
      %v3071 = vsel %vm3051, %v2950, %v2087
      %v3073 = vsel %vm3051, %v2952, %v2089
      %v3075 = vsel %vm3051, %v2954, %v2091
      %v3077 = vsel %vm3051, %v2956, %v2093
      %v3079 = vsel %vm3051, %v2958, %v2095
      %v3081 = vsel %vm3051, %v2960, %v2097
      %v3083 = vsel %vm3051, %v2962, %v2099
      %v3085 = vsel %vm3051, %v2964, %v2101
      %v3087 = vsel %vm3051, %v2966, %v2103
      %v3089 = vsel %vm3051, %v2968, %v2105
      %v3091 = vsel %vm3051, %v2970, %v2107
      %v3093 = vsel %vm3051, %v2972, %v2109
      %v3095 = vsel %vm3051, %v2974, %v2111
      %v3097 = vsel %vm3051, %v2976, %v2113
      %v3099 = vsel %vm3051, %v2978, %v2115
      %v3101 = vsel %vm3051, %v2980, %v2117
      %v3103 = vsel %vm3051, %v2982, %v2119
      %v3105 = vsel %vm3051, %v2984, %v2121
      %v3107 = vsel %vm3051, %v2986, %v2123
      %v3109 = vsel %vm3051, %v2988, %v2125
      %v3111 = vsel %vm3051, %v2990, %v2127
      %v3113 = vsel %vm3051, %v2992, %v2129
      %v3115 = vsel %vm3051, %v2994, %v2131
      %v3117 = vsel %vm3051, %v2996, %v2133
      %v3119 = vsel %vm3051, %v2998, %v2135
      %v3121 = vsel %vm3051, %v3000, %v2137
      %v3123 = vsel %vm3051, %v3002, %v2139
      %v3125 = vsel %vm3051, %v3004, %v2141
      %v3127 = vsel %vm3051, %v3006, %v2143
      %v3129 = vsel %vm3051, %v3008, %v2145
      %v3131 = vsel %vm3051, %v3010, %v2147
      %v3133 = vsel %vm3051, %v3012, %v2149
      %v3135 = vsel %vm3051, %v3014, %v2151
      %v3137 = vsel %vm3051, %v3016, %v2153
      %v3139 = vsel %vm3051, %v3018, %v2155
      %v3141 = vsel %vm3051, %v3020, %v2157
      %v3143 = vsel %vm3051, %v3022, %v2159
      %v3145 = vsel %vm3051, %v3024, %v2161
      %v3147 = vsel %vm3051, %v3026, %v2163
      %v3149 = vsel %vm3051, %v3028, %v2165
      %v3151 = vsel %vm3051, %v3030, %v2167
      %v3153 = vsel %vm3051, %v3032, %v2169
      %v3155 = vsel %vm3051, %v3034, %v2171
      %v3157 = vsel %vm3051, %v3036, %v2173
      %v3159 = vsel %vm3051, %v3038, %v2175
      %v3161 = vsel %vm3051, %v3040, %v2177
      %v3163 = vsel %vm3051, %v3042, %v2179
      %v3165 = vsel %vm3051, %v3044, %v2181
      %v3167 = vsel %vm3051, %v3046, %v2183
      %v3169 = vsel %vm3051, %v3048, %v2185
      %v3171 = vsel %vm3051, %v3050, %v2187
      %vm3172 = vcmask 171008
      %v3174 = vsel %vm3172, %v3053, %v2204
      %v3176 = vsel %vm3172, %v3055, %v2206
      %v3178 = vsel %vm3172, %v3057, %v2208
      %v3180 = vsel %vm3172, %v3059, %v2210
      %v3182 = vsel %vm3172, %v3061, %v2212
      %v3184 = vsel %vm3172, %v3063, %v2214
      %v3186 = vsel %vm3172, %v3065, %v2216
      %v3188 = vsel %vm3172, %v3067, %v2218
      %v3190 = vsel %vm3172, %v3069, %v2220
      %v3192 = vsel %vm3172, %v3071, %v2222
      %v3194 = vsel %vm3172, %v3073, %v2224
      %v3196 = vsel %vm3172, %v3075, %v2226
      %v3198 = vsel %vm3172, %v3077, %v2228
      %v3200 = vsel %vm3172, %v3079, %v2230
      %v3202 = vsel %vm3172, %v3081, %v2232
      %v3204 = vsel %vm3172, %v3083, %v2234
      %v3206 = vsel %vm3172, %v3085, %v2236
      %v3208 = vsel %vm3172, %v3087, %v2238
      %v3210 = vsel %vm3172, %v3089, %v2240
      %v3212 = vsel %vm3172, %v3091, %v2242
      %v3214 = vsel %vm3172, %v3093, %v2244
      %v3216 = vsel %vm3172, %v3095, %v2246
      %v3218 = vsel %vm3172, %v3097, %v2248
      %v3220 = vsel %vm3172, %v3099, %v2250
      %v3222 = vsel %vm3172, %v3101, %v2252
      %v3224 = vsel %vm3172, %v3103, %v2254
      %v3226 = vsel %vm3172, %v3105, %v2256
      %v3228 = vsel %vm3172, %v3107, %v2258
      %v3230 = vsel %vm3172, %v3109, %v2260
      %v3232 = vsel %vm3172, %v3111, %v2262
      %v3234 = vsel %vm3172, %v3113, %v2264
      %v3236 = vsel %vm3172, %v3115, %v2266
      %v3238 = vsel %vm3172, %v3117, %v2268
      %v3240 = vsel %vm3172, %v3119, %v2270
      %v3242 = vsel %vm3172, %v3121, %v2272
      %v3244 = vsel %vm3172, %v3123, %v2274
      %v3246 = vsel %vm3172, %v3125, %v2276
      %v3248 = vsel %vm3172, %v3127, %v2278
      %v3250 = vsel %vm3172, %v3129, %v2280
      %v3252 = vsel %vm3172, %v3131, %v2282
      %v3254 = vsel %vm3172, %v3133, %v2284
      %v3256 = vsel %vm3172, %v3135, %v2286
      %v3258 = vsel %vm3172, %v3137, %v2288
      %v3260 = vsel %vm3172, %v3139, %v2290
      %v3262 = vsel %vm3172, %v3141, %v2292
      %v3264 = vsel %vm3172, %v3143, %v2294
      %v3266 = vsel %vm3172, %v3145, %v2296
      %v3268 = vsel %vm3172, %v3147, %v2298
      %v3270 = vsel %vm3172, %v3149, %v2300
      %v3272 = vsel %vm3172, %v3151, %v2302
      %v3274 = vsel %vm3172, %v3153, %v2304
      %v3276 = vsel %vm3172, %v3155, %v2306
      %v3278 = vsel %vm3172, %v3157, %v2308
      %v3280 = vsel %vm3172, %v3159, %v2310
      %v3282 = vsel %vm3172, %v3161, %v2312
      %v3284 = vsel %vm3172, %v3163, %v2314
      %v3286 = vsel %vm3172, %v3165, %v2316
      %v3288 = vsel %vm3172, %v3167, %v2318
      %v3290 = vsel %vm3172, %v3169, %v2320
      %v3292 = vsel %vm3172, %v3171, %v2322
      %vm3293 = vcmask 195584
      %v3295 = vsel %vm3293, %v3174, %v2327
      %v3297 = vsel %vm3293, %v3176, %v2329
      %v3299 = vsel %vm3293, %v3178, %v2331
      %v3301 = vsel %vm3293, %v3180, %v2333
      %v3303 = vsel %vm3293, %v3182, %v2335
      %v3305 = vsel %vm3293, %v3184, %v2337
      %v3307 = vsel %vm3293, %v3186, %v2339
      %v3309 = vsel %vm3293, %v3188, %v2341
      %v3311 = vsel %vm3293, %v3190, %v2343
      %v3313 = vsel %vm3293, %v3192, %v2345
      %v3315 = vsel %vm3293, %v3194, %v2347
      %v3317 = vsel %vm3293, %v3196, %v2349
      %v3319 = vsel %vm3293, %v3198, %v2351
      %v3321 = vsel %vm3293, %v3200, %v2353
      %v3323 = vsel %vm3293, %v3202, %v2355
      %v3325 = vsel %vm3293, %v3204, %v2357
      %v3327 = vsel %vm3293, %v3206, %v2359
      %v3329 = vsel %vm3293, %v3208, %v2361
      %v3331 = vsel %vm3293, %v3210, %v2363
      %v3333 = vsel %vm3293, %v3212, %v2365
      %v3335 = vsel %vm3293, %v3214, %v2367
      %v3337 = vsel %vm3293, %v3216, %v2369
      %v3339 = vsel %vm3293, %v3218, %v2371
      %v3341 = vsel %vm3293, %v3220, %v2373
      %v3343 = vsel %vm3293, %v3222, %v2375
      %v3345 = vsel %vm3293, %v3224, %v2377
      %v3347 = vsel %vm3293, %v3226, %v2379
      %v3349 = vsel %vm3293, %v3228, %v2381
      %v3351 = vsel %vm3293, %v3230, %v2383
      %v3353 = vsel %vm3293, %v3232, %v2385
      %v3355 = vsel %vm3293, %v3234, %v2387
      %v3357 = vsel %vm3293, %v3236, %v2389
      %v3359 = vsel %vm3293, %v3238, %v2391
      %v3361 = vsel %vm3293, %v3240, %v2393
      %v3363 = vsel %vm3293, %v3242, %v2395
      %v3365 = vsel %vm3293, %v3244, %v2397
      %v3367 = vsel %vm3293, %v3246, %v2399
      %v3369 = vsel %vm3293, %v3248, %v2401
      %v3371 = vsel %vm3293, %v3250, %v2403
      %v3373 = vsel %vm3293, %v3252, %v2405
      %v3375 = vsel %vm3293, %v3254, %v2407
      %v3377 = vsel %vm3293, %v3256, %v2409
      %v3379 = vsel %vm3293, %v3258, %v2411
      %v3381 = vsel %vm3293, %v3260, %v2413
      %v3383 = vsel %vm3293, %v3262, %v2415
      %v3385 = vsel %vm3293, %v3264, %v2417
      %v3387 = vsel %vm3293, %v3266, %v2419
      %v3389 = vsel %vm3293, %v3268, %v2421
      %v3391 = vsel %vm3293, %v3270, %v2423
      %v3393 = vsel %vm3293, %v3272, %v2425
      %v3395 = vsel %vm3293, %v3274, %v2427
      %v3397 = vsel %vm3293, %v3276, %v2429
      %v3399 = vsel %vm3293, %v3278, %v2431
      %v3401 = vsel %vm3293, %v3280, %v2433
      %v3403 = vsel %vm3293, %v3282, %v2435
      %v3405 = vsel %vm3293, %v3284, %v2437
      %v3407 = vsel %vm3293, %v3286, %v2439
      %v3409 = vsel %vm3293, %v3288, %v2441
      %v3411 = vsel %vm3293, %v3290, %v2443
      %v3413 = vsel %vm3293, %v3292, %v2445
      %vm3414 = vcmask 220160
      %v3416 = vsel %vm3414, %v3295, 0
      %v3417 = vsel %vm3414, %v3297, 0
      %v3418 = vsel %vm3414, %v3299, 0
      %v3419 = vsel %vm3414, %v3301, 0
      %v3420 = vsel %vm3414, %v3303, 0
      %v3421 = vsel %vm3414, %v3305, 0
      %v3422 = vsel %vm3414, %v3307, 0
      %v3423 = vsel %vm3414, %v3309, 0
      %v3424 = vsel %vm3414, %v3311, 0
      %v3425 = vsel %vm3414, %v3313, 0
      %v3426 = vsel %vm3414, %v3315, 0
      %v3427 = vsel %vm3414, %v3317, 0
      %v3428 = vsel %vm3414, %v3319, 0
      %v3429 = vsel %vm3414, %v3321, 0
      %v3430 = vsel %vm3414, %v3323, 0
      %v3431 = vsel %vm3414, %v3325, 0
      %v3432 = vsel %vm3414, %v3327, 0
      %v3433 = vsel %vm3414, %v3329, 0
      %v3434 = vsel %vm3414, %v3331, 0
      %v3435 = vsel %vm3414, %v3333, 0
      %v3436 = vsel %vm3414, %v3335, 0
      %v3437 = vsel %vm3414, %v3337, 0
      %v3438 = vsel %vm3414, %v3339, 0
      %v3439 = vsel %vm3414, %v3341, 0
      %v3440 = vsel %vm3414, %v3343, 0
      %v3441 = vsel %vm3414, %v3345, 0
      %v3442 = vsel %vm3414, %v3347, 0
      %v3443 = vsel %vm3414, %v3349, 0
      %v3444 = vsel %vm3414, %v3351, 0
      %v3445 = vsel %vm3414, %v3353, 0
      %v3446 = vsel %vm3414, %v3355, 0
      %v3447 = vsel %vm3414, %v3357, 0
      %v3448 = vsel %vm3414, %v3359, 0
      %v3449 = vsel %vm3414, %v3361, 0
      %v3450 = vsel %vm3414, %v3363, 0
      %v3451 = vsel %vm3414, %v3365, 0
      %v3452 = vsel %vm3414, %v3367, 0
      %v3453 = vsel %vm3414, %v3369, 0
      %v3454 = vsel %vm3414, %v3371, 0
      %v3455 = vsel %vm3414, %v3373, 0
      %v3456 = vsel %vm3414, %v3375, 0
      %v3457 = vsel %vm3414, %v3377, 0
      %v3458 = vsel %vm3414, %v3379, 0
      %v3459 = vsel %vm3414, %v3381, 0
      %v3460 = vsel %vm3414, %v3383, 0
      %v3461 = vsel %vm3414, %v3385, 0
      %v3462 = vsel %vm3414, %v3387, 0
      %v3463 = vsel %vm3414, %v3389, 0
      %v3464 = vsel %vm3414, %v3391, 0
      %v3465 = vsel %vm3414, %v3393, 0
      %v3466 = vsel %vm3414, %v3395, 0
      %v3467 = vsel %vm3414, %v3397, 0
      %v3468 = vsel %vm3414, %v3399, 0
      %v3469 = vsel %vm3414, %v3401, 0
      %v3470 = vsel %vm3414, %v3403, 0
      %v3471 = vsel %vm3414, %v3405, 0
      %v3472 = vsel %vm3414, %v3407, 0
      %v3473 = vsel %vm3414, %v3409, 0
      %v3474 = vsel %vm3414, %v3411, 0
      %v3475 = vsel %vm3414, %v3413, 0
      %v3536 = vrot.slane %v3416, 1
      %v3537 = vrot.slane %v3416, 2
      %v3538 = vrot.slane %v3416, 3
      %v3539 = vrot.slane %v3416, 4
      %v3540 = vrot.slane %v3416, 5
      %v3541 = vrot.slane %v3416, 6
      %v3542 = vrot.slane %v3416, 7
      %v3543 = vrot.slane %v3417, 1
      %v3544 = vrot.slane %v3417, 2
      %v3545 = vrot.slane %v3417, 3
      %v3546 = vrot.slane %v3417, 4
      %v3547 = vrot.slane %v3417, 5
      %v3548 = vrot.slane %v3417, 6
      %v3549 = vrot.slane %v3418, 1
      %v3550 = vrot.slane %v3418, 2
      %v3551 = vrot.slane %v3418, 3
      %v3552 = vrot.slane %v3418, 4
      %v3553 = vrot.slane %v3418, 5
      %v3554 = vrot.slane %v3418, 6
      %v3555 = vrot.slane %v3418, 7
      %v3556 = vrot.slane %v3419, 1
      %v3557 = vrot.slane %v3419, 2
      %v3558 = vrot.slane %v3419, 3
      %v3559 = vrot.slane %v3419, 4
      %v3560 = vrot.slane %v3419, 5
      %v3561 = vrot.slane %v3419, 6
      %v3562 = vrot.slane %v3420, 1
      %v3563 = vrot.slane %v3420, 2
      %v3564 = vrot.slane %v3420, 3
      %v3565 = vrot.slane %v3420, 4
      %v3566 = vrot.slane %v3420, 5
      %v3567 = vrot.slane %v3420, 6
      %v3568 = vrot.slane %v3420, 7
      %v3569 = vrot.slane %v3421, 1
      %v3570 = vrot.slane %v3421, 2
      %v3571 = vrot.slane %v3421, 3
      %v3572 = vrot.slane %v3421, 4
      %v3573 = vrot.slane %v3421, 5
      %v3574 = vrot.slane %v3421, 6
      %v3575 = vrot.slane %v3422, 1
      %v3576 = vrot.slane %v3422, 2
      %v3577 = vrot.slane %v3422, 3
      %v3578 = vrot.slane %v3422, 4
      %v3579 = vrot.slane %v3422, 5
      %v3580 = vrot.slane %v3422, 6
      %v3581 = vrot.slane %v3422, 7
      %v3582 = vrot.slane %v3423, 1
      %v3583 = vrot.slane %v3423, 2
      %v3584 = vrot.slane %v3423, 3
      %v3585 = vrot.slane %v3423, 4
      %v3586 = vrot.slane %v3423, 5
      %v3587 = vrot.slane %v3423, 6
      %v3588 = vrot.slane %v3424, 1
      %v3589 = vrot.slane %v3424, 2
      %v3590 = vrot.slane %v3424, 3
      %v3591 = vrot.slane %v3424, 4
      %v3592 = vrot.slane %v3424, 5
      %v3593 = vrot.slane %v3424, 6
      %v3594 = vrot.slane %v3424, 7
      %v3595 = vrot.slane %v3425, 1
      %v3596 = vrot.slane %v3425, 2
      %v3597 = vrot.slane %v3425, 3
      %v3598 = vrot.slane %v3425, 4
      %v3599 = vrot.slane %v3425, 5
      %v3600 = vrot.slane %v3425, 6
      %v3601 = vrot.slane %v3426, 1
      %v3602 = vrot.slane %v3426, 2
      %v3603 = vrot.slane %v3426, 3
      %v3604 = vrot.slane %v3426, 4
      %v3605 = vrot.slane %v3426, 5
      %v3606 = vrot.slane %v3426, 6
      %v3607 = vrot.slane %v3426, 7
      %v3608 = vrot.slane %v3427, 1
      %v3609 = vrot.slane %v3427, 2
      %v3610 = vrot.slane %v3427, 3
      %v3611 = vrot.slane %v3427, 4
      %v3612 = vrot.slane %v3427, 5
      %v3613 = vrot.slane %v3427, 6
      %v3614 = vrot.slane %v3428, 1
      %v3615 = vrot.slane %v3428, 2
      %v3616 = vrot.slane %v3428, 3
      %v3617 = vrot.slane %v3428, 4
      %v3618 = vrot.slane %v3428, 5
      %v3619 = vrot.slane %v3428, 6
      %v3620 = vrot.slane %v3428, 7
      %v3621 = vrot.slane %v3429, 1
      %v3622 = vrot.slane %v3429, 2
      %v3623 = vrot.slane %v3429, 3
      %v3624 = vrot.slane %v3429, 4
      %v3625 = vrot.slane %v3429, 5
      %v3626 = vrot.slane %v3429, 6
      %v3627 = vrot.slane %v3430, 1
      %v3628 = vrot.slane %v3430, 2
      %v3629 = vrot.slane %v3430, 3
      %v3630 = vrot.slane %v3430, 4
      %v3631 = vrot.slane %v3430, 5
      %v3632 = vrot.slane %v3430, 6
      %v3633 = vrot.slane %v3430, 7
      %v3634 = vrot.slane %v3431, 1
      %v3635 = vrot.slane %v3431, 2
      %v3636 = vrot.slane %v3431, 3
      %v3637 = vrot.slane %v3431, 4
      %v3638 = vrot.slane %v3431, 5
      %v3639 = vrot.slane %v3431, 6
      %v3640 = vrot.slane %v3432, 1
      %v3641 = vrot.slane %v3432, 2
      %v3642 = vrot.slane %v3432, 3
      %v3643 = vrot.slane %v3432, 4
      %v3644 = vrot.slane %v3432, 5
      %v3645 = vrot.slane %v3432, 6
      %v3646 = vrot.slane %v3432, 7
      %v3647 = vrot.slane %v3433, 1
      %v3648 = vrot.slane %v3433, 2
      %v3649 = vrot.slane %v3433, 3
      %v3650 = vrot.slane %v3433, 4
      %v3651 = vrot.slane %v3433, 5
      %v3652 = vrot.slane %v3433, 6
      %v3653 = vrot.slane %v3434, 1
      %v3654 = vrot.slane %v3434, 2
      %v3655 = vrot.slane %v3434, 3
      %v3656 = vrot.slane %v3434, 4
      %v3657 = vrot.slane %v3434, 5
      %v3658 = vrot.slane %v3434, 6
      %v3659 = vrot.slane %v3434, 7
      %v3660 = vrot.slane %v3435, 1
      %v3661 = vrot.slane %v3435, 2
      %v3662 = vrot.slane %v3435, 3
      %v3663 = vrot.slane %v3435, 4
      %v3664 = vrot.slane %v3435, 5
      %v3665 = vrot.slane %v3435, 6
      %v3666 = vrot.slane %v3436, 1
      %v3667 = vrot.slane %v3436, 2
      %v3668 = vrot.slane %v3436, 3
      %v3669 = vrot.slane %v3436, 4
      %v3670 = vrot.slane %v3436, 5
      %v3671 = vrot.slane %v3436, 6
      %v3672 = vrot.slane %v3436, 7
      %v3673 = vrot.slane %v3437, 1
      %v3674 = vrot.slane %v3437, 2
      %v3675 = vrot.slane %v3437, 3
      %v3676 = vrot.slane %v3437, 4
      %v3677 = vrot.slane %v3437, 5
      %v3678 = vrot.slane %v3437, 6
      %v3679 = vrot.slane %v3438, 1
      %v3680 = vrot.slane %v3438, 2
      %v3681 = vrot.slane %v3438, 3
      %v3682 = vrot.slane %v3438, 4
      %v3683 = vrot.slane %v3438, 5
      %v3684 = vrot.slane %v3438, 6
      %v3685 = vrot.slane %v3438, 7
      %v3686 = vrot.slane %v3439, 1
      %v3687 = vrot.slane %v3439, 2
      %v3688 = vrot.slane %v3439, 3
      %v3689 = vrot.slane %v3439, 4
      %v3690 = vrot.slane %v3439, 5
      %v3691 = vrot.slane %v3439, 6
      %v3692 = vrot.slane %v3440, 1
      %v3693 = vrot.slane %v3440, 2
      %v3694 = vrot.slane %v3440, 3
      %v3695 = vrot.slane %v3440, 4
      %v3696 = vrot.slane %v3440, 5
      %v3697 = vrot.slane %v3440, 6
      %v3698 = vrot.slane %v3440, 7
      %v3699 = vrot.slane %v3441, 1
      %v3700 = vrot.slane %v3441, 2
      %v3701 = vrot.slane %v3441, 3
      %v3702 = vrot.slane %v3441, 4
      %v3703 = vrot.slane %v3441, 5
      %v3704 = vrot.slane %v3441, 6
      %v3705 = vrot.slane %v3442, 1
      %v3706 = vrot.slane %v3442, 2
      %v3707 = vrot.slane %v3442, 3
      %v3708 = vrot.slane %v3442, 4
      %v3709 = vrot.slane %v3442, 5
      %v3710 = vrot.slane %v3442, 6
      %v3711 = vrot.slane %v3442, 7
      %v3712 = vrot.slane %v3443, 1
      %v3713 = vrot.slane %v3443, 2
      %v3714 = vrot.slane %v3443, 3
      %v3715 = vrot.slane %v3443, 4
      %v3716 = vrot.slane %v3443, 5
      %v3717 = vrot.slane %v3443, 6
      %v3718 = vrot.slane %v3444, 1
      %v3719 = vrot.slane %v3444, 2
      %v3720 = vrot.slane %v3444, 3
      %v3721 = vrot.slane %v3444, 4
      %v3722 = vrot.slane %v3444, 5
      %v3723 = vrot.slane %v3444, 6
      %v3724 = vrot.slane %v3444, 7
      %v3725 = vrot.slane %v3445, 1
      %v3726 = vrot.slane %v3445, 2
      %v3727 = vrot.slane %v3445, 3
      %v3728 = vrot.slane %v3445, 4
      %v3729 = vrot.slane %v3445, 5
      %v3730 = vrot.slane %v3445, 6
      %v3731 = vrot.slane %v3446, 1
      %v3732 = vrot.slane %v3446, 2
      %v3733 = vrot.slane %v3446, 3
      %v3734 = vrot.slane %v3446, 4
      %v3735 = vrot.slane %v3446, 5
      %v3736 = vrot.slane %v3446, 6
      %v3737 = vrot.slane %v3446, 7
      %v3738 = vrot.slane %v3447, 1
      %v3739 = vrot.slane %v3447, 2
      %v3740 = vrot.slane %v3447, 3
      %v3741 = vrot.slane %v3447, 4
      %v3742 = vrot.slane %v3447, 5
      %v3743 = vrot.slane %v3447, 6
      %v3744 = vrot.slane %v3448, 1
      %v3745 = vrot.slane %v3448, 2
      %v3746 = vrot.slane %v3448, 3
      %v3747 = vrot.slane %v3448, 4
      %v3748 = vrot.slane %v3448, 5
      %v3749 = vrot.slane %v3448, 6
      %v3750 = vrot.slane %v3448, 7
      %v3751 = vrot.slane %v3449, 1
      %v3752 = vrot.slane %v3449, 2
      %v3753 = vrot.slane %v3449, 3
      %v3754 = vrot.slane %v3449, 4
      %v3755 = vrot.slane %v3449, 5
      %v3756 = vrot.slane %v3449, 6
      %v3757 = vrot.slane %v3450, 1
      %v3758 = vrot.slane %v3450, 2
      %v3759 = vrot.slane %v3450, 3
      %v3760 = vrot.slane %v3450, 4
      %v3761 = vrot.slane %v3450, 5
      %v3762 = vrot.slane %v3450, 6
      %v3763 = vrot.slane %v3450, 7
      %v3764 = vrot.slane %v3451, 1
      %v3765 = vrot.slane %v3451, 2
      %v3766 = vrot.slane %v3451, 3
      %v3767 = vrot.slane %v3451, 4
      %v3768 = vrot.slane %v3451, 5
      %v3769 = vrot.slane %v3451, 6
      %v3770 = vrot.slane %v3452, 1
      %v3771 = vrot.slane %v3452, 2
      %v3772 = vrot.slane %v3452, 3
      %v3773 = vrot.slane %v3452, 4
      %v3774 = vrot.slane %v3452, 5
      %v3775 = vrot.slane %v3452, 6
      %v3776 = vrot.slane %v3452, 7
      %v3777 = vrot.slane %v3453, 1
      %v3778 = vrot.slane %v3453, 2
      %v3779 = vrot.slane %v3453, 3
      %v3780 = vrot.slane %v3453, 4
      %v3781 = vrot.slane %v3453, 5
      %v3782 = vrot.slane %v3453, 6
      %v3783 = vrot.slane %v3454, 1
      %v3784 = vrot.slane %v3454, 2
      %v3785 = vrot.slane %v3454, 3
      %v3786 = vrot.slane %v3454, 4
      %v3787 = vrot.slane %v3454, 5
      %v3788 = vrot.slane %v3454, 6
      %v3789 = vrot.slane %v3454, 7
      %v3790 = vrot.slane %v3455, 1
      %v3791 = vrot.slane %v3455, 2
      %v3792 = vrot.slane %v3455, 3
      %v3793 = vrot.slane %v3455, 4
      %v3794 = vrot.slane %v3455, 5
      %v3795 = vrot.slane %v3455, 6
      %v3796 = vrot.slane %v3456, 1
      %v3797 = vrot.slane %v3456, 2
      %v3798 = vrot.slane %v3456, 3
      %v3799 = vrot.slane %v3456, 4
      %v3800 = vrot.slane %v3456, 5
      %v3801 = vrot.slane %v3456, 6
      %v3802 = vrot.slane %v3456, 7
      %v3803 = vrot.slane %v3457, 1
      %v3804 = vrot.slane %v3457, 2
      %v3805 = vrot.slane %v3457, 3
      %v3806 = vrot.slane %v3457, 4
      %v3807 = vrot.slane %v3457, 5
      %v3808 = vrot.slane %v3457, 6
      %v3809 = vrot.slane %v3458, 1
      %v3810 = vrot.slane %v3458, 2
      %v3811 = vrot.slane %v3458, 3
      %v3812 = vrot.slane %v3458, 4
      %v3813 = vrot.slane %v3458, 5
      %v3814 = vrot.slane %v3458, 6
      %v3815 = vrot.slane %v3458, 7
      %v3816 = vrot.slane %v3459, 1
      %v3817 = vrot.slane %v3459, 2
      %v3818 = vrot.slane %v3459, 3
      %v3819 = vrot.slane %v3459, 4
      %v3820 = vrot.slane %v3459, 5
      %v3821 = vrot.slane %v3459, 6
      %v3822 = vrot.slane %v3460, 1
      %v3823 = vrot.slane %v3460, 2
      %v3824 = vrot.slane %v3460, 3
      %v3825 = vrot.slane %v3460, 4
      %v3826 = vrot.slane %v3460, 5
      %v3827 = vrot.slane %v3460, 6
      %v3828 = vrot.slane %v3460, 7
      %v3829 = vrot.slane %v3461, 1
      %v3830 = vrot.slane %v3461, 2
      %v3831 = vrot.slane %v3461, 3
      %v3832 = vrot.slane %v3461, 4
      %v3833 = vrot.slane %v3461, 5
      %v3834 = vrot.slane %v3461, 6
      %v3835 = vrot.slane %v3462, 1
      %v3836 = vrot.slane %v3462, 2
      %v3837 = vrot.slane %v3462, 3
      %v3838 = vrot.slane %v3462, 4
      %v3839 = vrot.slane %v3462, 5
      %v3840 = vrot.slane %v3462, 6
      %v3841 = vrot.slane %v3462, 7
      %v3842 = vrot.slane %v3463, 1
      %v3843 = vrot.slane %v3463, 2
      %v3844 = vrot.slane %v3463, 3
      %v3845 = vrot.slane %v3463, 4
      %v3846 = vrot.slane %v3463, 5
      %v3847 = vrot.slane %v3463, 6
      %v3848 = vrot.slane %v3464, 1
      %v3849 = vrot.slane %v3464, 2
      %v3850 = vrot.slane %v3464, 3
      %v3851 = vrot.slane %v3464, 4
      %v3852 = vrot.slane %v3464, 5
      %v3853 = vrot.slane %v3464, 6
      %v3854 = vrot.slane %v3464, 7
      %v3855 = vrot.slane %v3465, 1
      %v3856 = vrot.slane %v3465, 2
      %v3857 = vrot.slane %v3465, 3
      %v3858 = vrot.slane %v3465, 4
      %v3859 = vrot.slane %v3465, 5
      %v3860 = vrot.slane %v3465, 6
      %v3861 = vrot.slane %v3466, 1
      %v3862 = vrot.slane %v3466, 2
      %v3863 = vrot.slane %v3466, 3
      %v3864 = vrot.slane %v3466, 4
      %v3865 = vrot.slane %v3466, 5
      %v3866 = vrot.slane %v3466, 6
      %v3867 = vrot.slane %v3466, 7
      %v3868 = vrot.slane %v3467, 1
      %v3869 = vrot.slane %v3467, 2
      %v3870 = vrot.slane %v3467, 3
      %v3871 = vrot.slane %v3467, 4
      %v3872 = vrot.slane %v3467, 5
      %v3873 = vrot.slane %v3467, 6
      %v3874 = vrot.slane %v3468, 1
      %v3875 = vrot.slane %v3468, 2
      %v3876 = vrot.slane %v3468, 3
      %v3877 = vrot.slane %v3468, 4
      %v3878 = vrot.slane %v3468, 5
      %v3879 = vrot.slane %v3468, 6
      %v3880 = vrot.slane %v3468, 7
      %v3881 = vrot.slane %v3469, 1
      %v3882 = vrot.slane %v3469, 2
      %v3883 = vrot.slane %v3469, 3
      %v3884 = vrot.slane %v3469, 4
      %v3885 = vrot.slane %v3469, 5
      %v3886 = vrot.slane %v3469, 6
      %v3887 = vrot.slane %v3470, 1
      %v3888 = vrot.slane %v3470, 2
      %v3889 = vrot.slane %v3470, 3
      %v3890 = vrot.slane %v3470, 4
      %v3891 = vrot.slane %v3470, 5
      %v3892 = vrot.slane %v3470, 6
      %v3893 = vrot.slane %v3470, 7
      %v3894 = vrot.slane %v3471, 1
      %v3895 = vrot.slane %v3471, 2
      %v3896 = vrot.slane %v3471, 3
      %v3897 = vrot.slane %v3471, 4
      %v3898 = vrot.slane %v3471, 5
      %v3899 = vrot.slane %v3471, 6
      %v3900 = vrot.slane %v3472, 1
      %v3901 = vrot.slane %v3472, 2
      %v3902 = vrot.slane %v3472, 3
      %v3903 = vrot.slane %v3472, 4
      %v3904 = vrot.slane %v3472, 5
      %v3905 = vrot.slane %v3472, 6
      %v3906 = vrot.slane %v3472, 7
      %v3907 = vrot.slane %v3473, 1
      %v3908 = vrot.slane %v3473, 2
      %v3909 = vrot.slane %v3473, 3
      %v3910 = vrot.slane %v3473, 4
      %v3911 = vrot.slane %v3473, 5
      %v3912 = vrot.slane %v3473, 6
      %v3913 = vrot.slane %v3474, 1
      %v3914 = vrot.slane %v3474, 2
      %v3915 = vrot.slane %v3474, 3
      %v3916 = vrot.slane %v3474, 4
      %v3917 = vrot.slane %v3474, 5
      %v3918 = vrot.slane %v3474, 6
      %v3919 = vrot.slane %v3474, 7
      %v3920 = vrot.slane %v3475, 1
      %v3921 = vrot.slane %v3475, 2
      %v3922 = vrot.slane %v3475, 3
      %v3923 = vrot.slane %v3475, 4
      %v3924 = vrot.slane %v3475, 5
      %v3925 = vrot.slane %v3475, 6
      %v3926 = vld [vmem:[%s1] sm:$0xf]
      %v3927 = vld [vmem:[%s1 + $0x4] sm:$0xf]
      %v3928 = vld [vmem:[%s1 + $0x8] sm:$0xf]
      %v3929 = vld [vmem:[%s1 + $0xc] sm:$0xf]
      %v3930 = vld [vmem:[%s2] sm:$0x1]
      %v3932 = vperm.slane %v3930, 0
      %3934 = vst [vmem:[#allocation1] ss:$9 sm:$0xff] %v3416
      %s3936 = scalar_lea.vmem [#allocation1], 1
      %3937 = vst [vmem:[%s3936] ss:$9 sm:$0xff] %v3536
      %s3939 = scalar_lea.vmem [#allocation1], 2
      %3940 = vst [vmem:[%s3939] ss:$9 sm:$0xff] %v3537
      %s3942 = scalar_lea.vmem [#allocation1], 3
      %3943 = vst [vmem:[%s3942] ss:$9 sm:$0xff] %v3538
      %s3945 = scalar_lea.vmem [#allocation1], 4
      %3946 = vst [vmem:[%s3945] ss:$9 sm:$0xff] %v3539
      %s3948 = scalar_lea.vmem [#allocation1], 5
      %3949 = vst [vmem:[%s3948] ss:$9 sm:$0xff] %v3540
      %s3951 = scalar_lea.vmem [#allocation1], 6
      %3952 = vst [vmem:[%s3951] ss:$9 sm:$0xff] %v3541
      %s3954 = scalar_lea.vmem [#allocation1], 7
      %3955 = vst [vmem:[%s3954] ss:$9 sm:$0xff] %v3542
      %v3956 = vld [vmem:[#allocation1] sm:$0xff]
      %3957 = vst [vmem:[#allocation1] ss:$9 sm:$0xff] %v3417
      %3959 = vst [vmem:[%s3936] ss:$9 sm:$0xff] %v3543
      %3961 = vst [vmem:[%s3939] ss:$9 sm:$0xff] %v3544
      %3963 = vst [vmem:[%s3942] ss:$9 sm:$0xff] %v3545
      %3965 = vst [vmem:[%s3945] ss:$9 sm:$0xff] %v3546
      %3967 = vst [vmem:[%s3948] ss:$9 sm:$0xff] %v3547
      %3969 = vst [vmem:[%s3951] ss:$9 sm:$0xff] %v3548
      %3970 = vst [vmem:[%s3954] ss:$9 sm:$0xff] %v3418
      %v3971 = vld [vmem:[#allocation1] sm:$0xff]
      %3973 = vst [vmem:[#allocation1] ss:$9 sm:$0xff] %v3549
      %3975 = vst [vmem:[%s3936] ss:$9 sm:$0xff] %v3550
      %3977 = vst [vmem:[%s3939] ss:$9 sm:$0xff] %v3551
      %3979 = vst [vmem:[%s3942] ss:$9 sm:$0xff] %v3552
      %3981 = vst [vmem:[%s3945] ss:$9 sm:$0xff] %v3553
      %3983 = vst [vmem:[%s3948] ss:$9 sm:$0xff] %v3554
      %3985 = vst [vmem:[%s3951] ss:$9 sm:$0xff] %v3555
      %3986 = vst [vmem:[%s3954] ss:$9 sm:$0xff] %v3419
      %v3987 = vld [vmem:[#allocation1] sm:$0xff]
      %3989 = vst [vmem:[#allocation1] ss:$9 sm:$0xff] %v3556
      %3991 = vst [vmem:[%s3936] ss:$9 sm:$0xff] %v3557
      %3993 = vst [vmem:[%s3939] ss:$9 sm:$0xff] %v3558
      %3995 = vst [vmem:[%s3942] ss:$9 sm:$0xff] %v3559
      %3997 = vst [vmem:[%s3945] ss:$9 sm:$0xff] %v3560
      %3999 = vst [vmem:[%s3948] ss:$9 sm:$0xff] %v3561
      %4000 = vst [vmem:[%s3951] ss:$9 sm:$0xff] %v3420
      %4002 = vst [vmem:[%s3954] ss:$9 sm:$0xff] %v3562
      %v4003 = vld [vmem:[#allocation1] sm:$0xff]
      %4005 = vst [vmem:[#allocation1] ss:$9 sm:$0xff] %v3563
      %4007 = vst [vmem:[%s3936] ss:$9 sm:$0xff] %v3564
      %4009 = vst [vmem:[%s3939] ss:$9 sm:$0xff] %v3565
      %4011 = vst [vmem:[%s3942] ss:$9 sm:$0xff] %v3566
      %4013 = vst [vmem:[%s3945] ss:$9 sm:$0xff] %v3567
      %4015 = vst [vmem:[%s3948] ss:$9 sm:$0xff] %v3568
      %4016 = vst [vmem:[%s3951] ss:$9 sm:$0xff] %v3421
      %4018 = vst [vmem:[%s3954] ss:$9 sm:$0xff] %v3569
      %v4019 = vld [vmem:[#allocation1] sm:$0xff]
      %4021 = vst [vmem:[#allocation1] ss:$9 sm:$0xff] %v3570
      %4023 = vst [vmem:[%s3936] ss:$9 sm:$0xff] %v3571
      %4025 = vst [vmem:[%s3939] ss:$9 sm:$0xff] %v3572
      %4027 = vst [vmem:[%s3942] ss:$9 sm:$0xff] %v3573
      %4029 = vst [vmem:[%s3945] ss:$9 sm:$0xff] %v3574
      %4030 = vst [vmem:[%s3948] ss:$9 sm:$0xff] %v3422
      %4032 = vst [vmem:[%s3951] ss:$9 sm:$0xff] %v3575
      %4034 = vst [vmem:[%s3954] ss:$9 sm:$0xff] %v3576
      %v4035 = vld [vmem:[#allocation1] sm:$0xff]
      %4037 = vst [vmem:[#allocation1] ss:$9 sm:$0xff] %v3577
      %4039 = vst [vmem:[%s3936] ss:$9 sm:$0xff] %v3578
      %4041 = vst [vmem:[%s3939] ss:$9 sm:$0xff] %v3579
      %4043 = vst [vmem:[%s3942] ss:$9 sm:$0xff] %v3580
      %4045 = vst [vmem:[%s3945] ss:$9 sm:$0xff] %v3581
      %4046 = vst [vmem:[%s3948] ss:$9 sm:$0xff] %v3423
      %4048 = vst [vmem:[%s3951] ss:$9 sm:$0xff] %v3582
      %4050 = vst [vmem:[%s3954] ss:$9 sm:$0xff] %v3583
      %v4051 = vld [vmem:[#allocation1] sm:$0xff]
      %4053 = vst [vmem:[#allocation1] ss:$9 sm:$0xff] %v3584
      %4055 = vst [vmem:[%s3936] ss:$9 sm:$0xff] %v3585
      %4057 = vst [vmem:[%s3939] ss:$9 sm:$0xff] %v3586
      %4059 = vst [vmem:[%s3942] ss:$9 sm:$0xff] %v3587
      %4060 = vst [vmem:[%s3945] ss:$9 sm:$0xff] %v3424
      %4062 = vst [vmem:[%s3948] ss:$9 sm:$0xff] %v3588
      %4064 = vst [vmem:[%s3951] ss:$9 sm:$0xff] %v3589
      %4066 = vst [vmem:[%s3954] ss:$9 sm:$0xff] %v3590
      %v4067 = vld [vmem:[#allocation1] sm:$0xff]
      %4069 = vst [vmem:[#allocation1] ss:$9 sm:$0xff] %v3591
      %4071 = vst [vmem:[%s3936] ss:$9 sm:$0xff] %v3592
      %4073 = vst [vmem:[%s3939] ss:$9 sm:$0xff] %v3593
      %4075 = vst [vmem:[%s3942] ss:$9 sm:$0xff] %v3594
      %4076 = vst [vmem:[%s3945] ss:$9 sm:$0xff] %v3425
      %4078 = vst [vmem:[%s3948] ss:$9 sm:$0xff] %v3595
      %4080 = vst [vmem:[%s3951] ss:$9 sm:$0xff] %v3596
      %4082 = vst [vmem:[%s3954] ss:$9 sm:$0xff] %v3597
      %v4083 = vld [vmem:[#allocation1] sm:$0xff]
      %4085 = vst [vmem:[#allocation1] ss:$9 sm:$0xff] %v3598
      %4087 = vst [vmem:[%s3936] ss:$9 sm:$0xff] %v3599
      %4089 = vst [vmem:[%s3939] ss:$9 sm:$0xff] %v3600
      %4090 = vst [vmem:[%s3942] ss:$9 sm:$0xff] %v3426
      %4092 = vst [vmem:[%s3945] ss:$9 sm:$0xff] %v3601
      %4094 = vst [vmem:[%s3948] ss:$9 sm:$0xff] %v3602
      %4096 = vst [vmem:[%s3951] ss:$9 sm:$0xff] %v3603
      %4098 = vst [vmem:[%s3954] ss:$9 sm:$0xff] %v3604
      %v4099 = vld [vmem:[#allocation1] sm:$0xff]
      %4101 = vst [vmem:[#allocation1] ss:$9 sm:$0xff] %v3605
      %4103 = vst [vmem:[%s3936] ss:$9 sm:$0xff] %v3606
      %4105 = vst [vmem:[%s3939] ss:$9 sm:$0xff] %v3607
      %4106 = vst [vmem:[%s3942] ss:$9 sm:$0xff] %v3427
      %4108 = vst [vmem:[%s3945] ss:$9 sm:$0xff] %v3608
      %4110 = vst [vmem:[%s3948] ss:$9 sm:$0xff] %v3609
      %4112 = vst [vmem:[%s3951] ss:$9 sm:$0xff] %v3610
      %4114 = vst [vmem:[%s3954] ss:$9 sm:$0xff] %v3611
      %v4115 = vld [vmem:[#allocation1] sm:$0xff]
      %4117 = vst [vmem:[#allocation1] ss:$9 sm:$0xff] %v3612
      %4119 = vst [vmem:[%s3936] ss:$9 sm:$0xff] %v3613
      %4120 = vst [vmem:[%s3939] ss:$9 sm:$0xff] %v3428
      %4122 = vst [vmem:[%s3942] ss:$9 sm:$0xff] %v3614
      %4124 = vst [vmem:[%s3945] ss:$9 sm:$0xff] %v3615
      %4126 = vst [vmem:[%s3948] ss:$9 sm:$0xff] %v3616
      %4128 = vst [vmem:[%s3951] ss:$9 sm:$0xff] %v3617
      %4130 = vst [vmem:[%s3954] ss:$9 sm:$0xff] %v3618
      %v4131 = vld [vmem:[#allocation1] sm:$0xff]
      %4133 = vst [vmem:[#allocation1] ss:$9 sm:$0xff] %v3619
      %4135 = vst [vmem:[%s3936] ss:$9 sm:$0xff] %v3620
      %4136 = vst [vmem:[%s3939] ss:$9 sm:$0xff] %v3429
      %4138 = vst [vmem:[%s3942] ss:$9 sm:$0xff] %v3621
      %4140 = vst [vmem:[%s3945] ss:$9 sm:$0xff] %v3622
      %4142 = vst [vmem:[%s3948] ss:$9 sm:$0xff] %v3623
      %4144 = vst [vmem:[%s3951] ss:$9 sm:$0xff] %v3624
      %4146 = vst [vmem:[%s3954] ss:$9 sm:$0xff] %v3625
      %v4147 = vld [vmem:[#allocation1] sm:$0xff]
      %4149 = vst [vmem:[#allocation1] ss:$9 sm:$0xff] %v3626
      %4150 = vst [vmem:[%s3936] ss:$9 sm:$0xff] %v3430
      %4152 = vst [vmem:[%s3939] ss:$9 sm:$0xff] %v3627
      %4154 = vst [vmem:[%s3942] ss:$9 sm:$0xff] %v3628
      %4156 = vst [vmem:[%s3945] ss:$9 sm:$0xff] %v3629
      %4158 = vst [vmem:[%s3948] ss:$9 sm:$0xff] %v3630
      %4160 = vst [vmem:[%s3951] ss:$9 sm:$0xff] %v3631
      %4162 = vst [vmem:[%s3954] ss:$9 sm:$0xff] %v3632
      %v4163 = vld [vmem:[#allocation1] sm:$0xff]
      %4165 = vst [vmem:[#allocation1] ss:$9 sm:$0xff] %v3633
      %4166 = vst [vmem:[%s3936] ss:$9 sm:$0xff] %v3431
      %4168 = vst [vmem:[%s3939] ss:$9 sm:$0xff] %v3634
      %4170 = vst [vmem:[%s3942] ss:$9 sm:$0xff] %v3635
      %4172 = vst [vmem:[%s3945] ss:$9 sm:$0xff] %v3636
      %4174 = vst [vmem:[%s3948] ss:$9 sm:$0xff] %v3637
      %4176 = vst [vmem:[%s3951] ss:$9 sm:$0xff] %v3638
      %4178 = vst [vmem:[%s3954] ss:$9 sm:$0xff] %v3639
      %v4179 = vld [vmem:[#allocation1] sm:$0xff]
      %4180 = vst [vmem:[#allocation1] ss:$9 sm:$0xff] %v3432
      %4182 = vst [vmem:[%s3936] ss:$9 sm:$0xff] %v3640
      %4184 = vst [vmem:[%s3939] ss:$9 sm:$0xff] %v3641
      %4186 = vst [vmem:[%s3942] ss:$9 sm:$0xff] %v3642
      %4188 = vst [vmem:[%s3945] ss:$9 sm:$0xff] %v3643
      %4190 = vst [vmem:[%s3948] ss:$9 sm:$0xff] %v3644
      %4192 = vst [vmem:[%s3951] ss:$9 sm:$0xff] %v3645
      %4194 = vst [vmem:[%s3954] ss:$9 sm:$0xff] %v3646
      %v4195 = vld [vmem:[#allocation1] sm:$0xff]
      %4196 = vst [vmem:[#allocation1] ss:$9 sm:$0xff] %v3433
      %4198 = vst [vmem:[%s3936] ss:$9 sm:$0xff] %v3647
      %4200 = vst [vmem:[%s3939] ss:$9 sm:$0xff] %v3648
      %4202 = vst [vmem:[%s3942] ss:$9 sm:$0xff] %v3649
      %4204 = vst [vmem:[%s3945] ss:$9 sm:$0xff] %v3650
      %4206 = vst [vmem:[%s3948] ss:$9 sm:$0xff] %v3651
      %4208 = vst [vmem:[%s3951] ss:$9 sm:$0xff] %v3652
      %4209 = vst [vmem:[%s3954] ss:$9 sm:$0xff] %v3434
      %v4210 = vld [vmem:[#allocation1] sm:$0xff]
      %4212 = vst [vmem:[#allocation1] ss:$9 sm:$0xff] %v3653
      %4214 = vst [vmem:[%s3936] ss:$9 sm:$0xff] %v3654
      %4216 = vst [vmem:[%s3939] ss:$9 sm:$0xff] %v3655
      %4218 = vst [vmem:[%s3942] ss:$9 sm:$0xff] %v3656
      %4220 = vst [vmem:[%s3945] ss:$9 sm:$0xff] %v3657
      %4222 = vst [vmem:[%s3948] ss:$9 sm:$0xff] %v3658
      %4224 = vst [vmem:[%s3951] ss:$9 sm:$0xff] %v3659
      %4225 = vst [vmem:[%s3954] ss:$9 sm:$0xff] %v3435
      %v4226 = vld [vmem:[#allocation1] sm:$0xff]
      %4228 = vst [vmem:[#allocation1] ss:$9 sm:$0xff] %v3660
      %4230 = vst [vmem:[%s3936] ss:$9 sm:$0xff] %v3661
      %4232 = vst [vmem:[%s3939] ss:$9 sm:$0xff] %v3662
      %4234 = vst [vmem:[%s3942] ss:$9 sm:$0xff] %v3663
      %4236 = vst [vmem:[%s3945] ss:$9 sm:$0xff] %v3664
      %4238 = vst [vmem:[%s3948] ss:$9 sm:$0xff] %v3665
      %4239 = vst [vmem:[%s3951] ss:$9 sm:$0xff] %v3436
      %4241 = vst [vmem:[%s3954] ss:$9 sm:$0xff] %v3666
      %v4242 = vld [vmem:[#allocation1] sm:$0xff]
      %4244 = vst [vmem:[#allocation1] ss:$9 sm:$0xff] %v3667
      %4246 = vst [vmem:[%s3936] ss:$9 sm:$0xff] %v3668
      %4248 = vst [vmem:[%s3939] ss:$9 sm:$0xff] %v3669
      %4250 = vst [vmem:[%s3942] ss:$9 sm:$0xff] %v3670
      %4252 = vst [vmem:[%s3945] ss:$9 sm:$0xff] %v3671
      %4254 = vst [vmem:[%s3948] ss:$9 sm:$0xff] %v3672
      %4255 = vst [vmem:[%s3951] ss:$9 sm:$0xff] %v3437
      %4257 = vst [vmem:[%s3954] ss:$9 sm:$0xff] %v3673
      %v4258 = vld [vmem:[#allocation1] sm:$0xff]
      %4260 = vst [vmem:[#allocation1] ss:$9 sm:$0xff] %v3674
      %4262 = vst [vmem:[%s3936] ss:$9 sm:$0xff] %v3675
      %4264 = vst [vmem:[%s3939] ss:$9 sm:$0xff] %v3676
      %4266 = vst [vmem:[%s3942] ss:$9 sm:$0xff] %v3677
      %4268 = vst [vmem:[%s3945] ss:$9 sm:$0xff] %v3678
      %4269 = vst [vmem:[%s3948] ss:$9 sm:$0xff] %v3438
      %4271 = vst [vmem:[%s3951] ss:$9 sm:$0xff] %v3679
      %4273 = vst [vmem:[%s3954] ss:$9 sm:$0xff] %v3680
      %v4274 = vld [vmem:[#allocation1] sm:$0xff]
      %4276 = vst [vmem:[#allocation1] ss:$9 sm:$0xff] %v3681
      %4278 = vst [vmem:[%s3936] ss:$9 sm:$0xff] %v3682
      %4280 = vst [vmem:[%s3939] ss:$9 sm:$0xff] %v3683
      %4282 = vst [vmem:[%s3942] ss:$9 sm:$0xff] %v3684
      %4284 = vst [vmem:[%s3945] ss:$9 sm:$0xff] %v3685
      %4285 = vst [vmem:[%s3948] ss:$9 sm:$0xff] %v3439
      %4287 = vst [vmem:[%s3951] ss:$9 sm:$0xff] %v3686
      %4289 = vst [vmem:[%s3954] ss:$9 sm:$0xff] %v3687
      %v4290 = vld [vmem:[#allocation1] sm:$0xff]
      %4292 = vst [vmem:[#allocation1] ss:$9 sm:$0xff] %v3688
      %4294 = vst [vmem:[%s3936] ss:$9 sm:$0xff] %v3689
      %4296 = vst [vmem:[%s3939] ss:$9 sm:$0xff] %v3690
      %4298 = vst [vmem:[%s3942] ss:$9 sm:$0xff] %v3691
      %4299 = vst [vmem:[%s3945] ss:$9 sm:$0xff] %v3440
      %4301 = vst [vmem:[%s3948] ss:$9 sm:$0xff] %v3692
      %4303 = vst [vmem:[%s3951] ss:$9 sm:$0xff] %v3693
      %4305 = vst [vmem:[%s3954] ss:$9 sm:$0xff] %v3694
      %v4306 = vld [vmem:[#allocation1] sm:$0xff]
      %4308 = vst [vmem:[#allocation1] ss:$9 sm:$0xff] %v3695
      %4310 = vst [vmem:[%s3936] ss:$9 sm:$0xff] %v3696
      %4312 = vst [vmem:[%s3939] ss:$9 sm:$0xff] %v3697
      %4314 = vst [vmem:[%s3942] ss:$9 sm:$0xff] %v3698
      %4315 = vst [vmem:[%s3945] ss:$9 sm:$0xff] %v3441
      %4317 = vst [vmem:[%s3948] ss:$9 sm:$0xff] %v3699
      %4319 = vst [vmem:[%s3951] ss:$9 sm:$0xff] %v3700
      %4321 = vst [vmem:[%s3954] ss:$9 sm:$0xff] %v3701
      %v4322 = vld [vmem:[#allocation1] sm:$0xff]
      %4324 = vst [vmem:[#allocation1] ss:$9 sm:$0xff] %v3702
      %4326 = vst [vmem:[%s3936] ss:$9 sm:$0xff] %v3703
      %4328 = vst [vmem:[%s3939] ss:$9 sm:$0xff] %v3704
      %4329 = vst [vmem:[%s3942] ss:$9 sm:$0xff] %v3442
      %4331 = vst [vmem:[%s3945] ss:$9 sm:$0xff] %v3705
      %4333 = vst [vmem:[%s3948] ss:$9 sm:$0xff] %v3706
      %4335 = vst [vmem:[%s3951] ss:$9 sm:$0xff] %v3707
      %4337 = vst [vmem:[%s3954] ss:$9 sm:$0xff] %v3708
      %v4338 = vld [vmem:[#allocation1] sm:$0xff]
      %4340 = vst [vmem:[#allocation1] ss:$9 sm:$0xff] %v3709
      %4342 = vst [vmem:[%s3936] ss:$9 sm:$0xff] %v3710
      %4344 = vst [vmem:[%s3939] ss:$9 sm:$0xff] %v3711
      %4345 = vst [vmem:[%s3942] ss:$9 sm:$0xff] %v3443
      %4347 = vst [vmem:[%s3945] ss:$9 sm:$0xff] %v3712
      %4349 = vst [vmem:[%s3948] ss:$9 sm:$0xff] %v3713
      %4351 = vst [vmem:[%s3951] ss:$9 sm:$0xff] %v3714
      %4353 = vst [vmem:[%s3954] ss:$9 sm:$0xff] %v3715
      %v4354 = vld [vmem:[#allocation1] sm:$0xff]
      %4356 = vst [vmem:[#allocation1] ss:$9 sm:$0xff] %v3716
      %4358 = vst [vmem:[%s3936] ss:$9 sm:$0xff] %v3717
      %4359 = vst [vmem:[%s3939] ss:$9 sm:$0xff] %v3444
      %4361 = vst [vmem:[%s3942] ss:$9 sm:$0xff] %v3718
      %4363 = vst [vmem:[%s3945] ss:$9 sm:$0xff] %v3719
      %4365 = vst [vmem:[%s3948] ss:$9 sm:$0xff] %v3720
      %4367 = vst [vmem:[%s3951] ss:$9 sm:$0xff] %v3721
      %4369 = vst [vmem:[%s3954] ss:$9 sm:$0xff] %v3722
      %v4370 = vld [vmem:[#allocation1] sm:$0xff]
      %4372 = vst [vmem:[#allocation1] ss:$9 sm:$0xff] %v3723
      %4374 = vst [vmem:[%s3936] ss:$9 sm:$0xff] %v3724
      %4375 = vst [vmem:[%s3939] ss:$9 sm:$0xff] %v3445
      %4377 = vst [vmem:[%s3942] ss:$9 sm:$0xff] %v3725
      %4379 = vst [vmem:[%s3945] ss:$9 sm:$0xff] %v3726
      %4381 = vst [vmem:[%s3948] ss:$9 sm:$0xff] %v3727
      %4383 = vst [vmem:[%s3951] ss:$9 sm:$0xff] %v3728
      %4385 = vst [vmem:[%s3954] ss:$9 sm:$0xff] %v3729
      %v4386 = vld [vmem:[#allocation1] sm:$0xff]
      %4388 = vst [vmem:[#allocation1] ss:$9 sm:$0xff] %v3730
      %4389 = vst [vmem:[%s3936] ss:$9 sm:$0xff] %v3446
      %4391 = vst [vmem:[%s3939] ss:$9 sm:$0xff] %v3731
      %4393 = vst [vmem:[%s3942] ss:$9 sm:$0xff] %v3732
      %4395 = vst [vmem:[%s3945] ss:$9 sm:$0xff] %v3733
      %4397 = vst [vmem:[%s3948] ss:$9 sm:$0xff] %v3734
      %4399 = vst [vmem:[%s3951] ss:$9 sm:$0xff] %v3735
      %4401 = vst [vmem:[%s3954] ss:$9 sm:$0xff] %v3736
      %v4402 = vld [vmem:[#allocation1] sm:$0xff]
      %4404 = vst [vmem:[#allocation1] ss:$9 sm:$0xff] %v3737
      %4405 = vst [vmem:[%s3936] ss:$9 sm:$0xff] %v3447
      %4407 = vst [vmem:[%s3939] ss:$9 sm:$0xff] %v3738
      %4409 = vst [vmem:[%s3942] ss:$9 sm:$0xff] %v3739
      %4411 = vst [vmem:[%s3945] ss:$9 sm:$0xff] %v3740
      %4413 = vst [vmem:[%s3948] ss:$9 sm:$0xff] %v3741
      %4415 = vst [vmem:[%s3951] ss:$9 sm:$0xff] %v3742
      %4417 = vst [vmem:[%s3954] ss:$9 sm:$0xff] %v3743
      %v4418 = vld [vmem:[#allocation1] sm:$0xff]
      %4419 = vst [vmem:[#allocation1] ss:$9 sm:$0xff] %v3448
      %4421 = vst [vmem:[%s3936] ss:$9 sm:$0xff] %v3744
      %4423 = vst [vmem:[%s3939] ss:$9 sm:$0xff] %v3745
      %4425 = vst [vmem:[%s3942] ss:$9 sm:$0xff] %v3746
      %4427 = vst [vmem:[%s3945] ss:$9 sm:$0xff] %v3747
      %4429 = vst [vmem:[%s3948] ss:$9 sm:$0xff] %v3748
      %4431 = vst [vmem:[%s3951] ss:$9 sm:$0xff] %v3749
      %4433 = vst [vmem:[%s3954] ss:$9 sm:$0xff] %v3750
      %v4434 = vld [vmem:[#allocation1] sm:$0xff]
      %4435 = vst [vmem:[#allocation1] ss:$9 sm:$0xff] %v3449
      %4437 = vst [vmem:[%s3936] ss:$9 sm:$0xff] %v3751
      %4439 = vst [vmem:[%s3939] ss:$9 sm:$0xff] %v3752
      %4441 = vst [vmem:[%s3942] ss:$9 sm:$0xff] %v3753
      %4443 = vst [vmem:[%s3945] ss:$9 sm:$0xff] %v3754
      %4445 = vst [vmem:[%s3948] ss:$9 sm:$0xff] %v3755
      %4447 = vst [vmem:[%s3951] ss:$9 sm:$0xff] %v3756
      %4448 = vst [vmem:[%s3954] ss:$9 sm:$0xff] %v3450
      %v4449 = vld [vmem:[#allocation1] sm:$0xff]
      %4451 = vst [vmem:[#allocation1] ss:$9 sm:$0xff] %v3757
      %4453 = vst [vmem:[%s3936] ss:$9 sm:$0xff] %v3758
      %4455 = vst [vmem:[%s3939] ss:$9 sm:$0xff] %v3759
      %4457 = vst [vmem:[%s3942] ss:$9 sm:$0xff] %v3760
      %4459 = vst [vmem:[%s3945] ss:$9 sm:$0xff] %v3761
      %4461 = vst [vmem:[%s3948] ss:$9 sm:$0xff] %v3762
      %4463 = vst [vmem:[%s3951] ss:$9 sm:$0xff] %v3763
      %4464 = vst [vmem:[%s3954] ss:$9 sm:$0xff] %v3451
      %v4465 = vld [vmem:[#allocation1] sm:$0xff]
      %4467 = vst [vmem:[#allocation1] ss:$9 sm:$0xff] %v3764
      %4469 = vst [vmem:[%s3936] ss:$9 sm:$0xff] %v3765
      %4471 = vst [vmem:[%s3939] ss:$9 sm:$0xff] %v3766
      %4473 = vst [vmem:[%s3942] ss:$9 sm:$0xff] %v3767
      %4475 = vst [vmem:[%s3945] ss:$9 sm:$0xff] %v3768
      %4477 = vst [vmem:[%s3948] ss:$9 sm:$0xff] %v3769
      %4478 = vst [vmem:[%s3951] ss:$9 sm:$0xff] %v3452
      %4480 = vst [vmem:[%s3954] ss:$9 sm:$0xff] %v3770
      %v4481 = vld [vmem:[#allocation1] sm:$0xff]
      %4483 = vst [vmem:[#allocation1] ss:$9 sm:$0xff] %v3771
      %4485 = vst [vmem:[%s3936] ss:$9 sm:$0xff] %v3772
      %4487 = vst [vmem:[%s3939] ss:$9 sm:$0xff] %v3773
      %4489 = vst [vmem:[%s3942] ss:$9 sm:$0xff] %v3774
      %4491 = vst [vmem:[%s3945] ss:$9 sm:$0xff] %v3775
      %4493 = vst [vmem:[%s3948] ss:$9 sm:$0xff] %v3776
      %4494 = vst [vmem:[%s3951] ss:$9 sm:$0xff] %v3453
      %4496 = vst [vmem:[%s3954] ss:$9 sm:$0xff] %v3777
      %v4497 = vld [vmem:[#allocation1] sm:$0xff]
      %4499 = vst [vmem:[#allocation1] ss:$9 sm:$0xff] %v3778
      %4501 = vst [vmem:[%s3936] ss:$9 sm:$0xff] %v3779
      %4503 = vst [vmem:[%s3939] ss:$9 sm:$0xff] %v3780
      %4505 = vst [vmem:[%s3942] ss:$9 sm:$0xff] %v3781
      %4507 = vst [vmem:[%s3945] ss:$9 sm:$0xff] %v3782
      %4508 = vst [vmem:[%s3948] ss:$9 sm:$0xff] %v3454
      %4510 = vst [vmem:[%s3951] ss:$9 sm:$0xff] %v3783
      %4512 = vst [vmem:[%s3954] ss:$9 sm:$0xff] %v3784
      %v4513 = vld [vmem:[#allocation1] sm:$0xff]
      %4515 = vst [vmem:[#allocation1] ss:$9 sm:$0xff] %v3785
      %4517 = vst [vmem:[%s3936] ss:$9 sm:$0xff] %v3786
      %4519 = vst [vmem:[%s3939] ss:$9 sm:$0xff] %v3787
      %4521 = vst [vmem:[%s3942] ss:$9 sm:$0xff] %v3788
      %4523 = vst [vmem:[%s3945] ss:$9 sm:$0xff] %v3789
      %4524 = vst [vmem:[%s3948] ss:$9 sm:$0xff] %v3455
      %4526 = vst [vmem:[%s3951] ss:$9 sm:$0xff] %v3790
      %4528 = vst [vmem:[%s3954] ss:$9 sm:$0xff] %v3791
      %v4529 = vld [vmem:[#allocation1] sm:$0xff]
      %4531 = vst [vmem:[#allocation1] ss:$9 sm:$0xff] %v3792
      %4533 = vst [vmem:[%s3936] ss:$9 sm:$0xff] %v3793
      %4535 = vst [vmem:[%s3939] ss:$9 sm:$0xff] %v3794
      %4537 = vst [vmem:[%s3942] ss:$9 sm:$0xff] %v3795
      %4538 = vst [vmem:[%s3945] ss:$9 sm:$0xff] %v3456
      %4540 = vst [vmem:[%s3948] ss:$9 sm:$0xff] %v3796
      %4542 = vst [vmem:[%s3951] ss:$9 sm:$0xff] %v3797
      %4544 = vst [vmem:[%s3954] ss:$9 sm:$0xff] %v3798
      %v4545 = vld [vmem:[#allocation1] sm:$0xff]
      %4547 = vst [vmem:[#allocation1] ss:$9 sm:$0xff] %v3799
      %4549 = vst [vmem:[%s3936] ss:$9 sm:$0xff] %v3800
      %4551 = vst [vmem:[%s3939] ss:$9 sm:$0xff] %v3801
      %4553 = vst [vmem:[%s3942] ss:$9 sm:$0xff] %v3802
      %4554 = vst [vmem:[%s3945] ss:$9 sm:$0xff] %v3457
      %4556 = vst [vmem:[%s3948] ss:$9 sm:$0xff] %v3803
      %4558 = vst [vmem:[%s3951] ss:$9 sm:$0xff] %v3804
      %4560 = vst [vmem:[%s3954] ss:$9 sm:$0xff] %v3805
      %v4561 = vld [vmem:[#allocation1] sm:$0xff]
      %4563 = vst [vmem:[#allocation1] ss:$9 sm:$0xff] %v3806
      %4565 = vst [vmem:[%s3936] ss:$9 sm:$0xff] %v3807
      %4567 = vst [vmem:[%s3939] ss:$9 sm:$0xff] %v3808
      %4568 = vst [vmem:[%s3942] ss:$9 sm:$0xff] %v3458
      %4570 = vst [vmem:[%s3945] ss:$9 sm:$0xff] %v3809
      %4572 = vst [vmem:[%s3948] ss:$9 sm:$0xff] %v3810
      %4574 = vst [vmem:[%s3951] ss:$9 sm:$0xff] %v3811
      %4576 = vst [vmem:[%s3954] ss:$9 sm:$0xff] %v3812
      %v4577 = vld [vmem:[#allocation1] sm:$0xff]
      %4579 = vst [vmem:[#allocation1] ss:$9 sm:$0xff] %v3813
      %4581 = vst [vmem:[%s3936] ss:$9 sm:$0xff] %v3814
      %4583 = vst [vmem:[%s3939] ss:$9 sm:$0xff] %v3815
      %4584 = vst [vmem:[%s3942] ss:$9 sm:$0xff] %v3459
      %4586 = vst [vmem:[%s3945] ss:$9 sm:$0xff] %v3816
      %4588 = vst [vmem:[%s3948] ss:$9 sm:$0xff] %v3817
      %4590 = vst [vmem:[%s3951] ss:$9 sm:$0xff] %v3818
      %4592 = vst [vmem:[%s3954] ss:$9 sm:$0xff] %v3819
      %v4593 = vld [vmem:[#allocation1] sm:$0xff]
      %4595 = vst [vmem:[#allocation1] ss:$9 sm:$0xff] %v3820
      %4597 = vst [vmem:[%s3936] ss:$9 sm:$0xff] %v3821
      %4598 = vst [vmem:[%s3939] ss:$9 sm:$0xff] %v3460
      %4600 = vst [vmem:[%s3942] ss:$9 sm:$0xff] %v3822
      %4602 = vst [vmem:[%s3945] ss:$9 sm:$0xff] %v3823
      %4604 = vst [vmem:[%s3948] ss:$9 sm:$0xff] %v3824
      %4606 = vst [vmem:[%s3951] ss:$9 sm:$0xff] %v3825
      %4608 = vst [vmem:[%s3954] ss:$9 sm:$0xff] %v3826
      %v4609 = vld [vmem:[#allocation1] sm:$0xff]
      %4611 = vst [vmem:[#allocation1] ss:$9 sm:$0xff] %v3827
      %4613 = vst [vmem:[%s3936] ss:$9 sm:$0xff] %v3828
      %4614 = vst [vmem:[%s3939] ss:$9 sm:$0xff] %v3461
      %4616 = vst [vmem:[%s3942] ss:$9 sm:$0xff] %v3829
      %4618 = vst [vmem:[%s3945] ss:$9 sm:$0xff] %v3830
      %4620 = vst [vmem:[%s3948] ss:$9 sm:$0xff] %v3831
      %4622 = vst [vmem:[%s3951] ss:$9 sm:$0xff] %v3832
      %4624 = vst [vmem:[%s3954] ss:$9 sm:$0xff] %v3833
      %v4625 = vld [vmem:[#allocation1] sm:$0xff]
      %4627 = vst [vmem:[#allocation1] ss:$9 sm:$0xff] %v3834
      %4628 = vst [vmem:[%s3936] ss:$9 sm:$0xff] %v3462
      %4630 = vst [vmem:[%s3939] ss:$9 sm:$0xff] %v3835
      %4632 = vst [vmem:[%s3942] ss:$9 sm:$0xff] %v3836
      %4634 = vst [vmem:[%s3945] ss:$9 sm:$0xff] %v3837
      %4636 = vst [vmem:[%s3948] ss:$9 sm:$0xff] %v3838
      %4638 = vst [vmem:[%s3951] ss:$9 sm:$0xff] %v3839
      %4640 = vst [vmem:[%s3954] ss:$9 sm:$0xff] %v3840
      %v4641 = vld [vmem:[#allocation1] sm:$0xff]
      %4643 = vst [vmem:[#allocation1] ss:$9 sm:$0xff] %v3841
      %4644 = vst [vmem:[%s3936] ss:$9 sm:$0xff] %v3463
      %4646 = vst [vmem:[%s3939] ss:$9 sm:$0xff] %v3842
      %4648 = vst [vmem:[%s3942] ss:$9 sm:$0xff] %v3843
      %4650 = vst [vmem:[%s3945] ss:$9 sm:$0xff] %v3844
      %4652 = vst [vmem:[%s3948] ss:$9 sm:$0xff] %v3845
      %4654 = vst [vmem:[%s3951] ss:$9 sm:$0xff] %v3846
      %4656 = vst [vmem:[%s3954] ss:$9 sm:$0xff] %v3847
      %v4657 = vld [vmem:[#allocation1] sm:$0xff]
      %4658 = vst [vmem:[#allocation1] ss:$9 sm:$0xff] %v3464
      %4660 = vst [vmem:[%s3936] ss:$9 sm:$0xff] %v3848
      %4662 = vst [vmem:[%s3939] ss:$9 sm:$0xff] %v3849
      %4664 = vst [vmem:[%s3942] ss:$9 sm:$0xff] %v3850
      %4666 = vst [vmem:[%s3945] ss:$9 sm:$0xff] %v3851
      %4668 = vst [vmem:[%s3948] ss:$9 sm:$0xff] %v3852
      %4670 = vst [vmem:[%s3951] ss:$9 sm:$0xff] %v3853
      %4672 = vst [vmem:[%s3954] ss:$9 sm:$0xff] %v3854
      %v4673 = vld [vmem:[#allocation1] sm:$0xff]
      %4674 = vst [vmem:[#allocation1] ss:$9 sm:$0xff] %v3465
      %4676 = vst [vmem:[%s3936] ss:$9 sm:$0xff] %v3855
      %4678 = vst [vmem:[%s3939] ss:$9 sm:$0xff] %v3856
      %4680 = vst [vmem:[%s3942] ss:$9 sm:$0xff] %v3857
      %4682 = vst [vmem:[%s3945] ss:$9 sm:$0xff] %v3858
      %4684 = vst [vmem:[%s3948] ss:$9 sm:$0xff] %v3859
      %4686 = vst [vmem:[%s3951] ss:$9 sm:$0xff] %v3860
      %4687 = vst [vmem:[%s3954] ss:$9 sm:$0xff] %v3466
      %v4688 = vld [vmem:[#allocation1] sm:$0xff]
      %4690 = vst [vmem:[#allocation1] ss:$9 sm:$0xff] %v3861
      %4692 = vst [vmem:[%s3936] ss:$9 sm:$0xff] %v3862
      %4694 = vst [vmem:[%s3939] ss:$9 sm:$0xff] %v3863
      %4696 = vst [vmem:[%s3942] ss:$9 sm:$0xff] %v3864
      %4698 = vst [vmem:[%s3945] ss:$9 sm:$0xff] %v3865
      %4700 = vst [vmem:[%s3948] ss:$9 sm:$0xff] %v3866
      %4702 = vst [vmem:[%s3951] ss:$9 sm:$0xff] %v3867
      %4703 = vst [vmem:[%s3954] ss:$9 sm:$0xff] %v3467
      %v4704 = vld [vmem:[#allocation1] sm:$0xff]
      %4706 = vst [vmem:[#allocation1] ss:$9 sm:$0xff] %v3868
      %4708 = vst [vmem:[%s3936] ss:$9 sm:$0xff] %v3869
      %4710 = vst [vmem:[%s3939] ss:$9 sm:$0xff] %v3870
      %4712 = vst [vmem:[%s3942] ss:$9 sm:$0xff] %v3871
      %4714 = vst [vmem:[%s3945] ss:$9 sm:$0xff] %v3872
      %4716 = vst [vmem:[%s3948] ss:$9 sm:$0xff] %v3873
      %4717 = vst [vmem:[%s3951] ss:$9 sm:$0xff] %v3468
      %4719 = vst [vmem:[%s3954] ss:$9 sm:$0xff] %v3874
      %v4720 = vld [vmem:[#allocation1] sm:$0xff]
      %4722 = vst [vmem:[#allocation1] ss:$9 sm:$0xff] %v3875
      %4724 = vst [vmem:[%s3936] ss:$9 sm:$0xff] %v3876
      %4726 = vst [vmem:[%s3939] ss:$9 sm:$0xff] %v3877
      %4728 = vst [vmem:[%s3942] ss:$9 sm:$0xff] %v3878
      %4730 = vst [vmem:[%s3945] ss:$9 sm:$0xff] %v3879
      %4732 = vst [vmem:[%s3948] ss:$9 sm:$0xff] %v3880
      %4733 = vst [vmem:[%s3951] ss:$9 sm:$0xff] %v3469
      %4735 = vst [vmem:[%s3954] ss:$9 sm:$0xff] %v3881
      %v4736 = vld [vmem:[#allocation1] sm:$0xff]
      %4738 = vst [vmem:[#allocation1] ss:$9 sm:$0xff] %v3882
      %4740 = vst [vmem:[%s3936] ss:$9 sm:$0xff] %v3883
      %4742 = vst [vmem:[%s3939] ss:$9 sm:$0xff] %v3884
      %4744 = vst [vmem:[%s3942] ss:$9 sm:$0xff] %v3885
      %4746 = vst [vmem:[%s3945] ss:$9 sm:$0xff] %v3886
      %4747 = vst [vmem:[%s3948] ss:$9 sm:$0xff] %v3470
      %4749 = vst [vmem:[%s3951] ss:$9 sm:$0xff] %v3887
      %4751 = vst [vmem:[%s3954] ss:$9 sm:$0xff] %v3888
      %v4752 = vld [vmem:[#allocation1] sm:$0xff]
      %4754 = vst [vmem:[#allocation1] ss:$9 sm:$0xff] %v3889
      %4756 = vst [vmem:[%s3936] ss:$9 sm:$0xff] %v3890
      %4758 = vst [vmem:[%s3939] ss:$9 sm:$0xff] %v3891
      %4760 = vst [vmem:[%s3942] ss:$9 sm:$0xff] %v3892
      %4762 = vst [vmem:[%s3945] ss:$9 sm:$0xff] %v3893
      %4763 = vst [vmem:[%s3948] ss:$9 sm:$0xff] %v3471
      %4765 = vst [vmem:[%s3951] ss:$9 sm:$0xff] %v3894
      %4767 = vst [vmem:[%s3954] ss:$9 sm:$0xff] %v3895
      %v4768 = vld [vmem:[#allocation1] sm:$0xff]
      %4770 = vst [vmem:[#allocation1] ss:$9 sm:$0xff] %v3896
      %4772 = vst [vmem:[%s3936] ss:$9 sm:$0xff] %v3897
      %4774 = vst [vmem:[%s3939] ss:$9 sm:$0xff] %v3898
      %4776 = vst [vmem:[%s3942] ss:$9 sm:$0xff] %v3899
      %4777 = vst [vmem:[%s3945] ss:$9 sm:$0xff] %v3472
      %4779 = vst [vmem:[%s3948] ss:$9 sm:$0xff] %v3900
      %4781 = vst [vmem:[%s3951] ss:$9 sm:$0xff] %v3901
      %4783 = vst [vmem:[%s3954] ss:$9 sm:$0xff] %v3902
      %v4784 = vld [vmem:[#allocation1] sm:$0xff]
      %4786 = vst [vmem:[#allocation1] ss:$9 sm:$0xff] %v3903
      %4788 = vst [vmem:[%s3936] ss:$9 sm:$0xff] %v3904
      %4790 = vst [vmem:[%s3939] ss:$9 sm:$0xff] %v3905
      %4792 = vst [vmem:[%s3942] ss:$9 sm:$0xff] %v3906
      %4793 = vst [vmem:[%s3945] ss:$9 sm:$0xff] %v3473
      %4795 = vst [vmem:[%s3948] ss:$9 sm:$0xff] %v3907
      %4797 = vst [vmem:[%s3951] ss:$9 sm:$0xff] %v3908
      %4799 = vst [vmem:[%s3954] ss:$9 sm:$0xff] %v3909
      %v4800 = vld [vmem:[#allocation1] sm:$0xff]
      %4802 = vst [vmem:[#allocation1] ss:$9 sm:$0xff] %v3910
      %4804 = vst [vmem:[%s3936] ss:$9 sm:$0xff] %v3911
      %4806 = vst [vmem:[%s3939] ss:$9 sm:$0xff] %v3912
      %4807 = vst [vmem:[%s3942] ss:$9 sm:$0xff] %v3474
      %4809 = vst [vmem:[%s3945] ss:$9 sm:$0xff] %v3913
      %4811 = vst [vmem:[%s3948] ss:$9 sm:$0xff] %v3914
      %4813 = vst [vmem:[%s3951] ss:$9 sm:$0xff] %v3915
      %4815 = vst [vmem:[%s3954] ss:$9 sm:$0xff] %v3916
      %v4816 = vld [vmem:[#allocation1] sm:$0xff]
      %4818 = vst [vmem:[#allocation1] ss:$9 sm:$0xff] %v3917
      %4820 = vst [vmem:[%s3936] ss:$9 sm:$0xff] %v3918
      %4822 = vst [vmem:[%s3939] ss:$9 sm:$0xff] %v3919
      %4823 = vst [vmem:[%s3942] ss:$9 sm:$0xff] %v3475
      %4825 = vst [vmem:[%s3945] ss:$9 sm:$0xff] %v3920
      %4827 = vst [vmem:[%s3948] ss:$9 sm:$0xff] %v3921
      %4829 = vst [vmem:[%s3951] ss:$9 sm:$0xff] %v3922
      %4831 = vst [vmem:[%s3954] ss:$9 sm:$0xff] %v3923
      %v4832 = vld [vmem:[#allocation1] sm:$0xff]
      %4834 = vst [vmem:[#allocation1] ss:$9 sm:$0xff] %v3924
      %4836 = vst [vmem:[%s3936] ss:$9 sm:$0xff] %v3925
      %v4837 = vld [vmem:[#allocation1] sm:$0xff]
      %v4842 = vunpack.c.l.b16 %v3926
      %v4843 = vunpack.c.l.b16 %v3927
      %v4844 = vunpack.c.l.b16 %v3928
      %v4845 = vunpack.c.l.b16 %v3929
      %v4846 = vpack.c.b16 %v4843, %v4842
      %v4847 = vpack.c.b16 %v4845, %v4844
      %vm4850 = vcmask 261120
      %v4851 = vsel %vm4850, %v3956, 0
      %v4853 = vsel %vm4850, %v3971, 0
      %v4855 = vsel %vm4850, %v3987, 0
      %v4857 = vsel %vm4850, %v4003, 0
      %v4859 = vsel %vm4850, %v4019, 0
      %v4861 = vsel %vm4850, %v4035, 0
      %v4863 = vsel %vm4850, %v4051, 0
      %v4865 = vsel %vm4850, %v4067, 0
      %v4867 = vsel %vm4850, %v4083, 0
      %v4869 = vsel %vm4850, %v4099, 0
      %v4871 = vsel %vm4850, %v4115, 0
      %v4873 = vsel %vm4850, %v4131, 0
      %v4875 = vsel %vm4850, %v4147, 0
      %v4877 = vsel %vm4850, %v4163, 0
      %v4879 = vsel %vm4850, %v4179, 0
      %v4881 = vsel %vm4850, %v4195, 0
      %v4883 = vsel %vm4850, %v4210, 0
      %v4885 = vsel %vm4850, %v4226, 0
      %v4887 = vsel %vm4850, %v4242, 0
      %v4889 = vsel %vm4850, %v4258, 0
      %v4891 = vsel %vm4850, %v4274, 0
      %v4893 = vsel %vm4850, %v4290, 0
      %v4895 = vsel %vm4850, %v4306, 0
      %v4897 = vsel %vm4850, %v4322, 0
      %v4899 = vsel %vm4850, %v4338, 0
      %v4901 = vsel %vm4850, %v4354, 0
      %v4903 = vsel %vm4850, %v4370, 0
      %v4905 = vsel %vm4850, %v4386, 0
      %v4907 = vsel %vm4850, %v4402, 0
      %v4909 = vsel %vm4850, %v4418, 0
      %v4911 = vsel %vm4850, %v4434, 0
      %v4913 = vsel %vm4850, %v4449, 0
      %v4915 = vsel %vm4850, %v4465, 0
      %v4917 = vsel %vm4850, %v4481, 0
      %v4919 = vsel %vm4850, %v4497, 0
      %v4921 = vsel %vm4850, %v4513, 0
      %v4923 = vsel %vm4850, %v4529, 0
      %v4925 = vsel %vm4850, %v4545, 0
      %v4927 = vsel %vm4850, %v4561, 0
      %v4929 = vsel %vm4850, %v4577, 0
      %v4931 = vsel %vm4850, %v4593, 0
      %v4933 = vsel %vm4850, %v4609, 0
      %v4935 = vsel %vm4850, %v4625, 0
      %v4937 = vsel %vm4850, %v4641, 0
      %v4939 = vsel %vm4850, %v4657, 0
      %v4941 = vsel %vm4850, %v4673, 0
      %v4943 = vsel %vm4850, %v4688, 0
      %v4945 = vsel %vm4850, %v4704, 0
      %v4947 = vsel %vm4850, %v4720, 0
      %v4949 = vsel %vm4850, %v4736, 0
      %v4951 = vsel %vm4850, %v4752, 0
      %v4953 = vsel %vm4850, %v4768, 0
      %v4955 = vsel %vm4850, %v4784, 0
      %v4957 = vsel %vm4850, %v4800, 0
      %v4959 = vsel %vm4850, %v4816, 0
      %v4961 = vsel %vm4850, %v4832, 0
      %v4963 = vsel %vm4850, %v4837, 0
      %4965 = vmatpush.bf16.msra.mxu0 0
      %4966 = vmatpush.bf16.msra.mxu0 0
      %4967 = vmatpush.bf16.msra.mxu0 0
      %4968 = vmatpush.bf16.msra.mxu0 0
      %4969 = vmatpush.bf16.msra.mxu0 0
      %4970 = vmatpush.bf16.msra.mxu0 0
      %4971 = vmatpush.bf16.msra.mxu0 %v4847
      %4972 = vmatpush.bf16.msra.mxu0 %v4846
      %4973 = vmatmul.bf16.gmra.mxu0 %v4851
      %v4974 = vpop.f32.mrf.mxu0
      %v4975 = vadd.f32 %v3932, %v4974
      %v4976 = vpop.f32.mrf.mxu0
      %v4977 = vadd.f32 %v3932, %v4976
      %4978 = vmatmul.bf16.gmra.mxu0 %v4853
      %v4979 = vpop.f32.mrf.mxu0
      %v4980 = vadd.f32 %v3932, %v4979
      %v4981 = vpop.f32.mrf.mxu0
      %v4982 = vadd.f32 %v3932, %v4981
      %4983 = vmatmul.bf16.gmra.mxu0 %v4855
      %v4984 = vpop.f32.mrf.mxu0
      %v4985 = vadd.f32 %v3932, %v4984
      %v4986 = vpop.f32.mrf.mxu0
      %v4987 = vadd.f32 %v3932, %v4986
      %4988 = vmatmul.bf16.gmra.mxu0 %v4857
      %v4989 = vpop.f32.mrf.mxu0
      %v4990 = vadd.f32 %v3932, %v4989
      %v4991 = vpop.f32.mrf.mxu0
      %v4992 = vadd.f32 %v3932, %v4991
      %4993 = vmatmul.bf16.gmra.mxu0 %v4859
      %v4994 = vpop.f32.mrf.mxu0
      %v4995 = vadd.f32 %v3932, %v4994
      %v4996 = vpop.f32.mrf.mxu0
      %v4997 = vadd.f32 %v3932, %v4996
      %4998 = vmatmul.bf16.gmra.mxu0 %v4861
      %v4999 = vpop.f32.mrf.mxu0
      %v5000 = vadd.f32 %v3932, %v4999
      %v5001 = vpop.f32.mrf.mxu0
      %v5002 = vadd.f32 %v3932, %v5001
      %5003 = vmatmul.bf16.gmra.mxu0 %v4863
      %v5004 = vpop.f32.mrf.mxu0
      %v5005 = vadd.f32 %v3932, %v5004
      %v5006 = vpop.f32.mrf.mxu0
      %v5007 = vadd.f32 %v3932, %v5006
      %5008 = vmatmul.bf16.gmra.mxu0 %v4865
      %v5009 = vpop.f32.mrf.mxu0
      %v5010 = vadd.f32 %v3932, %v5009
      %v5011 = vpop.f32.mrf.mxu0
      %v5012 = vadd.f32 %v3932, %v5011
      %5013 = vmatmul.bf16.gmra.mxu0 %v4867
      %v5014 = vpop.f32.mrf.mxu0
      %v5015 = vadd.f32 %v3932, %v5014
      %v5016 = vpop.f32.mrf.mxu0
      %v5017 = vadd.f32 %v3932, %v5016
      %5018 = vmatmul.bf16.gmra.mxu0 %v4869
      %v5019 = vpop.f32.mrf.mxu0
      %v5020 = vadd.f32 %v3932, %v5019
      %v5021 = vpop.f32.mrf.mxu0
      %v5022 = vadd.f32 %v3932, %v5021
      %5023 = vmatmul.bf16.gmra.mxu0 %v4871
      %v5024 = vpop.f32.mrf.mxu0
      %v5025 = vadd.f32 %v3932, %v5024
      %v5026 = vpop.f32.mrf.mxu0
      %v5027 = vadd.f32 %v3932, %v5026
      %5028 = vmatmul.bf16.gmra.mxu0 %v4873
      %v5029 = vpop.f32.mrf.mxu0
      %v5030 = vadd.f32 %v3932, %v5029
      %v5031 = vpop.f32.mrf.mxu0
      %v5032 = vadd.f32 %v3932, %v5031
      %5033 = vmatmul.bf16.gmra.mxu0 %v4875
      %v5034 = vpop.f32.mrf.mxu0
      %v5035 = vadd.f32 %v3932, %v5034
      %v5036 = vpop.f32.mrf.mxu0
      %v5037 = vadd.f32 %v3932, %v5036
      %5038 = vmatmul.bf16.gmra.mxu0 %v4877
      %v5039 = vpop.f32.mrf.mxu0
      %v5040 = vadd.f32 %v3932, %v5039
      %v5041 = vpop.f32.mrf.mxu0
      %v5042 = vadd.f32 %v3932, %v5041
      %5043 = vmatmul.bf16.gmra.mxu0 %v4879
      %v5044 = vpop.f32.mrf.mxu0
      %v5045 = vadd.f32 %v3932, %v5044
      %v5046 = vpop.f32.mrf.mxu0
      %v5047 = vadd.f32 %v3932, %v5046
      %5048 = vmatmul.bf16.gmra.mxu0 %v4881
      %v5049 = vpop.f32.mrf.mxu0
      %v5050 = vadd.f32 %v3932, %v5049
      %v5051 = vpop.f32.mrf.mxu0
      %v5052 = vadd.f32 %v3932, %v5051
      %5053 = vmatmul.bf16.gmra.mxu0 %v4883
      %v5054 = vpop.f32.mrf.mxu0
      %v5055 = vadd.f32 %v3932, %v5054
      %v5056 = vpop.f32.mrf.mxu0
      %v5057 = vadd.f32 %v3932, %v5056
      %5058 = vmatmul.bf16.gmra.mxu0 %v4885
      %v5059 = vpop.f32.mrf.mxu0
      %v5060 = vadd.f32 %v3932, %v5059
      %v5061 = vpop.f32.mrf.mxu0
      %v5062 = vadd.f32 %v3932, %v5061
      %5063 = vmatmul.bf16.gmra.mxu0 %v4887
      %v5064 = vpop.f32.mrf.mxu0
      %v5065 = vadd.f32 %v3932, %v5064
      %v5066 = vpop.f32.mrf.mxu0
      %v5067 = vadd.f32 %v3932, %v5066
      %5068 = vmatmul.bf16.gmra.mxu0 %v4889
      %v5069 = vpop.f32.mrf.mxu0
      %v5070 = vadd.f32 %v3932, %v5069
      %v5071 = vpop.f32.mrf.mxu0
      %v5072 = vadd.f32 %v3932, %v5071
      %5073 = vmatmul.bf16.gmra.mxu0 %v4891
      %v5074 = vpop.f32.mrf.mxu0
      %v5075 = vadd.f32 %v3932, %v5074
      %v5076 = vpop.f32.mrf.mxu0
      %v5077 = vadd.f32 %v3932, %v5076
      %5078 = vmatmul.bf16.gmra.mxu0 %v4893
      %v5079 = vpop.f32.mrf.mxu0
      %v5080 = vadd.f32 %v3932, %v5079
      %v5081 = vpop.f32.mrf.mxu0
      %v5082 = vadd.f32 %v3932, %v5081
      %5083 = vmatmul.bf16.gmra.mxu0 %v4895
      %v5084 = vpop.f32.mrf.mxu0
      %v5085 = vadd.f32 %v3932, %v5084
      %v5086 = vpop.f32.mrf.mxu0
      %v5087 = vadd.f32 %v3932, %v5086
      %5088 = vmatmul.bf16.gmra.mxu0 %v4897
      %v5089 = vpop.f32.mrf.mxu0
      %v5090 = vadd.f32 %v3932, %v5089
      %v5091 = vpop.f32.mrf.mxu0
      %v5092 = vadd.f32 %v3932, %v5091
      %5093 = vmatmul.bf16.gmra.mxu0 %v4899
      %v5094 = vpop.f32.mrf.mxu0
      %v5095 = vadd.f32 %v3932, %v5094
      %v5096 = vpop.f32.mrf.mxu0
      %v5097 = vadd.f32 %v3932, %v5096
      %5098 = vmatmul.bf16.gmra.mxu0 %v4901
      %v5099 = vpop.f32.mrf.mxu0
      %v5100 = vadd.f32 %v3932, %v5099
      %v5101 = vpop.f32.mrf.mxu0
      %v5102 = vadd.f32 %v3932, %v5101
      %5103 = vmatmul.bf16.gmra.mxu0 %v4903
      %v5104 = vpop.f32.mrf.mxu0
      %v5105 = vadd.f32 %v3932, %v5104
      %v5106 = vpop.f32.mrf.mxu0
      %v5107 = vadd.f32 %v3932, %v5106
      %5108 = vmatmul.bf16.gmra.mxu0 %v4905
      %v5109 = vpop.f32.mrf.mxu0
      %v5110 = vadd.f32 %v3932, %v5109
      %v5111 = vpop.f32.mrf.mxu0
      %v5112 = vadd.f32 %v3932, %v5111
      %5113 = vmatmul.bf16.gmra.mxu0 %v4907
      %v5114 = vpop.f32.mrf.mxu0
      %v5115 = vadd.f32 %v3932, %v5114
      %v5116 = vpop.f32.mrf.mxu0
      %v5117 = vadd.f32 %v3932, %v5116
      %5118 = vmatmul.bf16.gmra.mxu0 %v4909
      %v5119 = vpop.f32.mrf.mxu0
      %v5120 = vadd.f32 %v3932, %v5119
      %v5121 = vpop.f32.mrf.mxu0
      %v5122 = vadd.f32 %v3932, %v5121
      %5123 = vmatmul.bf16.gmra.mxu0 %v4911
      %v5124 = vpop.f32.mrf.mxu0
      %v5125 = vadd.f32 %v3932, %v5124
      %v5126 = vpop.f32.mrf.mxu0
      %v5127 = vadd.f32 %v3932, %v5126
      %5128 = vmatmul.bf16.gmra.mxu0 %v4913
      %v5129 = vpop.f32.mrf.mxu0
      %v5130 = vadd.f32 %v3932, %v5129
      %v5131 = vpop.f32.mrf.mxu0
      %v5132 = vadd.f32 %v3932, %v5131
      %5133 = vmatmul.bf16.gmra.mxu0 %v4915
      %v5134 = vpop.f32.mrf.mxu0
      %v5135 = vadd.f32 %v3932, %v5134
      %v5136 = vpop.f32.mrf.mxu0
      %v5137 = vadd.f32 %v3932, %v5136
      %5138 = vmatmul.bf16.gmra.mxu0 %v4917
      %v5139 = vpop.f32.mrf.mxu0
      %v5140 = vadd.f32 %v3932, %v5139
      %v5141 = vpop.f32.mrf.mxu0
      %v5142 = vadd.f32 %v3932, %v5141
      %5143 = vmatmul.bf16.gmra.mxu0 %v4919
      %v5144 = vpop.f32.mrf.mxu0
      %v5145 = vadd.f32 %v3932, %v5144
      %v5146 = vpop.f32.mrf.mxu0
      %v5147 = vadd.f32 %v3932, %v5146
      %5148 = vmatmul.bf16.gmra.mxu0 %v4921
      %v5149 = vpop.f32.mrf.mxu0
      %v5150 = vadd.f32 %v3932, %v5149
      %v5151 = vpop.f32.mrf.mxu0
      %v5152 = vadd.f32 %v3932, %v5151
      %5153 = vmatmul.bf16.gmra.mxu0 %v4923
      %v5154 = vpop.f32.mrf.mxu0
      %v5155 = vadd.f32 %v3932, %v5154
      %v5156 = vpop.f32.mrf.mxu0
      %v5157 = vadd.f32 %v3932, %v5156
      %5158 = vmatmul.bf16.gmra.mxu0 %v4925
      %v5159 = vpop.f32.mrf.mxu0
      %v5160 = vadd.f32 %v3932, %v5159
      %v5161 = vpop.f32.mrf.mxu0
      %v5162 = vadd.f32 %v3932, %v5161
      %5163 = vmatmul.bf16.gmra.mxu0 %v4927
      %v5164 = vpop.f32.mrf.mxu0
      %v5165 = vadd.f32 %v3932, %v5164
      %v5166 = vpop.f32.mrf.mxu0
      %v5167 = vadd.f32 %v3932, %v5166
      %5168 = vmatmul.bf16.gmra.mxu0 %v4929
      %v5169 = vpop.f32.mrf.mxu0
      %v5170 = vadd.f32 %v3932, %v5169
      %v5171 = vpop.f32.mrf.mxu0
      %v5172 = vadd.f32 %v3932, %v5171
      %5173 = vmatmul.bf16.gmra.mxu0 %v4931
      %v5174 = vpop.f32.mrf.mxu0
      %v5175 = vadd.f32 %v3932, %v5174
      %v5176 = vpop.f32.mrf.mxu0
      %v5177 = vadd.f32 %v3932, %v5176
      %5178 = vmatmul.bf16.gmra.mxu0 %v4933
      %v5179 = vpop.f32.mrf.mxu0
      %v5180 = vadd.f32 %v3932, %v5179
      %v5181 = vpop.f32.mrf.mxu0
      %v5182 = vadd.f32 %v3932, %v5181
      %5183 = vmatmul.bf16.gmra.mxu0 %v4935
      %v5184 = vpop.f32.mrf.mxu0
      %v5185 = vadd.f32 %v3932, %v5184
      %v5186 = vpop.f32.mrf.mxu0
      %v5187 = vadd.f32 %v3932, %v5186
      %5188 = vmatmul.bf16.gmra.mxu0 %v4937
      %v5189 = vpop.f32.mrf.mxu0
      %v5190 = vadd.f32 %v3932, %v5189
      %v5191 = vpop.f32.mrf.mxu0
      %v5192 = vadd.f32 %v3932, %v5191
      %5193 = vmatmul.bf16.gmra.mxu0 %v4939
      %v5194 = vpop.f32.mrf.mxu0
      %v5195 = vadd.f32 %v3932, %v5194
      %v5196 = vpop.f32.mrf.mxu0
      %v5197 = vadd.f32 %v3932, %v5196
      %5198 = vmatmul.bf16.gmra.mxu0 %v4941
      %v5199 = vpop.f32.mrf.mxu0
      %v5200 = vadd.f32 %v3932, %v5199
      %v5201 = vpop.f32.mrf.mxu0
      %v5202 = vadd.f32 %v3932, %v5201
      %5203 = vmatmul.bf16.gmra.mxu0 %v4943
      %v5204 = vpop.f32.mrf.mxu0
      %v5205 = vadd.f32 %v3932, %v5204
      %v5206 = vpop.f32.mrf.mxu0
      %v5207 = vadd.f32 %v3932, %v5206
      %5208 = vmatmul.bf16.gmra.mxu0 %v4945
      %v5209 = vpop.f32.mrf.mxu0
      %v5210 = vadd.f32 %v3932, %v5209
      %v5211 = vpop.f32.mrf.mxu0
      %v5212 = vadd.f32 %v3932, %v5211
      %5213 = vmatmul.bf16.gmra.mxu0 %v4947
      %v5214 = vpop.f32.mrf.mxu0
      %v5215 = vadd.f32 %v3932, %v5214
      %v5216 = vpop.f32.mrf.mxu0
      %v5217 = vadd.f32 %v3932, %v5216
      %5218 = vmatmul.bf16.gmra.mxu0 %v4949
      %v5219 = vpop.f32.mrf.mxu0
      %v5220 = vadd.f32 %v3932, %v5219
      %v5221 = vpop.f32.mrf.mxu0
      %v5222 = vadd.f32 %v3932, %v5221
      %5223 = vmatmul.bf16.gmra.mxu0 %v4951
      %v5224 = vpop.f32.mrf.mxu0
      %v5225 = vadd.f32 %v3932, %v5224
      %v5226 = vpop.f32.mrf.mxu0
      %v5227 = vadd.f32 %v3932, %v5226
      %5228 = vmatmul.bf16.gmra.mxu0 %v4953
      %v5229 = vpop.f32.mrf.mxu0
      %v5230 = vadd.f32 %v3932, %v5229
      %v5231 = vpop.f32.mrf.mxu0
      %v5232 = vadd.f32 %v3932, %v5231
      %5233 = vmatmul.bf16.gmra.mxu0 %v4955
      %v5234 = vpop.f32.mrf.mxu0
      %v5235 = vadd.f32 %v3932, %v5234
      %v5236 = vpop.f32.mrf.mxu0
      %v5237 = vadd.f32 %v3932, %v5236
      %5238 = vmatmul.bf16.gmra.mxu0 %v4957
      %v5239 = vpop.f32.mrf.mxu0
      %v5240 = vadd.f32 %v3932, %v5239
      %v5241 = vpop.f32.mrf.mxu0
      %v5242 = vadd.f32 %v3932, %v5241
      %5243 = vmatmul.bf16.gmra.mxu0 %v4959
      %v5244 = vpop.f32.mrf.mxu0
      %v5245 = vadd.f32 %v3932, %v5244
      %v5246 = vpop.f32.mrf.mxu0
      %v5247 = vadd.f32 %v3932, %v5246
      %5248 = vmatmul.bf16.gmra.mxu0 %v4961
      %v5249 = vpop.f32.mrf.mxu0
      %v5250 = vadd.f32 %v3932, %v5249
      %v5251 = vpop.f32.mrf.mxu0
      %v5252 = vadd.f32 %v3932, %v5251
      %5253 = vmatmul.bf16.gmra.mxu0 %v4963
      %v5254 = vpop.f32.mrf.mxu0
      %v5255 = vadd.f32 %v3932, %v5254
      %v5256 = vpop.f32.mrf.mxu0
      %5257 = vdwg.mxu0
      %v5371 = vrot.slane %v4975, 2
      %v5372 = vrot.slane %v4975, 4
      %v5373 = vrot.slane %v4975, 6
      %v5374 = vrot.slane %v4977, 2
      %v5375 = vrot.slane %v4977, 4
      %v5376 = vrot.slane %v4977, 6
      %v5377 = vrot.slane %v4980, 2
      %v5378 = vrot.slane %v4980, 4
      %v5379 = vrot.slane %v4980, 6
      %v5380 = vrot.slane %v4982, 2
      %v5381 = vrot.slane %v4982, 4
      %v5382 = vrot.slane %v4982, 6
      %v5383 = vrot.slane %v4985, 2
      %v5384 = vrot.slane %v4985, 4
      %v5385 = vrot.slane %v4985, 6
      %v5386 = vrot.slane %v4987, 2
      %v5387 = vrot.slane %v4987, 4
      %v5388 = vrot.slane %v4987, 6
      %v5389 = vrot.slane %v4990, 2
      %v5390 = vrot.slane %v4990, 4
      %v5391 = vrot.slane %v4990, 6
      %v5392 = vrot.slane %v4992, 2
      %v5393 = vrot.slane %v4992, 4
      %v5394 = vrot.slane %v4992, 6
      %v5395 = vrot.slane %v4995, 2
      %v5396 = vrot.slane %v4995, 4
      %v5397 = vrot.slane %v4995, 6
      %v5398 = vrot.slane %v4997, 2
      %v5399 = vrot.slane %v4997, 4
      %v5400 = vrot.slane %v4997, 6
      %v5401 = vrot.slane %v5000, 2
      %v5402 = vrot.slane %v5000, 4
      %v5403 = vrot.slane %v5000, 6
      %v5404 = vrot.slane %v5002, 2
      %v5405 = vrot.slane %v5002, 4
      %v5406 = vrot.slane %v5002, 6
      %v5407 = vrot.slane %v5005, 2
      %v5408 = vrot.slane %v5005, 4
      %v5409 = vrot.slane %v5005, 6
      %v5410 = vrot.slane %v5007, 2
      %v5411 = vrot.slane %v5007, 4
      %v5412 = vrot.slane %v5007, 6
      %v5413 = vrot.slane %v5010, 2
      %v5414 = vrot.slane %v5010, 4
      %v5415 = vrot.slane %v5010, 6
      %v5416 = vrot.slane %v5012, 2
      %v5417 = vrot.slane %v5012, 4
      %v5418 = vrot.slane %v5012, 6
      %v5419 = vrot.slane %v5015, 2
      %v5420 = vrot.slane %v5015, 4
      %v5421 = vrot.slane %v5015, 6
      %v5422 = vrot.slane %v5017, 2
      %v5423 = vrot.slane %v5017, 4
      %v5424 = vrot.slane %v5017, 6
      %v5425 = vrot.slane %v5020, 2
      %v5426 = vrot.slane %v5020, 4
      %v5427 = vrot.slane %v5020, 6
      %v5428 = vrot.slane %v5022, 2
      %v5429 = vrot.slane %v5022, 4
      %v5430 = vrot.slane %v5022, 6
      %v5431 = vrot.slane %v5025, 2
      %v5432 = vrot.slane %v5025, 4
      %v5433 = vrot.slane %v5025, 6
      %v5434 = vrot.slane %v5027, 2
      %v5435 = vrot.slane %v5027, 4
      %v5436 = vrot.slane %v5027, 6
      %v5437 = vrot.slane %v5030, 2
      %v5438 = vrot.slane %v5030, 4
      %v5439 = vrot.slane %v5030, 6
      %v5440 = vrot.slane %v5032, 2
      %v5441 = vrot.slane %v5032, 4
      %v5442 = vrot.slane %v5032, 6
      %v5443 = vrot.slane %v5035, 2
      %v5444 = vrot.slane %v5035, 4
      %v5445 = vrot.slane %v5035, 6
      %v5446 = vrot.slane %v5037, 2
      %v5447 = vrot.slane %v5037, 4
      %v5448 = vrot.slane %v5037, 6
      %v5449 = vrot.slane %v5040, 2
      %v5450 = vrot.slane %v5040, 4
      %v5451 = vrot.slane %v5040, 6
      %v5452 = vrot.slane %v5042, 2
      %v5453 = vrot.slane %v5042, 4
      %v5454 = vrot.slane %v5042, 6
      %v5455 = vrot.slane %v5045, 2
      %v5456 = vrot.slane %v5045, 4
      %v5457 = vrot.slane %v5045, 6
      %v5458 = vrot.slane %v5047, 2
      %v5459 = vrot.slane %v5047, 4
      %v5460 = vrot.slane %v5047, 6
      %v5461 = vrot.slane %v5050, 2
      %v5462 = vrot.slane %v5050, 4
      %v5463 = vrot.slane %v5050, 6
      %v5464 = vrot.slane %v5052, 2
      %v5465 = vrot.slane %v5052, 4
      %v5466 = vrot.slane %v5052, 6
      %v5467 = vrot.slane %v5055, 2
      %v5468 = vrot.slane %v5055, 4
      %v5469 = vrot.slane %v5055, 6
      %v5470 = vrot.slane %v5057, 2
      %v5471 = vrot.slane %v5057, 4
      %v5472 = vrot.slane %v5057, 6
      %v5473 = vrot.slane %v5060, 2
      %v5474 = vrot.slane %v5060, 4
      %v5475 = vrot.slane %v5060, 6
      %v5476 = vrot.slane %v5062, 2
      %v5477 = vrot.slane %v5062, 4
      %v5478 = vrot.slane %v5062, 6
      %v5479 = vrot.slane %v5065, 2
      %v5480 = vrot.slane %v5065, 4
      %v5481 = vrot.slane %v5065, 6
      %v5482 = vrot.slane %v5067, 2
      %v5483 = vrot.slane %v5067, 4
      %v5484 = vrot.slane %v5067, 6
      %v5485 = vrot.slane %v5070, 2
      %v5486 = vrot.slane %v5070, 4
      %v5487 = vrot.slane %v5070, 6
      %v5488 = vrot.slane %v5072, 2
      %v5489 = vrot.slane %v5072, 4
      %v5490 = vrot.slane %v5072, 6
      %v5491 = vrot.slane %v5075, 2
      %v5492 = vrot.slane %v5075, 4
      %v5493 = vrot.slane %v5075, 6
      %v5494 = vrot.slane %v5077, 2
      %v5495 = vrot.slane %v5077, 4
      %v5496 = vrot.slane %v5077, 6
      %v5497 = vrot.slane %v5080, 2
      %v5498 = vrot.slane %v5080, 4
      %v5499 = vrot.slane %v5080, 6
      %v5500 = vrot.slane %v5082, 2
      %v5501 = vrot.slane %v5082, 4
      %v5502 = vrot.slane %v5082, 6
      %v5503 = vrot.slane %v5085, 2
      %v5504 = vrot.slane %v5085, 4
      %v5505 = vrot.slane %v5085, 6
      %v5506 = vrot.slane %v5087, 2
      %v5507 = vrot.slane %v5087, 4
      %v5508 = vrot.slane %v5087, 6
      %v5509 = vrot.slane %v5090, 2
      %v5510 = vrot.slane %v5090, 4
      %v5511 = vrot.slane %v5090, 6
      %v5512 = vrot.slane %v5092, 2
      %v5513 = vrot.slane %v5092, 4
      %v5514 = vrot.slane %v5092, 6
      %v5515 = vrot.slane %v5095, 2
      %v5516 = vrot.slane %v5095, 4
      %v5517 = vrot.slane %v5095, 6
      %v5518 = vrot.slane %v5097, 2
      %v5519 = vrot.slane %v5097, 4
      %v5520 = vrot.slane %v5097, 6
      %v5521 = vrot.slane %v5100, 2
      %v5522 = vrot.slane %v5100, 4
      %v5523 = vrot.slane %v5100, 6
      %v5524 = vrot.slane %v5102, 2
      %v5525 = vrot.slane %v5102, 4
      %v5526 = vrot.slane %v5102, 6
      %v5527 = vrot.slane %v5105, 2
      %v5528 = vrot.slane %v5105, 4
      %v5529 = vrot.slane %v5105, 6
      %v5530 = vrot.slane %v5107, 2
      %v5531 = vrot.slane %v5107, 4
      %v5532 = vrot.slane %v5107, 6
      %v5533 = vrot.slane %v5110, 2
      %v5534 = vrot.slane %v5110, 4
      %v5535 = vrot.slane %v5110, 6
      %v5536 = vrot.slane %v5112, 2
      %v5537 = vrot.slane %v5112, 4
      %v5538 = vrot.slane %v5112, 6
      %v5539 = vrot.slane %v5115, 2
      %v5540 = vrot.slane %v5115, 4
      %v5541 = vrot.slane %v5115, 6
      %v5542 = vrot.slane %v5117, 2
      %v5543 = vrot.slane %v5117, 4
      %v5544 = vrot.slane %v5117, 6
      %v5545 = vrot.slane %v5120, 2
      %v5546 = vrot.slane %v5120, 4
      %v5547 = vrot.slane %v5120, 6
      %v5548 = vrot.slane %v5122, 2
      %v5549 = vrot.slane %v5122, 4
      %v5550 = vrot.slane %v5122, 6
      %v5551 = vrot.slane %v5125, 2
      %v5552 = vrot.slane %v5125, 4
      %v5553 = vrot.slane %v5125, 6
      %v5554 = vrot.slane %v5127, 2
      %v5555 = vrot.slane %v5127, 4
      %v5556 = vrot.slane %v5127, 6
      %v5557 = vrot.slane %v5130, 2
      %v5558 = vrot.slane %v5130, 4
      %v5559 = vrot.slane %v5130, 6
      %v5560 = vrot.slane %v5132, 2
      %v5561 = vrot.slane %v5132, 4
      %v5562 = vrot.slane %v5132, 6
      %v5563 = vrot.slane %v5135, 2
      %v5564 = vrot.slane %v5135, 4
      %v5565 = vrot.slane %v5135, 6
      %v5566 = vrot.slane %v5137, 2
      %v5567 = vrot.slane %v5137, 4
      %v5568 = vrot.slane %v5137, 6
      %v5569 = vrot.slane %v5140, 2
      %v5570 = vrot.slane %v5140, 4
      %v5571 = vrot.slane %v5140, 6
      %v5572 = vrot.slane %v5142, 2
      %v5573 = vrot.slane %v5142, 4
      %v5574 = vrot.slane %v5142, 6
      %v5575 = vrot.slane %v5145, 2
      %v5576 = vrot.slane %v5145, 4
      %v5577 = vrot.slane %v5145, 6
      %v5578 = vrot.slane %v5147, 2
      %v5579 = vrot.slane %v5147, 4
      %v5580 = vrot.slane %v5147, 6
      %v5581 = vrot.slane %v5150, 2
      %v5582 = vrot.slane %v5150, 4
      %v5583 = vrot.slane %v5150, 6
      %v5584 = vrot.slane %v5152, 2
      %v5585 = vrot.slane %v5152, 4
      %v5586 = vrot.slane %v5152, 6
      %v5587 = vrot.slane %v5155, 2
      %v5588 = vrot.slane %v5155, 4
      %v5589 = vrot.slane %v5155, 6
      %v5590 = vrot.slane %v5157, 2
      %v5591 = vrot.slane %v5157, 4
      %v5592 = vrot.slane %v5157, 6
      %v5593 = vrot.slane %v5160, 2
      %v5594 = vrot.slane %v5160, 4
      %v5595 = vrot.slane %v5160, 6
      %v5596 = vrot.slane %v5162, 2
      %v5597 = vrot.slane %v5162, 4
      %v5598 = vrot.slane %v5162, 6
      %v5599 = vrot.slane %v5165, 2
      %v5600 = vrot.slane %v5165, 4
      %v5601 = vrot.slane %v5165, 6
      %v5602 = vrot.slane %v5167, 2
      %v5603 = vrot.slane %v5167, 4
      %v5604 = vrot.slane %v5167, 6
      %v5605 = vrot.slane %v5170, 2
      %v5606 = vrot.slane %v5170, 4
      %v5607 = vrot.slane %v5170, 6
      %v5608 = vrot.slane %v5172, 2
      %v5609 = vrot.slane %v5172, 4
      %v5610 = vrot.slane %v5172, 6
      %v5611 = vrot.slane %v5175, 2
      %v5612 = vrot.slane %v5175, 4
      %v5613 = vrot.slane %v5175, 6
      %v5614 = vrot.slane %v5177, 2
      %v5615 = vrot.slane %v5177, 4
      %v5616 = vrot.slane %v5177, 6
      %v5617 = vrot.slane %v5180, 2
      %v5618 = vrot.slane %v5180, 4
      %v5619 = vrot.slane %v5180, 6
      %v5620 = vrot.slane %v5182, 2
      %v5621 = vrot.slane %v5182, 4
      %v5622 = vrot.slane %v5182, 6
      %v5623 = vrot.slane %v5185, 2
      %v5624 = vrot.slane %v5185, 4
      %v5625 = vrot.slane %v5185, 6
      %v5626 = vrot.slane %v5187, 2
      %v5627 = vrot.slane %v5187, 4
      %v5628 = vrot.slane %v5187, 6
      %v5629 = vrot.slane %v5190, 2
      %v5630 = vrot.slane %v5190, 4
      %v5631 = vrot.slane %v5190, 6
      %v5632 = vrot.slane %v5192, 2
      %v5633 = vrot.slane %v5192, 4
      %v5634 = vrot.slane %v5192, 6
      %v5635 = vrot.slane %v5195, 2
      %v5636 = vrot.slane %v5195, 4
      %v5637 = vrot.slane %v5195, 6
      %v5638 = vrot.slane %v5197, 2
      %v5639 = vrot.slane %v5197, 4
      %v5640 = vrot.slane %v5197, 6
      %v5641 = vrot.slane %v5200, 2
      %v5642 = vrot.slane %v5200, 4
      %v5643 = vrot.slane %v5200, 6
      %v5644 = vrot.slane %v5202, 2
      %v5645 = vrot.slane %v5202, 4
      %v5646 = vrot.slane %v5202, 6
      %v5647 = vrot.slane %v5205, 2
      %v5648 = vrot.slane %v5205, 4
      %v5649 = vrot.slane %v5205, 6
      %v5650 = vrot.slane %v5207, 2
      %v5651 = vrot.slane %v5207, 4
      %v5652 = vrot.slane %v5207, 6
      %v5653 = vrot.slane %v5210, 2
      %v5654 = vrot.slane %v5210, 4
      %v5655 = vrot.slane %v5210, 6
      %v5656 = vrot.slane %v5212, 2
      %v5657 = vrot.slane %v5212, 4
      %v5658 = vrot.slane %v5212, 6
      %v5659 = vrot.slane %v5215, 2
      %v5660 = vrot.slane %v5215, 4
      %v5661 = vrot.slane %v5215, 6
      %v5662 = vrot.slane %v5217, 2
      %v5663 = vrot.slane %v5217, 4
      %v5664 = vrot.slane %v5217, 6
      %v5665 = vrot.slane %v5220, 2
      %v5666 = vrot.slane %v5220, 4
      %v5667 = vrot.slane %v5220, 6
      %v5668 = vrot.slane %v5222, 2
      %v5669 = vrot.slane %v5222, 4
      %v5670 = vrot.slane %v5222, 6
      %v5671 = vrot.slane %v5225, 2
      %v5672 = vrot.slane %v5225, 4
      %v5673 = vrot.slane %v5225, 6
      %v5674 = vrot.slane %v5227, 2
      %v5675 = vrot.slane %v5227, 4
      %v5676 = vrot.slane %v5227, 6
      %v5677 = vrot.slane %v5230, 2
      %v5678 = vrot.slane %v5230, 4
      %v5679 = vrot.slane %v5230, 6
      %v5680 = vrot.slane %v5232, 2
      %v5681 = vrot.slane %v5232, 4
      %v5682 = vrot.slane %v5232, 6
      %v5683 = vrot.slane %v5235, 2
      %v5684 = vrot.slane %v5235, 4
      %v5685 = vrot.slane %v5235, 6
      %v5686 = vrot.slane %v5237, 2
      %v5687 = vrot.slane %v5237, 4
      %v5688 = vrot.slane %v5237, 6
      %v5689 = vrot.slane %v5240, 2
      %v5690 = vrot.slane %v5240, 4
      %v5691 = vrot.slane %v5240, 6
      %v5692 = vrot.slane %v5242, 2
      %v5693 = vrot.slane %v5242, 4
      %v5694 = vrot.slane %v5242, 6
      %v5695 = vrot.slane %v5245, 2
      %v5696 = vrot.slane %v5245, 4
      %v5697 = vrot.slane %v5245, 6
      %v5698 = vrot.slane %v5247, 2
      %v5699 = vrot.slane %v5247, 4
      %v5700 = vrot.slane %v5247, 6
      %v5701 = vrot.slane %v5250, 2
      %v5702 = vrot.slane %v5250, 4
      %v5703 = vrot.slane %v5250, 6
      %v5704 = vrot.slane %v5252, 2
      %v5705 = vrot.slane %v5252, 4
      %v5706 = vrot.slane %v5252, 6
      %v5707 = vrot.slane %v5255, 2
      %v6045 = vmax.f32 %v4975, %v5382
      %v6046 = vmax.f32 %v5371, %v4985
      %v6047 = vmax.f32 %v5372, %v5383
      %v6048 = vmax.f32 %v5373, %v5384
      %v6049 = vmax.f32 %v4977, %v5385
      %v6050 = vmax.f32 %v5374, %v4987
      %v6051 = vmax.f32 %v5375, %v5386
      %v6052 = vmax.f32 %v5376, %v5387
      %v6053 = vmax.f32 %v4980, %v5388
      %v6054 = vmax.f32 %v5377, %v4990
      %v6055 = vmax.f32 %v5378, %v5389
      %v6056 = vmax.f32 %v5379, %v5390
      %v6057 = vmax.f32 %v4982, %v5391
      %v6058 = vmax.f32 %v5380, %v4992
      %v6059 = vmax.f32 %v5381, %v5392
      %v6060 = vmax.f32 %v5393, %v5404
      %v6061 = vmax.f32 %v5394, %v5405
      %v6062 = vmax.f32 %v4995, %v5406
      %v6063 = vmax.f32 %v5395, %v5005
      %v6064 = vmax.f32 %v5396, %v5407
      %v6065 = vmax.f32 %v5397, %v5408
      %v6066 = vmax.f32 %v4997, %v5409
      %v6067 = vmax.f32 %v5398, %v5007
      %v6068 = vmax.f32 %v5399, %v5410
      %v6069 = vmax.f32 %v5400, %v5411
      %v6070 = vmax.f32 %v5000, %v5412
      %v6071 = vmax.f32 %v5401, %v5010
      %v6072 = vmax.f32 %v5402, %v5413
      %v6073 = vmax.f32 %v5403, %v5414
      %v6074 = vmax.f32 %v5002, %v5415
      %v6075 = vmax.f32 %v5012, %v5427
      %v6076 = vmax.f32 %v5416, %v5022
      %v6077 = vmax.f32 %v5417, %v5428
      %v6078 = vmax.f32 %v5418, %v5429
      %v6079 = vmax.f32 %v5015, %v5430
      %v6080 = vmax.f32 %v5419, %v5025
      %v6081 = vmax.f32 %v5420, %v5431
      %v6082 = vmax.f32 %v5421, %v5432
      %v6083 = vmax.f32 %v5017, %v5433
      %v6084 = vmax.f32 %v5422, %v5027
      %v6085 = vmax.f32 %v5423, %v5434
      %v6086 = vmax.f32 %v5424, %v5435
      %v6087 = vmax.f32 %v5020, %v5436
      %v6088 = vmax.f32 %v5425, %v5030
      %v6089 = vmax.f32 %v5426, %v5437
      %v6090 = vmax.f32 %v5438, %v5449
      %v6091 = vmax.f32 %v5439, %v5450
      %v6092 = vmax.f32 %v5032, %v5451
      %v6093 = vmax.f32 %v5440, %v5042
      %v6094 = vmax.f32 %v5441, %v5452
      %v6095 = vmax.f32 %v5442, %v5453
      %v6096 = vmax.f32 %v5035, %v5454
      %v6097 = vmax.f32 %v5443, %v5045
      %v6098 = vmax.f32 %v5444, %v5455
      %v6099 = vmax.f32 %v5445, %v5456
      %v6100 = vmax.f32 %v5037, %v5457
      %v6101 = vmax.f32 %v5446, %v5047
      %v6102 = vmax.f32 %v5447, %v5458
      %v6103 = vmax.f32 %v5448, %v5459
      %v6104 = vmax.f32 %v5040, %v5460
      %v6105 = vmax.f32 %v5050, %v5472
      %v6106 = vmax.f32 %v5461, %v5060
      %v6107 = vmax.f32 %v5462, %v5473
      %v6108 = vmax.f32 %v5463, %v5474
      %v6109 = vmax.f32 %v5052, %v5475
      %v6110 = vmax.f32 %v5464, %v5062
      %v6111 = vmax.f32 %v5465, %v5476
      %v6112 = vmax.f32 %v5466, %v5477
      %v6113 = vmax.f32 %v5055, %v5478
      %v6114 = vmax.f32 %v5467, %v5065
      %v6115 = vmax.f32 %v5468, %v5479
      %v6116 = vmax.f32 %v5469, %v5480
      %v6117 = vmax.f32 %v5057, %v5481
      %v6118 = vmax.f32 %v5470, %v5067
      %v6119 = vmax.f32 %v5471, %v5482
      %v6120 = vmax.f32 %v5483, %v5494
      %v6121 = vmax.f32 %v5484, %v5495
      %v6122 = vmax.f32 %v5070, %v5496
      %v6123 = vmax.f32 %v5485, %v5080
      %v6124 = vmax.f32 %v5486, %v5497
      %v6125 = vmax.f32 %v5487, %v5498
      %v6126 = vmax.f32 %v5072, %v5499
      %v6127 = vmax.f32 %v5488, %v5082
      %v6128 = vmax.f32 %v5489, %v5500
      %v6129 = vmax.f32 %v5490, %v5501
      %v6130 = vmax.f32 %v5075, %v5502
      %v6131 = vmax.f32 %v5491, %v5085
      %v6132 = vmax.f32 %v5492, %v5503
      %v6133 = vmax.f32 %v5493, %v5504
      %v6134 = vmax.f32 %v5077, %v5505
      %v6135 = vmax.f32 %v5087, %v5517
      %v6136 = vmax.f32 %v5506, %v5097
      %v6137 = vmax.f32 %v5507, %v5518
      %v6138 = vmax.f32 %v5508, %v5519
      %v6139 = vmax.f32 %v5090, %v5520
      %v6140 = vmax.f32 %v5509, %v5100
      %v6141 = vmax.f32 %v5510, %v5521
      %v6142 = vmax.f32 %v5511, %v5522
      %v6143 = vmax.f32 %v5092, %v5523
      %v6144 = vmax.f32 %v5512, %v5102
      %v6145 = vmax.f32 %v5513, %v5524
      %v6146 = vmax.f32 %v5514, %v5525
      %v6147 = vmax.f32 %v5095, %v5526
      %v6148 = vmax.f32 %v5515, %v5105
      %v6149 = vmax.f32 %v5516, %v5527
      %v6150 = vmax.f32 %v5528, %v5539
      %v6151 = vmax.f32 %v5529, %v5540
      %v6152 = vmax.f32 %v5107, %v5541
      %v6153 = vmax.f32 %v5530, %v5117
      %v6154 = vmax.f32 %v5531, %v5542
      %v6155 = vmax.f32 %v5532, %v5543
      %v6156 = vmax.f32 %v5110, %v5544
      %v6157 = vmax.f32 %v5533, %v5120
      %v6158 = vmax.f32 %v5534, %v5545
      %v6159 = vmax.f32 %v5535, %v5546
      %v6160 = vmax.f32 %v5112, %v5547
      %v6161 = vmax.f32 %v5536, %v5122
      %v6162 = vmax.f32 %v5537, %v5548
      %v6163 = vmax.f32 %v5538, %v5549
      %v6164 = vmax.f32 %v5115, %v5550
      %v6165 = vmax.f32 %v5125, %v5562
      %v6166 = vmax.f32 %v5551, %v5135
      %v6167 = vmax.f32 %v5552, %v5563
      %v6168 = vmax.f32 %v5553, %v5564
      %v6169 = vmax.f32 %v5127, %v5565
      %v6170 = vmax.f32 %v5554, %v5137
      %v6171 = vmax.f32 %v5555, %v5566
      %v6172 = vmax.f32 %v5556, %v5567
      %v6173 = vmax.f32 %v5130, %v5568
      %v6174 = vmax.f32 %v5557, %v5140
      %v6175 = vmax.f32 %v5558, %v5569
      %v6176 = vmax.f32 %v5559, %v5570
      %v6177 = vmax.f32 %v5132, %v5571
      %v6178 = vmax.f32 %v5560, %v5142
      %v6179 = vmax.f32 %v5561, %v5572
      %v6180 = vmax.f32 %v5573, %v5584
      %v6181 = vmax.f32 %v5574, %v5585
      %v6182 = vmax.f32 %v5145, %v5586
      %v6183 = vmax.f32 %v5575, %v5155
      %v6184 = vmax.f32 %v5576, %v5587
      %v6185 = vmax.f32 %v5577, %v5588
      %v6186 = vmax.f32 %v5147, %v5589
      %v6187 = vmax.f32 %v5578, %v5157
      %v6188 = vmax.f32 %v5579, %v5590
      %v6189 = vmax.f32 %v5580, %v5591
      %v6190 = vmax.f32 %v5150, %v5592
      %v6191 = vmax.f32 %v5581, %v5160
      %v6192 = vmax.f32 %v5582, %v5593
      %v6193 = vmax.f32 %v5583, %v5594
      %v6194 = vmax.f32 %v5152, %v5595
      %v6195 = vmax.f32 %v5162, %v5607
      %v6196 = vmax.f32 %v5596, %v5172
      %v6197 = vmax.f32 %v5597, %v5608
      %v6198 = vmax.f32 %v5598, %v5609
      %v6199 = vmax.f32 %v5165, %v5610
      %v6200 = vmax.f32 %v5599, %v5175
      %v6201 = vmax.f32 %v5600, %v5611
      %v6202 = vmax.f32 %v5601, %v5612
      %v6203 = vmax.f32 %v5167, %v5613
      %v6204 = vmax.f32 %v5602, %v5177
      %v6205 = vmax.f32 %v5603, %v5614
      %v6206 = vmax.f32 %v5604, %v5615
      %v6207 = vmax.f32 %v5170, %v5616
      %v6208 = vmax.f32 %v5605, %v5180
      %v6209 = vmax.f32 %v5606, %v5617
      %v6210 = vmax.f32 %v5618, %v5629
      %v6211 = vmax.f32 %v5619, %v5630
      %v6212 = vmax.f32 %v5182, %v5631
      %v6213 = vmax.f32 %v5620, %v5192
      %v6214 = vmax.f32 %v5621, %v5632
      %v6215 = vmax.f32 %v5622, %v5633
      %v6216 = vmax.f32 %v5185, %v5634
      %v6217 = vmax.f32 %v5623, %v5195
      %v6218 = vmax.f32 %v5624, %v5635
      %v6219 = vmax.f32 %v5625, %v5636
      %v6220 = vmax.f32 %v5187, %v5637
      %v6221 = vmax.f32 %v5626, %v5197
      %v6222 = vmax.f32 %v5627, %v5638
      %v6223 = vmax.f32 %v5628, %v5639
      %v6224 = vmax.f32 %v5190, %v5640
      %v6225 = vmax.f32 %v5200, %v5652
      %v6226 = vmax.f32 %v5641, %v5210
      %v6227 = vmax.f32 %v5642, %v5653
      %v6228 = vmax.f32 %v5643, %v5654
      %v6229 = vmax.f32 %v5202, %v5655
      %v6230 = vmax.f32 %v5644, %v5212
      %v6231 = vmax.f32 %v5645, %v5656
      %v6232 = vmax.f32 %v5646, %v5657
      %v6233 = vmax.f32 %v5205, %v5658
      %v6234 = vmax.f32 %v5647, %v5215
      %v6235 = vmax.f32 %v5648, %v5659
      %v6236 = vmax.f32 %v5649, %v5660
      %v6237 = vmax.f32 %v5207, %v5661
      %v6238 = vmax.f32 %v5650, %v5217
      %v6239 = vmax.f32 %v5651, %v5662
      %v6240 = vmax.f32 %v5663, %v5674
      %v6241 = vmax.f32 %v5664, %v5675
      %v6242 = vmax.f32 %v5220, %v5676
      %v6243 = vmax.f32 %v5665, %v5230
      %v6244 = vmax.f32 %v5666, %v5677
      %v6245 = vmax.f32 %v5667, %v5678
      %v6246 = vmax.f32 %v5222, %v5679
      %v6247 = vmax.f32 %v5668, %v5232
      %v6248 = vmax.f32 %v5669, %v5680
      %v6249 = vmax.f32 %v5670, %v5681
      %v6250 = vmax.f32 %v5225, %v5682
      %v6251 = vmax.f32 %v5671, %v5235
      %v6252 = vmax.f32 %v5672, %v5683
      %v6253 = vmax.f32 %v5673, %v5684
      %v6254 = vmax.f32 %v5227, %v5685
      %v6255 = vmax.f32 %v5237, %v5697
      %v6256 = vmax.f32 %v5686, %v5247
      %v6257 = vmax.f32 %v5687, %v5698
      %v6258 = vmax.f32 %v5688, %v5699
      %v6259 = vmax.f32 %v5240, %v5700
      %v6260 = vmax.f32 %v5689, %v5250
      %v6261 = vmax.f32 %v5690, %v5701
      %v6262 = vmax.f32 %v5691, %v5702
      %v6263 = vmax.f32 %v5242, %v5703
      %v6264 = vmax.f32 %v5692, %v5252
      %v6265 = vmax.f32 %v5693, %v5704
      %v6266 = vmax.f32 %v5694, %v5705
      %v6267 = vmax.f32 %v5245, %v5706
      %v6268 = vmax.f32 %v5695, %v5255
      %v6269 = vmax.f32 %v5696, %v5707
      %v6495 = vrot.slane %v6045, 7
      %v6496 = vrot.slane %v6495, 2
      %v6497 = vrot.slane %v6046, 7
      %v6498 = vrot.slane %v6497, 2
      %v6499 = vrot.slane %v6047, 7
      %v6500 = vrot.slane %v6499, 2
      %v6501 = vrot.slane %v6048, 7
      %v6502 = vrot.slane %v6501, 2
      %v6503 = vrot.slane %v6049, 7
      %v6504 = vrot.slane %v6503, 2
      %v6505 = vrot.slane %v6050, 7
      %v6506 = vrot.slane %v6505, 2
      %v6507 = vrot.slane %v6051, 7
      %v6508 = vrot.slane %v6507, 2
      %v6509 = vrot.slane %v6052, 7
      %v6510 = vrot.slane %v6509, 2
      %v6511 = vrot.slane %v6053, 7
      %v6512 = vrot.slane %v6511, 2
      %v6513 = vrot.slane %v6054, 7
      %v6514 = vrot.slane %v6513, 2
      %v6515 = vrot.slane %v6055, 7
      %v6516 = vrot.slane %v6515, 2
      %v6517 = vrot.slane %v6056, 7
      %v6518 = vrot.slane %v6517, 2
      %v6519 = vrot.slane %v6057, 7
      %v6520 = vrot.slane %v6519, 2
      %v6521 = vrot.slane %v6058, 7
      %v6522 = vrot.slane %v6521, 2
      %v6523 = vrot.slane %v6059, 7
      %v6524 = vrot.slane %v6523, 2
      %v6525 = vrot.slane %v6060, 7
      %v6526 = vrot.slane %v6525, 2
      %v6527 = vrot.slane %v6061, 7
      %v6528 = vrot.slane %v6527, 2
      %v6529 = vrot.slane %v6062, 7
      %v6530 = vrot.slane %v6529, 2
      %v6531 = vrot.slane %v6063, 7
      %v6532 = vrot.slane %v6531, 2
      %v6533 = vrot.slane %v6064, 7
      %v6534 = vrot.slane %v6533, 2
      %v6535 = vrot.slane %v6065, 7
      %v6536 = vrot.slane %v6535, 2
      %v6537 = vrot.slane %v6066, 7
      %v6538 = vrot.slane %v6537, 2
      %v6539 = vrot.slane %v6067, 7
      %v6540 = vrot.slane %v6539, 2
      %v6541 = vrot.slane %v6068, 7
      %v6542 = vrot.slane %v6541, 2
      %v6543 = vrot.slane %v6069, 7
      %v6544 = vrot.slane %v6543, 2
      %v6545 = vrot.slane %v6070, 7
      %v6546 = vrot.slane %v6545, 2
      %v6547 = vrot.slane %v6071, 7
      %v6548 = vrot.slane %v6547, 2
      %v6549 = vrot.slane %v6072, 7
      %v6550 = vrot.slane %v6549, 2
      %v6551 = vrot.slane %v6073, 7
      %v6552 = vrot.slane %v6551, 2
      %v6553 = vrot.slane %v6074, 7
      %v6554 = vrot.slane %v6553, 2
      %v6555 = vrot.slane %v6075, 7
      %v6556 = vrot.slane %v6555, 2
      %v6557 = vrot.slane %v6076, 7
      %v6558 = vrot.slane %v6557, 2
      %v6559 = vrot.slane %v6077, 7
      %v6560 = vrot.slane %v6559, 2
      %v6561 = vrot.slane %v6078, 7
      %v6562 = vrot.slane %v6561, 2
      %v6563 = vrot.slane %v6079, 7
      %v6564 = vrot.slane %v6563, 2
      %v6565 = vrot.slane %v6080, 7
      %v6566 = vrot.slane %v6565, 2
      %v6567 = vrot.slane %v6081, 7
      %v6568 = vrot.slane %v6567, 2
      %v6569 = vrot.slane %v6082, 7
      %v6570 = vrot.slane %v6569, 2
      %v6571 = vrot.slane %v6083, 7
      %v6572 = vrot.slane %v6571, 2
      %v6573 = vrot.slane %v6084, 7
      %v6574 = vrot.slane %v6573, 2
      %v6575 = vrot.slane %v6085, 7
      %v6576 = vrot.slane %v6575, 2
      %v6577 = vrot.slane %v6086, 7
      %v6578 = vrot.slane %v6577, 2
      %v6579 = vrot.slane %v6087, 7
      %v6580 = vrot.slane %v6579, 2
      %v6581 = vrot.slane %v6088, 7
      %v6582 = vrot.slane %v6581, 2
      %v6583 = vrot.slane %v6089, 7
      %v6584 = vrot.slane %v6583, 2
      %v6585 = vrot.slane %v6090, 7
      %v6586 = vrot.slane %v6585, 2
      %v6587 = vrot.slane %v6091, 7
      %v6588 = vrot.slane %v6587, 2
      %v6589 = vrot.slane %v6092, 7
      %v6590 = vrot.slane %v6589, 2
      %v6591 = vrot.slane %v6093, 7
      %v6592 = vrot.slane %v6591, 2
      %v6593 = vrot.slane %v6094, 7
      %v6594 = vrot.slane %v6593, 2
      %v6595 = vrot.slane %v6095, 7
      %v6596 = vrot.slane %v6595, 2
      %v6597 = vrot.slane %v6096, 7
      %v6598 = vrot.slane %v6597, 2
      %v6599 = vrot.slane %v6097, 7
      %v6600 = vrot.slane %v6599, 2
      %v6601 = vrot.slane %v6098, 7
      %v6602 = vrot.slane %v6601, 2
      %v6603 = vrot.slane %v6099, 7
      %v6604 = vrot.slane %v6603, 2
      %v6605 = vrot.slane %v6100, 7
      %v6606 = vrot.slane %v6605, 2
      %v6607 = vrot.slane %v6101, 7
      %v6608 = vrot.slane %v6607, 2
      %v6609 = vrot.slane %v6102, 7
      %v6610 = vrot.slane %v6609, 2
      %v6611 = vrot.slane %v6103, 7
      %v6612 = vrot.slane %v6611, 2
      %v6613 = vrot.slane %v6104, 7
      %v6614 = vrot.slane %v6613, 2
      %v6615 = vrot.slane %v6105, 7
      %v6616 = vrot.slane %v6615, 2
      %v6617 = vrot.slane %v6106, 7
      %v6618 = vrot.slane %v6617, 2
      %v6619 = vrot.slane %v6107, 7
      %v6620 = vrot.slane %v6619, 2
      %v6621 = vrot.slane %v6108, 7
      %v6622 = vrot.slane %v6621, 2
      %v6623 = vrot.slane %v6109, 7
      %v6624 = vrot.slane %v6623, 2
      %v6625 = vrot.slane %v6110, 7
      %v6626 = vrot.slane %v6625, 2
      %v6627 = vrot.slane %v6111, 7
      %v6628 = vrot.slane %v6627, 2
      %v6629 = vrot.slane %v6112, 7
      %v6630 = vrot.slane %v6629, 2
      %v6631 = vrot.slane %v6113, 7
      %v6632 = vrot.slane %v6631, 2
      %v6633 = vrot.slane %v6114, 7
      %v6634 = vrot.slane %v6633, 2
      %v6635 = vrot.slane %v6115, 7
      %v6636 = vrot.slane %v6635, 2
      %v6637 = vrot.slane %v6116, 7
      %v6638 = vrot.slane %v6637, 2
      %v6639 = vrot.slane %v6117, 7
      %v6640 = vrot.slane %v6639, 2
      %v6641 = vrot.slane %v6118, 7
      %v6642 = vrot.slane %v6641, 2
      %v6643 = vrot.slane %v6119, 7
      %v6644 = vrot.slane %v6643, 2
      %v6645 = vrot.slane %v6120, 7
      %v6646 = vrot.slane %v6645, 2
      %v6647 = vrot.slane %v6121, 7
      %v6648 = vrot.slane %v6647, 2
      %v6649 = vrot.slane %v6122, 7
      %v6650 = vrot.slane %v6649, 2
      %v6651 = vrot.slane %v6123, 7
      %v6652 = vrot.slane %v6651, 2
      %v6653 = vrot.slane %v6124, 7
      %v6654 = vrot.slane %v6653, 2
      %v6655 = vrot.slane %v6125, 7
      %v6656 = vrot.slane %v6655, 2
      %v6657 = vrot.slane %v6126, 7
      %v6658 = vrot.slane %v6657, 2
      %v6659 = vrot.slane %v6127, 7
      %v6660 = vrot.slane %v6659, 2
      %v6661 = vrot.slane %v6128, 7
      %v6662 = vrot.slane %v6661, 2
      %v6663 = vrot.slane %v6129, 7
      %v6664 = vrot.slane %v6663, 2
      %v6665 = vrot.slane %v6130, 7
      %v6666 = vrot.slane %v6665, 2
      %v6667 = vrot.slane %v6131, 7
      %v6668 = vrot.slane %v6667, 2
      %v6669 = vrot.slane %v6132, 7
      %v6670 = vrot.slane %v6669, 2
      %v6671 = vrot.slane %v6133, 7
      %v6672 = vrot.slane %v6671, 2
      %v6673 = vrot.slane %v6134, 7
      %v6674 = vrot.slane %v6673, 2
      %v6675 = vrot.slane %v6135, 7
      %v6676 = vrot.slane %v6675, 2
      %v6677 = vrot.slane %v6136, 7
      %v6678 = vrot.slane %v6677, 2
      %v6679 = vrot.slane %v6137, 7
      %v6680 = vrot.slane %v6679, 2
      %v6681 = vrot.slane %v6138, 7
      %v6682 = vrot.slane %v6681, 2
      %v6683 = vrot.slane %v6139, 7
      %v6684 = vrot.slane %v6683, 2
      %v6685 = vrot.slane %v6140, 7
      %v6686 = vrot.slane %v6685, 2
      %v6687 = vrot.slane %v6141, 7
      %v6688 = vrot.slane %v6687, 2
      %v6689 = vrot.slane %v6142, 7
      %v6690 = vrot.slane %v6689, 2
      %v6691 = vrot.slane %v6143, 7
      %v6692 = vrot.slane %v6691, 2
      %v6693 = vrot.slane %v6144, 7
      %v6694 = vrot.slane %v6693, 2
      %v6695 = vrot.slane %v6145, 7
      %v6696 = vrot.slane %v6695, 2
      %v6697 = vrot.slane %v6146, 7
      %v6698 = vrot.slane %v6697, 2
      %v6699 = vrot.slane %v6147, 7
      %v6700 = vrot.slane %v6699, 2
      %v6701 = vrot.slane %v6148, 7
      %v6702 = vrot.slane %v6701, 2
      %v6703 = vrot.slane %v6149, 7
      %v6704 = vrot.slane %v6703, 2
      %v6705 = vrot.slane %v6150, 7
      %v6706 = vrot.slane %v6705, 2
      %v6707 = vrot.slane %v6151, 7
      %v6708 = vrot.slane %v6707, 2
      %v6709 = vrot.slane %v6152, 7
      %v6710 = vrot.slane %v6709, 2
      %v6711 = vrot.slane %v6153, 7
      %v6712 = vrot.slane %v6711, 2
      %v6713 = vrot.slane %v6154, 7
      %v6714 = vrot.slane %v6713, 2
      %v6715 = vrot.slane %v6155, 7
      %v6716 = vrot.slane %v6715, 2
      %v6717 = vrot.slane %v6156, 7
      %v6718 = vrot.slane %v6717, 2
      %v6719 = vrot.slane %v6157, 7
      %v6720 = vrot.slane %v6719, 2
      %v6721 = vrot.slane %v6158, 7
      %v6722 = vrot.slane %v6721, 2
      %v6723 = vrot.slane %v6159, 7
      %v6724 = vrot.slane %v6723, 2
      %v6725 = vrot.slane %v6160, 7
      %v6726 = vrot.slane %v6725, 2
      %v6727 = vrot.slane %v6161, 7
      %v6728 = vrot.slane %v6727, 2
      %v6729 = vrot.slane %v6162, 7
      %v6730 = vrot.slane %v6729, 2
      %v6731 = vrot.slane %v6163, 7
      %v6732 = vrot.slane %v6731, 2
      %v6733 = vrot.slane %v6164, 7
      %v6734 = vrot.slane %v6733, 2
      %v6735 = vrot.slane %v6165, 7
      %v6736 = vrot.slane %v6735, 2
      %v6737 = vrot.slane %v6166, 7
      %v6738 = vrot.slane %v6737, 2
      %v6739 = vrot.slane %v6167, 7
      %v6740 = vrot.slane %v6739, 2
      %v6741 = vrot.slane %v6168, 7
      %v6742 = vrot.slane %v6741, 2
      %v6743 = vrot.slane %v6169, 7
      %v6744 = vrot.slane %v6743, 2
      %v6745 = vrot.slane %v6170, 7
      %v6746 = vrot.slane %v6745, 2
      %v6747 = vrot.slane %v6171, 7
      %v6748 = vrot.slane %v6747, 2
      %v6749 = vrot.slane %v6172, 7
      %v6750 = vrot.slane %v6749, 2
      %v6751 = vrot.slane %v6173, 7
      %v6752 = vrot.slane %v6751, 2
      %v6753 = vrot.slane %v6174, 7
      %v6754 = vrot.slane %v6753, 2
      %v6755 = vrot.slane %v6175, 7
      %v6756 = vrot.slane %v6755, 2
      %v6757 = vrot.slane %v6176, 7
      %v6758 = vrot.slane %v6757, 2
      %v6759 = vrot.slane %v6177, 7
      %v6760 = vrot.slane %v6759, 2
      %v6761 = vrot.slane %v6178, 7
      %v6762 = vrot.slane %v6761, 2
      %v6763 = vrot.slane %v6179, 7
      %v6764 = vrot.slane %v6763, 2
      %v6765 = vrot.slane %v6180, 7
      %v6766 = vrot.slane %v6765, 2
      %v6767 = vrot.slane %v6181, 7
      %v6768 = vrot.slane %v6767, 2
      %v6769 = vrot.slane %v6182, 7
      %v6770 = vrot.slane %v6769, 2
      %v6771 = vrot.slane %v6183, 7
      %v6772 = vrot.slane %v6771, 2
      %v6773 = vrot.slane %v6184, 7
      %v6774 = vrot.slane %v6773, 2
      %v6775 = vrot.slane %v6185, 7
      %v6776 = vrot.slane %v6775, 2
      %v6777 = vrot.slane %v6186, 7
      %v6778 = vrot.slane %v6777, 2
      %v6779 = vrot.slane %v6187, 7
      %v6780 = vrot.slane %v6779, 2
      %v6781 = vrot.slane %v6188, 7
      %v6782 = vrot.slane %v6781, 2
      %v6783 = vrot.slane %v6189, 7
      %v6784 = vrot.slane %v6783, 2
      %v6785 = vrot.slane %v6190, 7
      %v6786 = vrot.slane %v6785, 2
      %v6787 = vrot.slane %v6191, 7
      %v6788 = vrot.slane %v6787, 2
      %v6789 = vrot.slane %v6192, 7
      %v6790 = vrot.slane %v6789, 2
      %v6791 = vrot.slane %v6193, 7
      %v6792 = vrot.slane %v6791, 2
      %v6793 = vrot.slane %v6194, 7
      %v6794 = vrot.slane %v6793, 2
      %v6795 = vrot.slane %v6195, 7
      %v6796 = vrot.slane %v6795, 2
      %v6797 = vrot.slane %v6196, 7
      %v6798 = vrot.slane %v6797, 2
      %v6799 = vrot.slane %v6197, 7
      %v6800 = vrot.slane %v6799, 2
      %v6801 = vrot.slane %v6198, 7
      %v6802 = vrot.slane %v6801, 2
      %v6803 = vrot.slane %v6199, 7
      %v6804 = vrot.slane %v6803, 2
      %v6805 = vrot.slane %v6200, 7
      %v6806 = vrot.slane %v6805, 2
      %v6807 = vrot.slane %v6201, 7
      %v6808 = vrot.slane %v6807, 2
      %v6809 = vrot.slane %v6202, 7
      %v6810 = vrot.slane %v6809, 2
      %v6811 = vrot.slane %v6203, 7
      %v6812 = vrot.slane %v6811, 2
      %v6813 = vrot.slane %v6204, 7
      %v6814 = vrot.slane %v6813, 2
      %v6815 = vrot.slane %v6205, 7
      %v6816 = vrot.slane %v6815, 2
      %v6817 = vrot.slane %v6206, 7
      %v6818 = vrot.slane %v6817, 2
      %v6819 = vrot.slane %v6207, 7
      %v6820 = vrot.slane %v6819, 2
      %v6821 = vrot.slane %v6208, 7
      %v6822 = vrot.slane %v6821, 2
      %v6823 = vrot.slane %v6209, 7
      %v6824 = vrot.slane %v6823, 2
      %v6825 = vrot.slane %v6210, 7
      %v6826 = vrot.slane %v6825, 2
      %v6827 = vrot.slane %v6211, 7
      %v6828 = vrot.slane %v6827, 2
      %v6829 = vrot.slane %v6212, 7
      %v6830 = vrot.slane %v6829, 2
      %v6831 = vrot.slane %v6213, 7
      %v6832 = vrot.slane %v6831, 2
      %v6833 = vrot.slane %v6214, 7
      %v6834 = vrot.slane %v6833, 2
      %v6835 = vrot.slane %v6215, 7
      %v6836 = vrot.slane %v6835, 2
      %v6837 = vrot.slane %v6216, 7
      %v6838 = vrot.slane %v6837, 2
      %v6839 = vrot.slane %v6217, 7
      %v6840 = vrot.slane %v6839, 2
      %v6841 = vrot.slane %v6218, 7
      %v6842 = vrot.slane %v6841, 2
      %v6843 = vrot.slane %v6219, 7
      %v6844 = vrot.slane %v6843, 2
      %v6845 = vrot.slane %v6220, 7
      %v6846 = vrot.slane %v6845, 2
      %v6847 = vrot.slane %v6221, 7
      %v6848 = vrot.slane %v6847, 2
      %v6849 = vrot.slane %v6222, 7
      %v6850 = vrot.slane %v6849, 2
      %v6851 = vrot.slane %v6223, 7
      %v6852 = vrot.slane %v6851, 2
      %v6853 = vrot.slane %v6224, 7
      %v6854 = vrot.slane %v6853, 2
      %v6855 = vrot.slane %v6225, 7
      %v6856 = vrot.slane %v6855, 2
      %v6857 = vrot.slane %v6226, 7
      %v6858 = vrot.slane %v6857, 2
      %v6859 = vrot.slane %v6227, 7
      %v6860 = vrot.slane %v6859, 2
      %v6861 = vrot.slane %v6228, 7
      %v6862 = vrot.slane %v6861, 2
      %v6863 = vrot.slane %v6229, 7
      %v6864 = vrot.slane %v6863, 2
      %v6865 = vrot.slane %v6230, 7
      %v6866 = vrot.slane %v6865, 2
      %v6867 = vrot.slane %v6231, 7
      %v6868 = vrot.slane %v6867, 2
      %v6869 = vrot.slane %v6232, 7
      %v6870 = vrot.slane %v6869, 2
      %v6871 = vrot.slane %v6233, 7
      %v6872 = vrot.slane %v6871, 2
      %v6873 = vrot.slane %v6234, 7
      %v6874 = vrot.slane %v6873, 2
      %v6875 = vrot.slane %v6235, 7
      %v6876 = vrot.slane %v6875, 2
      %v6877 = vrot.slane %v6236, 7
      %v6878 = vrot.slane %v6877, 2
      %v6879 = vrot.slane %v6237, 7
      %v6880 = vrot.slane %v6879, 2
      %v6881 = vrot.slane %v6238, 7
      %v6882 = vrot.slane %v6881, 2
      %v6883 = vrot.slane %v6239, 7
      %v6884 = vrot.slane %v6883, 2
      %v6885 = vrot.slane %v6240, 7
      %v6886 = vrot.slane %v6885, 2
      %v6887 = vrot.slane %v6241, 7
      %v6888 = vrot.slane %v6887, 2
      %v6889 = vrot.slane %v6242, 7
      %v6890 = vrot.slane %v6889, 2
      %v6891 = vrot.slane %v6243, 7
      %v6892 = vrot.slane %v6891, 2
      %v6893 = vrot.slane %v6244, 7
      %v6894 = vrot.slane %v6893, 2
      %v6895 = vrot.slane %v6245, 7
      %v6896 = vrot.slane %v6895, 2
      %v6897 = vrot.slane %v6246, 7
      %v6898 = vrot.slane %v6897, 2
      %v6899 = vrot.slane %v6247, 7
      %v6900 = vrot.slane %v6899, 2
      %v6901 = vrot.slane %v6248, 7
      %v6902 = vrot.slane %v6901, 2
      %v6903 = vrot.slane %v6249, 7
      %v6904 = vrot.slane %v6903, 2
      %v6905 = vrot.slane %v6250, 7
      %v6906 = vrot.slane %v6905, 2
      %v6907 = vrot.slane %v6251, 7
      %v6908 = vrot.slane %v6907, 2
      %v6909 = vrot.slane %v6252, 7
      %v6910 = vrot.slane %v6909, 2
      %v6911 = vrot.slane %v6253, 7
      %v6912 = vrot.slane %v6911, 2
      %v6913 = vrot.slane %v6254, 7
      %v6914 = vrot.slane %v6913, 2
      %v6915 = vrot.slane %v6255, 7
      %v6916 = vrot.slane %v6915, 2
      %v6917 = vrot.slane %v6256, 7
      %v6918 = vrot.slane %v6917, 2
      %v6919 = vrot.slane %v6257, 7
      %v6920 = vrot.slane %v6919, 2
      %v6921 = vrot.slane %v6258, 7
      %v6922 = vrot.slane %v6921, 2
      %v6923 = vrot.slane %v6259, 7
      %v6924 = vrot.slane %v6923, 2
      %v6925 = vrot.slane %v6260, 7
      %v6926 = vrot.slane %v6925, 2
      %v6927 = vrot.slane %v6261, 7
      %v6928 = vrot.slane %v6927, 2
      %v6929 = vrot.slane %v6262, 7
      %v6930 = vrot.slane %v6929, 2
      %v6931 = vrot.slane %v6263, 7
      %v6932 = vrot.slane %v6931, 2
      %v6933 = vrot.slane %v6264, 7
      %v6934 = vrot.slane %v6933, 2
      %v6935 = vrot.slane %v6265, 7
      %v6936 = vrot.slane %v6935, 2
      %v6937 = vrot.slane %v6266, 7
      %v6938 = vrot.slane %v6937, 2
      %v6939 = vrot.slane %v6267, 7
      %v6940 = vrot.slane %v6939, 2
      %v6941 = vrot.slane %v6268, 7
      %v6942 = vrot.slane %v6941, 2
      %v6943 = vrot.slane %v6269, 7
      %v6944 = vrot.slane %v6943, 2
      %v7170 = vmax.f32 %v6045, %v6496
      %v7171 = vmax.f32 %v6046, %v6498
      %v7172 = vmax.f32 %v6047, %v6500
      %v7173 = vmax.f32 %v6048, %v6502
      %v7174 = vmax.f32 %v6049, %v6504
      %v7175 = vmax.f32 %v6050, %v6506
      %v7176 = vmax.f32 %v6051, %v6508
      %v7177 = vmax.f32 %v6052, %v6510
      %v7178 = vmax.f32 %v6053, %v6512
      %v7179 = vmax.f32 %v6054, %v6514
      %v7180 = vmax.f32 %v6055, %v6516
      %v7181 = vmax.f32 %v6056, %v6518
      %v7182 = vmax.f32 %v6057, %v6520
      %v7183 = vmax.f32 %v6058, %v6522
      %v7184 = vmax.f32 %v6059, %v6524
      %v7185 = vmax.f32 %v6060, %v6526
      %v7186 = vmax.f32 %v6061, %v6528
      %v7187 = vmax.f32 %v6062, %v6530
      %v7188 = vmax.f32 %v6063, %v6532
      %v7189 = vmax.f32 %v6064, %v6534
      %v7190 = vmax.f32 %v6065, %v6536
      %v7191 = vmax.f32 %v6066, %v6538
      %v7192 = vmax.f32 %v6067, %v6540
      %v7193 = vmax.f32 %v6068, %v6542
      %v7194 = vmax.f32 %v6069, %v6544
      %v7195 = vmax.f32 %v6070, %v6546
      %v7196 = vmax.f32 %v6071, %v6548
      %v7197 = vmax.f32 %v6072, %v6550
      %v7198 = vmax.f32 %v6073, %v6552
      %v7199 = vmax.f32 %v6074, %v6554
      %v7200 = vmax.f32 %v6075, %v6556
      %v7201 = vmax.f32 %v6076, %v6558
      %v7202 = vmax.f32 %v6077, %v6560
      %v7203 = vmax.f32 %v6078, %v6562
      %v7204 = vmax.f32 %v6079, %v6564
      %v7205 = vmax.f32 %v6080, %v6566
      %v7206 = vmax.f32 %v6081, %v6568
      %v7207 = vmax.f32 %v6082, %v6570
      %v7208 = vmax.f32 %v6083, %v6572
      %v7209 = vmax.f32 %v6084, %v6574
      %v7210 = vmax.f32 %v6085, %v6576
      %v7211 = vmax.f32 %v6086, %v6578
      %v7212 = vmax.f32 %v6087, %v6580
      %v7213 = vmax.f32 %v6088, %v6582
      %v7214 = vmax.f32 %v6089, %v6584
      %v7215 = vmax.f32 %v6090, %v6586
      %v7216 = vmax.f32 %v6091, %v6588
      %v7217 = vmax.f32 %v6092, %v6590
      %v7218 = vmax.f32 %v6093, %v6592
      %v7219 = vmax.f32 %v6094, %v6594
      %v7220 = vmax.f32 %v6095, %v6596
      %v7221 = vmax.f32 %v6096, %v6598
      %v7222 = vmax.f32 %v6097, %v6600
      %v7223 = vmax.f32 %v6098, %v6602
      %v7224 = vmax.f32 %v6099, %v6604
      %v7225 = vmax.f32 %v6100, %v6606
      %v7226 = vmax.f32 %v6101, %v6608
      %v7227 = vmax.f32 %v6102, %v6610
      %v7228 = vmax.f32 %v6103, %v6612
      %v7229 = vmax.f32 %v6104, %v6614
      %v7230 = vmax.f32 %v6105, %v6616
      %v7231 = vmax.f32 %v6106, %v6618
      %v7232 = vmax.f32 %v6107, %v6620
      %v7233 = vmax.f32 %v6108, %v6622
      %v7234 = vmax.f32 %v6109, %v6624
      %v7235 = vmax.f32 %v6110, %v6626
      %v7236 = vmax.f32 %v6111, %v6628
      %v7237 = vmax.f32 %v6112, %v6630
      %v7238 = vmax.f32 %v6113, %v6632
      %v7239 = vmax.f32 %v6114, %v6634
      %v7240 = vmax.f32 %v6115, %v6636
      %v7241 = vmax.f32 %v6116, %v6638
      %v7242 = vmax.f32 %v6117, %v6640
      %v7243 = vmax.f32 %v6118, %v6642
      %v7244 = vmax.f32 %v6119, %v6644
      %v7245 = vmax.f32 %v6120, %v6646
      %v7246 = vmax.f32 %v6121, %v6648
      %v7247 = vmax.f32 %v6122, %v6650
      %v7248 = vmax.f32 %v6123, %v6652
      %v7249 = vmax.f32 %v6124, %v6654
      %v7250 = vmax.f32 %v6125, %v6656
      %v7251 = vmax.f32 %v6126, %v6658
      %v7252 = vmax.f32 %v6127, %v6660
      %v7253 = vmax.f32 %v6128, %v6662
      %v7254 = vmax.f32 %v6129, %v6664
      %v7255 = vmax.f32 %v6130, %v6666
      %v7256 = vmax.f32 %v6131, %v6668
      %v7257 = vmax.f32 %v6132, %v6670
      %v7258 = vmax.f32 %v6133, %v6672
      %v7259 = vmax.f32 %v6134, %v6674
      %v7260 = vmax.f32 %v6135, %v6676
      %v7261 = vmax.f32 %v6136, %v6678
      %v7262 = vmax.f32 %v6137, %v6680
      %v7263 = vmax.f32 %v6138, %v6682
      %v7264 = vmax.f32 %v6139, %v6684
      %v7265 = vmax.f32 %v6140, %v6686
      %v7266 = vmax.f32 %v6141, %v6688
      %v7267 = vmax.f32 %v6142, %v6690
      %v7268 = vmax.f32 %v6143, %v6692
      %v7269 = vmax.f32 %v6144, %v6694
      %v7270 = vmax.f32 %v6145, %v6696
      %v7271 = vmax.f32 %v6146, %v6698
      %v7272 = vmax.f32 %v6147, %v6700
      %v7273 = vmax.f32 %v6148, %v6702
      %v7274 = vmax.f32 %v6149, %v6704
      %v7275 = vmax.f32 %v6150, %v6706
      %v7276 = vmax.f32 %v6151, %v6708
      %v7277 = vmax.f32 %v6152, %v6710
      %v7278 = vmax.f32 %v6153, %v6712
      %v7279 = vmax.f32 %v6154, %v6714
      %v7280 = vmax.f32 %v6155, %v6716
      %v7281 = vmax.f32 %v6156, %v6718
      %v7282 = vmax.f32 %v6157, %v6720
      %v7283 = vmax.f32 %v6158, %v6722
      %v7284 = vmax.f32 %v6159, %v6724
      %v7285 = vmax.f32 %v6160, %v6726
      %v7286 = vmax.f32 %v6161, %v6728
      %v7287 = vmax.f32 %v6162, %v6730
      %v7288 = vmax.f32 %v6163, %v6732
      %v7289 = vmax.f32 %v6164, %v6734
      %v7290 = vmax.f32 %v6165, %v6736
      %v7291 = vmax.f32 %v6166, %v6738
      %v7292 = vmax.f32 %v6167, %v6740
      %v7293 = vmax.f32 %v6168, %v6742
      %v7294 = vmax.f32 %v6169, %v6744
      %v7295 = vmax.f32 %v6170, %v6746
      %v7296 = vmax.f32 %v6171, %v6748
      %v7297 = vmax.f32 %v6172, %v6750
      %v7298 = vmax.f32 %v6173, %v6752
      %v7299 = vmax.f32 %v6174, %v6754
      %v7300 = vmax.f32 %v6175, %v6756
      %v7301 = vmax.f32 %v6176, %v6758
      %v7302 = vmax.f32 %v6177, %v6760
      %v7303 = vmax.f32 %v6178, %v6762
      %v7304 = vmax.f32 %v6179, %v6764
      %v7305 = vmax.f32 %v6180, %v6766
      %v7306 = vmax.f32 %v6181, %v6768
      %v7307 = vmax.f32 %v6182, %v6770
      %v7308 = vmax.f32 %v6183, %v6772
      %v7309 = vmax.f32 %v6184, %v6774
      %v7310 = vmax.f32 %v6185, %v6776
      %v7311 = vmax.f32 %v6186, %v6778
      %v7312 = vmax.f32 %v6187, %v6780
      %v7313 = vmax.f32 %v6188, %v6782
      %v7314 = vmax.f32 %v6189, %v6784
      %v7315 = vmax.f32 %v6190, %v6786
      %v7316 = vmax.f32 %v6191, %v6788
      %v7317 = vmax.f32 %v6192, %v6790
      %v7318 = vmax.f32 %v6193, %v6792
      %v7319 = vmax.f32 %v6194, %v6794
      %v7320 = vmax.f32 %v6195, %v6796
      %v7321 = vmax.f32 %v6196, %v6798
      %v7322 = vmax.f32 %v6197, %v6800
      %v7323 = vmax.f32 %v6198, %v6802
      %v7324 = vmax.f32 %v6199, %v6804
      %v7325 = vmax.f32 %v6200, %v6806
      %v7326 = vmax.f32 %v6201, %v6808
      %v7327 = vmax.f32 %v6202, %v6810
      %v7328 = vmax.f32 %v6203, %v6812
      %v7329 = vmax.f32 %v6204, %v6814
      %v7330 = vmax.f32 %v6205, %v6816
      %v7331 = vmax.f32 %v6206, %v6818
      %v7332 = vmax.f32 %v6207, %v6820
      %v7333 = vmax.f32 %v6208, %v6822
      %v7334 = vmax.f32 %v6209, %v6824
      %v7335 = vmax.f32 %v6210, %v6826
      %v7336 = vmax.f32 %v6211, %v6828
      %v7337 = vmax.f32 %v6212, %v6830
      %v7338 = vmax.f32 %v6213, %v6832
      %v7339 = vmax.f32 %v6214, %v6834
      %v7340 = vmax.f32 %v6215, %v6836
      %v7341 = vmax.f32 %v6216, %v6838
      %v7342 = vmax.f32 %v6217, %v6840
      %v7343 = vmax.f32 %v6218, %v6842
      %v7344 = vmax.f32 %v6219, %v6844
      %v7345 = vmax.f32 %v6220, %v6846
      %v7346 = vmax.f32 %v6221, %v6848
      %v7347 = vmax.f32 %v6222, %v6850
      %v7348 = vmax.f32 %v6223, %v6852
      %v7349 = vmax.f32 %v6224, %v6854
      %v7350 = vmax.f32 %v6225, %v6856
      %v7351 = vmax.f32 %v6226, %v6858
      %v7352 = vmax.f32 %v6227, %v6860
      %v7353 = vmax.f32 %v6228, %v6862
      %v7354 = vmax.f32 %v6229, %v6864
      %v7355 = vmax.f32 %v6230, %v6866
      %v7356 = vmax.f32 %v6231, %v6868
      %v7357 = vmax.f32 %v6232, %v6870
      %v7358 = vmax.f32 %v6233, %v6872
      %v7359 = vmax.f32 %v6234, %v6874
      %v7360 = vmax.f32 %v6235, %v6876
      %v7361 = vmax.f32 %v6236, %v6878
      %v7362 = vmax.f32 %v6237, %v6880
      %v7363 = vmax.f32 %v6238, %v6882
      %v7364 = vmax.f32 %v6239, %v6884
      %v7365 = vmax.f32 %v6240, %v6886
      %v7366 = vmax.f32 %v6241, %v6888
      %v7367 = vmax.f32 %v6242, %v6890
      %v7368 = vmax.f32 %v6243, %v6892
      %v7369 = vmax.f32 %v6244, %v6894
      %v7370 = vmax.f32 %v6245, %v6896
      %v7371 = vmax.f32 %v6246, %v6898
      %v7372 = vmax.f32 %v6247, %v6900
      %v7373 = vmax.f32 %v6248, %v6902
      %v7374 = vmax.f32 %v6249, %v6904
      %v7375 = vmax.f32 %v6250, %v6906
      %v7376 = vmax.f32 %v6251, %v6908
      %v7377 = vmax.f32 %v6252, %v6910
      %v7378 = vmax.f32 %v6253, %v6912
      %v7379 = vmax.f32 %v6254, %v6914
      %v7380 = vmax.f32 %v6255, %v6916
      %v7381 = vmax.f32 %v6256, %v6918
      %v7382 = vmax.f32 %v6257, %v6920
      %v7383 = vmax.f32 %v6258, %v6922
      %v7384 = vmax.f32 %v6259, %v6924
      %v7385 = vmax.f32 %v6260, %v6926
      %v7386 = vmax.f32 %v6261, %v6928
      %v7387 = vmax.f32 %v6262, %v6930
      %v7388 = vmax.f32 %v6263, %v6932
      %v7389 = vmax.f32 %v6264, %v6934
      %v7390 = vmax.f32 %v6265, %v6936
      %v7391 = vmax.f32 %v6266, %v6938
      %v7392 = vmax.f32 %v6267, %v6940
      %v7393 = vmax.f32 %v6268, %v6942
      %v7394 = vmax.f32 %v6269, %v6944
      %v7395 = vpack.c.bf16 %v7170, %v7170
      %v7396 = vpack.c.bf16 %v7171, %v7171
      %v7397 = vpack.c.bf16 %v7172, %v7172
      %v7398 = vpack.c.bf16 %v7173, %v7173
      %v7399 = vpack.c.bf16 %v7174, %v7174
      %v7400 = vpack.c.bf16 %v7175, %v7175
      %v7401 = vpack.c.bf16 %v7176, %v7176
      %v7402 = vpack.c.bf16 %v7177, %v7177
      %v7403 = vpack.c.bf16 %v7178, %v7178
      %v7404 = vpack.c.bf16 %v7179, %v7179
      %v7405 = vpack.c.bf16 %v7180, %v7180
      %v7406 = vpack.c.bf16 %v7181, %v7181
      %v7407 = vpack.c.bf16 %v7182, %v7182
      %v7408 = vpack.c.bf16 %v7183, %v7183
      %v7409 = vpack.c.bf16 %v7184, %v7184
      %v7410 = vpack.c.bf16 %v7185, %v7185
      %v7411 = vpack.c.bf16 %v7186, %v7186
      %v7412 = vpack.c.bf16 %v7187, %v7187
      %v7413 = vpack.c.bf16 %v7188, %v7188
      %v7414 = vpack.c.bf16 %v7189, %v7189
      %v7415 = vpack.c.bf16 %v7190, %v7190
      %v7416 = vpack.c.bf16 %v7191, %v7191
      %v7417 = vpack.c.bf16 %v7192, %v7192
      %v7418 = vpack.c.bf16 %v7193, %v7193
      %v7419 = vpack.c.bf16 %v7194, %v7194
      %v7420 = vpack.c.bf16 %v7195, %v7195
      %v7421 = vpack.c.bf16 %v7196, %v7196
      %v7422 = vpack.c.bf16 %v7197, %v7197
      %v7423 = vpack.c.bf16 %v7198, %v7198
      %v7424 = vpack.c.bf16 %v7199, %v7199
      %v7425 = vpack.c.bf16 %v7200, %v7200
      %v7426 = vpack.c.bf16 %v7201, %v7201
      %v7427 = vpack.c.bf16 %v7202, %v7202
      %v7428 = vpack.c.bf16 %v7203, %v7203
      %v7429 = vpack.c.bf16 %v7204, %v7204
      %v7430 = vpack.c.bf16 %v7205, %v7205
      %v7431 = vpack.c.bf16 %v7206, %v7206
      %v7432 = vpack.c.bf16 %v7207, %v7207
      %v7433 = vpack.c.bf16 %v7208, %v7208
      %v7434 = vpack.c.bf16 %v7209, %v7209
      %v7435 = vpack.c.bf16 %v7210, %v7210
      %v7436 = vpack.c.bf16 %v7211, %v7211
      %v7437 = vpack.c.bf16 %v7212, %v7212
      %v7438 = vpack.c.bf16 %v7213, %v7213
      %v7439 = vpack.c.bf16 %v7214, %v7214
      %v7440 = vpack.c.bf16 %v7215, %v7215
      %v7441 = vpack.c.bf16 %v7216, %v7216
      %v7442 = vpack.c.bf16 %v7217, %v7217
      %v7443 = vpack.c.bf16 %v7218, %v7218
      %v7444 = vpack.c.bf16 %v7219, %v7219
      %v7445 = vpack.c.bf16 %v7220, %v7220
      %v7446 = vpack.c.bf16 %v7221, %v7221
      %v7447 = vpack.c.bf16 %v7222, %v7222
      %v7448 = vpack.c.bf16 %v7223, %v7223
      %v7449 = vpack.c.bf16 %v7224, %v7224
      %v7450 = vpack.c.bf16 %v7225, %v7225
      %v7451 = vpack.c.bf16 %v7226, %v7226
      %v7452 = vpack.c.bf16 %v7227, %v7227
      %v7453 = vpack.c.bf16 %v7228, %v7228
      %v7454 = vpack.c.bf16 %v7229, %v7229
      %v7455 = vpack.c.bf16 %v7230, %v7230
      %v7456 = vpack.c.bf16 %v7231, %v7231
      %v7457 = vpack.c.bf16 %v7232, %v7232
      %v7458 = vpack.c.bf16 %v7233, %v7233
      %v7459 = vpack.c.bf16 %v7234, %v7234
      %v7460 = vpack.c.bf16 %v7235, %v7235
      %v7461 = vpack.c.bf16 %v7236, %v7236
      %v7462 = vpack.c.bf16 %v7237, %v7237
      %v7463 = vpack.c.bf16 %v7238, %v7238
      %v7464 = vpack.c.bf16 %v7239, %v7239
      %v7465 = vpack.c.bf16 %v7240, %v7240
      %v7466 = vpack.c.bf16 %v7241, %v7241
      %v7467 = vpack.c.bf16 %v7242, %v7242
      %v7468 = vpack.c.bf16 %v7243, %v7243
      %v7469 = vpack.c.bf16 %v7244, %v7244
      %v7470 = vpack.c.bf16 %v7245, %v7245
      %v7471 = vpack.c.bf16 %v7246, %v7246
      %v7472 = vpack.c.bf16 %v7247, %v7247
      %v7473 = vpack.c.bf16 %v7248, %v7248
      %v7474 = vpack.c.bf16 %v7249, %v7249
      %v7475 = vpack.c.bf16 %v7250, %v7250
      %v7476 = vpack.c.bf16 %v7251, %v7251
      %v7477 = vpack.c.bf16 %v7252, %v7252
      %v7478 = vpack.c.bf16 %v7253, %v7253
      %v7479 = vpack.c.bf16 %v7254, %v7254
      %v7480 = vpack.c.bf16 %v7255, %v7255
      %v7481 = vpack.c.bf16 %v7256, %v7256
      %v7482 = vpack.c.bf16 %v7257, %v7257
      %v7483 = vpack.c.bf16 %v7258, %v7258
      %v7484 = vpack.c.bf16 %v7259, %v7259
      %v7485 = vpack.c.bf16 %v7260, %v7260
      %v7486 = vpack.c.bf16 %v7261, %v7261
      %v7487 = vpack.c.bf16 %v7262, %v7262
      %v7488 = vpack.c.bf16 %v7263, %v7263
      %v7489 = vpack.c.bf16 %v7264, %v7264
      %v7490 = vpack.c.bf16 %v7265, %v7265
      %v7491 = vpack.c.bf16 %v7266, %v7266
      %v7492 = vpack.c.bf16 %v7267, %v7267
      %v7493 = vpack.c.bf16 %v7268, %v7268
      %v7494 = vpack.c.bf16 %v7269, %v7269
      %v7495 = vpack.c.bf16 %v7270, %v7270
      %v7496 = vpack.c.bf16 %v7271, %v7271
      %v7497 = vpack.c.bf16 %v7272, %v7272
      %v7498 = vpack.c.bf16 %v7273, %v7273
      %v7499 = vpack.c.bf16 %v7274, %v7274
      %v7500 = vpack.c.bf16 %v7275, %v7275
      %v7501 = vpack.c.bf16 %v7276, %v7276
      %v7502 = vpack.c.bf16 %v7277, %v7277
      %v7503 = vpack.c.bf16 %v7278, %v7278
      %v7504 = vpack.c.bf16 %v7279, %v7279
      %v7505 = vpack.c.bf16 %v7280, %v7280
      %v7506 = vpack.c.bf16 %v7281, %v7281
      %v7507 = vpack.c.bf16 %v7282, %v7282
      %v7508 = vpack.c.bf16 %v7283, %v7283
      %v7509 = vpack.c.bf16 %v7284, %v7284
      %v7510 = vpack.c.bf16 %v7285, %v7285
      %v7511 = vpack.c.bf16 %v7286, %v7286
      %v7512 = vpack.c.bf16 %v7287, %v7287
      %v7513 = vpack.c.bf16 %v7288, %v7288
      %v7514 = vpack.c.bf16 %v7289, %v7289
      %v7515 = vpack.c.bf16 %v7290, %v7290
      %v7516 = vpack.c.bf16 %v7291, %v7291
      %v7517 = vpack.c.bf16 %v7292, %v7292
      %v7518 = vpack.c.bf16 %v7293, %v7293
      %v7519 = vpack.c.bf16 %v7294, %v7294
      %v7520 = vpack.c.bf16 %v7295, %v7295
      %v7521 = vpack.c.bf16 %v7296, %v7296
      %v7522 = vpack.c.bf16 %v7297, %v7297
      %v7523 = vpack.c.bf16 %v7298, %v7298
      %v7524 = vpack.c.bf16 %v7299, %v7299
      %v7525 = vpack.c.bf16 %v7300, %v7300
      %v7526 = vpack.c.bf16 %v7301, %v7301
      %v7527 = vpack.c.bf16 %v7302, %v7302
      %v7528 = vpack.c.bf16 %v7303, %v7303
      %v7529 = vpack.c.bf16 %v7304, %v7304
      %v7530 = vpack.c.bf16 %v7305, %v7305
      %v7531 = vpack.c.bf16 %v7306, %v7306
      %v7532 = vpack.c.bf16 %v7307, %v7307
      %v7533 = vpack.c.bf16 %v7308, %v7308
      %v7534 = vpack.c.bf16 %v7309, %v7309
      %v7535 = vpack.c.bf16 %v7310, %v7310
      %v7536 = vpack.c.bf16 %v7311, %v7311
      %v7537 = vpack.c.bf16 %v7312, %v7312
      %v7538 = vpack.c.bf16 %v7313, %v7313
      %v7539 = vpack.c.bf16 %v7314, %v7314
      %v7540 = vpack.c.bf16 %v7315, %v7315
      %v7541 = vpack.c.bf16 %v7316, %v7316
      %v7542 = vpack.c.bf16 %v7317, %v7317
      %v7543 = vpack.c.bf16 %v7318, %v7318
      %v7544 = vpack.c.bf16 %v7319, %v7319
      %v7545 = vpack.c.bf16 %v7320, %v7320
      %v7546 = vpack.c.bf16 %v7321, %v7321
      %v7547 = vpack.c.bf16 %v7322, %v7322
      %v7548 = vpack.c.bf16 %v7323, %v7323
      %v7549 = vpack.c.bf16 %v7324, %v7324
      %v7550 = vpack.c.bf16 %v7325, %v7325
      %v7551 = vpack.c.bf16 %v7326, %v7326
      %v7552 = vpack.c.bf16 %v7327, %v7327
      %v7553 = vpack.c.bf16 %v7328, %v7328
      %v7554 = vpack.c.bf16 %v7329, %v7329
      %v7555 = vpack.c.bf16 %v7330, %v7330
      %v7556 = vpack.c.bf16 %v7331, %v7331
      %v7557 = vpack.c.bf16 %v7332, %v7332
      %v7558 = vpack.c.bf16 %v7333, %v7333
      %v7559 = vpack.c.bf16 %v7334, %v7334
      %v7560 = vpack.c.bf16 %v7335, %v7335
      %v7561 = vpack.c.bf16 %v7336, %v7336
      %v7562 = vpack.c.bf16 %v7337, %v7337
      %v7563 = vpack.c.bf16 %v7338, %v7338
      %v7564 = vpack.c.bf16 %v7339, %v7339
      %v7565 = vpack.c.bf16 %v7340, %v7340
      %v7566 = vpack.c.bf16 %v7341, %v7341
      %v7567 = vpack.c.bf16 %v7342, %v7342
      %v7568 = vpack.c.bf16 %v7343, %v7343
      %v7569 = vpack.c.bf16 %v7344, %v7344
      %v7570 = vpack.c.bf16 %v7345, %v7345
      %v7571 = vpack.c.bf16 %v7346, %v7346
      %v7572 = vpack.c.bf16 %v7347, %v7347
      %v7573 = vpack.c.bf16 %v7348, %v7348
      %v7574 = vpack.c.bf16 %v7349, %v7349
      %v7575 = vpack.c.bf16 %v7350, %v7350
      %v7576 = vpack.c.bf16 %v7351, %v7351
      %v7577 = vpack.c.bf16 %v7352, %v7352
      %v7578 = vpack.c.bf16 %v7353, %v7353
      %v7579 = vpack.c.bf16 %v7354, %v7354
      %v7580 = vpack.c.bf16 %v7355, %v7355
      %v7581 = vpack.c.bf16 %v7356, %v7356
      %v7582 = vpack.c.bf16 %v7357, %v7357
      %v7583 = vpack.c.bf16 %v7358, %v7358
      %v7584 = vpack.c.bf16 %v7359, %v7359
      %v7585 = vpack.c.bf16 %v7360, %v7360
      %v7586 = vpack.c.bf16 %v7361, %v7361
      %v7587 = vpack.c.bf16 %v7362, %v7362
      %v7588 = vpack.c.bf16 %v7363, %v7363
      %v7589 = vpack.c.bf16 %v7364, %v7364
      %v7590 = vpack.c.bf16 %v7365, %v7365
      %v7591 = vpack.c.bf16 %v7366, %v7366
      %v7592 = vpack.c.bf16 %v7367, %v7367
      %v7593 = vpack.c.bf16 %v7368, %v7368
      %v7594 = vpack.c.bf16 %v7369, %v7369
      %v7595 = vpack.c.bf16 %v7370, %v7370
      %v7596 = vpack.c.bf16 %v7371, %v7371
      %v7597 = vpack.c.bf16 %v7372, %v7372
      %v7598 = vpack.c.bf16 %v7373, %v7373
      %v7599 = vpack.c.bf16 %v7374, %v7374
      %v7600 = vpack.c.bf16 %v7375, %v7375
      %v7601 = vpack.c.bf16 %v7376, %v7376
      %v7602 = vpack.c.bf16 %v7377, %v7377
      %v7603 = vpack.c.bf16 %v7378, %v7378
      %v7604 = vpack.c.bf16 %v7379, %v7379
      %v7605 = vpack.c.bf16 %v7380, %v7380
      %v7606 = vpack.c.bf16 %v7381, %v7381
      %v7607 = vpack.c.bf16 %v7382, %v7382
      %v7608 = vpack.c.bf16 %v7383, %v7383
      %v7609 = vpack.c.bf16 %v7384, %v7384
      %v7610 = vpack.c.bf16 %v7385, %v7385
      %v7611 = vpack.c.bf16 %v7386, %v7386
      %v7612 = vpack.c.bf16 %v7387, %v7387
      %v7613 = vpack.c.bf16 %v7388, %v7388
      %v7614 = vpack.c.bf16 %v7389, %v7389
      %v7615 = vpack.c.bf16 %v7390, %v7390
      %v7616 = vpack.c.bf16 %v7391, %v7391
      %v7617 = vpack.c.bf16 %v7392, %v7392
      %v7618 = vpack.c.bf16 %v7393, %v7393
      %v7619 = vpack.c.bf16 %v7394, %v7394
      %v7741 = vunpack.c.l.b16 %v7395
      %v7742 = vunpack.c.l.b16 %v7396
      %v7743 = vunpack.c.l.b16 %v7397
      %v7744 = vunpack.c.l.b16 %v7398
      %v7745 = vunpack.c.l.b16 %v7399
      %v7746 = vunpack.c.l.b16 %v7400
      %v7747 = vunpack.c.l.b16 %v7401
      %v7748 = vunpack.c.l.b16 %v7402
      %v7749 = vunpack.c.l.b16 %v7403
      %v7750 = vunpack.c.l.b16 %v7404
      %v7751 = vunpack.c.l.b16 %v7405
      %v7752 = vunpack.c.l.b16 %v7410
      %v7753 = vunpack.c.l.b16 %v7411
      %v7754 = vunpack.c.l.b16 %v7412
      %v7755 = vunpack.c.l.b16 %v7413
      %v7756 = vunpack.c.l.b16 %v7414
      %v7757 = vunpack.c.l.b16 %v7415
      %v7758 = vunpack.c.l.b16 %v7416
      %v7759 = vunpack.c.l.b16 %v7417
      %v7760 = vunpack.c.l.b16 %v7418
      %v7761 = vunpack.c.l.b16 %v7419
      %v7762 = vunpack.c.l.b16 %v7420
      %v7763 = vunpack.c.l.b16 %v7425
      %v7764 = vunpack.c.l.b16 %v7426
      %v7765 = vunpack.c.l.b16 %v7427
      %v7766 = vunpack.c.l.b16 %v7428
      %v7767 = vunpack.c.l.b16 %v7429
      %v7768 = vunpack.c.l.b16 %v7430
      %v7769 = vunpack.c.l.b16 %v7431
      %v7770 = vunpack.c.l.b16 %v7432
      %v7771 = vunpack.c.l.b16 %v7433
      %v7772 = vunpack.c.l.b16 %v7434
      %v7773 = vunpack.c.l.b16 %v7435
      %v7774 = vunpack.c.l.b16 %v7440
      %v7775 = vunpack.c.l.b16 %v7441
      %v7776 = vunpack.c.l.b16 %v7442
      %v7777 = vunpack.c.l.b16 %v7443
      %v7778 = vunpack.c.l.b16 %v7444
      %v7779 = vunpack.c.l.b16 %v7445
      %v7780 = vunpack.c.l.b16 %v7446
      %v7781 = vunpack.c.l.b16 %v7447
      %v7782 = vunpack.c.l.b16 %v7448
      %v7783 = vunpack.c.l.b16 %v7449
      %v7784 = vunpack.c.l.b16 %v7450
      %v7785 = vunpack.c.l.b16 %v7455
      %v7786 = vunpack.c.l.b16 %v7456
      %v7787 = vunpack.c.l.b16 %v7457
      %v7788 = vunpack.c.l.b16 %v7458
      %v7789 = vunpack.c.l.b16 %v7459
      %v7790 = vunpack.c.l.b16 %v7460
      %v7791 = vunpack.c.l.b16 %v7461
      %v7792 = vunpack.c.l.b16 %v7462
      %v7793 = vunpack.c.l.b16 %v7463
      %v7794 = vunpack.c.l.b16 %v7464
      %v7795 = vunpack.c.l.b16 %v7465
      %v7796 = vunpack.c.l.b16 %v7470
      %v7797 = vunpack.c.l.b16 %v7471
      %v7798 = vunpack.c.l.b16 %v7472
      %v7799 = vunpack.c.l.b16 %v7473
      %v7800 = vunpack.c.l.b16 %v7474
      %v7801 = vunpack.c.l.b16 %v7475
      %v7802 = vunpack.c.l.b16 %v7476
      %v7803 = vunpack.c.l.b16 %v7477
      %v7804 = vunpack.c.l.b16 %v7478
      %v7805 = vunpack.c.l.b16 %v7479
      %v7806 = vunpack.c.l.b16 %v7480
      %v7807 = vunpack.c.l.b16 %v7485
      %v7808 = vunpack.c.l.b16 %v7486
      %v7809 = vunpack.c.l.b16 %v7487
      %v7810 = vunpack.c.l.b16 %v7488
      %v7811 = vunpack.c.l.b16 %v7489
      %v7812 = vunpack.c.l.b16 %v7490
      %v7813 = vunpack.c.l.b16 %v7491
      %v7814 = vunpack.c.l.b16 %v7492
      %v7815 = vunpack.c.l.b16 %v7493
      %v7816 = vunpack.c.l.b16 %v7494
      %v7817 = vunpack.c.l.b16 %v7495
      %v7818 = vunpack.c.l.b16 %v7500
      %v7819 = vunpack.c.l.b16 %v7501
      %v7820 = vunpack.c.l.b16 %v7502
      %v7821 = vunpack.c.l.b16 %v7503
      %v7822 = vunpack.c.l.b16 %v7504
      %v7823 = vunpack.c.l.b16 %v7505
      %v7824 = vunpack.c.l.b16 %v7506
      %v7825 = vunpack.c.l.b16 %v7507
      %v7826 = vunpack.c.l.b16 %v7508
      %v7827 = vunpack.c.l.b16 %v7509
      %v7828 = vunpack.c.l.b16 %v7510
      %v7829 = vunpack.c.l.b16 %v7515
      %v7830 = vunpack.c.l.b16 %v7516
      %v7831 = vunpack.c.l.b16 %v7517
      %v7832 = vunpack.c.l.b16 %v7518
      %v7833 = vunpack.c.l.b16 %v7519
      %v7834 = vunpack.c.l.b16 %v7520
      %v7835 = vunpack.c.l.b16 %v7521
      %v7836 = vunpack.c.l.b16 %v7522
      %v7837 = vunpack.c.l.b16 %v7523
      %v7838 = vunpack.c.l.b16 %v7524
      %v7839 = vunpack.c.l.b16 %v7525
      %v7840 = vunpack.c.l.b16 %v7530
      %v7841 = vunpack.c.l.b16 %v7531
      %v7842 = vunpack.c.l.b16 %v7532
      %v7843 = vunpack.c.l.b16 %v7533
      %v7844 = vunpack.c.l.b16 %v7534
      %v7845 = vunpack.c.l.b16 %v7535
      %v7846 = vunpack.c.l.b16 %v7536
      %v7847 = vunpack.c.l.b16 %v7537
      %v7848 = vunpack.c.l.b16 %v7538
      %v7849 = vunpack.c.l.b16 %v7539
      %v7850 = vunpack.c.l.b16 %v7540
      %v7851 = vunpack.c.l.b16 %v7545
      %v7852 = vunpack.c.l.b16 %v7546
      %v7853 = vunpack.c.l.b16 %v7547
      %v7854 = vunpack.c.l.b16 %v7548
      %v7855 = vunpack.c.l.b16 %v7549
      %v7856 = vunpack.c.l.b16 %v7550
      %v7857 = vunpack.c.l.b16 %v7551
      %v7858 = vunpack.c.l.b16 %v7552
      %v7859 = vunpack.c.l.b16 %v7553
      %v7860 = vunpack.c.l.b16 %v7554
      %v7861 = vunpack.c.l.b16 %v7555
      %v7862 = vpack.c.b16 %v7741, %v7741
      %v7863 = vpack.c.b16 %v7742, %v7742
      %v7864 = vpack.c.b16 %v7743, %v7743
      %v7865 = vpack.c.b16 %v7744, %v7744
      %v7866 = vpack.c.b16 %v7745, %v7745
      %v7867 = vpack.c.b16 %v7746, %v7746
      %v7868 = vpack.c.b16 %v7747, %v7747
      %v7869 = vpack.c.b16 %v7748, %v7748
      %v7870 = vpack.c.b16 %v7749, %v7749
      %v7871 = vpack.c.b16 %v7750, %v7750
      %v7872 = vpack.c.b16 %v7751, %v7751
      %v7873 = vpack.c.b16 %v7752, %v7752
      %v7874 = vpack.c.b16 %v7753, %v7753
      %v7875 = vpack.c.b16 %v7754, %v7754
      %v7876 = vpack.c.b16 %v7755, %v7755
      %v7877 = vpack.c.b16 %v7756, %v7756
      %v7878 = vpack.c.b16 %v7757, %v7757
      %v7879 = vpack.c.b16 %v7758, %v7758
      %v7880 = vpack.c.b16 %v7759, %v7759
      %v7881 = vpack.c.b16 %v7760, %v7760
      %v7882 = vpack.c.b16 %v7761, %v7761
      %v7883 = vpack.c.b16 %v7762, %v7762
      %v7884 = vpack.c.b16 %v7763, %v7763
      %v7885 = vpack.c.b16 %v7764, %v7764
      %v7886 = vpack.c.b16 %v7765, %v7765
      %v7887 = vpack.c.b16 %v7766, %v7766
      %v7888 = vpack.c.b16 %v7767, %v7767
      %v7889 = vpack.c.b16 %v7768, %v7768
      %v7890 = vpack.c.b16 %v7769, %v7769
      %v7891 = vpack.c.b16 %v7770, %v7770
      %v7892 = vpack.c.b16 %v7771, %v7771
      %v7893 = vpack.c.b16 %v7772, %v7772
      %v7894 = vpack.c.b16 %v7773, %v7773
      %v7895 = vpack.c.b16 %v7774, %v7774
      %v7896 = vpack.c.b16 %v7775, %v7775
      %v7897 = vpack.c.b16 %v7776, %v7776
      %v7898 = vpack.c.b16 %v7777, %v7777
      %v7899 = vpack.c.b16 %v7778, %v7778
      %v7900 = vpack.c.b16 %v7779, %v7779
      %v7901 = vpack.c.b16 %v7780, %v7780
      %v7902 = vpack.c.b16 %v7781, %v7781
      %v7903 = vpack.c.b16 %v7782, %v7782
      %v7904 = vpack.c.b16 %v7783, %v7783
      %v7905 = vpack.c.b16 %v7784, %v7784
      %v7906 = vpack.c.b16 %v7785, %v7785
      %v7907 = vpack.c.b16 %v7786, %v7786
      %v7908 = vpack.c.b16 %v7787, %v7787
      %v7909 = vpack.c.b16 %v7788, %v7788
      %v7910 = vpack.c.b16 %v7789, %v7789
      %v7911 = vpack.c.b16 %v7790, %v7790
      %v7912 = vpack.c.b16 %v7791, %v7791
      %v7913 = vpack.c.b16 %v7792, %v7792
      %v7914 = vpack.c.b16 %v7793, %v7793
      %v7915 = vpack.c.b16 %v7794, %v7794
      %v7916 = vpack.c.b16 %v7795, %v7795
      %v7917 = vpack.c.b16 %v7796, %v7796
      %v7918 = vpack.c.b16 %v7797, %v7797
      %v7919 = vpack.c.b16 %v7798, %v7798
      %v7920 = vpack.c.b16 %v7799, %v7799
      %v7921 = vpack.c.b16 %v7800, %v7800
      %v7922 = vpack.c.b16 %v7801, %v7801
      %v7923 = vpack.c.b16 %v7802, %v7802
      %v7924 = vpack.c.b16 %v7803, %v7803
      %v7925 = vpack.c.b16 %v7804, %v7804
      %v7926 = vpack.c.b16 %v7805, %v7805
      %v7927 = vpack.c.b16 %v7806, %v7806
      %v7928 = vpack.c.b16 %v7807, %v7807
      %v7929 = vpack.c.b16 %v7808, %v7808
      %v7930 = vpack.c.b16 %v7809, %v7809
      %v7931 = vpack.c.b16 %v7810, %v7810
      %v7932 = vpack.c.b16 %v7811, %v7811
      %v7933 = vpack.c.b16 %v7812, %v7812
      %v7934 = vpack.c.b16 %v7813, %v7813
      %v7935 = vpack.c.b16 %v7814, %v7814
      %v7936 = vpack.c.b16 %v7815, %v7815
      %v7937 = vpack.c.b16 %v7816, %v7816
      %v7938 = vpack.c.b16 %v7817, %v7817
      %v7939 = vpack.c.b16 %v7818, %v7818
      %v7940 = vpack.c.b16 %v7819, %v7819
      %v7941 = vpack.c.b16 %v7820, %v7820
      %v7942 = vpack.c.b16 %v7821, %v7821
      %v7943 = vpack.c.b16 %v7822, %v7822
      %v7944 = vpack.c.b16 %v7823, %v7823
      %v7945 = vpack.c.b16 %v7824, %v7824
      %v7946 = vpack.c.b16 %v7825, %v7825
      %v7947 = vpack.c.b16 %v7826, %v7826
      %v7948 = vpack.c.b16 %v7827, %v7827
      %v7949 = vpack.c.b16 %v7828, %v7828
      %v7950 = vpack.c.b16 %v7829, %v7829
      %v7951 = vpack.c.b16 %v7830, %v7830
      %v7952 = vpack.c.b16 %v7831, %v7831
      %v7953 = vpack.c.b16 %v7832, %v7832
      %v7954 = vpack.c.b16 %v7833, %v7833
      %v7955 = vpack.c.b16 %v7834, %v7834
      %v7956 = vpack.c.b16 %v7835, %v7835
      %v7957 = vpack.c.b16 %v7836, %v7836
      %v7958 = vpack.c.b16 %v7837, %v7837
      %v7959 = vpack.c.b16 %v7838, %v7838
      %v7960 = vpack.c.b16 %v7839, %v7839
      %v7961 = vpack.c.b16 %v7840, %v7840
      %v7962 = vpack.c.b16 %v7841, %v7841
      %v7963 = vpack.c.b16 %v7842, %v7842
      %v7964 = vpack.c.b16 %v7843, %v7843
      %v7965 = vpack.c.b16 %v7844, %v7844
      %v7966 = vpack.c.b16 %v7845, %v7845
      %v7967 = vpack.c.b16 %v7846, %v7846
      %v7968 = vpack.c.b16 %v7847, %v7847
      %v7969 = vpack.c.b16 %v7848, %v7848
      %v7970 = vpack.c.b16 %v7849, %v7849
      %v7971 = vpack.c.b16 %v7850, %v7850
      %v7972 = vpack.c.b16 %v7851, %v7851
      %v7973 = vpack.c.b16 %v7852, %v7852
      %v7974 = vpack.c.b16 %v7853, %v7853
      %v7975 = vpack.c.b16 %v7854, %v7854
      %v7976 = vpack.c.b16 %v7855, %v7855
      %v7977 = vpack.c.b16 %v7856, %v7856
      %v7978 = vpack.c.b16 %v7857, %v7857
      %v7979 = vpack.c.b16 %v7858, %v7858
      %v7980 = vpack.c.b16 %v7859, %v7859
      %v7981 = vpack.c.b16 %v7860, %v7860
      %v7982 = vpack.c.b16 %v7861, %v7861
      %v7983 = vunpack.c.l.b16 %v7862
      %v7984 = vunpack.c.l.b16 %v7863
      %v7985 = vunpack.c.l.b16 %v7864
      %v7986 = vunpack.c.l.b16 %v7865
      %v7987 = vunpack.c.l.b16 %v7866
      %v7988 = vunpack.c.l.b16 %v7867
      %v7989 = vunpack.c.l.b16 %v7868
      %v7990 = vunpack.c.l.b16 %v7869
      %v7991 = vunpack.c.l.b16 %v7870
      %v7992 = vunpack.c.l.b16 %v7871
      %v7993 = vunpack.c.l.b16 %v7872
      %v7994 = vunpack.c.l.b16 %v7873
      %v7995 = vunpack.c.l.b16 %v7874
      %v7996 = vunpack.c.l.b16 %v7875
      %v7997 = vunpack.c.l.b16 %v7876
      %v7998 = vunpack.c.l.b16 %v7877
      %v7999 = vunpack.c.l.b16 %v7878
      %v8000 = vunpack.c.l.b16 %v7879
      %v8001 = vunpack.c.l.b16 %v7880
      %v8002 = vunpack.c.l.b16 %v7881
      %v8003 = vunpack.c.l.b16 %v7882
      %v8004 = vunpack.c.l.b16 %v7883
      %v8005 = vunpack.c.l.b16 %v7884
      %v8006 = vunpack.c.l.b16 %v7885
      %v8007 = vunpack.c.l.b16 %v7886
      %v8008 = vunpack.c.l.b16 %v7887
      %v8009 = vunpack.c.l.b16 %v7888
      %v8010 = vunpack.c.l.b16 %v7889
      %v8011 = vunpack.c.l.b16 %v7890
      %v8012 = vunpack.c.l.b16 %v7891
      %v8013 = vunpack.c.l.b16 %v7892
      %v8014 = vunpack.c.l.b16 %v7893
      %v8015 = vunpack.c.l.b16 %v7894
      %v8016 = vunpack.c.l.b16 %v7895
      %v8017 = vunpack.c.l.b16 %v7896
      %v8018 = vunpack.c.l.b16 %v7897
      %v8019 = vunpack.c.l.b16 %v7898
      %v8020 = vunpack.c.l.b16 %v7899
      %v8021 = vunpack.c.l.b16 %v7900
      %v8022 = vunpack.c.l.b16 %v7901
      %v8023 = vunpack.c.l.b16 %v7902
      %v8024 = vunpack.c.l.b16 %v7903
      %v8025 = vunpack.c.l.b16 %v7904
      %v8026 = vunpack.c.l.b16 %v7905
      %v8027 = vunpack.c.l.b16 %v7906
      %v8028 = vunpack.c.l.b16 %v7907
      %v8029 = vunpack.c.l.b16 %v7908
      %v8030 = vunpack.c.l.b16 %v7909
      %v8031 = vunpack.c.l.b16 %v7910
      %v8032 = vunpack.c.l.b16 %v7911
      %v8033 = vunpack.c.l.b16 %v7912
      %v8034 = vunpack.c.l.b16 %v7913
      %v8035 = vunpack.c.l.b16 %v7914
      %v8036 = vunpack.c.l.b16 %v7915
      %v8037 = vunpack.c.l.b16 %v7916
      %v8038 = vunpack.c.l.b16 %v7917
      %v8039 = vunpack.c.l.b16 %v7918
      %v8040 = vunpack.c.l.b16 %v7919
      %v8041 = vunpack.c.l.b16 %v7920
      %v8042 = vunpack.c.l.b16 %v7921
      %v8043 = vunpack.c.l.b16 %v7922
      %v8044 = vunpack.c.l.b16 %v7923
      %v8045 = vunpack.c.l.b16 %v7924
      %v8046 = vunpack.c.l.b16 %v7925
      %v8047 = vunpack.c.l.b16 %v7926
      %v8048 = vunpack.c.l.b16 %v7927
      %v8049 = vunpack.c.l.b16 %v7928
      %v8050 = vunpack.c.l.b16 %v7929
      %v8051 = vunpack.c.l.b16 %v7930
      %v8052 = vunpack.c.l.b16 %v7931
      %v8053 = vunpack.c.l.b16 %v7932
      %v8054 = vunpack.c.l.b16 %v7933
      %v8055 = vunpack.c.l.b16 %v7934
      %v8056 = vunpack.c.l.b16 %v7935
      %v8057 = vunpack.c.l.b16 %v7936
      %v8058 = vunpack.c.l.b16 %v7937
      %v8059 = vunpack.c.l.b16 %v7938
      %v8060 = vunpack.c.l.b16 %v7939
      %v8061 = vunpack.c.l.b16 %v7940
      %v8062 = vunpack.c.l.b16 %v7941
      %v8063 = vunpack.c.l.b16 %v7942
      %v8064 = vunpack.c.l.b16 %v7943
      %v8065 = vunpack.c.l.b16 %v7944
      %v8066 = vunpack.c.l.b16 %v7945
      %v8067 = vunpack.c.l.b16 %v7946
      %v8068 = vunpack.c.l.b16 %v7947
      %v8069 = vunpack.c.l.b16 %v7948
      %v8070 = vunpack.c.l.b16 %v7949
      %v8071 = vunpack.c.l.b16 %v7950
      %v8072 = vunpack.c.l.b16 %v7951
      %v8073 = vunpack.c.l.b16 %v7952
      %v8074 = vunpack.c.l.b16 %v7953
      %v8075 = vunpack.c.l.b16 %v7954
      %v8076 = vunpack.c.l.b16 %v7955
      %v8077 = vunpack.c.l.b16 %v7956
      %v8078 = vunpack.c.l.b16 %v7957
      %v8079 = vunpack.c.l.b16 %v7958
      %v8080 = vunpack.c.l.b16 %v7959
      %v8081 = vunpack.c.l.b16 %v7960
      %v8082 = vunpack.c.l.b16 %v7961
      %v8083 = vunpack.c.l.b16 %v7962
      %v8084 = vunpack.c.l.b16 %v7963
      %v8085 = vunpack.c.l.b16 %v7964
      %v8086 = vunpack.c.l.b16 %v7965
      %v8087 = vunpack.c.l.b16 %v7966
      %v8088 = vunpack.c.l.b16 %v7967
      %v8089 = vunpack.c.l.b16 %v7968
      %v8090 = vunpack.c.l.b16 %v7969
      %v8091 = vunpack.c.l.b16 %v7970
      %v8092 = vunpack.c.l.b16 %v7971
      %v8093 = vunpack.c.l.b16 %v7972
      %v8094 = vunpack.c.l.b16 %v7973
      %v8095 = vunpack.c.l.b16 %v7974
      %v8096 = vunpack.c.l.b16 %v7975
      %v8097 = vunpack.c.l.b16 %v7976
      %v8098 = vunpack.c.l.b16 %v7977
      %v8099 = vunpack.c.l.b16 %v7978
      %v8100 = vunpack.c.l.b16 %v7979
      %v8101 = vunpack.c.l.b16 %v7980
      %v8102 = vunpack.c.l.b16 %v7981
      %v8103 = vunpack.c.l.b16 %v7982
      %v8104 = vrot.slane %v7984, 7
      %vm8105 = vcmask 1041409
      %v8106 = vsel %vm8105, %v8104, %v7983
      %v8107 = vrot.slane %v7985, 6
      %vm8108 = vcmask 1042434
      %v8109 = vsel %vm8108, %v8107, %v8106
      %v8110 = vrot.slane %v7986, 5
      %vm8111 = vcmask 1043459
      %v8112 = vsel %vm8111, %v8110, %v8109
      %v8113 = vrot.slane %v7987, 4
      %vm8114 = vcmask 1044484
      %v8115 = vsel %vm8114, %v8113, %v8112
      %v8116 = vrot.slane %v7988, 3
      %vm8117 = vcmask 1045509
      %v8118 = vsel %vm8117, %v8116, %v8115
      %v8119 = vrot.slane %v7989, 2
      %vm8120 = vcmask 1046534
      %v8121 = vsel %vm8120, %v8119, %v8118
      %v8122 = vrot.slane %v7990, 1
      %vm8123 = vcmask 1047559
      %v8124 = vsel %vm8123, %v8122, %v8121
      %v8125 = vrot.slane %v7992, 7
      %v8126 = vsel %vm8105, %v8125, %v7991
      %v8127 = vrot.slane %v7993, 6
      %v8128 = vsel %vm8108, %v8127, %v8126
      %v8129 = vrot.slane %v7995, 7
      %v8130 = vsel %vm8105, %v8129, %v7994
      %v8131 = vrot.slane %v7996, 6
      %v8132 = vsel %vm8108, %v8131, %v8130
      %v8133 = vrot.slane %v7997, 5
      %v8134 = vsel %vm8111, %v8133, %v8132
      %v8135 = vrot.slane %v7998, 4
      %v8136 = vsel %vm8114, %v8135, %v8134
      %v8137 = vrot.slane %v7999, 3
      %v8138 = vsel %vm8117, %v8137, %v8136
      %v8139 = vrot.slane %v8000, 2
      %v8140 = vsel %vm8120, %v8139, %v8138
      %v8141 = vrot.slane %v8001, 1
      %v8142 = vsel %vm8123, %v8141, %v8140
      %v8143 = vrot.slane %v8003, 7
      %v8144 = vsel %vm8105, %v8143, %v8002
      %v8145 = vrot.slane %v8004, 6
      %v8146 = vsel %vm8108, %v8145, %v8144
      %v8147 = vrot.slane %v8006, 7
      %v8148 = vsel %vm8105, %v8147, %v8005
      %v8149 = vrot.slane %v8007, 6
      %v8150 = vsel %vm8108, %v8149, %v8148
      %v8151 = vrot.slane %v8008, 5
      %v8152 = vsel %vm8111, %v8151, %v8150
      %v8153 = vrot.slane %v8009, 4
      %v8154 = vsel %vm8114, %v8153, %v8152
      %v8155 = vrot.slane %v8010, 3
      %v8156 = vsel %vm8117, %v8155, %v8154
      %v8157 = vrot.slane %v8011, 2
      %v8158 = vsel %vm8120, %v8157, %v8156
      %v8159 = vrot.slane %v8012, 1
      %v8160 = vsel %vm8123, %v8159, %v8158
      %v8161 = vrot.slane %v8014, 7
      %v8162 = vsel %vm8105, %v8161, %v8013
      %v8163 = vrot.slane %v8015, 6
      %v8164 = vsel %vm8108, %v8163, %v8162
      %v8165 = vrot.slane %v8017, 7
      %v8166 = vsel %vm8105, %v8165, %v8016
      %v8167 = vrot.slane %v8018, 6
      %v8168 = vsel %vm8108, %v8167, %v8166
      %v8169 = vrot.slane %v8019, 5
      %v8170 = vsel %vm8111, %v8169, %v8168
      %v8171 = vrot.slane %v8020, 4
      %v8172 = vsel %vm8114, %v8171, %v8170
      %v8173 = vrot.slane %v8021, 3
      %v8174 = vsel %vm8117, %v8173, %v8172
      %v8175 = vrot.slane %v8022, 2
      %v8176 = vsel %vm8120, %v8175, %v8174
      %v8177 = vrot.slane %v8023, 1
      %v8178 = vsel %vm8123, %v8177, %v8176
      %v8179 = vrot.slane %v8025, 7
      %v8180 = vsel %vm8105, %v8179, %v8024
      %v8181 = vrot.slane %v8026, 6
      %v8182 = vsel %vm8108, %v8181, %v8180
      %v8183 = vrot.slane %v8028, 7
      %v8184 = vsel %vm8105, %v8183, %v8027
      %v8185 = vrot.slane %v8029, 6
      %v8186 = vsel %vm8108, %v8185, %v8184
      %v8187 = vrot.slane %v8030, 5
      %v8188 = vsel %vm8111, %v8187, %v8186
      %v8189 = vrot.slane %v8031, 4
      %v8190 = vsel %vm8114, %v8189, %v8188
      %v8191 = vrot.slane %v8032, 3
      %v8192 = vsel %vm8117, %v8191, %v8190
      %v8193 = vrot.slane %v8033, 2
      %v8194 = vsel %vm8120, %v8193, %v8192
      %v8195 = vrot.slane %v8034, 1
      %v8196 = vsel %vm8123, %v8195, %v8194
      %v8197 = vrot.slane %v8036, 7
      %v8198 = vsel %vm8105, %v8197, %v8035
      %v8199 = vrot.slane %v8037, 6
      %v8200 = vsel %vm8108, %v8199, %v8198
      %v8201 = vrot.slane %v8039, 7
      %v8202 = vsel %vm8105, %v8201, %v8038
      %v8203 = vrot.slane %v8040, 6
      %v8204 = vsel %vm8108, %v8203, %v8202
      %v8205 = vrot.slane %v8041, 5
      %v8206 = vsel %vm8111, %v8205, %v8204
      %v8207 = vrot.slane %v8042, 4
      %v8208 = vsel %vm8114, %v8207, %v8206
      %v8209 = vrot.slane %v8043, 3
      %v8210 = vsel %vm8117, %v8209, %v8208
      %v8211 = vrot.slane %v8044, 2
      %v8212 = vsel %vm8120, %v8211, %v8210
      %v8213 = vrot.slane %v8045, 1
      %v8214 = vsel %vm8123, %v8213, %v8212
      %v8215 = vrot.slane %v8047, 7
      %v8216 = vsel %vm8105, %v8215, %v8046
      %v8217 = vrot.slane %v8048, 6
      %v8218 = vsel %vm8108, %v8217, %v8216
      %v8219 = vrot.slane %v8050, 7
      %v8220 = vsel %vm8105, %v8219, %v8049
      %v8221 = vrot.slane %v8051, 6
      %v8222 = vsel %vm8108, %v8221, %v8220
      %v8223 = vrot.slane %v8052, 5
      %v8224 = vsel %vm8111, %v8223, %v8222
      %v8225 = vrot.slane %v8053, 4
      %v8226 = vsel %vm8114, %v8225, %v8224
      %v8227 = vrot.slane %v8054, 3
      %v8228 = vsel %vm8117, %v8227, %v8226
      %v8229 = vrot.slane %v8055, 2
      %v8230 = vsel %vm8120, %v8229, %v8228
      %v8231 = vrot.slane %v8056, 1
      %v8232 = vsel %vm8123, %v8231, %v8230
      %v8233 = vrot.slane %v8058, 7
      %v8234 = vsel %vm8105, %v8233, %v8057
      %v8235 = vrot.slane %v8059, 6
      %v8236 = vsel %vm8108, %v8235, %v8234
      %v8237 = vrot.slane %v8061, 7
      %v8238 = vsel %vm8105, %v8237, %v8060
      %v8239 = vrot.slane %v8062, 6
      %v8240 = vsel %vm8108, %v8239, %v8238
      %v8241 = vrot.slane %v8063, 5
      %v8242 = vsel %vm8111, %v8241, %v8240
      %v8243 = vrot.slane %v8064, 4
      %v8244 = vsel %vm8114, %v8243, %v8242
      %v8245 = vrot.slane %v8065, 3
      %v8246 = vsel %vm8117, %v8245, %v8244
      %v8247 = vrot.slane %v8066, 2
      %v8248 = vsel %vm8120, %v8247, %v8246
      %v8249 = vrot.slane %v8067, 1
      %v8250 = vsel %vm8123, %v8249, %v8248
      %v8251 = vrot.slane %v8069, 7
      %v8252 = vsel %vm8105, %v8251, %v8068
      %v8253 = vrot.slane %v8070, 6
      %v8254 = vsel %vm8108, %v8253, %v8252
      %v8255 = vrot.slane %v8072, 7
      %v8256 = vsel %vm8105, %v8255, %v8071
      %v8257 = vrot.slane %v8073, 6
      %v8258 = vsel %vm8108, %v8257, %v8256
      %v8259 = vrot.slane %v8074, 5
      %v8260 = vsel %vm8111, %v8259, %v8258
      %v8261 = vrot.slane %v8075, 4
      %v8262 = vsel %vm8114, %v8261, %v8260
      %v8263 = vrot.slane %v8076, 3
      %v8264 = vsel %vm8117, %v8263, %v8262
      %v8265 = vrot.slane %v8077, 2
      %v8266 = vsel %vm8120, %v8265, %v8264
      %v8267 = vrot.slane %v8078, 1
      %v8268 = vsel %vm8123, %v8267, %v8266
      %v8269 = vrot.slane %v8080, 7
      %v8270 = vsel %vm8105, %v8269, %v8079
      %v8271 = vrot.slane %v8081, 6
      %v8272 = vsel %vm8108, %v8271, %v8270
      %v8273 = vrot.slane %v8083, 7
      %v8274 = vsel %vm8105, %v8273, %v8082
      %v8275 = vrot.slane %v8084, 6
      %v8276 = vsel %vm8108, %v8275, %v8274
      %v8277 = vrot.slane %v8085, 5
      %v8278 = vsel %vm8111, %v8277, %v8276
      %v8279 = vrot.slane %v8086, 4
      %v8280 = vsel %vm8114, %v8279, %v8278
      %v8281 = vrot.slane %v8087, 3
      %v8282 = vsel %vm8117, %v8281, %v8280
      %v8283 = vrot.slane %v8088, 2
      %v8284 = vsel %vm8120, %v8283, %v8282
      %v8285 = vrot.slane %v8089, 1
      %v8286 = vsel %vm8123, %v8285, %v8284
      %v8287 = vrot.slane %v8091, 7
      %v8288 = vsel %vm8105, %v8287, %v8090
      %v8289 = vrot.slane %v8092, 6
      %v8290 = vsel %vm8108, %v8289, %v8288
      %v8291 = vrot.slane %v8094, 7
      %v8292 = vsel %vm8105, %v8291, %v8093
      %v8293 = vrot.slane %v8095, 6
      %v8294 = vsel %vm8108, %v8293, %v8292
      %v8295 = vrot.slane %v8096, 5
      %v8296 = vsel %vm8111, %v8295, %v8294
      %v8297 = vrot.slane %v8097, 4
      %v8298 = vsel %vm8114, %v8297, %v8296
      %v8299 = vrot.slane %v8098, 3
      %v8300 = vsel %vm8117, %v8299, %v8298
      %v8301 = vrot.slane %v8099, 2
      %v8302 = vsel %vm8120, %v8301, %v8300
      %v8303 = vrot.slane %v8100, 1
      %v8304 = vsel %vm8123, %v8303, %v8302
      %v8305 = vrot.slane %v8102, 7
      %v8306 = vsel %vm8105, %v8305, %v8101
      %v8307 = vrot.slane %v8103, 6
      %v8308 = vsel %vm8108, %v8307, %v8306
      %v8309 = vpack.c.b16 %v8128, %v8124
      %v8310 = vpack.c.b16 %v8146, %v8142
      %v8311 = vpack.c.b16 %v8164, %v8160
      %v8312 = vpack.c.b16 %v8182, %v8178
      %v8313 = vpack.c.b16 %v8200, %v8196
      %v8314 = vpack.c.b16 %v8218, %v8214
      %v8315 = vpack.c.b16 %v8236, %v8232
      %v8316 = vpack.c.b16 %v8254, %v8250
      %v8317 = vpack.c.b16 %v8272, %v8268
      %v8318 = vpack.c.b16 %v8290, %v8286
      %v8319 = vpack.c.b16 %v8308, %v8304
      %v8331 = vunpack.c.l.b16 %v7406
      %v8332 = vunpack.c.l.b16 %v7421
      %v8333 = vunpack.c.l.b16 %v7436
      %v8334 = vunpack.c.l.b16 %v7451
      %v8335 = vunpack.c.l.b16 %v7466
      %v8336 = vunpack.c.l.b16 %v7481
      %v8337 = vunpack.c.l.b16 %v7496
      %v8338 = vunpack.c.l.b16 %v7511
      %v8339 = vunpack.c.l.b16 %v7526
      %v8340 = vunpack.c.l.b16 %v7541
      %v8341 = vunpack.c.l.b16 %v7556
      %v8342 = vpack.c.b16 %v8331, %v8331
      %v8343 = vpack.c.b16 %v8332, %v8332
      %v8344 = vpack.c.b16 %v8333, %v8333
      %v8345 = vpack.c.b16 %v8334, %v8334
      %v8346 = vpack.c.b16 %v8335, %v8335
      %v8347 = vpack.c.b16 %v8336, %v8336
      %v8348 = vpack.c.b16 %v8337, %v8337
      %v8349 = vpack.c.b16 %v8338, %v8338
      %v8350 = vpack.c.b16 %v8339, %v8339
      %v8351 = vpack.c.b16 %v8340, %v8340
      %v8352 = vpack.c.b16 %v8341, %v8341
      %v8353 = vunpack.c.l.b16 %v8342
      %v8354 = vunpack.c.l.b16 %v8343
      %v8355 = vunpack.c.l.b16 %v8344
      %v8356 = vunpack.c.l.b16 %v8345
      %v8357 = vunpack.c.l.b16 %v8346
      %v8358 = vunpack.c.l.b16 %v8347
      %v8359 = vunpack.c.l.b16 %v8348
      %v8360 = vunpack.c.l.b16 %v8349
      %v8361 = vunpack.c.l.b16 %v8350
      %v8362 = vunpack.c.l.b16 %v8351
      %v8363 = vunpack.c.l.b16 %v8352
      %v8364 = vrot.slane %v7985, 7
      %v8365 = vsel %vm8105, %v8364, %v7984
      %v8366 = vrot.slane %v7986, 6
      %v8367 = vsel %vm8108, %v8366, %v8365
      %v8368 = vrot.slane %v7987, 5
      %v8369 = vsel %vm8111, %v8368, %v8367
      %v8370 = vrot.slane %v7988, 4
      %v8371 = vsel %vm8114, %v8370, %v8369
      %v8372 = vrot.slane %v7989, 3
      %v8373 = vsel %vm8117, %v8372, %v8371
      %v8374 = vrot.slane %v7990, 2
      %v8375 = vsel %vm8120, %v8374, %v8373
      %v8376 = vrot.slane %v7991, 1
      %v8377 = vsel %vm8123, %v8376, %v8375
      %v8378 = vrot.slane %v7993, 7
      %v8379 = vsel %vm8105, %v8378, %v7992
      %v8380 = vrot.slane %v8353, 6
      %v8381 = vsel %vm8108, %v8380, %v8379
      %v8382 = vrot.slane %v7996, 7
      %v8383 = vsel %vm8105, %v8382, %v7995
      %v8384 = vrot.slane %v7997, 6
      %v8385 = vsel %vm8108, %v8384, %v8383
      %v8386 = vrot.slane %v7998, 5
      %v8387 = vsel %vm8111, %v8386, %v8385
      %v8388 = vrot.slane %v7999, 4
      %v8389 = vsel %vm8114, %v8388, %v8387
      %v8390 = vrot.slane %v8000, 3
      %v8391 = vsel %vm8117, %v8390, %v8389
      %v8392 = vrot.slane %v8001, 2
      %v8393 = vsel %vm8120, %v8392, %v8391
      %v8394 = vrot.slane %v8002, 1
      %v8395 = vsel %vm8123, %v8394, %v8393
      %v8396 = vrot.slane %v8004, 7
      %v8397 = vsel %vm8105, %v8396, %v8003
      %v8398 = vrot.slane %v8354, 6
      %v8399 = vsel %vm8108, %v8398, %v8397
      %v8400 = vrot.slane %v8007, 7
      %v8401 = vsel %vm8105, %v8400, %v8006
      %v8402 = vrot.slane %v8008, 6
      %v8403 = vsel %vm8108, %v8402, %v8401
      %v8404 = vrot.slane %v8009, 5
      %v8405 = vsel %vm8111, %v8404, %v8403
      %v8406 = vrot.slane %v8010, 4
      %v8407 = vsel %vm8114, %v8406, %v8405
      %v8408 = vrot.slane %v8011, 3
      %v8409 = vsel %vm8117, %v8408, %v8407
      %v8410 = vrot.slane %v8012, 2
      %v8411 = vsel %vm8120, %v8410, %v8409
      %v8412 = vrot.slane %v8013, 1
      %v8413 = vsel %vm8123, %v8412, %v8411
      %v8414 = vrot.slane %v8015, 7
      %v8415 = vsel %vm8105, %v8414, %v8014
      %v8416 = vrot.slane %v8355, 6
      %v8417 = vsel %vm8108, %v8416, %v8415
      %v8418 = vrot.slane %v8018, 7
      %v8419 = vsel %vm8105, %v8418, %v8017
      %v8420 = vrot.slane %v8019, 6
      %v8421 = vsel %vm8108, %v8420, %v8419
      %v8422 = vrot.slane %v8020, 5
      %v8423 = vsel %vm8111, %v8422, %v8421
      %v8424 = vrot.slane %v8021, 4
      %v8425 = vsel %vm8114, %v8424, %v8423
      %v8426 = vrot.slane %v8022, 3
      %v8427 = vsel %vm8117, %v8426, %v8425
      %v8428 = vrot.slane %v8023, 2
      %v8429 = vsel %vm8120, %v8428, %v8427
      %v8430 = vrot.slane %v8024, 1
      %v8431 = vsel %vm8123, %v8430, %v8429
      %v8432 = vrot.slane %v8026, 7
      %v8433 = vsel %vm8105, %v8432, %v8025
      %v8434 = vrot.slane %v8356, 6
      %v8435 = vsel %vm8108, %v8434, %v8433
      %v8436 = vrot.slane %v8029, 7
      %v8437 = vsel %vm8105, %v8436, %v8028
      %v8438 = vrot.slane %v8030, 6
      %v8439 = vsel %vm8108, %v8438, %v8437
      %v8440 = vrot.slane %v8031, 5
      %v8441 = vsel %vm8111, %v8440, %v8439
      %v8442 = vrot.slane %v8032, 4
      %v8443 = vsel %vm8114, %v8442, %v8441
      %v8444 = vrot.slane %v8033, 3
      %v8445 = vsel %vm8117, %v8444, %v8443
      %v8446 = vrot.slane %v8034, 2
      %v8447 = vsel %vm8120, %v8446, %v8445
      %v8448 = vrot.slane %v8035, 1
      %v8449 = vsel %vm8123, %v8448, %v8447
      %v8450 = vrot.slane %v8037, 7
      %v8451 = vsel %vm8105, %v8450, %v8036
      %v8452 = vrot.slane %v8357, 6
      %v8453 = vsel %vm8108, %v8452, %v8451
      %v8454 = vrot.slane %v8040, 7
      %v8455 = vsel %vm8105, %v8454, %v8039
      %v8456 = vrot.slane %v8041, 6
      %v8457 = vsel %vm8108, %v8456, %v8455
      %v8458 = vrot.slane %v8042, 5
      %v8459 = vsel %vm8111, %v8458, %v8457
      %v8460 = vrot.slane %v8043, 4
      %v8461 = vsel %vm8114, %v8460, %v8459
      %v8462 = vrot.slane %v8044, 3
      %v8463 = vsel %vm8117, %v8462, %v8461
      %v8464 = vrot.slane %v8045, 2
      %v8465 = vsel %vm8120, %v8464, %v8463
      %v8466 = vrot.slane %v8046, 1
      %v8467 = vsel %vm8123, %v8466, %v8465
      %v8468 = vrot.slane %v8048, 7
      %v8469 = vsel %vm8105, %v8468, %v8047
      %v8470 = vrot.slane %v8358, 6
      %v8471 = vsel %vm8108, %v8470, %v8469
      %v8472 = vrot.slane %v8051, 7
      %v8473 = vsel %vm8105, %v8472, %v8050
      %v8474 = vrot.slane %v8052, 6
      %v8475 = vsel %vm8108, %v8474, %v8473
      %v8476 = vrot.slane %v8053, 5
      %v8477 = vsel %vm8111, %v8476, %v8475
      %v8478 = vrot.slane %v8054, 4
      %v8479 = vsel %vm8114, %v8478, %v8477
      %v8480 = vrot.slane %v8055, 3
      %v8481 = vsel %vm8117, %v8480, %v8479
      %v8482 = vrot.slane %v8056, 2
      %v8483 = vsel %vm8120, %v8482, %v8481
      %v8484 = vrot.slane %v8057, 1
      %v8485 = vsel %vm8123, %v8484, %v8483
      %v8486 = vrot.slane %v8059, 7
      %v8487 = vsel %vm8105, %v8486, %v8058
      %v8488 = vrot.slane %v8359, 6
      %v8489 = vsel %vm8108, %v8488, %v8487
      %v8490 = vrot.slane %v8062, 7
      %v8491 = vsel %vm8105, %v8490, %v8061
      %v8492 = vrot.slane %v8063, 6
      %v8493 = vsel %vm8108, %v8492, %v8491
      %v8494 = vrot.slane %v8064, 5
      %v8495 = vsel %vm8111, %v8494, %v8493
      %v8496 = vrot.slane %v8065, 4
      %v8497 = vsel %vm8114, %v8496, %v8495
      %v8498 = vrot.slane %v8066, 3
      %v8499 = vsel %vm8117, %v8498, %v8497
      %v8500 = vrot.slane %v8067, 2
      %v8501 = vsel %vm8120, %v8500, %v8499
      %v8502 = vrot.slane %v8068, 1
      %v8503 = vsel %vm8123, %v8502, %v8501
      %v8504 = vrot.slane %v8070, 7
      %v8505 = vsel %vm8105, %v8504, %v8069
      %v8506 = vrot.slane %v8360, 6
      %v8507 = vsel %vm8108, %v8506, %v8505
      %v8508 = vrot.slane %v8073, 7
      %v8509 = vsel %vm8105, %v8508, %v8072
      %v8510 = vrot.slane %v8074, 6
      %v8511 = vsel %vm8108, %v8510, %v8509
      %v8512 = vrot.slane %v8075, 5
      %v8513 = vsel %vm8111, %v8512, %v8511
      %v8514 = vrot.slane %v8076, 4
      %v8515 = vsel %vm8114, %v8514, %v8513
      %v8516 = vrot.slane %v8077, 3
      %v8517 = vsel %vm8117, %v8516, %v8515
      %v8518 = vrot.slane %v8078, 2
      %v8519 = vsel %vm8120, %v8518, %v8517
      %v8520 = vrot.slane %v8079, 1
      %v8521 = vsel %vm8123, %v8520, %v8519
      %v8522 = vrot.slane %v8081, 7
      %v8523 = vsel %vm8105, %v8522, %v8080
      %v8524 = vrot.slane %v8361, 6
      %v8525 = vsel %vm8108, %v8524, %v8523
      %v8526 = vrot.slane %v8084, 7
      %v8527 = vsel %vm8105, %v8526, %v8083
      %v8528 = vrot.slane %v8085, 6
      %v8529 = vsel %vm8108, %v8528, %v8527
      %v8530 = vrot.slane %v8086, 5
      %v8531 = vsel %vm8111, %v8530, %v8529
      %v8532 = vrot.slane %v8087, 4
      %v8533 = vsel %vm8114, %v8532, %v8531
      %v8534 = vrot.slane %v8088, 3
      %v8535 = vsel %vm8117, %v8534, %v8533
      %v8536 = vrot.slane %v8089, 2
      %v8537 = vsel %vm8120, %v8536, %v8535
      %v8538 = vrot.slane %v8090, 1
      %v8539 = vsel %vm8123, %v8538, %v8537
      %v8540 = vrot.slane %v8092, 7
      %v8541 = vsel %vm8105, %v8540, %v8091
      %v8542 = vrot.slane %v8362, 6
      %v8543 = vsel %vm8108, %v8542, %v8541
      %v8544 = vrot.slane %v8095, 7
      %v8545 = vsel %vm8105, %v8544, %v8094
      %v8546 = vrot.slane %v8096, 6
      %v8547 = vsel %vm8108, %v8546, %v8545
      %v8548 = vrot.slane %v8097, 5
      %v8549 = vsel %vm8111, %v8548, %v8547
      %v8550 = vrot.slane %v8098, 4
      %v8551 = vsel %vm8114, %v8550, %v8549
      %v8552 = vrot.slane %v8099, 3
      %v8553 = vsel %vm8117, %v8552, %v8551
      %v8554 = vrot.slane %v8100, 2
      %v8555 = vsel %vm8120, %v8554, %v8553
      %v8556 = vrot.slane %v8101, 1
      %v8557 = vsel %vm8123, %v8556, %v8555
      %v8558 = vrot.slane %v8103, 7
      %v8559 = vsel %vm8105, %v8558, %v8102
      %v8560 = vrot.slane %v8363, 6
      %v8561 = vsel %vm8108, %v8560, %v8559
      %v8562 = vpack.c.b16 %v8381, %v8377
      %v8563 = vpack.c.b16 %v8399, %v8395
      %v8564 = vpack.c.b16 %v8417, %v8413
      %v8565 = vpack.c.b16 %v8435, %v8431
      %v8566 = vpack.c.b16 %v8453, %v8449
      %v8567 = vpack.c.b16 %v8471, %v8467
      %v8568 = vpack.c.b16 %v8489, %v8485
      %v8569 = vpack.c.b16 %v8507, %v8503
      %v8570 = vpack.c.b16 %v8525, %v8521
      %v8571 = vpack.c.b16 %v8543, %v8539
      %v8572 = vpack.c.b16 %v8561, %v8557
      %8573 = vrot.lane.b32.xlu0 %v8562, 32
      %v8574 = vpop.permute.xlu0 %8573
      %8575 = vrot.lane.b32.xlu0 %v8563, 32
      %v8576 = vpop.permute.xlu0 %8575
      %8577 = vrot.lane.b32.xlu0 %v8564, 32
      %v8578 = vpop.permute.xlu0 %8577
      %8579 = vrot.lane.b32.xlu0 %v8565, 32
      %v8580 = vpop.permute.xlu0 %8579
      %8581 = vrot.lane.b32.xlu0 %v8566, 32
      %v8582 = vpop.permute.xlu0 %8581
      %8583 = vrot.lane.b32.xlu0 %v8567, 32
      %v8584 = vpop.permute.xlu0 %8583
      %8585 = vrot.lane.b32.xlu0 %v8568, 32
      %v8586 = vpop.permute.xlu0 %8585
      %8587 = vrot.lane.b32.xlu0 %v8569, 32
      %v8588 = vpop.permute.xlu0 %8587
      %8589 = vrot.lane.b32.xlu0 %v8570, 32
      %v8590 = vpop.permute.xlu0 %8589
      %8591 = vrot.lane.b32.xlu0 %v8571, 32
      %v8592 = vpop.permute.xlu0 %8591
      %8593 = vrot.lane.b32.xlu0 %v8572, 32
      %v8594 = vpop.permute.xlu0 %8593
      %v8606 = vunpack.c.l.b16 %v7407
      %v8607 = vunpack.c.l.b16 %v7422
      %v8608 = vunpack.c.l.b16 %v7437
      %v8609 = vunpack.c.l.b16 %v7452
      %v8610 = vunpack.c.l.b16 %v7467
      %v8611 = vunpack.c.l.b16 %v7482
      %v8612 = vunpack.c.l.b16 %v7497
      %v8613 = vunpack.c.l.b16 %v7512
      %v8614 = vunpack.c.l.b16 %v7527
      %v8615 = vunpack.c.l.b16 %v7542
      %v8616 = vunpack.c.l.b16 %v7557
      %v8617 = vpack.c.b16 %v8606, %v8606
      %v8618 = vpack.c.b16 %v8607, %v8607
      %v8619 = vpack.c.b16 %v8608, %v8608
      %v8620 = vpack.c.b16 %v8609, %v8609
      %v8621 = vpack.c.b16 %v8610, %v8610
      %v8622 = vpack.c.b16 %v8611, %v8611
      %v8623 = vpack.c.b16 %v8612, %v8612
      %v8624 = vpack.c.b16 %v8613, %v8613
      %v8625 = vpack.c.b16 %v8614, %v8614
      %v8626 = vpack.c.b16 %v8615, %v8615
      %v8627 = vpack.c.b16 %v8616, %v8616
      %v8628 = vunpack.c.l.b16 %v8617
      %v8629 = vunpack.c.l.b16 %v8618
      %v8630 = vunpack.c.l.b16 %v8619
      %v8631 = vunpack.c.l.b16 %v8620
      %v8632 = vunpack.c.l.b16 %v8621
      %v8633 = vunpack.c.l.b16 %v8622
      %v8634 = vunpack.c.l.b16 %v8623
      %v8635 = vunpack.c.l.b16 %v8624
      %v8636 = vunpack.c.l.b16 %v8625
      %v8637 = vunpack.c.l.b16 %v8626
      %v8638 = vunpack.c.l.b16 %v8627
      %v8639 = vrot.slane %v7986, 7
      %v8640 = vsel %vm8105, %v8639, %v7985
      %v8641 = vrot.slane %v7987, 6
      %v8642 = vsel %vm8108, %v8641, %v8640
      %v8643 = vrot.slane %v7988, 5
      %v8644 = vsel %vm8111, %v8643, %v8642
      %v8645 = vrot.slane %v7989, 4
      %v8646 = vsel %vm8114, %v8645, %v8644
      %v8647 = vrot.slane %v7990, 3
      %v8648 = vsel %vm8117, %v8647, %v8646
      %v8649 = vrot.slane %v7991, 2
      %v8650 = vsel %vm8120, %v8649, %v8648
      %v8651 = vrot.slane %v7992, 1
      %v8652 = vsel %vm8123, %v8651, %v8650
      %v8653 = vrot.slane %v8353, 7
      %v8654 = vsel %vm8105, %v8653, %v7993
      %v8655 = vrot.slane %v8628, 6
      %v8656 = vsel %vm8108, %v8655, %v8654
      %v8657 = vrot.slane %v7997, 7
      %v8658 = vsel %vm8105, %v8657, %v7996
      %v8659 = vrot.slane %v7998, 6
      %v8660 = vsel %vm8108, %v8659, %v8658
      %v8661 = vrot.slane %v7999, 5
      %v8662 = vsel %vm8111, %v8661, %v8660
      %v8663 = vrot.slane %v8000, 4
      %v8664 = vsel %vm8114, %v8663, %v8662
      %v8665 = vrot.slane %v8001, 3
      %v8666 = vsel %vm8117, %v8665, %v8664
      %v8667 = vrot.slane %v8002, 2
      %v8668 = vsel %vm8120, %v8667, %v8666
      %v8669 = vrot.slane %v8003, 1
      %v8670 = vsel %vm8123, %v8669, %v8668
      %v8671 = vrot.slane %v8354, 7
      %v8672 = vsel %vm8105, %v8671, %v8004
      %v8673 = vrot.slane %v8629, 6
      %v8674 = vsel %vm8108, %v8673, %v8672
      %v8675 = vrot.slane %v8008, 7
      %v8676 = vsel %vm8105, %v8675, %v8007
      %v8677 = vrot.slane %v8009, 6
      %v8678 = vsel %vm8108, %v8677, %v8676
      %v8679 = vrot.slane %v8010, 5
      %v8680 = vsel %vm8111, %v8679, %v8678
      %v8681 = vrot.slane %v8011, 4
      %v8682 = vsel %vm8114, %v8681, %v8680
      %v8683 = vrot.slane %v8012, 3
      %v8684 = vsel %vm8117, %v8683, %v8682
      %v8685 = vrot.slane %v8013, 2
      %v8686 = vsel %vm8120, %v8685, %v8684
      %v8687 = vrot.slane %v8014, 1
      %v8688 = vsel %vm8123, %v8687, %v8686
      %v8689 = vrot.slane %v8355, 7
      %v8690 = vsel %vm8105, %v8689, %v8015
      %v8691 = vrot.slane %v8630, 6
      %v8692 = vsel %vm8108, %v8691, %v8690
      %v8693 = vrot.slane %v8019, 7
      %v8694 = vsel %vm8105, %v8693, %v8018
      %v8695 = vrot.slane %v8020, 6
      %v8696 = vsel %vm8108, %v8695, %v8694
      %v8697 = vrot.slane %v8021, 5
      %v8698 = vsel %vm8111, %v8697, %v8696
      %v8699 = vrot.slane %v8022, 4
      %v8700 = vsel %vm8114, %v8699, %v8698
      %v8701 = vrot.slane %v8023, 3
      %v8702 = vsel %vm8117, %v8701, %v8700
      %v8703 = vrot.slane %v8024, 2
      %v8704 = vsel %vm8120, %v8703, %v8702
      %v8705 = vrot.slane %v8025, 1
      %v8706 = vsel %vm8123, %v8705, %v8704
      %v8707 = vrot.slane %v8356, 7
      %v8708 = vsel %vm8105, %v8707, %v8026
      %v8709 = vrot.slane %v8631, 6
      %v8710 = vsel %vm8108, %v8709, %v8708
      %v8711 = vrot.slane %v8030, 7
      %v8712 = vsel %vm8105, %v8711, %v8029
      %v8713 = vrot.slane %v8031, 6
      %v8714 = vsel %vm8108, %v8713, %v8712
      %v8715 = vrot.slane %v8032, 5
      %v8716 = vsel %vm8111, %v8715, %v8714
      %v8717 = vrot.slane %v8033, 4
      %v8718 = vsel %vm8114, %v8717, %v8716
      %v8719 = vrot.slane %v8034, 3
      %v8720 = vsel %vm8117, %v8719, %v8718
      %v8721 = vrot.slane %v8035, 2
      %v8722 = vsel %vm8120, %v8721, %v8720
      %v8723 = vrot.slane %v8036, 1
      %v8724 = vsel %vm8123, %v8723, %v8722
      %v8725 = vrot.slane %v8357, 7
      %v8726 = vsel %vm8105, %v8725, %v8037
      %v8727 = vrot.slane %v8632, 6
      %v8728 = vsel %vm8108, %v8727, %v8726
      %v8729 = vrot.slane %v8041, 7
      %v8730 = vsel %vm8105, %v8729, %v8040
      %v8731 = vrot.slane %v8042, 6
      %v8732 = vsel %vm8108, %v8731, %v8730
      %v8733 = vrot.slane %v8043, 5
      %v8734 = vsel %vm8111, %v8733, %v8732
      %v8735 = vrot.slane %v8044, 4
      %v8736 = vsel %vm8114, %v8735, %v8734
      %v8737 = vrot.slane %v8045, 3
      %v8738 = vsel %vm8117, %v8737, %v8736
      %v8739 = vrot.slane %v8046, 2
      %v8740 = vsel %vm8120, %v8739, %v8738
      %v8741 = vrot.slane %v8047, 1
      %v8742 = vsel %vm8123, %v8741, %v8740
      %v8743 = vrot.slane %v8358, 7
      %v8744 = vsel %vm8105, %v8743, %v8048
      %v8745 = vrot.slane %v8633, 6
      %v8746 = vsel %vm8108, %v8745, %v8744
      %v8747 = vrot.slane %v8052, 7
      %v8748 = vsel %vm8105, %v8747, %v8051
      %v8749 = vrot.slane %v8053, 6
      %v8750 = vsel %vm8108, %v8749, %v8748
      %v8751 = vrot.slane %v8054, 5
      %v8752 = vsel %vm8111, %v8751, %v8750
      %v8753 = vrot.slane %v8055, 4
      %v8754 = vsel %vm8114, %v8753, %v8752
      %v8755 = vrot.slane %v8056, 3
      %v8756 = vsel %vm8117, %v8755, %v8754
      %v8757 = vrot.slane %v8057, 2
      %v8758 = vsel %vm8120, %v8757, %v8756
      %v8759 = vrot.slane %v8058, 1
      %v8760 = vsel %vm8123, %v8759, %v8758
      %v8761 = vrot.slane %v8359, 7
      %v8762 = vsel %vm8105, %v8761, %v8059
      %v8763 = vrot.slane %v8634, 6
      %v8764 = vsel %vm8108, %v8763, %v8762
      %v8765 = vrot.slane %v8063, 7
      %v8766 = vsel %vm8105, %v8765, %v8062
      %v8767 = vrot.slane %v8064, 6
      %v8768 = vsel %vm8108, %v8767, %v8766
      %v8769 = vrot.slane %v8065, 5
      %v8770 = vsel %vm8111, %v8769, %v8768
      %v8771 = vrot.slane %v8066, 4
      %v8772 = vsel %vm8114, %v8771, %v8770
      %v8773 = vrot.slane %v8067, 3
      %v8774 = vsel %vm8117, %v8773, %v8772
      %v8775 = vrot.slane %v8068, 2
      %v8776 = vsel %vm8120, %v8775, %v8774
      %v8777 = vrot.slane %v8069, 1
      %v8778 = vsel %vm8123, %v8777, %v8776
      %v8779 = vrot.slane %v8360, 7
      %v8780 = vsel %vm8105, %v8779, %v8070
      %v8781 = vrot.slane %v8635, 6
      %v8782 = vsel %vm8108, %v8781, %v8780
      %v8783 = vrot.slane %v8074, 7
      %v8784 = vsel %vm8105, %v8783, %v8073
      %v8785 = vrot.slane %v8075, 6
      %v8786 = vsel %vm8108, %v8785, %v8784
      %v8787 = vrot.slane %v8076, 5
      %v8788 = vsel %vm8111, %v8787, %v8786
      %v8789 = vrot.slane %v8077, 4
      %v8790 = vsel %vm8114, %v8789, %v8788
      %v8791 = vrot.slane %v8078, 3
      %v8792 = vsel %vm8117, %v8791, %v8790
      %v8793 = vrot.slane %v8079, 2
      %v8794 = vsel %vm8120, %v8793, %v8792
      %v8795 = vrot.slane %v8080, 1
      %v8796 = vsel %vm8123, %v8795, %v8794
      %v8797 = vrot.slane %v8361, 7
      %v8798 = vsel %vm8105, %v8797, %v8081
      %v8799 = vrot.slane %v8636, 6
      %v8800 = vsel %vm8108, %v8799, %v8798
      %v8801 = vrot.slane %v8085, 7
      %v8802 = vsel %vm8105, %v8801, %v8084
      %v8803 = vrot.slane %v8086, 6
      %v8804 = vsel %vm8108, %v8803, %v8802
      %v8805 = vrot.slane %v8087, 5
      %v8806 = vsel %vm8111, %v8805, %v8804
      %v8807 = vrot.slane %v8088, 4
      %v8808 = vsel %vm8114, %v8807, %v8806
      %v8809 = vrot.slane %v8089, 3
      %v8810 = vsel %vm8117, %v8809, %v8808
      %v8811 = vrot.slane %v8090, 2
      %v8812 = vsel %vm8120, %v8811, %v8810
      %v8813 = vrot.slane %v8091, 1
      %v8814 = vsel %vm8123, %v8813, %v8812
      %v8815 = vrot.slane %v8362, 7
      %v8816 = vsel %vm8105, %v8815, %v8092
      %v8817 = vrot.slane %v8637, 6
      %v8818 = vsel %vm8108, %v8817, %v8816
      %v8819 = vrot.slane %v8096, 7
      %v8820 = vsel %vm8105, %v8819, %v8095
      %v8821 = vrot.slane %v8097, 6
      %v8822 = vsel %vm8108, %v8821, %v8820
      %v8823 = vrot.slane %v8098, 5
      %v8824 = vsel %vm8111, %v8823, %v8822
      %v8825 = vrot.slane %v8099, 4
      %v8826 = vsel %vm8114, %v8825, %v8824
      %v8827 = vrot.slane %v8100, 3
      %v8828 = vsel %vm8117, %v8827, %v8826
      %v8829 = vrot.slane %v8101, 2
      %v8830 = vsel %vm8120, %v8829, %v8828
      %v8831 = vrot.slane %v8102, 1
      %v8832 = vsel %vm8123, %v8831, %v8830
      %v8833 = vrot.slane %v8363, 7
      %v8834 = vsel %vm8105, %v8833, %v8103
      %v8835 = vrot.slane %v8638, 6
      %v8836 = vsel %vm8108, %v8835, %v8834
      %v8837 = vpack.c.b16 %v8656, %v8652
      %v8838 = vpack.c.b16 %v8674, %v8670
      %v8839 = vpack.c.b16 %v8692, %v8688
      %v8840 = vpack.c.b16 %v8710, %v8706
      %v8841 = vpack.c.b16 %v8728, %v8724
      %v8842 = vpack.c.b16 %v8746, %v8742
      %v8843 = vpack.c.b16 %v8764, %v8760
      %v8844 = vpack.c.b16 %v8782, %v8778
      %v8845 = vpack.c.b16 %v8800, %v8796
      %v8846 = vpack.c.b16 %v8818, %v8814
      %v8847 = vpack.c.b16 %v8836, %v8832
      %8848 = vrot.lane.b32.xlu0 %v8837, 64
      %v8849 = vpop.permute.xlu0 %8848
      %8850 = vrot.lane.b32.xlu0 %v8838, 64
      %v8851 = vpop.permute.xlu0 %8850
      %8852 = vrot.lane.b32.xlu0 %v8839, 64
      %v8853 = vpop.permute.xlu0 %8852
      %8854 = vrot.lane.b32.xlu0 %v8840, 64
      %v8855 = vpop.permute.xlu0 %8854
      %8856 = vrot.lane.b32.xlu0 %v8841, 64
      %v8857 = vpop.permute.xlu0 %8856
      %8858 = vrot.lane.b32.xlu0 %v8842, 64
      %v8859 = vpop.permute.xlu0 %8858
      %8860 = vrot.lane.b32.xlu0 %v8843, 64
      %v8861 = vpop.permute.xlu0 %8860
      %8862 = vrot.lane.b32.xlu0 %v8844, 64
      %v8863 = vpop.permute.xlu0 %8862
      %8864 = vrot.lane.b32.xlu0 %v8845, 64
      %v8865 = vpop.permute.xlu0 %8864
      %8866 = vrot.lane.b32.xlu0 %v8846, 64
      %v8867 = vpop.permute.xlu0 %8866
      %8868 = vrot.lane.b32.xlu0 %v8847, 64
      %v8869 = vpop.permute.xlu0 %8868
      %v8881 = vunpack.c.l.b16 %v7408
      %v8882 = vunpack.c.l.b16 %v7423
      %v8883 = vunpack.c.l.b16 %v7438
      %v8884 = vunpack.c.l.b16 %v7453
      %v8885 = vunpack.c.l.b16 %v7468
      %v8886 = vunpack.c.l.b16 %v7483
      %v8887 = vunpack.c.l.b16 %v7498
      %v8888 = vunpack.c.l.b16 %v7513
      %v8889 = vunpack.c.l.b16 %v7528
      %v8890 = vunpack.c.l.b16 %v7543
      %v8891 = vunpack.c.l.b16 %v7558
      %v8892 = vpack.c.b16 %v8881, %v8881
      %v8893 = vpack.c.b16 %v8882, %v8882
      %v8894 = vpack.c.b16 %v8883, %v8883
      %v8895 = vpack.c.b16 %v8884, %v8884
      %v8896 = vpack.c.b16 %v8885, %v8885
      %v8897 = vpack.c.b16 %v8886, %v8886
      %v8898 = vpack.c.b16 %v8887, %v8887
      %v8899 = vpack.c.b16 %v8888, %v8888
      %v8900 = vpack.c.b16 %v8889, %v8889
      %v8901 = vpack.c.b16 %v8890, %v8890
      %v8902 = vpack.c.b16 %v8891, %v8891
      %v8903 = vunpack.c.l.b16 %v8892
      %v8904 = vunpack.c.l.b16 %v8893
      %v8905 = vunpack.c.l.b16 %v8894
      %v8906 = vunpack.c.l.b16 %v8895
      %v8907 = vunpack.c.l.b16 %v8896
      %v8908 = vunpack.c.l.b16 %v8897
      %v8909 = vunpack.c.l.b16 %v8898
      %v8910 = vunpack.c.l.b16 %v8899
      %v8911 = vunpack.c.l.b16 %v8900
      %v8912 = vunpack.c.l.b16 %v8901
      %v8913 = vunpack.c.l.b16 %v8902
      %v8914 = vrot.slane %v7987, 7
      %v8915 = vsel %vm8105, %v8914, %v7986
      %v8916 = vrot.slane %v7988, 6
      %v8917 = vsel %vm8108, %v8916, %v8915
      %v8918 = vrot.slane %v7989, 5
      %v8919 = vsel %vm8111, %v8918, %v8917
      %v8920 = vrot.slane %v7990, 4
      %v8921 = vsel %vm8114, %v8920, %v8919
      %v8922 = vrot.slane %v7991, 3
      %v8923 = vsel %vm8117, %v8922, %v8921
      %v8924 = vrot.slane %v7992, 2
      %v8925 = vsel %vm8120, %v8924, %v8923
      %v8926 = vrot.slane %v7993, 1
      %v8927 = vsel %vm8123, %v8926, %v8925
      %v8928 = vrot.slane %v8628, 7
      %v8929 = vsel %vm8105, %v8928, %v8353
      %v8930 = vrot.slane %v8903, 6
      %v8931 = vsel %vm8108, %v8930, %v8929
      %v8932 = vrot.slane %v7998, 7
      %v8933 = vsel %vm8105, %v8932, %v7997
      %v8934 = vrot.slane %v7999, 6
      %v8935 = vsel %vm8108, %v8934, %v8933
      %v8936 = vrot.slane %v8000, 5
      %v8937 = vsel %vm8111, %v8936, %v8935
      %v8938 = vrot.slane %v8001, 4
      %v8939 = vsel %vm8114, %v8938, %v8937
      %v8940 = vrot.slane %v8002, 3
      %v8941 = vsel %vm8117, %v8940, %v8939
      %v8942 = vrot.slane %v8003, 2
      %v8943 = vsel %vm8120, %v8942, %v8941
      %v8944 = vrot.slane %v8004, 1
      %v8945 = vsel %vm8123, %v8944, %v8943
      %v8946 = vrot.slane %v8629, 7
      %v8947 = vsel %vm8105, %v8946, %v8354
      %v8948 = vrot.slane %v8904, 6
      %v8949 = vsel %vm8108, %v8948, %v8947
      %v8950 = vrot.slane %v8009, 7
      %v8951 = vsel %vm8105, %v8950, %v8008
      %v8952 = vrot.slane %v8010, 6
      %v8953 = vsel %vm8108, %v8952, %v8951
      %v8954 = vrot.slane %v8011, 5
      %v8955 = vsel %vm8111, %v8954, %v8953
      %v8956 = vrot.slane %v8012, 4
      %v8957 = vsel %vm8114, %v8956, %v8955
      %v8958 = vrot.slane %v8013, 3
      %v8959 = vsel %vm8117, %v8958, %v8957
      %v8960 = vrot.slane %v8014, 2
      %v8961 = vsel %vm8120, %v8960, %v8959
      %v8962 = vrot.slane %v8015, 1
      %v8963 = vsel %vm8123, %v8962, %v8961
      %v8964 = vrot.slane %v8630, 7
      %v8965 = vsel %vm8105, %v8964, %v8355
      %v8966 = vrot.slane %v8905, 6
      %v8967 = vsel %vm8108, %v8966, %v8965
      %v8968 = vrot.slane %v8020, 7
      %v8969 = vsel %vm8105, %v8968, %v8019
      %v8970 = vrot.slane %v8021, 6
      %v8971 = vsel %vm8108, %v8970, %v8969
      %v8972 = vrot.slane %v8022, 5
      %v8973 = vsel %vm8111, %v8972, %v8971
      %v8974 = vrot.slane %v8023, 4
      %v8975 = vsel %vm8114, %v8974, %v8973
      %v8976 = vrot.slane %v8024, 3
      %v8977 = vsel %vm8117, %v8976, %v8975
      %v8978 = vrot.slane %v8025, 2
      %v8979 = vsel %vm8120, %v8978, %v8977
      %v8980 = vrot.slane %v8026, 1
      %v8981 = vsel %vm8123, %v8980, %v8979
      %v8982 = vrot.slane %v8631, 7
      %v8983 = vsel %vm8105, %v8982, %v8356
      %v8984 = vrot.slane %v8906, 6
      %v8985 = vsel %vm8108, %v8984, %v8983
      %v8986 = vrot.slane %v8031, 7
      %v8987 = vsel %vm8105, %v8986, %v8030
      %v8988 = vrot.slane %v8032, 6
      %v8989 = vsel %vm8108, %v8988, %v8987
      %v8990 = vrot.slane %v8033, 5
      %v8991 = vsel %vm8111, %v8990, %v8989
      %v8992 = vrot.slane %v8034, 4
      %v8993 = vsel %vm8114, %v8992, %v8991
      %v8994 = vrot.slane %v8035, 3
      %v8995 = vsel %vm8117, %v8994, %v8993
      %v8996 = vrot.slane %v8036, 2
      %v8997 = vsel %vm8120, %v8996, %v8995
      %v8998 = vrot.slane %v8037, 1
      %v8999 = vsel %vm8123, %v8998, %v8997
      %v9000 = vrot.slane %v8632, 7
      %v9001 = vsel %vm8105, %v9000, %v8357
      %v9002 = vrot.slane %v8907, 6
      %v9003 = vsel %vm8108, %v9002, %v9001
      %v9004 = vrot.slane %v8042, 7
      %v9005 = vsel %vm8105, %v9004, %v8041
      %v9006 = vrot.slane %v8043, 6
      %v9007 = vsel %vm8108, %v9006, %v9005
      %v9008 = vrot.slane %v8044, 5
      %v9009 = vsel %vm8111, %v9008, %v9007
      %v9010 = vrot.slane %v8045, 4
      %v9011 = vsel %vm8114, %v9010, %v9009
      %v9012 = vrot.slane %v8046, 3
      %v9013 = vsel %vm8117, %v9012, %v9011
      %v9014 = vrot.slane %v8047, 2
      %v9015 = vsel %vm8120, %v9014, %v9013
      %v9016 = vrot.slane %v8048, 1
      %v9017 = vsel %vm8123, %v9016, %v9015
      %v9018 = vrot.slane %v8633, 7
      %v9019 = vsel %vm8105, %v9018, %v8358
      %v9020 = vrot.slane %v8908, 6
      %v9021 = vsel %vm8108, %v9020, %v9019
      %v9022 = vrot.slane %v8053, 7
      %v9023 = vsel %vm8105, %v9022, %v8052
      %v9024 = vrot.slane %v8054, 6
      %v9025 = vsel %vm8108, %v9024, %v9023
      %v9026 = vrot.slane %v8055, 5
      %v9027 = vsel %vm8111, %v9026, %v9025
      %v9028 = vrot.slane %v8056, 4
      %v9029 = vsel %vm8114, %v9028, %v9027
      %v9030 = vrot.slane %v8057, 3
      %v9031 = vsel %vm8117, %v9030, %v9029
      %v9032 = vrot.slane %v8058, 2
      %v9033 = vsel %vm8120, %v9032, %v9031
      %v9034 = vrot.slane %v8059, 1
      %v9035 = vsel %vm8123, %v9034, %v9033
      %v9036 = vrot.slane %v8634, 7
      %v9037 = vsel %vm8105, %v9036, %v8359
      %v9038 = vrot.slane %v8909, 6
      %v9039 = vsel %vm8108, %v9038, %v9037
      %v9040 = vrot.slane %v8064, 7
      %v9041 = vsel %vm8105, %v9040, %v8063
      %v9042 = vrot.slane %v8065, 6
      %v9043 = vsel %vm8108, %v9042, %v9041
      %v9044 = vrot.slane %v8066, 5
      %v9045 = vsel %vm8111, %v9044, %v9043
      %v9046 = vrot.slane %v8067, 4
      %v9047 = vsel %vm8114, %v9046, %v9045
      %v9048 = vrot.slane %v8068, 3
      %v9049 = vsel %vm8117, %v9048, %v9047
      %v9050 = vrot.slane %v8069, 2
      %v9051 = vsel %vm8120, %v9050, %v9049
      %v9052 = vrot.slane %v8070, 1
      %v9053 = vsel %vm8123, %v9052, %v9051
      %v9054 = vrot.slane %v8635, 7
      %v9055 = vsel %vm8105, %v9054, %v8360
      %v9056 = vrot.slane %v8910, 6
      %v9057 = vsel %vm8108, %v9056, %v9055
      %v9058 = vrot.slane %v8075, 7
      %v9059 = vsel %vm8105, %v9058, %v8074
      %v9060 = vrot.slane %v8076, 6
      %v9061 = vsel %vm8108, %v9060, %v9059
      %v9062 = vrot.slane %v8077, 5
      %v9063 = vsel %vm8111, %v9062, %v9061
      %v9064 = vrot.slane %v8078, 4
      %v9065 = vsel %vm8114, %v9064, %v9063
      %v9066 = vrot.slane %v8079, 3
      %v9067 = vsel %vm8117, %v9066, %v9065
      %v9068 = vrot.slane %v8080, 2
      %v9069 = vsel %vm8120, %v9068, %v9067
      %v9070 = vrot.slane %v8081, 1
      %v9071 = vsel %vm8123, %v9070, %v9069
      %v9072 = vrot.slane %v8636, 7
      %v9073 = vsel %vm8105, %v9072, %v8361
      %v9074 = vrot.slane %v8911, 6
      %v9075 = vsel %vm8108, %v9074, %v9073
      %v9076 = vrot.slane %v8086, 7
      %v9077 = vsel %vm8105, %v9076, %v8085
      %v9078 = vrot.slane %v8087, 6
      %v9079 = vsel %vm8108, %v9078, %v9077
      %v9080 = vrot.slane %v8088, 5
      %v9081 = vsel %vm8111, %v9080, %v9079
      %v9082 = vrot.slane %v8089, 4
      %v9083 = vsel %vm8114, %v9082, %v9081
      %v9084 = vrot.slane %v8090, 3
      %v9085 = vsel %vm8117, %v9084, %v9083
      %v9086 = vrot.slane %v8091, 2
      %v9087 = vsel %vm8120, %v9086, %v9085
      %v9088 = vrot.slane %v8092, 1
      %v9089 = vsel %vm8123, %v9088, %v9087
      %v9090 = vrot.slane %v8637, 7
      %v9091 = vsel %vm8105, %v9090, %v8362
      %v9092 = vrot.slane %v8912, 6
      %v9093 = vsel %vm8108, %v9092, %v9091
      %v9094 = vrot.slane %v8097, 7
      %v9095 = vsel %vm8105, %v9094, %v8096
      %v9096 = vrot.slane %v8098, 6
      %v9097 = vsel %vm8108, %v9096, %v9095
      %v9098 = vrot.slane %v8099, 5
      %v9099 = vsel %vm8111, %v9098, %v9097
      %v9100 = vrot.slane %v8100, 4
      %v9101 = vsel %vm8114, %v9100, %v9099
      %v9102 = vrot.slane %v8101, 3
      %v9103 = vsel %vm8117, %v9102, %v9101
      %v9104 = vrot.slane %v8102, 2
      %v9105 = vsel %vm8120, %v9104, %v9103
      %v9106 = vrot.slane %v8103, 1
      %v9107 = vsel %vm8123, %v9106, %v9105
      %v9108 = vrot.slane %v8638, 7
      %v9109 = vsel %vm8105, %v9108, %v8363
      %v9110 = vrot.slane %v8913, 6
      %v9111 = vsel %vm8108, %v9110, %v9109
      %v9112 = vpack.c.b16 %v8931, %v8927
      %v9113 = vpack.c.b16 %v8949, %v8945
      %v9114 = vpack.c.b16 %v8967, %v8963
      %v9115 = vpack.c.b16 %v8985, %v8981
      %v9116 = vpack.c.b16 %v9003, %v8999
      %v9117 = vpack.c.b16 %v9021, %v9017
      %v9118 = vpack.c.b16 %v9039, %v9035
      %v9119 = vpack.c.b16 %v9057, %v9053
      %v9120 = vpack.c.b16 %v9075, %v9071
      %v9121 = vpack.c.b16 %v9093, %v9089
      %v9122 = vpack.c.b16 %v9111, %v9107
      %9123 = vrot.lane.b32.xlu0 %v9112, 96
      %v9124 = vpop.permute.xlu0 %9123
      %9125 = vrot.lane.b32.xlu0 %v9113, 96
      %v9126 = vpop.permute.xlu0 %9125
      %9127 = vrot.lane.b32.xlu0 %v9114, 96
      %v9128 = vpop.permute.xlu0 %9127
      %9129 = vrot.lane.b32.xlu0 %v9115, 96
      %v9130 = vpop.permute.xlu0 %9129
      %9131 = vrot.lane.b32.xlu0 %v9116, 96
      %v9132 = vpop.permute.xlu0 %9131
      %9133 = vrot.lane.b32.xlu0 %v9117, 96
      %v9134 = vpop.permute.xlu0 %9133
      %9135 = vrot.lane.b32.xlu0 %v9118, 96
      %v9136 = vpop.permute.xlu0 %9135
      %9137 = vrot.lane.b32.xlu0 %v9119, 96
      %v9138 = vpop.permute.xlu0 %9137
      %9139 = vrot.lane.b32.xlu0 %v9120, 96
      %v9140 = vpop.permute.xlu0 %9139
      %9141 = vrot.lane.b32.xlu0 %v9121, 96
      %v9142 = vpop.permute.xlu0 %9141
      %9143 = vrot.lane.b32.xlu0 %v9122, 96
      %v9144 = vpop.permute.xlu0 %9143
      %v9156 = vunpack.c.l.b16 %v7409
      %v9157 = vunpack.c.l.b16 %v7424
      %v9158 = vunpack.c.l.b16 %v7439
      %v9159 = vunpack.c.l.b16 %v7454
      %v9160 = vunpack.c.l.b16 %v7469
      %v9161 = vunpack.c.l.b16 %v7484
      %v9162 = vunpack.c.l.b16 %v7499
      %v9163 = vunpack.c.l.b16 %v7514
      %v9164 = vunpack.c.l.b16 %v7529
      %v9165 = vunpack.c.l.b16 %v7544
      %v9166 = vunpack.c.l.b16 %v7559
      %v9167 = vpack.c.b16 %v9156, %v9156
      %v9168 = vpack.c.b16 %v9157, %v9157
      %v9169 = vpack.c.b16 %v9158, %v9158
      %v9170 = vpack.c.b16 %v9159, %v9159
      %v9171 = vpack.c.b16 %v9160, %v9160
      %v9172 = vpack.c.b16 %v9161, %v9161
      %v9173 = vpack.c.b16 %v9162, %v9162
      %v9174 = vpack.c.b16 %v9163, %v9163
      %v9175 = vpack.c.b16 %v9164, %v9164
      %v9176 = vpack.c.b16 %v9165, %v9165
      %v9177 = vpack.c.b16 %v9166, %v9166
      %v9178 = vunpack.c.l.b16 %v9167
      %v9179 = vunpack.c.l.b16 %v9168
      %v9180 = vunpack.c.l.b16 %v9169
      %v9181 = vunpack.c.l.b16 %v9170
      %v9182 = vunpack.c.l.b16 %v9171
      %v9183 = vunpack.c.l.b16 %v9172
      %v9184 = vunpack.c.l.b16 %v9173
      %v9185 = vunpack.c.l.b16 %v9174
      %v9186 = vunpack.c.l.b16 %v9175
      %v9187 = vunpack.c.l.b16 %v9176
      %v9188 = vunpack.c.l.b16 %v9177
      %v9189 = vrot.slane %v7988, 7
      %v9190 = vsel %vm8105, %v9189, %v7987
      %v9191 = vrot.slane %v7989, 6
      %v9192 = vsel %vm8108, %v9191, %v9190
      %v9193 = vrot.slane %v7990, 5
      %v9194 = vsel %vm8111, %v9193, %v9192
      %v9195 = vrot.slane %v7991, 4
      %v9196 = vsel %vm8114, %v9195, %v9194
      %v9197 = vrot.slane %v7992, 3
      %v9198 = vsel %vm8117, %v9197, %v9196
      %v9199 = vrot.slane %v7993, 2
      %v9200 = vsel %vm8120, %v9199, %v9198
      %v9201 = vrot.slane %v8353, 1
      %v9202 = vsel %vm8123, %v9201, %v9200
      %v9203 = vrot.slane %v8903, 7
      %v9204 = vsel %vm8105, %v9203, %v8628
      %v9205 = vrot.slane %v9178, 6
      %v9206 = vsel %vm8108, %v9205, %v9204
      %v9207 = vrot.slane %v7999, 7
      %v9208 = vsel %vm8105, %v9207, %v7998
      %v9209 = vrot.slane %v8000, 6
      %v9210 = vsel %vm8108, %v9209, %v9208
      %v9211 = vrot.slane %v8001, 5
      %v9212 = vsel %vm8111, %v9211, %v9210
      %v9213 = vrot.slane %v8002, 4
      %v9214 = vsel %vm8114, %v9213, %v9212
      %v9215 = vrot.slane %v8003, 3
      %v9216 = vsel %vm8117, %v9215, %v9214
      %v9217 = vrot.slane %v8004, 2
      %v9218 = vsel %vm8120, %v9217, %v9216
      %v9219 = vrot.slane %v8354, 1
      %v9220 = vsel %vm8123, %v9219, %v9218
      %v9221 = vrot.slane %v8904, 7
      %v9222 = vsel %vm8105, %v9221, %v8629
      %v9223 = vrot.slane %v9179, 6
      %v9224 = vsel %vm8108, %v9223, %v9222
      %v9225 = vrot.slane %v8010, 7
      %v9226 = vsel %vm8105, %v9225, %v8009
      %v9227 = vrot.slane %v8011, 6
      %v9228 = vsel %vm8108, %v9227, %v9226
      %v9229 = vrot.slane %v8012, 5
      %v9230 = vsel %vm8111, %v9229, %v9228
      %v9231 = vrot.slane %v8013, 4
      %v9232 = vsel %vm8114, %v9231, %v9230
      %v9233 = vrot.slane %v8014, 3
      %v9234 = vsel %vm8117, %v9233, %v9232
      %v9235 = vrot.slane %v8015, 2
      %v9236 = vsel %vm8120, %v9235, %v9234
      %v9237 = vrot.slane %v8355, 1
      %v9238 = vsel %vm8123, %v9237, %v9236
      %v9239 = vrot.slane %v8905, 7
      %v9240 = vsel %vm8105, %v9239, %v8630
      %v9241 = vrot.slane %v9180, 6
      %v9242 = vsel %vm8108, %v9241, %v9240
      %v9243 = vrot.slane %v8021, 7
      %v9244 = vsel %vm8105, %v9243, %v8020
      %v9245 = vrot.slane %v8022, 6
      %v9246 = vsel %vm8108, %v9245, %v9244
      %v9247 = vrot.slane %v8023, 5
      %v9248 = vsel %vm8111, %v9247, %v9246
      %v9249 = vrot.slane %v8024, 4
      %v9250 = vsel %vm8114, %v9249, %v9248
      %v9251 = vrot.slane %v8025, 3
      %v9252 = vsel %vm8117, %v9251, %v9250
      %v9253 = vrot.slane %v8026, 2
      %v9254 = vsel %vm8120, %v9253, %v9252
      %v9255 = vrot.slane %v8356, 1
      %v9256 = vsel %vm8123, %v9255, %v9254
      %v9257 = vrot.slane %v8906, 7
      %v9258 = vsel %vm8105, %v9257, %v8631
      %v9259 = vrot.slane %v9181, 6
      %v9260 = vsel %vm8108, %v9259, %v9258
      %v9261 = vrot.slane %v8032, 7
      %v9262 = vsel %vm8105, %v9261, %v8031
      %v9263 = vrot.slane %v8033, 6
      %v9264 = vsel %vm8108, %v9263, %v9262
      %v9265 = vrot.slane %v8034, 5
      %v9266 = vsel %vm8111, %v9265, %v9264
      %v9267 = vrot.slane %v8035, 4
      %v9268 = vsel %vm8114, %v9267, %v9266
      %v9269 = vrot.slane %v8036, 3
      %v9270 = vsel %vm8117, %v9269, %v9268
      %v9271 = vrot.slane %v8037, 2
      %v9272 = vsel %vm8120, %v9271, %v9270
      %v9273 = vrot.slane %v8357, 1
      %v9274 = vsel %vm8123, %v9273, %v9272
      %v9275 = vrot.slane %v8907, 7
      %v9276 = vsel %vm8105, %v9275, %v8632
      %v9277 = vrot.slane %v9182, 6
      %v9278 = vsel %vm8108, %v9277, %v9276
      %v9279 = vrot.slane %v8043, 7
      %v9280 = vsel %vm8105, %v9279, %v8042
      %v9281 = vrot.slane %v8044, 6
      %v9282 = vsel %vm8108, %v9281, %v9280
      %v9283 = vrot.slane %v8045, 5
      %v9284 = vsel %vm8111, %v9283, %v9282
      %v9285 = vrot.slane %v8046, 4
      %v9286 = vsel %vm8114, %v9285, %v9284
      %v9287 = vrot.slane %v8047, 3
      %v9288 = vsel %vm8117, %v9287, %v9286
      %v9289 = vrot.slane %v8048, 2
      %v9290 = vsel %vm8120, %v9289, %v9288
      %v9291 = vrot.slane %v8358, 1
      %v9292 = vsel %vm8123, %v9291, %v9290
      %v9293 = vrot.slane %v8908, 7
      %v9294 = vsel %vm8105, %v9293, %v8633
      %v9295 = vrot.slane %v9183, 6
      %v9296 = vsel %vm8108, %v9295, %v9294
      %v9297 = vrot.slane %v8054, 7
      %v9298 = vsel %vm8105, %v9297, %v8053
      %v9299 = vrot.slane %v8055, 6
      %v9300 = vsel %vm8108, %v9299, %v9298
      %v9301 = vrot.slane %v8056, 5
      %v9302 = vsel %vm8111, %v9301, %v9300
      %v9303 = vrot.slane %v8057, 4
      %v9304 = vsel %vm8114, %v9303, %v9302
      %v9305 = vrot.slane %v8058, 3
      %v9306 = vsel %vm8117, %v9305, %v9304
      %v9307 = vrot.slane %v8059, 2
      %v9308 = vsel %vm8120, %v9307, %v9306
      %v9309 = vrot.slane %v8359, 1
      %v9310 = vsel %vm8123, %v9309, %v9308
      %v9311 = vrot.slane %v8909, 7
      %v9312 = vsel %vm8105, %v9311, %v8634
      %v9313 = vrot.slane %v9184, 6
      %v9314 = vsel %vm8108, %v9313, %v9312
      %v9315 = vrot.slane %v8065, 7
      %v9316 = vsel %vm8105, %v9315, %v8064
      %v9317 = vrot.slane %v8066, 6
      %v9318 = vsel %vm8108, %v9317, %v9316
      %v9319 = vrot.slane %v8067, 5
      %v9320 = vsel %vm8111, %v9319, %v9318
      %v9321 = vrot.slane %v8068, 4
      %v9322 = vsel %vm8114, %v9321, %v9320
      %v9323 = vrot.slane %v8069, 3
      %v9324 = vsel %vm8117, %v9323, %v9322
      %v9325 = vrot.slane %v8070, 2
      %v9326 = vsel %vm8120, %v9325, %v9324
      %v9327 = vrot.slane %v8360, 1
      %v9328 = vsel %vm8123, %v9327, %v9326
      %v9329 = vrot.slane %v8910, 7
      %v9330 = vsel %vm8105, %v9329, %v8635
      %v9331 = vrot.slane %v9185, 6
      %v9332 = vsel %vm8108, %v9331, %v9330
      %v9333 = vrot.slane %v8076, 7
      %v9334 = vsel %vm8105, %v9333, %v8075
      %v9335 = vrot.slane %v8077, 6
      %v9336 = vsel %vm8108, %v9335, %v9334
      %v9337 = vrot.slane %v8078, 5
      %v9338 = vsel %vm8111, %v9337, %v9336
      %v9339 = vrot.slane %v8079, 4
      %v9340 = vsel %vm8114, %v9339, %v9338
      %v9341 = vrot.slane %v8080, 3
      %v9342 = vsel %vm8117, %v9341, %v9340
      %v9343 = vrot.slane %v8081, 2
      %v9344 = vsel %vm8120, %v9343, %v9342
      %v9345 = vrot.slane %v8361, 1
      %v9346 = vsel %vm8123, %v9345, %v9344
      %v9347 = vrot.slane %v8911, 7
      %v9348 = vsel %vm8105, %v9347, %v8636
      %v9349 = vrot.slane %v9186, 6
      %v9350 = vsel %vm8108, %v9349, %v9348
      %v9351 = vrot.slane %v8087, 7
      %v9352 = vsel %vm8105, %v9351, %v8086
      %v9353 = vrot.slane %v8088, 6
      %v9354 = vsel %vm8108, %v9353, %v9352
      %v9355 = vrot.slane %v8089, 5
      %v9356 = vsel %vm8111, %v9355, %v9354
      %v9357 = vrot.slane %v8090, 4
      %v9358 = vsel %vm8114, %v9357, %v9356
      %v9359 = vrot.slane %v8091, 3
      %v9360 = vsel %vm8117, %v9359, %v9358
      %v9361 = vrot.slane %v8092, 2
      %v9362 = vsel %vm8120, %v9361, %v9360
      %v9363 = vrot.slane %v8362, 1
      %v9364 = vsel %vm8123, %v9363, %v9362
      %v9365 = vrot.slane %v8912, 7
      %v9366 = vsel %vm8105, %v9365, %v8637
      %v9367 = vrot.slane %v9187, 6
      %v9368 = vsel %vm8108, %v9367, %v9366
      %v9369 = vrot.slane %v8098, 7
      %v9370 = vsel %vm8105, %v9369, %v8097
      %v9371 = vrot.slane %v8099, 6
      %v9372 = vsel %vm8108, %v9371, %v9370
      %v9373 = vrot.slane %v8100, 5
      %v9374 = vsel %vm8111, %v9373, %v9372
      %v9375 = vrot.slane %v8101, 4
      %v9376 = vsel %vm8114, %v9375, %v9374
      %v9377 = vrot.slane %v8102, 3
      %v9378 = vsel %vm8117, %v9377, %v9376
      %v9379 = vrot.slane %v8103, 2
      %v9380 = vsel %vm8120, %v9379, %v9378
      %v9381 = vrot.slane %v8363, 1
      %v9382 = vsel %vm8123, %v9381, %v9380
      %v9383 = vrot.slane %v8913, 7
      %v9384 = vsel %vm8105, %v9383, %v8638
      %v9385 = vrot.slane %v9188, 6
      %v9386 = vsel %vm8108, %v9385, %v9384
      %v9387 = vpack.c.b16 %v9206, %v9202
      %v9388 = vpack.c.b16 %v9224, %v9220
      %v9389 = vpack.c.b16 %v9242, %v9238
      %v9390 = vpack.c.b16 %v9260, %v9256
      %v9391 = vpack.c.b16 %v9278, %v9274
      %v9392 = vpack.c.b16 %v9296, %v9292
      %v9393 = vpack.c.b16 %v9314, %v9310
      %v9394 = vpack.c.b16 %v9332, %v9328
      %v9395 = vpack.c.b16 %v9350, %v9346
      %v9396 = vpack.c.b16 %v9368, %v9364
      %v9397 = vpack.c.b16 %v9386, %v9382
      %v9409 = vunpack.c.l.b16 %v7560
      %v9410 = vunpack.c.l.b16 %v7561
      %v9411 = vunpack.c.l.b16 %v7562
      %v9412 = vunpack.c.l.b16 %v7563
      %v9413 = vunpack.c.l.b16 %v7564
      %v9414 = vunpack.c.l.b16 %v7565
      %v9415 = vunpack.c.l.b16 %v7566
      %v9416 = vunpack.c.l.b16 %v7567
      %v9417 = vunpack.c.l.b16 %v7568
      %v9418 = vunpack.c.l.b16 %v7569
      %v9419 = vunpack.c.l.b16 %v7570
      %v9420 = vpack.c.b16 %v9409, %v9409
      %v9421 = vpack.c.b16 %v9410, %v9410
      %v9422 = vpack.c.b16 %v9411, %v9411
      %v9423 = vpack.c.b16 %v9412, %v9412
      %v9424 = vpack.c.b16 %v9413, %v9413
      %v9425 = vpack.c.b16 %v9414, %v9414
      %v9426 = vpack.c.b16 %v9415, %v9415
      %v9427 = vpack.c.b16 %v9416, %v9416
      %v9428 = vpack.c.b16 %v9417, %v9417
      %v9429 = vpack.c.b16 %v9418, %v9418
      %v9430 = vpack.c.b16 %v9419, %v9419
      %v9431 = vunpack.c.l.b16 %v9420
      %v9432 = vunpack.c.l.b16 %v9421
      %v9433 = vunpack.c.l.b16 %v9422
      %v9434 = vunpack.c.l.b16 %v9423
      %v9435 = vunpack.c.l.b16 %v9424
      %v9436 = vunpack.c.l.b16 %v9425
      %v9437 = vunpack.c.l.b16 %v9426
      %v9438 = vunpack.c.l.b16 %v9427
      %v9439 = vunpack.c.l.b16 %v9428
      %v9440 = vunpack.c.l.b16 %v9429
      %v9441 = vunpack.c.l.b16 %v9430
      %v9442 = vrot.slane %v9432, 7
      %v9443 = vsel %vm8105, %v9442, %v9431
      %v9444 = vrot.slane %v9433, 6
      %v9445 = vsel %vm8108, %v9444, %v9443
      %v9446 = vrot.slane %v9434, 5
      %v9447 = vsel %vm8111, %v9446, %v9445
      %v9448 = vrot.slane %v9435, 4
      %v9449 = vsel %vm8114, %v9448, %v9447
      %v9450 = vrot.slane %v9436, 3
      %v9451 = vsel %vm8117, %v9450, %v9449
      %v9452 = vrot.slane %v9437, 2
      %v9453 = vsel %vm8120, %v9452, %v9451
      %v9454 = vrot.slane %v9438, 1
      %v9455 = vsel %vm8123, %v9454, %v9453
      %v9456 = vrot.slane %v9440, 7
      %v9457 = vsel %vm8105, %v9456, %v9439
      %v9458 = vrot.slane %v9441, 6
      %v9459 = vsel %vm8108, %v9458, %v9457
      %v9460 = vpack.c.b16 %v9459, %v9455
      %9461 = vrot.lane.b32.xlu0 %v8310, 32
      %v9462 = vpop.permute.xlu0 %9461
      %9463 = vrot.lane.b32.xlu0 %v8311, 32
      %v9464 = vpop.permute.xlu0 %9463
      %9465 = vrot.lane.b32.xlu0 %v8312, 32
      %v9466 = vpop.permute.xlu0 %9465
      %9467 = vrot.lane.b32.xlu0 %v8313, 32
      %v9468 = vpop.permute.xlu0 %9467
      %9469 = vrot.lane.b32.xlu0 %v8314, 32
      %v9470 = vpop.permute.xlu0 %9469
      %9471 = vrot.lane.b32.xlu0 %v8315, 32
      %v9472 = vpop.permute.xlu0 %9471
      %9473 = vrot.lane.b32.xlu0 %v8316, 32
      %v9474 = vpop.permute.xlu0 %9473
      %9475 = vrot.lane.b32.xlu0 %v8317, 32
      %v9476 = vpop.permute.xlu0 %9475
      %9477 = vrot.lane.b32.xlu0 %v8318, 32
      %v9478 = vpop.permute.xlu0 %9477
      %9479 = vrot.lane.b32.xlu0 %v8319, 32
      %v9480 = vpop.permute.xlu0 %9479
      %9481 = vrot.lane.b32.xlu0 %v9460, 32
      %v9482 = vpop.permute.xlu0 %9481
      %v9484 = vunpack.c.l.b16 %v7571
      %v9485 = vpack.c.b16 %v9484, %v9484
      %v9486 = vunpack.c.l.b16 %v9485
      %v9487 = vrot.slane %v9433, 7
      %v9488 = vsel %vm8105, %v9487, %v9432
      %v9489 = vrot.slane %v9434, 6
      %v9490 = vsel %vm8108, %v9489, %v9488
      %v9491 = vrot.slane %v9435, 5
      %v9492 = vsel %vm8111, %v9491, %v9490
      %v9493 = vrot.slane %v9436, 4
      %v9494 = vsel %vm8114, %v9493, %v9492
      %v9495 = vrot.slane %v9437, 3
      %v9496 = vsel %vm8117, %v9495, %v9494
      %v9497 = vrot.slane %v9438, 2
      %v9498 = vsel %vm8120, %v9497, %v9496
      %v9499 = vrot.slane %v9439, 1
      %v9500 = vsel %vm8123, %v9499, %v9498
      %v9501 = vrot.slane %v9441, 7
      %v9502 = vsel %vm8105, %v9501, %v9440
      %v9503 = vrot.slane %v9486, 6
      %v9504 = vsel %vm8108, %v9503, %v9502
      %v9505 = vpack.c.b16 %v9504, %v9500
      %9506 = vrot.lane.b32.xlu0 %v8563, 64
      %v9507 = vpop.permute.xlu0 %9506
      %9508 = vrot.lane.b32.xlu0 %v8564, 64
      %v9509 = vpop.permute.xlu0 %9508
      %9510 = vrot.lane.b32.xlu0 %v8565, 64
      %v9511 = vpop.permute.xlu0 %9510
      %9512 = vrot.lane.b32.xlu0 %v8566, 64
      %v9513 = vpop.permute.xlu0 %9512
      %9514 = vrot.lane.b32.xlu0 %v8567, 64
      %v9515 = vpop.permute.xlu0 %9514
      %9516 = vrot.lane.b32.xlu0 %v8568, 64
      %v9517 = vpop.permute.xlu0 %9516
      %9518 = vrot.lane.b32.xlu0 %v8569, 64
      %v9519 = vpop.permute.xlu0 %9518
      %9520 = vrot.lane.b32.xlu0 %v8570, 64
      %v9521 = vpop.permute.xlu0 %9520
      %9522 = vrot.lane.b32.xlu0 %v8571, 64
      %v9523 = vpop.permute.xlu0 %9522
      %9524 = vrot.lane.b32.xlu0 %v8572, 64
      %v9525 = vpop.permute.xlu0 %9524
      %9526 = vrot.lane.b32.xlu0 %v9505, 64
      %v9527 = vpop.permute.xlu0 %9526
      %v9529 = vunpack.c.l.b16 %v7572
      %v9530 = vpack.c.b16 %v9529, %v9529
      %v9531 = vunpack.c.l.b16 %v9530
      %v9532 = vrot.slane %v9434, 7
      %v9533 = vsel %vm8105, %v9532, %v9433
      %v9534 = vrot.slane %v9435, 6
      %v9535 = vsel %vm8108, %v9534, %v9533
      %v9536 = vrot.slane %v9436, 5
      %v9537 = vsel %vm8111, %v9536, %v9535
      %v9538 = vrot.slane %v9437, 4
      %v9539 = vsel %vm8114, %v9538, %v9537
      %v9540 = vrot.slane %v9438, 3
      %v9541 = vsel %vm8117, %v9540, %v9539
      %v9542 = vrot.slane %v9439, 2
      %v9543 = vsel %vm8120, %v9542, %v9541
      %v9544 = vrot.slane %v9440, 1
      %v9545 = vsel %vm8123, %v9544, %v9543
      %v9546 = vrot.slane %v9486, 7
      %v9547 = vsel %vm8105, %v9546, %v9441
      %v9548 = vrot.slane %v9531, 6
      %v9549 = vsel %vm8108, %v9548, %v9547
      %v9550 = vpack.c.b16 %v9549, %v9545
      %9551 = vrot.lane.b32.xlu0 %v8838, 96
      %v9552 = vpop.permute.xlu0 %9551
      %9553 = vrot.lane.b32.xlu0 %v8839, 96
      %v9554 = vpop.permute.xlu0 %9553
      %9555 = vrot.lane.b32.xlu0 %v8840, 96
      %v9556 = vpop.permute.xlu0 %9555
      %9557 = vrot.lane.b32.xlu0 %v8841, 96
      %v9558 = vpop.permute.xlu0 %9557
      %9559 = vrot.lane.b32.xlu0 %v8842, 96
      %v9560 = vpop.permute.xlu0 %9559
      %9561 = vrot.lane.b32.xlu0 %v8843, 96
      %v9562 = vpop.permute.xlu0 %9561
      %9563 = vrot.lane.b32.xlu0 %v8844, 96
      %v9564 = vpop.permute.xlu0 %9563
      %9565 = vrot.lane.b32.xlu0 %v8845, 96
      %v9566 = vpop.permute.xlu0 %9565
      %9567 = vrot.lane.b32.xlu0 %v8846, 96
      %v9568 = vpop.permute.xlu0 %9567
      %9569 = vrot.lane.b32.xlu0 %v8847, 96
      %v9570 = vpop.permute.xlu0 %9569
      %9571 = vrot.lane.b32.xlu0 %v9550, 96
      %v9572 = vpop.permute.xlu0 %9571
      %v9574 = vunpack.c.l.b16 %v7573
      %v9575 = vpack.c.b16 %v9574, %v9574
      %v9576 = vunpack.c.l.b16 %v9575
      %v9577 = vrot.slane %v9435, 7
      %v9578 = vsel %vm8105, %v9577, %v9434
      %v9579 = vrot.slane %v9436, 6
      %v9580 = vsel %vm8108, %v9579, %v9578
      %v9581 = vrot.slane %v9437, 5
      %v9582 = vsel %vm8111, %v9581, %v9580
      %v9583 = vrot.slane %v9438, 4
      %v9584 = vsel %vm8114, %v9583, %v9582
      %v9585 = vrot.slane %v9439, 3
      %v9586 = vsel %vm8117, %v9585, %v9584
      %v9587 = vrot.slane %v9440, 2
      %v9588 = vsel %vm8120, %v9587, %v9586
      %v9589 = vrot.slane %v9441, 1
      %v9590 = vsel %vm8123, %v9589, %v9588
      %v9591 = vrot.slane %v9531, 7
      %v9592 = vsel %vm8105, %v9591, %v9486
      %v9593 = vrot.slane %v9576, 6
      %v9594 = vsel %vm8108, %v9593, %v9592
      %v9595 = vpack.c.b16 %v9594, %v9590
      %v9597 = vunpack.c.l.b16 %v7574
      %v9598 = vpack.c.b16 %v9597, %v9597
      %v9599 = vunpack.c.l.b16 %v9598
      %v9600 = vrot.slane %v9436, 7
      %v9601 = vsel %vm8105, %v9600, %v9435
      %v9602 = vrot.slane %v9437, 6
      %v9603 = vsel %vm8108, %v9602, %v9601
      %v9604 = vrot.slane %v9438, 5
      %v9605 = vsel %vm8111, %v9604, %v9603
      %v9606 = vrot.slane %v9439, 4
      %v9607 = vsel %vm8114, %v9606, %v9605
      %v9608 = vrot.slane %v9440, 3
      %v9609 = vsel %vm8117, %v9608, %v9607
      %v9610 = vrot.slane %v9441, 2
      %v9611 = vsel %vm8120, %v9610, %v9609
      %v9612 = vrot.slane %v9486, 1
      %v9613 = vsel %vm8123, %v9612, %v9611
      %v9614 = vrot.slane %v9576, 7
      %v9615 = vsel %vm8105, %v9614, %v9531
      %v9616 = vrot.slane %v9599, 6
      %v9617 = vsel %vm8108, %v9616, %v9615
      %v9618 = vpack.c.b16 %v9617, %v9613
      %9619 = vrot.lane.b32.xlu0 %v9388, 32
      %v9620 = vpop.permute.xlu0 %9619
      %9621 = vrot.lane.b32.xlu0 %v9389, 32
      %v9622 = vpop.permute.xlu0 %9621
      %9623 = vrot.lane.b32.xlu0 %v9390, 32
      %v9624 = vpop.permute.xlu0 %9623
      %9625 = vrot.lane.b32.xlu0 %v9391, 32
      %v9626 = vpop.permute.xlu0 %9625
      %9627 = vrot.lane.b32.xlu0 %v9392, 32
      %v9628 = vpop.permute.xlu0 %9627
      %9629 = vrot.lane.b32.xlu0 %v9393, 32
      %v9630 = vpop.permute.xlu0 %9629
      %9631 = vrot.lane.b32.xlu0 %v9394, 32
      %v9632 = vpop.permute.xlu0 %9631
      %9633 = vrot.lane.b32.xlu0 %v9395, 32
      %v9634 = vpop.permute.xlu0 %9633
      %9635 = vrot.lane.b32.xlu0 %v9396, 32
      %v9636 = vpop.permute.xlu0 %9635
      %9637 = vrot.lane.b32.xlu0 %v9397, 32
      %v9638 = vpop.permute.xlu0 %9637
      %9639 = vrot.lane.b32.xlu0 %v9618, 32
      %v9640 = vpop.permute.xlu0 %9639
      %v9652 = vunpack.c.l.b16 %v7575
      %v9653 = vunpack.c.l.b16 %v7576
      %v9654 = vunpack.c.l.b16 %v7577
      %v9655 = vunpack.c.l.b16 %v7578
      %v9656 = vunpack.c.l.b16 %v7579
      %v9657 = vunpack.c.l.b16 %v7580
      %v9658 = vunpack.c.l.b16 %v7581
      %v9659 = vunpack.c.l.b16 %v7582
      %v9660 = vunpack.c.l.b16 %v7583
      %v9661 = vunpack.c.l.b16 %v7584
      %v9662 = vunpack.c.l.b16 %v7585
      %v9663 = vpack.c.b16 %v9652, %v9652
      %v9664 = vpack.c.b16 %v9653, %v9653
      %v9665 = vpack.c.b16 %v9654, %v9654
      %v9666 = vpack.c.b16 %v9655, %v9655
      %v9667 = vpack.c.b16 %v9656, %v9656
      %v9668 = vpack.c.b16 %v9657, %v9657
      %v9669 = vpack.c.b16 %v9658, %v9658
      %v9670 = vpack.c.b16 %v9659, %v9659
      %v9671 = vpack.c.b16 %v9660, %v9660
      %v9672 = vpack.c.b16 %v9661, %v9661
      %v9673 = vpack.c.b16 %v9662, %v9662
      %v9674 = vunpack.c.l.b16 %v9663
      %v9675 = vunpack.c.l.b16 %v9664
      %v9676 = vunpack.c.l.b16 %v9665
      %v9677 = vunpack.c.l.b16 %v9666
      %v9678 = vunpack.c.l.b16 %v9667
      %v9679 = vunpack.c.l.b16 %v9668
      %v9680 = vunpack.c.l.b16 %v9669
      %v9681 = vunpack.c.l.b16 %v9670
      %v9682 = vunpack.c.l.b16 %v9671
      %v9683 = vunpack.c.l.b16 %v9672
      %v9684 = vunpack.c.l.b16 %v9673
      %v9685 = vrot.slane %v9675, 7
      %v9686 = vsel %vm8105, %v9685, %v9674
      %v9687 = vrot.slane %v9676, 6
      %v9688 = vsel %vm8108, %v9687, %v9686
      %v9689 = vrot.slane %v9677, 5
      %v9690 = vsel %vm8111, %v9689, %v9688
      %v9691 = vrot.slane %v9678, 4
      %v9692 = vsel %vm8114, %v9691, %v9690
      %v9693 = vrot.slane %v9679, 3
      %v9694 = vsel %vm8117, %v9693, %v9692
      %v9695 = vrot.slane %v9680, 2
      %v9696 = vsel %vm8120, %v9695, %v9694
      %v9697 = vrot.slane %v9681, 1
      %v9698 = vsel %vm8123, %v9697, %v9696
      %v9699 = vrot.slane %v9683, 7
      %v9700 = vsel %vm8105, %v9699, %v9682
      %v9701 = vrot.slane %v9684, 6
      %v9702 = vsel %vm8108, %v9701, %v9700
      %v9703 = vpack.c.b16 %v9702, %v9698
      %9704 = vrot.lane.b32.xlu0 %v8311, 64
      %v9705 = vpop.permute.xlu0 %9704
      %9706 = vrot.lane.b32.xlu0 %v8312, 64
      %v9707 = vpop.permute.xlu0 %9706
      %9708 = vrot.lane.b32.xlu0 %v8313, 64
      %v9709 = vpop.permute.xlu0 %9708
      %9710 = vrot.lane.b32.xlu0 %v8314, 64
      %v9711 = vpop.permute.xlu0 %9710
      %9712 = vrot.lane.b32.xlu0 %v8315, 64
      %v9713 = vpop.permute.xlu0 %9712
      %9714 = vrot.lane.b32.xlu0 %v8316, 64
      %v9715 = vpop.permute.xlu0 %9714
      %9716 = vrot.lane.b32.xlu0 %v8317, 64
      %v9717 = vpop.permute.xlu0 %9716
      %9718 = vrot.lane.b32.xlu0 %v8318, 64
      %v9719 = vpop.permute.xlu0 %9718
      %9720 = vrot.lane.b32.xlu0 %v8319, 64
      %v9721 = vpop.permute.xlu0 %9720
      %9722 = vrot.lane.b32.xlu0 %v9460, 64
      %v9723 = vpop.permute.xlu0 %9722
      %9724 = vrot.lane.b32.xlu0 %v9703, 64
      %v9725 = vpop.permute.xlu0 %9724
      %v9727 = vunpack.c.l.b16 %v7586
      %v9728 = vpack.c.b16 %v9727, %v9727
      %v9729 = vunpack.c.l.b16 %v9728
      %v9730 = vrot.slane %v9676, 7
      %v9731 = vsel %vm8105, %v9730, %v9675
      %v9732 = vrot.slane %v9677, 6
      %v9733 = vsel %vm8108, %v9732, %v9731
      %v9734 = vrot.slane %v9678, 5
      %v9735 = vsel %vm8111, %v9734, %v9733
      %v9736 = vrot.slane %v9679, 4
      %v9737 = vsel %vm8114, %v9736, %v9735
      %v9738 = vrot.slane %v9680, 3
      %v9739 = vsel %vm8117, %v9738, %v9737
      %v9740 = vrot.slane %v9681, 2
      %v9741 = vsel %vm8120, %v9740, %v9739
      %v9742 = vrot.slane %v9682, 1
      %v9743 = vsel %vm8123, %v9742, %v9741
      %v9744 = vrot.slane %v9684, 7
      %v9745 = vsel %vm8105, %v9744, %v9683
      %v9746 = vrot.slane %v9729, 6
      %v9747 = vsel %vm8108, %v9746, %v9745
      %v9748 = vpack.c.b16 %v9747, %v9743
      %9749 = vrot.lane.b32.xlu0 %v8564, 96
      %v9750 = vpop.permute.xlu0 %9749
      %9751 = vrot.lane.b32.xlu0 %v8565, 96
      %v9752 = vpop.permute.xlu0 %9751
      %9753 = vrot.lane.b32.xlu0 %v8566, 96
      %v9754 = vpop.permute.xlu0 %9753
      %9755 = vrot.lane.b32.xlu0 %v8567, 96
      %v9756 = vpop.permute.xlu0 %9755
      %9757 = vrot.lane.b32.xlu0 %v8568, 96
      %v9758 = vpop.permute.xlu0 %9757
      %9759 = vrot.lane.b32.xlu0 %v8569, 96
      %v9760 = vpop.permute.xlu0 %9759
      %9761 = vrot.lane.b32.xlu0 %v8570, 96
      %v9762 = vpop.permute.xlu0 %9761
      %9763 = vrot.lane.b32.xlu0 %v8571, 96
      %v9764 = vpop.permute.xlu0 %9763
      %9765 = vrot.lane.b32.xlu0 %v8572, 96
      %v9766 = vpop.permute.xlu0 %9765
      %9767 = vrot.lane.b32.xlu0 %v9505, 96
      %v9768 = vpop.permute.xlu0 %9767
      %9769 = vrot.lane.b32.xlu0 %v9748, 96
      %v9770 = vpop.permute.xlu0 %9769
      %v9772 = vunpack.c.l.b16 %v7587
      %v9773 = vpack.c.b16 %v9772, %v9772
      %v9774 = vunpack.c.l.b16 %v9773
      %v9775 = vrot.slane %v9677, 7
      %v9776 = vsel %vm8105, %v9775, %v9676
      %v9777 = vrot.slane %v9678, 6
      %v9778 = vsel %vm8108, %v9777, %v9776
      %v9779 = vrot.slane %v9679, 5
      %v9780 = vsel %vm8111, %v9779, %v9778
      %v9781 = vrot.slane %v9680, 4
      %v9782 = vsel %vm8114, %v9781, %v9780
      %v9783 = vrot.slane %v9681, 3
      %v9784 = vsel %vm8117, %v9783, %v9782
      %v9785 = vrot.slane %v9682, 2
      %v9786 = vsel %vm8120, %v9785, %v9784
      %v9787 = vrot.slane %v9683, 1
      %v9788 = vsel %vm8123, %v9787, %v9786
      %v9789 = vrot.slane %v9729, 7
      %v9790 = vsel %vm8105, %v9789, %v9684
      %v9791 = vrot.slane %v9774, 6
      %v9792 = vsel %vm8108, %v9791, %v9790
      %v9793 = vpack.c.b16 %v9792, %v9788
      %v9795 = vunpack.c.l.b16 %v7588
      %v9796 = vpack.c.b16 %v9795, %v9795
      %v9797 = vunpack.c.l.b16 %v9796
      %v9798 = vrot.slane %v9678, 7
      %v9799 = vsel %vm8105, %v9798, %v9677
      %v9800 = vrot.slane %v9679, 6
      %v9801 = vsel %vm8108, %v9800, %v9799
      %v9802 = vrot.slane %v9680, 5
      %v9803 = vsel %vm8111, %v9802, %v9801
      %v9804 = vrot.slane %v9681, 4
      %v9805 = vsel %vm8114, %v9804, %v9803
      %v9806 = vrot.slane %v9682, 3
      %v9807 = vsel %vm8117, %v9806, %v9805
      %v9808 = vrot.slane %v9683, 2
      %v9809 = vsel %vm8120, %v9808, %v9807
      %v9810 = vrot.slane %v9684, 1
      %v9811 = vsel %vm8123, %v9810, %v9809
      %v9812 = vrot.slane %v9774, 7
      %v9813 = vsel %vm8105, %v9812, %v9729
      %v9814 = vrot.slane %v9797, 6
      %v9815 = vsel %vm8108, %v9814, %v9813
      %v9816 = vpack.c.b16 %v9815, %v9811
      %9817 = vrot.lane.b32.xlu0 %v9114, 32
      %v9818 = vpop.permute.xlu0 %9817
      %9819 = vrot.lane.b32.xlu0 %v9115, 32
      %v9820 = vpop.permute.xlu0 %9819
      %9821 = vrot.lane.b32.xlu0 %v9116, 32
      %v9822 = vpop.permute.xlu0 %9821
      %9823 = vrot.lane.b32.xlu0 %v9117, 32
      %v9824 = vpop.permute.xlu0 %9823
      %9825 = vrot.lane.b32.xlu0 %v9118, 32
      %v9826 = vpop.permute.xlu0 %9825
      %9827 = vrot.lane.b32.xlu0 %v9119, 32
      %v9828 = vpop.permute.xlu0 %9827
      %9829 = vrot.lane.b32.xlu0 %v9120, 32
      %v9830 = vpop.permute.xlu0 %9829
      %9831 = vrot.lane.b32.xlu0 %v9121, 32
      %v9832 = vpop.permute.xlu0 %9831
      %9833 = vrot.lane.b32.xlu0 %v9122, 32
      %v9834 = vpop.permute.xlu0 %9833
      %9835 = vrot.lane.b32.xlu0 %v9595, 32
      %v9836 = vpop.permute.xlu0 %9835
      %9837 = vrot.lane.b32.xlu0 %v9816, 32
      %v9838 = vpop.permute.xlu0 %9837
      %v9840 = vunpack.c.l.b16 %v7589
      %v9841 = vpack.c.b16 %v9840, %v9840
      %v9842 = vunpack.c.l.b16 %v9841
      %v9843 = vrot.slane %v9679, 7
      %v9844 = vsel %vm8105, %v9843, %v9678
      %v9845 = vrot.slane %v9680, 6
      %v9846 = vsel %vm8108, %v9845, %v9844
      %v9847 = vrot.slane %v9681, 5
      %v9848 = vsel %vm8111, %v9847, %v9846
      %v9849 = vrot.slane %v9682, 4
      %v9850 = vsel %vm8114, %v9849, %v9848
      %v9851 = vrot.slane %v9683, 3
      %v9852 = vsel %vm8117, %v9851, %v9850
      %v9853 = vrot.slane %v9684, 2
      %v9854 = vsel %vm8120, %v9853, %v9852
      %v9855 = vrot.slane %v9729, 1
      %v9856 = vsel %vm8123, %v9855, %v9854
      %v9857 = vrot.slane %v9797, 7
      %v9858 = vsel %vm8105, %v9857, %v9774
      %v9859 = vrot.slane %v9842, 6
      %v9860 = vsel %vm8108, %v9859, %v9858
      %v9861 = vpack.c.b16 %v9860, %v9856
      %9862 = vrot.lane.b32.xlu0 %v9389, 64
      %v9863 = vpop.permute.xlu0 %9862
      %9864 = vrot.lane.b32.xlu0 %v9390, 64
      %v9865 = vpop.permute.xlu0 %9864
      %9866 = vrot.lane.b32.xlu0 %v9391, 64
      %v9867 = vpop.permute.xlu0 %9866
      %9868 = vrot.lane.b32.xlu0 %v9392, 64
      %v9869 = vpop.permute.xlu0 %9868
      %9870 = vrot.lane.b32.xlu0 %v9393, 64
      %v9871 = vpop.permute.xlu0 %9870
      %9872 = vrot.lane.b32.xlu0 %v9394, 64
      %v9873 = vpop.permute.xlu0 %9872
      %9874 = vrot.lane.b32.xlu0 %v9395, 64
      %v9875 = vpop.permute.xlu0 %9874
      %9876 = vrot.lane.b32.xlu0 %v9396, 64
      %v9877 = vpop.permute.xlu0 %9876
      %9878 = vrot.lane.b32.xlu0 %v9397, 64
      %v9879 = vpop.permute.xlu0 %9878
      %9880 = vrot.lane.b32.xlu0 %v9618, 64
      %v9881 = vpop.permute.xlu0 %9880
      %9882 = vrot.lane.b32.xlu0 %v9861, 64
      %v9883 = vpop.permute.xlu0 %9882
      %v9895 = vunpack.c.l.b16 %v7590
      %v9896 = vunpack.c.l.b16 %v7591
      %v9897 = vunpack.c.l.b16 %v7592
      %v9898 = vunpack.c.l.b16 %v7593
      %v9899 = vunpack.c.l.b16 %v7594
      %v9900 = vunpack.c.l.b16 %v7595
      %v9901 = vunpack.c.l.b16 %v7596
      %v9902 = vunpack.c.l.b16 %v7597
      %v9903 = vunpack.c.l.b16 %v7598
      %v9904 = vunpack.c.l.b16 %v7599
      %v9905 = vunpack.c.l.b16 %v7600
      %v9906 = vpack.c.b16 %v9895, %v9895
      %v9907 = vpack.c.b16 %v9896, %v9896
      %v9908 = vpack.c.b16 %v9897, %v9897
      %v9909 = vpack.c.b16 %v9898, %v9898
      %v9910 = vpack.c.b16 %v9899, %v9899
      %v9911 = vpack.c.b16 %v9900, %v9900
      %v9912 = vpack.c.b16 %v9901, %v9901
      %v9913 = vpack.c.b16 %v9902, %v9902
      %v9914 = vpack.c.b16 %v9903, %v9903
      %v9915 = vpack.c.b16 %v9904, %v9904
      %v9916 = vpack.c.b16 %v9905, %v9905
      %v9917 = vunpack.c.l.b16 %v9906
      %v9918 = vunpack.c.l.b16 %v9907
      %v9919 = vunpack.c.l.b16 %v9908
      %v9920 = vunpack.c.l.b16 %v9909
      %v9921 = vunpack.c.l.b16 %v9910
      %v9922 = vunpack.c.l.b16 %v9911
      %v9923 = vunpack.c.l.b16 %v9912
      %v9924 = vunpack.c.l.b16 %v9913
      %v9925 = vunpack.c.l.b16 %v9914
      %v9926 = vunpack.c.l.b16 %v9915
      %v9927 = vunpack.c.l.b16 %v9916
      %v9928 = vrot.slane %v9918, 7
      %v9929 = vsel %vm8105, %v9928, %v9917
      %v9930 = vrot.slane %v9919, 6
      %v9931 = vsel %vm8108, %v9930, %v9929
      %v9932 = vrot.slane %v9920, 5
      %v9933 = vsel %vm8111, %v9932, %v9931
      %v9934 = vrot.slane %v9921, 4
      %v9935 = vsel %vm8114, %v9934, %v9933
      %v9936 = vrot.slane %v9922, 3
      %v9937 = vsel %vm8117, %v9936, %v9935
      %v9938 = vrot.slane %v9923, 2
      %v9939 = vsel %vm8120, %v9938, %v9937
      %v9940 = vrot.slane %v9924, 1
      %v9941 = vsel %vm8123, %v9940, %v9939
      %v9942 = vrot.slane %v9926, 7
      %v9943 = vsel %vm8105, %v9942, %v9925
      %v9944 = vrot.slane %v9927, 6
      %v9945 = vsel %vm8108, %v9944, %v9943
      %v9946 = vpack.c.b16 %v9945, %v9941
      %9947 = vrot.lane.b32.xlu0 %v8312, 96
      %v9948 = vpop.permute.xlu0 %9947
      %9949 = vrot.lane.b32.xlu0 %v8313, 96
      %v9950 = vpop.permute.xlu0 %9949
      %9951 = vrot.lane.b32.xlu0 %v8314, 96
      %v9952 = vpop.permute.xlu0 %9951
      %9953 = vrot.lane.b32.xlu0 %v8315, 96
      %v9954 = vpop.permute.xlu0 %9953
      %9955 = vrot.lane.b32.xlu0 %v8316, 96
      %v9956 = vpop.permute.xlu0 %9955
      %9957 = vrot.lane.b32.xlu0 %v8317, 96
      %v9958 = vpop.permute.xlu0 %9957
      %9959 = vrot.lane.b32.xlu0 %v8318, 96
      %v9960 = vpop.permute.xlu0 %9959
      %9961 = vrot.lane.b32.xlu0 %v8319, 96
      %v9962 = vpop.permute.xlu0 %9961
      %9963 = vrot.lane.b32.xlu0 %v9460, 96
      %v9964 = vpop.permute.xlu0 %9963
      %9965 = vrot.lane.b32.xlu0 %v9703, 96
      %v9966 = vpop.permute.xlu0 %9965
      %9967 = vrot.lane.b32.xlu0 %v9946, 96
      %v9968 = vpop.permute.xlu0 %9967
      %v9971 = vsel %vm4850, %v8309, %v8574
      %v9974 = vsel %vm4850, %v8310, %v8576
      %v9977 = vsel %vm4850, %v8311, %v8578
      %v9980 = vsel %vm4850, %v8312, %v8580
      %v9983 = vsel %vm4850, %v8313, %v8582
      %v9986 = vsel %vm4850, %v8314, %v8584
      %v9989 = vsel %vm4850, %v8315, %v8586
      %v9992 = vsel %vm4850, %v8316, %v8588
      %v9995 = vsel %vm4850, %v8317, %v8590
      %v9998 = vsel %vm4850, %v8318, %v8592
      %v10001 = vsel %vm4850, %v8319, %v8594
      %vm10002 = vcmask 523264
      %v10004 = vsel %vm10002, %v9971, %v8849
      %v10006 = vsel %vm10002, %v9974, %v8851
      %v10008 = vsel %vm10002, %v9977, %v8853
      %v10010 = vsel %vm10002, %v9980, %v8855
      %v10012 = vsel %vm10002, %v9983, %v8857
      %v10014 = vsel %vm10002, %v9986, %v8859
      %v10016 = vsel %vm10002, %v9989, %v8861
      %v10018 = vsel %vm10002, %v9992, %v8863
      %v10020 = vsel %vm10002, %v9995, %v8865
      %v10022 = vsel %vm10002, %v9998, %v8867
      %v10024 = vsel %vm10002, %v10001, %v8869
      %vm10025 = vcmask 785408
      %v10027 = vsel %vm10025, %v10004, %v9124
      %v10029 = vsel %vm10025, %v10006, %v9126
      %v10031 = vsel %vm10025, %v10008, %v9128
      %v10033 = vsel %vm10025, %v10010, %v9130
      %v10035 = vsel %vm10025, %v10012, %v9132
      %v10037 = vsel %vm10025, %v10014, %v9134
      %v10039 = vsel %vm10025, %v10016, %v9136
      %v10041 = vsel %vm10025, %v10018, %v9138
      %v10043 = vsel %vm10025, %v10020, %v9140
      %v10045 = vsel %vm10025, %v10022, %v9142
      %v10047 = vsel %vm10025, %v10024, %v9144
      %v10050 = vsel %vm4850, %v9387, %v9462
      %v10053 = vsel %vm4850, %v9388, %v9464
      %v10056 = vsel %vm4850, %v9389, %v9466
      %v10059 = vsel %vm4850, %v9390, %v9468
      %v10062 = vsel %vm4850, %v9391, %v9470
      %v10065 = vsel %vm4850, %v9392, %v9472
      %v10068 = vsel %vm4850, %v9393, %v9474
      %v10071 = vsel %vm4850, %v9394, %v9476
      %v10074 = vsel %vm4850, %v9395, %v9478
      %v10077 = vsel %vm4850, %v9396, %v9480
      %v10080 = vsel %vm4850, %v9397, %v9482
      %v10082 = vsel %vm10002, %v10050, %v9507
      %v10084 = vsel %vm10002, %v10053, %v9509
      %v10086 = vsel %vm10002, %v10056, %v9511
      %v10088 = vsel %vm10002, %v10059, %v9513
      %v10090 = vsel %vm10002, %v10062, %v9515
      %v10092 = vsel %vm10002, %v10065, %v9517
      %v10094 = vsel %vm10002, %v10068, %v9519
      %v10096 = vsel %vm10002, %v10071, %v9521
      %v10098 = vsel %vm10002, %v10074, %v9523
      %v10100 = vsel %vm10002, %v10077, %v9525
      %v10102 = vsel %vm10002, %v10080, %v9527
      %v10104 = vsel %vm10025, %v10082, %v9552
      %v10106 = vsel %vm10025, %v10084, %v9554
      %v10108 = vsel %vm10025, %v10086, %v9556
      %v10110 = vsel %vm10025, %v10088, %v9558
      %v10112 = vsel %vm10025, %v10090, %v9560
      %v10114 = vsel %vm10025, %v10092, %v9562
      %v10116 = vsel %vm10025, %v10094, %v9564
      %v10118 = vsel %vm10025, %v10096, %v9566
      %v10120 = vsel %vm10025, %v10098, %v9568
      %v10122 = vsel %vm10025, %v10100, %v9570
      %v10124 = vsel %vm10025, %v10102, %v9572
      %v10127 = vsel %vm4850, %v9113, %v9620
      %v10130 = vsel %vm4850, %v9114, %v9622
      %v10133 = vsel %vm4850, %v9115, %v9624
      %v10136 = vsel %vm4850, %v9116, %v9626
      %v10139 = vsel %vm4850, %v9117, %v9628
      %v10142 = vsel %vm4850, %v9118, %v9630
      %v10145 = vsel %vm4850, %v9119, %v9632
      %v10148 = vsel %vm4850, %v9120, %v9634
      %v10151 = vsel %vm4850, %v9121, %v9636
      %v10154 = vsel %vm4850, %v9122, %v9638
      %v10157 = vsel %vm4850, %v9595, %v9640
      %v10159 = vsel %vm10002, %v10127, %v9705
      %v10161 = vsel %vm10002, %v10130, %v9707
      %v10163 = vsel %vm10002, %v10133, %v9709
      %v10165 = vsel %vm10002, %v10136, %v9711
      %v10167 = vsel %vm10002, %v10139, %v9713
      %v10169 = vsel %vm10002, %v10142, %v9715
      %v10171 = vsel %vm10002, %v10145, %v9717
      %v10173 = vsel %vm10002, %v10148, %v9719
      %v10175 = vsel %vm10002, %v10151, %v9721
      %v10177 = vsel %vm10002, %v10154, %v9723
      %v10179 = vsel %vm10002, %v10157, %v9725
      %v10181 = vsel %vm10025, %v10159, %v9750
      %v10183 = vsel %vm10025, %v10161, %v9752
      %v10185 = vsel %vm10025, %v10163, %v9754
      %v10187 = vsel %vm10025, %v10165, %v9756
      %v10189 = vsel %vm10025, %v10167, %v9758
      %v10191 = vsel %vm10025, %v10169, %v9760
      %v10193 = vsel %vm10025, %v10171, %v9762
      %v10195 = vsel %vm10025, %v10173, %v9764
      %v10197 = vsel %vm10025, %v10175, %v9766
      %v10199 = vsel %vm10025, %v10177, %v9768
      %v10201 = vsel %vm10025, %v10179, %v9770
      %v10204 = vsel %vm4850, %v8839, %v9818
      %v10207 = vsel %vm4850, %v8840, %v9820
      %v10210 = vsel %vm4850, %v8841, %v9822
      %v10213 = vsel %vm4850, %v8842, %v9824
      %v10216 = vsel %vm4850, %v8843, %v9826
      %v10219 = vsel %vm4850, %v8844, %v9828
      %v10222 = vsel %vm4850, %v8845, %v9830
      %v10225 = vsel %vm4850, %v8846, %v9832
      %v10228 = vsel %vm4850, %v8847, %v9834
      %v10231 = vsel %vm4850, %v9550, %v9836
      %v10234 = vsel %vm4850, %v9793, %v9838
      %v10236 = vsel %vm10002, %v10204, %v9863
      %v10238 = vsel %vm10002, %v10207, %v9865
      %v10240 = vsel %vm10002, %v10210, %v9867
      %v10242 = vsel %vm10002, %v10213, %v9869
      %v10244 = vsel %vm10002, %v10216, %v9871
      %v10246 = vsel %vm10002, %v10219, %v9873
      %v10248 = vsel %vm10002, %v10222, %v9875
      %v10250 = vsel %vm10002, %v10225, %v9877
      %v10252 = vsel %vm10002, %v10228, %v9879
      %v10254 = vsel %vm10002, %v10231, %v9881
      %v10256 = vsel %vm10002, %v10234, %v9883
      %v10258 = vsel %vm10025, %v10236, %v9948
      %v10260 = vsel %vm10025, %v10238, %v9950
      %v10262 = vsel %vm10025, %v10240, %v9952
      %v10264 = vsel %vm10025, %v10242, %v9954
      %v10266 = vsel %vm10025, %v10244, %v9956
      %v10268 = vsel %vm10025, %v10246, %v9958
      %v10270 = vsel %vm10025, %v10248, %v9960
      %v10272 = vsel %vm10025, %v10250, %v9962
      %v10274 = vsel %vm10025, %v10252, %v9964
      %v10276 = vsel %vm10025, %v10254, %v9966
      %v10278 = vsel %vm10025, %v10256, %v9968
      %v10280 = vunpack.c.l.b16 %v7601
      %v10281 = vpack.c.b16 %v10280, %v10280
      %v10282 = vunpack.c.l.b16 %v10281
      %v10283 = vrot.slane %v9919, 7
      %v10284 = vsel %vm8105, %v10283, %v9918
      %v10285 = vrot.slane %v9920, 6
      %v10286 = vsel %vm8108, %v10285, %v10284
      %v10287 = vrot.slane %v9921, 5
      %v10288 = vsel %vm8111, %v10287, %v10286
      %v10289 = vrot.slane %v9922, 4
      %v10290 = vsel %vm8114, %v10289, %v10288
      %v10291 = vrot.slane %v9923, 3
      %v10292 = vsel %vm8117, %v10291, %v10290
      %v10293 = vrot.slane %v9924, 2
      %v10294 = vsel %vm8120, %v10293, %v10292
      %v10295 = vrot.slane %v9925, 1
      %v10296 = vsel %vm8123, %v10295, %v10294
      %v10297 = vrot.slane %v9927, 7
      %v10298 = vsel %vm8105, %v10297, %v9926
      %v10299 = vrot.slane %v10282, 6
      %v10300 = vsel %vm8108, %v10299, %v10298
      %v10301 = vpack.c.b16 %v10300, %v10296
      %v10303 = vunpack.c.l.b16 %v7602
      %v10304 = vpack.c.b16 %v10303, %v10303
      %v10305 = vunpack.c.l.b16 %v10304
      %v10306 = vrot.slane %v9920, 7
      %v10307 = vsel %vm8105, %v10306, %v9919
      %v10308 = vrot.slane %v9921, 6
      %v10309 = vsel %vm8108, %v10308, %v10307
      %v10310 = vrot.slane %v9922, 5
      %v10311 = vsel %vm8111, %v10310, %v10309
      %v10312 = vrot.slane %v9923, 4
      %v10313 = vsel %vm8114, %v10312, %v10311
      %v10314 = vrot.slane %v9924, 3
      %v10315 = vsel %vm8117, %v10314, %v10313
      %v10316 = vrot.slane %v9925, 2
      %v10317 = vsel %vm8120, %v10316, %v10315
      %v10318 = vrot.slane %v9926, 1
      %v10319 = vsel %vm8123, %v10318, %v10317
      %v10320 = vrot.slane %v10282, 7
      %v10321 = vsel %vm8105, %v10320, %v9927
      %v10322 = vrot.slane %v10305, 6
      %v10323 = vsel %vm8108, %v10322, %v10321
      %v10324 = vpack.c.b16 %v10323, %v10319
      %10325 = vrot.lane.b32.xlu0 %v8840, 32
      %v10326 = vpop.permute.xlu0 %10325
      %10327 = vrot.lane.b32.xlu0 %v8841, 32
      %v10328 = vpop.permute.xlu0 %10327
      %10329 = vrot.lane.b32.xlu0 %v8842, 32
      %v10330 = vpop.permute.xlu0 %10329
      %10331 = vrot.lane.b32.xlu0 %v8843, 32
      %v10332 = vpop.permute.xlu0 %10331
      %10333 = vrot.lane.b32.xlu0 %v8844, 32
      %v10334 = vpop.permute.xlu0 %10333
      %10335 = vrot.lane.b32.xlu0 %v8845, 32
      %v10336 = vpop.permute.xlu0 %10335
      %10337 = vrot.lane.b32.xlu0 %v8846, 32
      %v10338 = vpop.permute.xlu0 %10337
      %10339 = vrot.lane.b32.xlu0 %v8847, 32
      %v10340 = vpop.permute.xlu0 %10339
      %10341 = vrot.lane.b32.xlu0 %v9550, 32
      %v10342 = vpop.permute.xlu0 %10341
      %10343 = vrot.lane.b32.xlu0 %v9793, 32
      %v10344 = vpop.permute.xlu0 %10343
      %10345 = vrot.lane.b32.xlu0 %v10324, 32
      %v10346 = vpop.permute.xlu0 %10345
      %v10348 = vunpack.c.l.b16 %v7603
      %v10349 = vpack.c.b16 %v10348, %v10348
      %v10350 = vunpack.c.l.b16 %v10349
      %v10351 = vrot.slane %v9921, 7
      %v10352 = vsel %vm8105, %v10351, %v9920
      %v10353 = vrot.slane %v9922, 6
      %v10354 = vsel %vm8108, %v10353, %v10352
      %v10355 = vrot.slane %v9923, 5
      %v10356 = vsel %vm8111, %v10355, %v10354
      %v10357 = vrot.slane %v9924, 4
      %v10358 = vsel %vm8114, %v10357, %v10356
      %v10359 = vrot.slane %v9925, 3
      %v10360 = vsel %vm8117, %v10359, %v10358
      %v10361 = vrot.slane %v9926, 2
      %v10362 = vsel %vm8120, %v10361, %v10360
      %v10363 = vrot.slane %v9927, 1
      %v10364 = vsel %vm8123, %v10363, %v10362
      %v10365 = vrot.slane %v10305, 7
      %v10366 = vsel %vm8105, %v10365, %v10282
      %v10367 = vrot.slane %v10350, 6
      %v10368 = vsel %vm8108, %v10367, %v10366
      %v10369 = vpack.c.b16 %v10368, %v10364
      %10370 = vrot.lane.b32.xlu0 %v9115, 64
      %v10371 = vpop.permute.xlu0 %10370
      %10372 = vrot.lane.b32.xlu0 %v9116, 64
      %v10373 = vpop.permute.xlu0 %10372
      %10374 = vrot.lane.b32.xlu0 %v9117, 64
      %v10375 = vpop.permute.xlu0 %10374
      %10376 = vrot.lane.b32.xlu0 %v9118, 64
      %v10377 = vpop.permute.xlu0 %10376
      %10378 = vrot.lane.b32.xlu0 %v9119, 64
      %v10379 = vpop.permute.xlu0 %10378
      %10380 = vrot.lane.b32.xlu0 %v9120, 64
      %v10381 = vpop.permute.xlu0 %10380
      %10382 = vrot.lane.b32.xlu0 %v9121, 64
      %v10383 = vpop.permute.xlu0 %10382
      %10384 = vrot.lane.b32.xlu0 %v9122, 64
      %v10385 = vpop.permute.xlu0 %10384
      %10386 = vrot.lane.b32.xlu0 %v9595, 64
      %v10387 = vpop.permute.xlu0 %10386
      %10388 = vrot.lane.b32.xlu0 %v9816, 64
      %v10389 = vpop.permute.xlu0 %10388
      %10390 = vrot.lane.b32.xlu0 %v10369, 64
      %v10391 = vpop.permute.xlu0 %10390
      %v10393 = vunpack.c.l.b16 %v7604
      %v10394 = vpack.c.b16 %v10393, %v10393
      %v10395 = vunpack.c.l.b16 %v10394
      %v10396 = vrot.slane %v9922, 7
      %v10397 = vsel %vm8105, %v10396, %v9921
      %v10398 = vrot.slane %v9923, 6
      %v10399 = vsel %vm8108, %v10398, %v10397
      %v10400 = vrot.slane %v9924, 5
      %v10401 = vsel %vm8111, %v10400, %v10399
      %v10402 = vrot.slane %v9925, 4
      %v10403 = vsel %vm8114, %v10402, %v10401
      %v10404 = vrot.slane %v9926, 3
      %v10405 = vsel %vm8117, %v10404, %v10403
      %v10406 = vrot.slane %v9927, 2
      %v10407 = vsel %vm8120, %v10406, %v10405
      %v10408 = vrot.slane %v10282, 1
      %v10409 = vsel %vm8123, %v10408, %v10407
      %v10410 = vrot.slane %v10350, 7
      %v10411 = vsel %vm8105, %v10410, %v10305
      %v10412 = vrot.slane %v10395, 6
      %v10413 = vsel %vm8108, %v10412, %v10411
      %v10414 = vpack.c.b16 %v10413, %v10409
      %10415 = vrot.lane.b32.xlu0 %v9390, 96
      %v10416 = vpop.permute.xlu0 %10415
      %10417 = vrot.lane.b32.xlu0 %v9391, 96
      %v10418 = vpop.permute.xlu0 %10417
      %10419 = vrot.lane.b32.xlu0 %v9392, 96
      %v10420 = vpop.permute.xlu0 %10419
      %10421 = vrot.lane.b32.xlu0 %v9393, 96
      %v10422 = vpop.permute.xlu0 %10421
      %10423 = vrot.lane.b32.xlu0 %v9394, 96
      %v10424 = vpop.permute.xlu0 %10423
      %10425 = vrot.lane.b32.xlu0 %v9395, 96
      %v10426 = vpop.permute.xlu0 %10425
      %10427 = vrot.lane.b32.xlu0 %v9396, 96
      %v10428 = vpop.permute.xlu0 %10427
      %10429 = vrot.lane.b32.xlu0 %v9397, 96
      %v10430 = vpop.permute.xlu0 %10429
      %10431 = vrot.lane.b32.xlu0 %v9618, 96
      %v10432 = vpop.permute.xlu0 %10431
      %10433 = vrot.lane.b32.xlu0 %v9861, 96
      %v10434 = vpop.permute.xlu0 %10433
      %10435 = vrot.lane.b32.xlu0 %v10414, 96
      %v10436 = vpop.permute.xlu0 %10435
      %v10448 = vunpack.c.l.b16 %v7605
      %v10449 = vunpack.c.l.b16 %v7606
      %v10450 = vunpack.c.l.b16 %v7607
      %v10451 = vunpack.c.l.b16 %v7608
      %v10452 = vunpack.c.l.b16 %v7609
      %v10453 = vunpack.c.l.b16 %v7610
      %v10454 = vunpack.c.l.b16 %v7611
      %v10455 = vunpack.c.l.b16 %v7612
      %v10456 = vunpack.c.l.b16 %v7613
      %v10457 = vunpack.c.l.b16 %v7614
      %v10458 = vunpack.c.l.b16 %v7615
      %v10459 = vpack.c.b16 %v10448, %v10448
      %v10460 = vpack.c.b16 %v10449, %v10449
      %v10461 = vpack.c.b16 %v10450, %v10450
      %v10462 = vpack.c.b16 %v10451, %v10451
      %v10463 = vpack.c.b16 %v10452, %v10452
      %v10464 = vpack.c.b16 %v10453, %v10453
      %v10465 = vpack.c.b16 %v10454, %v10454
      %v10466 = vpack.c.b16 %v10455, %v10455
      %v10467 = vpack.c.b16 %v10456, %v10456
      %v10468 = vpack.c.b16 %v10457, %v10457
      %v10469 = vpack.c.b16 %v10458, %v10458
      %v10470 = vunpack.c.l.b16 %v10459
      %v10471 = vunpack.c.l.b16 %v10460
      %v10472 = vunpack.c.l.b16 %v10461
      %v10473 = vunpack.c.l.b16 %v10462
      %v10474 = vunpack.c.l.b16 %v10463
      %v10475 = vunpack.c.l.b16 %v10464
      %v10476 = vunpack.c.l.b16 %v10465
      %v10477 = vunpack.c.l.b16 %v10466
      %v10478 = vunpack.c.l.b16 %v10467
      %v10479 = vunpack.c.l.b16 %v10468
      %v10480 = vunpack.c.l.b16 %v10469
      %v10481 = vrot.slane %v10471, 7
      %v10482 = vsel %vm8105, %v10481, %v10470
      %v10483 = vrot.slane %v10472, 6
      %v10484 = vsel %vm8108, %v10483, %v10482
      %v10485 = vrot.slane %v10473, 5
      %v10486 = vsel %vm8111, %v10485, %v10484
      %v10487 = vrot.slane %v10474, 4
      %v10488 = vsel %vm8114, %v10487, %v10486
      %v10489 = vrot.slane %v10475, 3
      %v10490 = vsel %vm8117, %v10489, %v10488
      %v10491 = vrot.slane %v10476, 2
      %v10492 = vsel %vm8120, %v10491, %v10490
      %v10493 = vrot.slane %v10477, 1
      %v10494 = vsel %vm8123, %v10493, %v10492
      %v10495 = vrot.slane %v10479, 7
      %v10496 = vsel %vm8105, %v10495, %v10478
      %v10497 = vrot.slane %v10480, 6
      %v10498 = vsel %vm8108, %v10497, %v10496
      %v10499 = vpack.c.b16 %v10498, %v10494
      %v10501 = vunpack.c.l.b16 %v7616
      %v10502 = vpack.c.b16 %v10501, %v10501
      %v10503 = vunpack.c.l.b16 %v10502
      %v10504 = vrot.slane %v10472, 7
      %v10505 = vsel %vm8105, %v10504, %v10471
      %v10506 = vrot.slane %v10473, 6
      %v10507 = vsel %vm8108, %v10506, %v10505
      %v10508 = vrot.slane %v10474, 5
      %v10509 = vsel %vm8111, %v10508, %v10507
      %v10510 = vrot.slane %v10475, 4
      %v10511 = vsel %vm8114, %v10510, %v10509
      %v10512 = vrot.slane %v10476, 3
      %v10513 = vsel %vm8117, %v10512, %v10511
      %v10514 = vrot.slane %v10477, 2
      %v10515 = vsel %vm8120, %v10514, %v10513
      %v10516 = vrot.slane %v10478, 1
      %v10517 = vsel %vm8123, %v10516, %v10515
      %v10518 = vrot.slane %v10480, 7
      %v10519 = vsel %vm8105, %v10518, %v10479
      %v10520 = vrot.slane %v10503, 6
      %v10521 = vsel %vm8108, %v10520, %v10519
      %v10522 = vpack.c.b16 %v10521, %v10517
      %10523 = vrot.lane.b32.xlu0 %v9505, 32
      %v10524 = vpop.permute.xlu0 %10523
      %10525 = vrot.lane.b32.xlu0 %v9748, 32
      %v10526 = vpop.permute.xlu0 %10525
      %10527 = vrot.lane.b32.xlu0 %v10301, 32
      %v10528 = vpop.permute.xlu0 %10527
      %10529 = vrot.lane.b32.xlu0 %v10522, 32
      %v10530 = vpop.permute.xlu0 %10529
      %v10532 = vunpack.c.l.b16 %v7617
      %v10533 = vpack.c.b16 %v10532, %v10532
      %v10534 = vunpack.c.l.b16 %v10533
      %v10535 = vrot.slane %v10473, 7
      %v10536 = vsel %vm8105, %v10535, %v10472
      %v10537 = vrot.slane %v10474, 6
      %v10538 = vsel %vm8108, %v10537, %v10536
      %v10539 = vrot.slane %v10475, 5
      %v10540 = vsel %vm8111, %v10539, %v10538
      %v10541 = vrot.slane %v10476, 4
      %v10542 = vsel %vm8114, %v10541, %v10540
      %v10543 = vrot.slane %v10477, 3
      %v10544 = vsel %vm8117, %v10543, %v10542
      %v10545 = vrot.slane %v10478, 2
      %v10546 = vsel %vm8120, %v10545, %v10544
      %v10547 = vrot.slane %v10479, 1
      %v10548 = vsel %vm8123, %v10547, %v10546
      %v10549 = vrot.slane %v10503, 7
      %v10550 = vsel %vm8105, %v10549, %v10480
      %v10551 = vrot.slane %v10534, 6
      %v10552 = vsel %vm8108, %v10551, %v10550
      %v10553 = vpack.c.b16 %v10552, %v10548
      %10554 = vrot.lane.b32.xlu0 %v9550, 64
      %v10555 = vpop.permute.xlu0 %10554
      %10556 = vrot.lane.b32.xlu0 %v9793, 64
      %v10557 = vpop.permute.xlu0 %10556
      %10558 = vrot.lane.b32.xlu0 %v10324, 64
      %v10559 = vpop.permute.xlu0 %10558
      %10560 = vrot.lane.b32.xlu0 %v10553, 64
      %v10561 = vpop.permute.xlu0 %10560
      %v10563 = vunpack.c.l.b16 %v7618
      %v10564 = vpack.c.b16 %v10563, %v10563
      %v10565 = vunpack.c.l.b16 %v10564
      %v10566 = vrot.slane %v10474, 7
      %v10567 = vsel %vm8105, %v10566, %v10473
      %v10568 = vrot.slane %v10475, 6
      %v10569 = vsel %vm8108, %v10568, %v10567
      %v10570 = vrot.slane %v10476, 5
      %v10571 = vsel %vm8111, %v10570, %v10569
      %v10572 = vrot.slane %v10477, 4
      %v10573 = vsel %vm8114, %v10572, %v10571
      %v10574 = vrot.slane %v10478, 3
      %v10575 = vsel %vm8117, %v10574, %v10573
      %v10576 = vrot.slane %v10479, 2
      %v10577 = vsel %vm8120, %v10576, %v10575
      %v10578 = vrot.slane %v10480, 1
      %v10579 = vsel %vm8123, %v10578, %v10577
      %v10580 = vrot.slane %v10534, 7
      %v10581 = vsel %vm8105, %v10580, %v10503
      %v10582 = vrot.slane %v10565, 6
      %v10583 = vsel %vm8108, %v10582, %v10581
      %v10584 = vpack.c.b16 %v10583, %v10579
      %10585 = vrot.lane.b32.xlu0 %v9595, 96
      %v10586 = vpop.permute.xlu0 %10585
      %10587 = vrot.lane.b32.xlu0 %v9816, 96
      %v10588 = vpop.permute.xlu0 %10587
      %10589 = vrot.lane.b32.xlu0 %v10369, 96
      %v10590 = vpop.permute.xlu0 %10589
      %10591 = vrot.lane.b32.xlu0 %v10584, 96
      %v10592 = vpop.permute.xlu0 %10591
      %v10594 = vunpack.c.l.b16 %v7619
      %v10595 = vpack.c.b16 %v10594, %v10594
      %v10596 = vunpack.c.l.b16 %v10595
      %v10597 = vrot.slane %v10475, 7
      %v10598 = vsel %vm8105, %v10597, %v10474
      %v10599 = vrot.slane %v10476, 6
      %v10600 = vsel %vm8108, %v10599, %v10598
      %v10601 = vrot.slane %v10477, 5
      %v10602 = vsel %vm8111, %v10601, %v10600
      %v10603 = vrot.slane %v10478, 4
      %v10604 = vsel %vm8114, %v10603, %v10602
      %v10605 = vrot.slane %v10479, 3
      %v10606 = vsel %vm8117, %v10605, %v10604
      %v10607 = vrot.slane %v10480, 2
      %v10608 = vsel %vm8120, %v10607, %v10606
      %v10609 = vrot.slane %v10503, 1
      %v10610 = vsel %vm8123, %v10609, %v10608
      %v10611 = vrot.slane %v10565, 7
      %v10612 = vsel %vm8105, %v10611, %v10534
      %v10613 = vrot.slane %v10596, 6
      %v10614 = vsel %vm8108, %v10613, %v10612
      %v10615 = vpack.c.b16 %v10614, %v10610
      %v10618 = vsel %vm4850, %v8565, %v10326
      %v10621 = vsel %vm4850, %v8566, %v10328
      %v10624 = vsel %vm4850, %v8567, %v10330
      %v10627 = vsel %vm4850, %v8568, %v10332
      %v10630 = vsel %vm4850, %v8569, %v10334
      %v10633 = vsel %vm4850, %v8570, %v10336
      %v10636 = vsel %vm4850, %v8571, %v10338
      %v10639 = vsel %vm4850, %v8572, %v10340
      %v10642 = vsel %vm4850, %v9505, %v10342
      %v10645 = vsel %vm4850, %v9748, %v10344
      %v10648 = vsel %vm4850, %v10301, %v10346
      %v10650 = vsel %vm10002, %v10618, %v10371
      %v10652 = vsel %vm10002, %v10621, %v10373
      %v10654 = vsel %vm10002, %v10624, %v10375
      %v10656 = vsel %vm10002, %v10627, %v10377
      %v10658 = vsel %vm10002, %v10630, %v10379
      %v10660 = vsel %vm10002, %v10633, %v10381
      %v10662 = vsel %vm10002, %v10636, %v10383
      %v10664 = vsel %vm10002, %v10639, %v10385
      %v10666 = vsel %vm10002, %v10642, %v10387
      %v10668 = vsel %vm10002, %v10645, %v10389
      %v10670 = vsel %vm10002, %v10648, %v10391
      %v10672 = vsel %vm10025, %v10650, %v10416
      %v10674 = vsel %vm10025, %v10652, %v10418
      %v10676 = vsel %vm10025, %v10654, %v10420
      %v10678 = vsel %vm10025, %v10656, %v10422
      %v10680 = vsel %vm10025, %v10658, %v10424
      %v10682 = vsel %vm10025, %v10660, %v10426
      %v10684 = vsel %vm10025, %v10662, %v10428
      %v10686 = vsel %vm10025, %v10664, %v10430
      %v10688 = vsel %vm10025, %v10666, %v10432
      %v10690 = vsel %vm10025, %v10668, %v10434
      %v10692 = vsel %vm10025, %v10670, %v10436
      %v10695 = vsel %vm4850, %v9460, %v10524
      %v10698 = vsel %vm4850, %v9703, %v10526
      %v10701 = vsel %vm4850, %v9946, %v10528
      %v10704 = vsel %vm4850, %v10499, %v10530
      %v10706 = vsel %vm10002, %v10695, %v10555
      %v10708 = vsel %vm10002, %v10698, %v10557
      %v10710 = vsel %vm10002, %v10701, %v10559
      %v10712 = vsel %vm10002, %v10704, %v10561
      %v10714 = vsel %vm10025, %v10706, %v10586
      %v10716 = vsel %vm10025, %v10708, %v10588
      %v10718 = vsel %vm10025, %v10710, %v10590
      %v10720 = vsel %vm10025, %v10712, %v10592
      %v10776 = vrot.slane %v10104, 7
      %v10777 = vrot.slane %v10181, 6
      %v10778 = vrot.slane %v10258, 5
      %v10779 = vrot.slane %v10672, 4
      %v10780 = vrot.slane %v10035, 3
      %v10781 = vrot.slane %v9391, 2
      %v10782 = vrot.slane %v10106, 7
      %v10783 = vrot.slane %v10183, 6
      %v10784 = vrot.slane %v10260, 5
      %v10785 = vrot.slane %v10674, 4
      %v10786 = vrot.slane %v10037, 3
      %v10787 = vrot.slane %v9392, 2
      %v10788 = vrot.slane %v10108, 7
      %v10789 = vrot.slane %v10185, 6
      %v10790 = vrot.slane %v10262, 5
      %v10791 = vrot.slane %v10676, 4
      %v10792 = vrot.slane %v10039, 3
      %v10793 = vrot.slane %v9393, 2
      %v10794 = vrot.slane %v10110, 7
      %v10795 = vrot.slane %v10187, 6
      %v10796 = vrot.slane %v10264, 5
      %v10797 = vrot.slane %v10678, 4
      %v10798 = vrot.slane %v10041, 3
      %v10799 = vrot.slane %v9394, 2
      %v10800 = vrot.slane %v10112, 7
      %v10801 = vrot.slane %v10189, 6
      %v10802 = vrot.slane %v10266, 5
      %v10803 = vrot.slane %v10680, 4
      %v10804 = vrot.slane %v10043, 3
      %v10805 = vrot.slane %v9395, 2
      %v10806 = vrot.slane %v10114, 7
      %v10807 = vrot.slane %v10191, 6
      %v10808 = vrot.slane %v10268, 5
      %v10809 = vrot.slane %v10682, 4
      %v10810 = vrot.slane %v10045, 3
      %v10811 = vrot.slane %v9396, 2
      %v10812 = vrot.slane %v10116, 7
      %v10813 = vrot.slane %v10193, 6
      %v10814 = vrot.slane %v10270, 5
      %v10815 = vrot.slane %v10684, 4
      %v10816 = vrot.slane %v10047, 3
      %v10817 = vrot.slane %v9397, 2
      %v10818 = vrot.slane %v10118, 7
      %v10819 = vrot.slane %v10195, 6
      %v10820 = vrot.slane %v10272, 5
      %v10821 = vrot.slane %v10686, 4
      %v10822 = vrot.slane %v10714, 3
      %v10823 = vrot.slane %v9618, 2
      %v10824 = vrot.slane %v10120, 7
      %v10825 = vrot.slane %v10197, 6
      %v10826 = vrot.slane %v10274, 5
      %v10827 = vrot.slane %v10688, 4
      %v10828 = vrot.slane %v10716, 3
      %v10829 = vrot.slane %v9861, 2
      %v10830 = vrot.slane %v10122, 7
      %v10831 = vrot.slane %v10199, 6
      %v10832 = vrot.slane %v10276, 5
      %v10833 = vrot.slane %v10690, 4
      %v10834 = vrot.slane %v10718, 3
      %v10835 = vrot.slane %v10414, 2
      %v10836 = vrot.slane %v10124, 7
      %v10837 = vrot.slane %v10201, 6
      %v10838 = vrot.slane %v10278, 5
      %v10839 = vrot.slane %v10692, 4
      %v10840 = vrot.slane %v10720, 3
      %v10841 = vrot.slane %v10615, 2
      %vm10842 = vcmask 1040384
      %v10844 = vsel %vm10842, %v10027, %v10776
      %v10847 = vsel %vm8108, %v10777, %v10778
      %vm10848 = vcmask 1041408
      %v10849 = vsel %vm10848, %v10844, %v10847
      %v10852 = vsel %vm8114, %v10779, %v10780
      %vm10853 = vcmask 1045508
      %v10855 = vsel %vm10853, %v10852, %v10781
      %vm10856 = vcmask 1043456
      %v10857 = vsel %vm10856, %v10849, %v10855
      %v10859 = vsel %vm8105, %v10027, %v10776
      %v10860 = vsel %vm8111, %v10777, %v10778
      %vm10861 = vcmask 1042433
      %v10862 = vsel %vm10861, %v10859, %v10860
      %v10863 = vsel %vm8117, %v10779, %v10780
      %vm10864 = vcmask 1046533
      %v10865 = vsel %vm10864, %v10863, %v10781
      %vm10866 = vcmask 1044481
      %v10867 = vsel %vm10866, %v10862, %v10865
      %v10869 = vrot.slane %v10867, 1
      %v10870 = vsel %vm8108, %v10027, %v10776
      %v10871 = vsel %vm8114, %v10777, %v10778
      %vm10872 = vcmask 1043458
      %v10873 = vsel %vm10872, %v10870, %v10871
      %v10874 = vsel %vm8120, %v10779, %v10780
      %vm10875 = vcmask 1045504
      %v10876 = vsel %vm10875, %v10781, %v10874
      %vm10877 = vcmask 1045506
      %v10878 = vsel %vm10877, %v10873, %v10876
      %v10880 = vrot.slane %v10878, 2
      %v10881 = vsel %vm8111, %v10027, %v10776
      %v10882 = vsel %vm8117, %v10777, %v10778
      %vm10883 = vcmask 1044483
      %v10884 = vsel %vm10883, %v10881, %v10882
      %vm10885 = vcmask 1046528
      %v10886 = vsel %vm10885, %v10780, %v10779
      %vm10887 = vcmask 1046529
      %v10888 = vsel %vm10887, %v10781, %v10886
      %vm10889 = vcmask 1046531
      %v10890 = vsel %vm10889, %v10884, %v10888
      %v10892 = vrot.slane %v10890, 3
      %v10893 = vsel %vm8114, %v10027, %v10776
      %v10894 = vsel %vm8120, %v10777, %v10778
      %v10895 = vsel %vm10853, %v10893, %v10894
      %v10896 = vsel %vm10842, %v10779, %v10780
      %v10897 = vsel %vm10848, %v10896, %v10781
      %v10898 = vsel %vm10856, %v10897, %v10895
      %v10900 = vrot.slane %v10898, 4
      %v10901 = vsel %vm8117, %v10027, %v10776
      %v10902 = vsel %vm10885, %v10778, %v10777
      %v10903 = vsel %vm10864, %v10901, %v10902
      %v10904 = vsel %vm8105, %v10779, %v10780
      %v10905 = vsel %vm10861, %v10904, %v10781
      %v10906 = vsel %vm10866, %v10905, %v10903
      %v10908 = vrot.slane %v10906, 5
      %v10910 = vsel %vm10842, %v10029, %v10782
      %v10913 = vsel %vm8108, %v10783, %v10784
      %v10914 = vsel %vm10848, %v10910, %v10913
      %v10917 = vsel %vm8114, %v10785, %v10786
      %v10919 = vsel %vm10853, %v10917, %v10787
      %v10920 = vsel %vm10856, %v10914, %v10919
      %v10922 = vsel %vm8105, %v10029, %v10782
      %v10923 = vsel %vm8111, %v10783, %v10784
      %v10924 = vsel %vm10861, %v10922, %v10923
      %v10925 = vsel %vm8117, %v10785, %v10786
      %v10926 = vsel %vm10864, %v10925, %v10787
      %v10927 = vsel %vm10866, %v10924, %v10926
      %v10929 = vrot.slane %v10927, 1
      %v10930 = vsel %vm8108, %v10029, %v10782
      %v10931 = vsel %vm8114, %v10783, %v10784
      %v10932 = vsel %vm10872, %v10930, %v10931
      %v10933 = vsel %vm8120, %v10785, %v10786
      %v10934 = vsel %vm10875, %v10787, %v10933
      %v10935 = vsel %vm10877, %v10932, %v10934
      %v10937 = vrot.slane %v10935, 2
      %v10938 = vsel %vm8111, %v10029, %v10782
      %v10939 = vsel %vm8117, %v10783, %v10784
      %v10940 = vsel %vm10883, %v10938, %v10939
      %v10941 = vsel %vm10885, %v10786, %v10785
      %v10942 = vsel %vm10887, %v10787, %v10941
      %v10943 = vsel %vm10889, %v10940, %v10942
      %v10945 = vrot.slane %v10943, 3
      %v10946 = vsel %vm8114, %v10029, %v10782
      %v10947 = vsel %vm8120, %v10783, %v10784
      %v10948 = vsel %vm10853, %v10946, %v10947
      %v10949 = vsel %vm10842, %v10785, %v10786
      %v10950 = vsel %vm10848, %v10949, %v10787
      %v10951 = vsel %vm10856, %v10950, %v10948
      %v10953 = vrot.slane %v10951, 4
      %v10954 = vsel %vm8117, %v10029, %v10782
      %v10955 = vsel %vm10885, %v10784, %v10783
      %v10956 = vsel %vm10864, %v10954, %v10955
      %v10957 = vsel %vm8105, %v10785, %v10786
      %v10958 = vsel %vm10861, %v10957, %v10787
      %v10959 = vsel %vm10866, %v10958, %v10956
      %v10961 = vrot.slane %v10959, 5
      %v10963 = vsel %vm10842, %v10031, %v10788
      %v10966 = vsel %vm8108, %v10789, %v10790
      %v10967 = vsel %vm10848, %v10963, %v10966
      %v10970 = vsel %vm8114, %v10791, %v10792
      %v10972 = vsel %vm10853, %v10970, %v10793
      %v10973 = vsel %vm10856, %v10967, %v10972
      %v10975 = vsel %vm8105, %v10031, %v10788
      %v10976 = vsel %vm8111, %v10789, %v10790
      %v10977 = vsel %vm10861, %v10975, %v10976
      %v10978 = vsel %vm8117, %v10791, %v10792
      %v10979 = vsel %vm10864, %v10978, %v10793
      %v10980 = vsel %vm10866, %v10977, %v10979
      %v10982 = vrot.slane %v10980, 1
      %v10983 = vsel %vm8108, %v10031, %v10788
      %v10984 = vsel %vm8114, %v10789, %v10790
      %v10985 = vsel %vm10872, %v10983, %v10984
      %v10986 = vsel %vm8120, %v10791, %v10792
      %v10987 = vsel %vm10875, %v10793, %v10986
      %v10988 = vsel %vm10877, %v10985, %v10987
      %v10990 = vrot.slane %v10988, 2
      %v10991 = vsel %vm8111, %v10031, %v10788
      %v10992 = vsel %vm8117, %v10789, %v10790
      %v10993 = vsel %vm10883, %v10991, %v10992
      %v10994 = vsel %vm10885, %v10792, %v10791
      %v10995 = vsel %vm10887, %v10793, %v10994
      %v10996 = vsel %vm10889, %v10993, %v10995
      %v10998 = vrot.slane %v10996, 3
      %v10999 = vsel %vm8114, %v10031, %v10788
      %v11000 = vsel %vm8120, %v10789, %v10790
      %v11001 = vsel %vm10853, %v10999, %v11000
      %v11002 = vsel %vm10842, %v10791, %v10792
      %v11003 = vsel %vm10848, %v11002, %v10793
      %v11004 = vsel %vm10856, %v11003, %v11001
      %v11006 = vrot.slane %v11004, 4
      %v11007 = vsel %vm8117, %v10031, %v10788
      %v11008 = vsel %vm10885, %v10790, %v10789
      %v11009 = vsel %vm10864, %v11007, %v11008
      %v11010 = vsel %vm8105, %v10791, %v10792
      %v11011 = vsel %vm10861, %v11010, %v10793
      %v11012 = vsel %vm10866, %v11011, %v11009
      %v11014 = vrot.slane %v11012, 5
      %v11016 = vsel %vm10842, %v10033, %v10794
      %v11019 = vsel %vm8108, %v10795, %v10796
      %v11020 = vsel %vm10848, %v11016, %v11019
      %v11023 = vsel %vm8114, %v10797, %v10798
      %v11025 = vsel %vm10853, %v11023, %v10799
      %v11026 = vsel %vm10856, %v11020, %v11025
      %v11028 = vsel %vm8105, %v10033, %v10794
      %v11029 = vsel %vm8111, %v10795, %v10796
      %v11030 = vsel %vm10861, %v11028, %v11029
      %v11031 = vsel %vm8117, %v10797, %v10798
      %v11032 = vsel %vm10864, %v11031, %v10799
      %v11033 = vsel %vm10866, %v11030, %v11032
      %v11035 = vrot.slane %v11033, 1
      %v11036 = vsel %vm8108, %v10033, %v10794
      %v11037 = vsel %vm8114, %v10795, %v10796
      %v11038 = vsel %vm10872, %v11036, %v11037
      %v11039 = vsel %vm8120, %v10797, %v10798
      %v11040 = vsel %vm10875, %v10799, %v11039
      %v11041 = vsel %vm10877, %v11038, %v11040
      %v11043 = vrot.slane %v11041, 2
      %v11044 = vsel %vm8111, %v10033, %v10794
      %v11045 = vsel %vm8117, %v10795, %v10796
      %v11046 = vsel %vm10883, %v11044, %v11045
      %v11047 = vsel %vm10885, %v10798, %v10797
      %v11048 = vsel %vm10887, %v10799, %v11047
      %v11049 = vsel %vm10889, %v11046, %v11048
      %v11051 = vrot.slane %v11049, 3
      %v11052 = vsel %vm8114, %v10033, %v10794
      %v11053 = vsel %vm8120, %v10795, %v10796
      %v11054 = vsel %vm10853, %v11052, %v11053
      %v11055 = vsel %vm10842, %v10797, %v10798
      %v11056 = vsel %vm10848, %v11055, %v10799
      %v11057 = vsel %vm10856, %v11056, %v11054
      %v11059 = vrot.slane %v11057, 4
      %v11060 = vsel %vm8117, %v10033, %v10794
      %v11061 = vsel %vm10885, %v10796, %v10795
      %v11062 = vsel %vm10864, %v11060, %v11061
      %v11063 = vsel %vm8105, %v10797, %v10798
      %v11064 = vsel %vm10861, %v11063, %v10799
      %v11065 = vsel %vm10866, %v11064, %v11062
      %v11067 = vrot.slane %v11065, 5
      %v11069 = vsel %vm10842, %v10035, %v10800
      %v11072 = vsel %vm8108, %v10801, %v10802
      %v11073 = vsel %vm10848, %v11069, %v11072
      %v11076 = vsel %vm8114, %v10803, %v10804
      %v11078 = vsel %vm10853, %v11076, %v10805
      %v11079 = vsel %vm10856, %v11073, %v11078
      %v11081 = vsel %vm8105, %v10035, %v10800
      %v11082 = vsel %vm8111, %v10801, %v10802
      %v11083 = vsel %vm10861, %v11081, %v11082
      %v11084 = vsel %vm8117, %v10803, %v10804
      %v11085 = vsel %vm10864, %v11084, %v10805
      %v11086 = vsel %vm10866, %v11083, %v11085
      %v11088 = vrot.slane %v11086, 1
      %v11089 = vsel %vm8108, %v10035, %v10800
      %v11090 = vsel %vm8114, %v10801, %v10802
      %v11091 = vsel %vm10872, %v11089, %v11090
      %v11092 = vsel %vm8120, %v10803, %v10804
      %v11093 = vsel %vm10875, %v10805, %v11092
      %v11094 = vsel %vm10877, %v11091, %v11093
      %v11096 = vrot.slane %v11094, 2
      %v11097 = vsel %vm8111, %v10035, %v10800
      %v11098 = vsel %vm8117, %v10801, %v10802
      %v11099 = vsel %vm10883, %v11097, %v11098
      %v11100 = vsel %vm10885, %v10804, %v10803
      %v11101 = vsel %vm10887, %v10805, %v11100
      %v11102 = vsel %vm10889, %v11099, %v11101
      %v11104 = vrot.slane %v11102, 3
      %v11105 = vsel %vm8114, %v10035, %v10800
      %v11106 = vsel %vm8120, %v10801, %v10802
      %v11107 = vsel %vm10853, %v11105, %v11106
      %v11108 = vsel %vm10842, %v10803, %v10804
      %v11109 = vsel %vm10848, %v11108, %v10805
      %v11110 = vsel %vm10856, %v11109, %v11107
      %v11112 = vrot.slane %v11110, 4
      %v11113 = vsel %vm8117, %v10035, %v10800
      %v11114 = vsel %vm10885, %v10802, %v10801
      %v11115 = vsel %vm10864, %v11113, %v11114
      %v11116 = vsel %vm8105, %v10803, %v10804
      %v11117 = vsel %vm10861, %v11116, %v10805
      %v11118 = vsel %vm10866, %v11117, %v11115
      %v11120 = vrot.slane %v11118, 5
      %v11122 = vsel %vm10842, %v10037, %v10806
      %v11125 = vsel %vm8108, %v10807, %v10808
      %v11126 = vsel %vm10848, %v11122, %v11125
      %v11129 = vsel %vm8114, %v10809, %v10810
      %v11131 = vsel %vm10853, %v11129, %v10811
      %v11132 = vsel %vm10856, %v11126, %v11131
      %v11134 = vsel %vm8105, %v10037, %v10806
      %v11135 = vsel %vm8111, %v10807, %v10808
      %v11136 = vsel %vm10861, %v11134, %v11135
      %v11137 = vsel %vm8117, %v10809, %v10810
      %v11138 = vsel %vm10864, %v11137, %v10811
      %v11139 = vsel %vm10866, %v11136, %v11138
      %v11141 = vrot.slane %v11139, 1
      %v11142 = vsel %vm8108, %v10037, %v10806
      %v11143 = vsel %vm8114, %v10807, %v10808
      %v11144 = vsel %vm10872, %v11142, %v11143
      %v11145 = vsel %vm8120, %v10809, %v10810
      %v11146 = vsel %vm10875, %v10811, %v11145
      %v11147 = vsel %vm10877, %v11144, %v11146
      %v11149 = vrot.slane %v11147, 2
      %v11150 = vsel %vm8111, %v10037, %v10806
      %v11151 = vsel %vm8117, %v10807, %v10808
      %v11152 = vsel %vm10883, %v11150, %v11151
      %v11153 = vsel %vm10885, %v10810, %v10809
      %v11154 = vsel %vm10887, %v10811, %v11153
      %v11155 = vsel %vm10889, %v11152, %v11154
      %v11157 = vrot.slane %v11155, 3
      %v11158 = vsel %vm8114, %v10037, %v10806
      %v11159 = vsel %vm8120, %v10807, %v10808
      %v11160 = vsel %vm10853, %v11158, %v11159
      %v11161 = vsel %vm10842, %v10809, %v10810
      %v11162 = vsel %vm10848, %v11161, %v10811
      %v11163 = vsel %vm10856, %v11162, %v11160
      %v11165 = vrot.slane %v11163, 4
      %v11166 = vsel %vm8117, %v10037, %v10806
      %v11167 = vsel %vm10885, %v10808, %v10807
      %v11168 = vsel %vm10864, %v11166, %v11167
      %v11169 = vsel %vm8105, %v10809, %v10810
      %v11170 = vsel %vm10861, %v11169, %v10811
      %v11171 = vsel %vm10866, %v11170, %v11168
      %v11173 = vrot.slane %v11171, 5
      %v11175 = vsel %vm10842, %v10039, %v10812
      %v11178 = vsel %vm8108, %v10813, %v10814
      %v11179 = vsel %vm10848, %v11175, %v11178
      %v11182 = vsel %vm8114, %v10815, %v10816
      %v11184 = vsel %vm10853, %v11182, %v10817
      %v11185 = vsel %vm10856, %v11179, %v11184
      %v11187 = vsel %vm8105, %v10039, %v10812
      %v11188 = vsel %vm8111, %v10813, %v10814
      %v11189 = vsel %vm10861, %v11187, %v11188
      %v11190 = vsel %vm8117, %v10815, %v10816
      %v11191 = vsel %vm10864, %v11190, %v10817
      %v11192 = vsel %vm10866, %v11189, %v11191
      %v11194 = vrot.slane %v11192, 1
      %v11195 = vsel %vm8108, %v10039, %v10812
      %v11196 = vsel %vm8114, %v10813, %v10814
      %v11197 = vsel %vm10872, %v11195, %v11196
      %v11198 = vsel %vm8120, %v10815, %v10816
      %v11199 = vsel %vm10875, %v10817, %v11198
      %v11200 = vsel %vm10877, %v11197, %v11199
      %v11202 = vrot.slane %v11200, 2
      %v11203 = vsel %vm8111, %v10039, %v10812
      %v11204 = vsel %vm8117, %v10813, %v10814
      %v11205 = vsel %vm10883, %v11203, %v11204
      %v11206 = vsel %vm10885, %v10816, %v10815
      %v11207 = vsel %vm10887, %v10817, %v11206
      %v11208 = vsel %vm10889, %v11205, %v11207
      %v11210 = vrot.slane %v11208, 3
      %v11211 = vsel %vm8114, %v10039, %v10812
      %v11212 = vsel %vm8120, %v10813, %v10814
      %v11213 = vsel %vm10853, %v11211, %v11212
      %v11214 = vsel %vm10842, %v10815, %v10816
      %v11215 = vsel %vm10848, %v11214, %v10817
      %v11216 = vsel %vm10856, %v11215, %v11213
      %v11218 = vrot.slane %v11216, 4
      %v11219 = vsel %vm8117, %v10039, %v10812
      %v11220 = vsel %vm10885, %v10814, %v10813
      %v11221 = vsel %vm10864, %v11219, %v11220
      %v11222 = vsel %vm8105, %v10815, %v10816
      %v11223 = vsel %vm10861, %v11222, %v10817
      %v11224 = vsel %vm10866, %v11223, %v11221
      %v11226 = vrot.slane %v11224, 5
      %v11228 = vsel %vm10842, %v10041, %v10818
      %v11231 = vsel %vm8108, %v10819, %v10820
      %v11232 = vsel %vm10848, %v11228, %v11231
      %v11235 = vsel %vm8114, %v10821, %v10822
      %v11237 = vsel %vm10853, %v11235, %v10823
      %v11238 = vsel %vm10856, %v11232, %v11237
      %v11240 = vsel %vm8105, %v10041, %v10818
      %v11241 = vsel %vm8111, %v10819, %v10820
      %v11242 = vsel %vm10861, %v11240, %v11241
      %v11243 = vsel %vm8117, %v10821, %v10822
      %v11244 = vsel %vm10864, %v11243, %v10823
      %v11245 = vsel %vm10866, %v11242, %v11244
      %v11247 = vrot.slane %v11245, 1
      %v11248 = vsel %vm8108, %v10041, %v10818
      %v11249 = vsel %vm8114, %v10819, %v10820
      %v11250 = vsel %vm10872, %v11248, %v11249
      %v11251 = vsel %vm8120, %v10821, %v10822
      %v11252 = vsel %vm10875, %v10823, %v11251
      %v11253 = vsel %vm10877, %v11250, %v11252
      %v11255 = vrot.slane %v11253, 2
      %v11256 = vsel %vm8111, %v10041, %v10818
      %v11257 = vsel %vm8117, %v10819, %v10820
      %v11258 = vsel %vm10883, %v11256, %v11257
      %v11259 = vsel %vm10885, %v10822, %v10821
      %v11260 = vsel %vm10887, %v10823, %v11259
      %v11261 = vsel %vm10889, %v11258, %v11260
      %v11263 = vrot.slane %v11261, 3
      %v11264 = vsel %vm8114, %v10041, %v10818
      %v11265 = vsel %vm8120, %v10819, %v10820
      %v11266 = vsel %vm10853, %v11264, %v11265
      %v11267 = vsel %vm10842, %v10821, %v10822
      %v11268 = vsel %vm10848, %v11267, %v10823
      %v11269 = vsel %vm10856, %v11268, %v11266
      %v11271 = vrot.slane %v11269, 4
      %v11272 = vsel %vm8117, %v10041, %v10818
      %v11273 = vsel %vm10885, %v10820, %v10819
      %v11274 = vsel %vm10864, %v11272, %v11273
      %v11275 = vsel %vm8105, %v10821, %v10822
      %v11276 = vsel %vm10861, %v11275, %v10823
      %v11277 = vsel %vm10866, %v11276, %v11274
      %v11279 = vrot.slane %v11277, 5
      %v11281 = vsel %vm10842, %v10043, %v10824
      %v11284 = vsel %vm8108, %v10825, %v10826
      %v11285 = vsel %vm10848, %v11281, %v11284
      %v11288 = vsel %vm8114, %v10827, %v10828
      %v11290 = vsel %vm10853, %v11288, %v10829
      %v11291 = vsel %vm10856, %v11285, %v11290
      %v11293 = vsel %vm8105, %v10043, %v10824
      %v11294 = vsel %vm8111, %v10825, %v10826
      %v11295 = vsel %vm10861, %v11293, %v11294
      %v11296 = vsel %vm8117, %v10827, %v10828
      %v11297 = vsel %vm10864, %v11296, %v10829
      %v11298 = vsel %vm10866, %v11295, %v11297
      %v11300 = vrot.slane %v11298, 1
      %v11301 = vsel %vm8108, %v10043, %v10824
      %v11302 = vsel %vm8114, %v10825, %v10826
      %v11303 = vsel %vm10872, %v11301, %v11302
      %v11304 = vsel %vm8120, %v10827, %v10828
      %v11305 = vsel %vm10875, %v10829, %v11304
      %v11306 = vsel %vm10877, %v11303, %v11305
      %v11308 = vrot.slane %v11306, 2
      %v11309 = vsel %vm8111, %v10043, %v10824
      %v11310 = vsel %vm8117, %v10825, %v10826
      %v11311 = vsel %vm10883, %v11309, %v11310
      %v11312 = vsel %vm10885, %v10828, %v10827
      %v11313 = vsel %vm10887, %v10829, %v11312
      %v11314 = vsel %vm10889, %v11311, %v11313
      %v11316 = vrot.slane %v11314, 3
      %v11317 = vsel %vm8114, %v10043, %v10824
      %v11318 = vsel %vm8120, %v10825, %v10826
      %v11319 = vsel %vm10853, %v11317, %v11318
      %v11320 = vsel %vm10842, %v10827, %v10828
      %v11321 = vsel %vm10848, %v11320, %v10829
      %v11322 = vsel %vm10856, %v11321, %v11319
      %v11324 = vrot.slane %v11322, 4
      %v11325 = vsel %vm8117, %v10043, %v10824
      %v11326 = vsel %vm10885, %v10826, %v10825
      %v11327 = vsel %vm10864, %v11325, %v11326
      %v11328 = vsel %vm8105, %v10827, %v10828
      %v11329 = vsel %vm10861, %v11328, %v10829
      %v11330 = vsel %vm10866, %v11329, %v11327
      %v11332 = vrot.slane %v11330, 5
      %v11334 = vsel %vm10842, %v10045, %v10830
      %v11337 = vsel %vm8108, %v10831, %v10832
      %v11338 = vsel %vm10848, %v11334, %v11337
      %v11341 = vsel %vm8114, %v10833, %v10834
      %v11343 = vsel %vm10853, %v11341, %v10835
      %v11344 = vsel %vm10856, %v11338, %v11343
      %v11346 = vsel %vm8105, %v10045, %v10830
      %v11347 = vsel %vm8111, %v10831, %v10832
      %v11348 = vsel %vm10861, %v11346, %v11347
      %v11349 = vsel %vm8117, %v10833, %v10834
      %v11350 = vsel %vm10864, %v11349, %v10835
      %v11351 = vsel %vm10866, %v11348, %v11350
      %v11353 = vrot.slane %v11351, 1
      %v11354 = vsel %vm8108, %v10045, %v10830
      %v11355 = vsel %vm8114, %v10831, %v10832
      %v11356 = vsel %vm10872, %v11354, %v11355
      %v11357 = vsel %vm8120, %v10833, %v10834
      %v11358 = vsel %vm10875, %v10835, %v11357
      %v11359 = vsel %vm10877, %v11356, %v11358
      %v11361 = vrot.slane %v11359, 2
      %v11362 = vsel %vm8111, %v10045, %v10830
      %v11363 = vsel %vm8117, %v10831, %v10832
      %v11364 = vsel %vm10883, %v11362, %v11363
      %v11365 = vsel %vm10885, %v10834, %v10833
      %v11366 = vsel %vm10887, %v10835, %v11365
      %v11367 = vsel %vm10889, %v11364, %v11366
      %v11369 = vrot.slane %v11367, 3
      %v11370 = vsel %vm8114, %v10045, %v10830
      %v11371 = vsel %vm8120, %v10831, %v10832
      %v11372 = vsel %vm10853, %v11370, %v11371
      %v11373 = vsel %vm10842, %v10833, %v10834
      %v11374 = vsel %vm10848, %v11373, %v10835
      %v11375 = vsel %vm10856, %v11374, %v11372
      %v11377 = vrot.slane %v11375, 4
      %v11378 = vsel %vm8117, %v10045, %v10830
      %v11379 = vsel %vm10885, %v10832, %v10831
      %v11380 = vsel %vm10864, %v11378, %v11379
      %v11381 = vsel %vm8105, %v10833, %v10834
      %v11382 = vsel %vm10861, %v11381, %v10835
      %v11383 = vsel %vm10866, %v11382, %v11380
      %v11385 = vrot.slane %v11383, 5
      %v11387 = vsel %vm10842, %v10047, %v10836
      %v11390 = vsel %vm8108, %v10837, %v10838
      %v11391 = vsel %vm10848, %v11387, %v11390
      %v11394 = vsel %vm8114, %v10839, %v10840
      %v11396 = vsel %vm10853, %v11394, %v10841
      %v11397 = vsel %vm10856, %v11391, %v11396
      %v11399 = vsel %vm8105, %v10047, %v10836
      %v11400 = vsel %vm8111, %v10837, %v10838
      %v11401 = vsel %vm10861, %v11399, %v11400
      %v11402 = vsel %vm8117, %v10839, %v10840
      %v11403 = vsel %vm10864, %v11402, %v10841
      %v11404 = vsel %vm10866, %v11401, %v11403
      %v11406 = vrot.slane %v11404, 1
      %v11407 = vsel %vm8108, %v10047, %v10836
      %v11408 = vsel %vm8114, %v10837, %v10838
      %v11409 = vsel %vm10872, %v11407, %v11408
      %v11410 = vsel %vm8120, %v10839, %v10840
      %v11411 = vsel %vm10875, %v10841, %v11410
      %v11412 = vsel %vm10877, %v11409, %v11411
      %v11414 = vrot.slane %v11412, 2
      %v11415 = vsel %vm8111, %v10047, %v10836
      %v11416 = vsel %vm8117, %v10837, %v10838
      %v11417 = vsel %vm10883, %v11415, %v11416
      %v11418 = vsel %vm10885, %v10840, %v10839
      %v11419 = vsel %vm10887, %v10841, %v11418
      %v11420 = vsel %vm10889, %v11417, %v11419
      %v11422 = vrot.slane %v11420, 3
      %v11423 = vsel %vm8114, %v10047, %v10836
      %v11424 = vsel %vm8120, %v10837, %v10838
      %v11425 = vsel %vm10853, %v11423, %v11424
      %v11426 = vsel %vm10842, %v10839, %v10840
      %v11427 = vsel %vm10848, %v11426, %v10841
      %v11428 = vsel %vm10856, %v11427, %v11425
      %v11430 = vrot.slane %v11428, 4
      %v11431 = vsel %vm8117, %v10047, %v10836
      %v11432 = vsel %vm10885, %v10838, %v10837
      %v11433 = vsel %vm10864, %v11431, %v11432
      %v11434 = vsel %vm8105, %v10839, %v10840
      %v11435 = vsel %vm10861, %v11434, %v10841
      %v11436 = vsel %vm10866, %v11435, %v11433
      %v11438 = vrot.slane %v11436, 5
      %v11439 = vunpack.i.l.s16 %v10857
      %v11440 = vunpack.i.h.s16 %v10857
      %v11441 = vunpack.i.l.s16 %v10869
      %v11442 = vunpack.i.h.s16 %v10869
      %v11443 = vunpack.i.l.s16 %v10880
      %v11444 = vunpack.i.h.s16 %v10880
      %v11445 = vunpack.i.l.s16 %v10892
      %v11446 = vunpack.i.h.s16 %v10892
      %v11447 = vunpack.i.l.s16 %v10900
      %v11448 = vunpack.i.h.s16 %v10900
      %v11449 = vunpack.i.l.s16 %v10908
      %v11450 = vunpack.i.l.s16 %v10920
      %v11451 = vunpack.i.h.s16 %v10920
      %v11452 = vunpack.i.l.s16 %v10929
      %v11453 = vunpack.i.h.s16 %v10929
      %v11454 = vunpack.i.l.s16 %v10937
      %v11455 = vunpack.i.h.s16 %v10937
      %v11456 = vunpack.i.l.s16 %v10945
      %v11457 = vunpack.i.h.s16 %v10945
      %v11458 = vunpack.i.l.s16 %v10953
      %v11459 = vunpack.i.h.s16 %v10953
      %v11460 = vunpack.i.l.s16 %v10961
      %v11461 = vunpack.i.l.s16 %v10973
      %v11462 = vunpack.i.h.s16 %v10973
      %v11463 = vunpack.i.l.s16 %v10982
      %v11464 = vunpack.i.h.s16 %v10982
      %v11465 = vunpack.i.l.s16 %v10990
      %v11466 = vunpack.i.h.s16 %v10990
      %v11467 = vunpack.i.l.s16 %v10998
      %v11468 = vunpack.i.h.s16 %v10998
      %v11469 = vunpack.i.l.s16 %v11006
      %v11470 = vunpack.i.h.s16 %v11006
      %v11471 = vunpack.i.l.s16 %v11014
      %v11472 = vunpack.i.l.s16 %v11026
      %v11473 = vunpack.i.h.s16 %v11026
      %v11474 = vunpack.i.l.s16 %v11035
      %v11475 = vunpack.i.h.s16 %v11035
      %v11476 = vunpack.i.l.s16 %v11043
      %v11477 = vunpack.i.h.s16 %v11043
      %v11478 = vunpack.i.l.s16 %v11051
      %v11479 = vunpack.i.h.s16 %v11051
      %v11480 = vunpack.i.l.s16 %v11059
      %v11481 = vunpack.i.h.s16 %v11059
      %v11482 = vunpack.i.l.s16 %v11067
      %v11483 = vunpack.i.l.s16 %v11079
      %v11484 = vunpack.i.h.s16 %v11079
      %v11485 = vunpack.i.l.s16 %v11088
      %v11486 = vunpack.i.h.s16 %v11088
      %v11487 = vunpack.i.l.s16 %v11096
      %v11488 = vunpack.i.h.s16 %v11096
      %v11489 = vunpack.i.l.s16 %v11104
      %v11490 = vunpack.i.h.s16 %v11104
      %v11491 = vunpack.i.l.s16 %v11112
      %v11492 = vunpack.i.h.s16 %v11112
      %v11493 = vunpack.i.l.s16 %v11120
      %v11494 = vunpack.i.l.s16 %v11132
      %v11495 = vunpack.i.h.s16 %v11132
      %v11496 = vunpack.i.l.s16 %v11141
      %v11497 = vunpack.i.h.s16 %v11141
      %v11498 = vunpack.i.l.s16 %v11149
      %v11499 = vunpack.i.h.s16 %v11149
      %v11500 = vunpack.i.l.s16 %v11157
      %v11501 = vunpack.i.h.s16 %v11157
      %v11502 = vunpack.i.l.s16 %v11165
      %v11503 = vunpack.i.h.s16 %v11165
      %v11504 = vunpack.i.l.s16 %v11173
      %v11505 = vunpack.i.l.s16 %v11185
      %v11506 = vunpack.i.h.s16 %v11185
      %v11507 = vunpack.i.l.s16 %v11194
      %v11508 = vunpack.i.h.s16 %v11194
      %v11509 = vunpack.i.l.s16 %v11202
      %v11510 = vunpack.i.h.s16 %v11202
      %v11511 = vunpack.i.l.s16 %v11210
      %v11512 = vunpack.i.h.s16 %v11210
      %v11513 = vunpack.i.l.s16 %v11218
      %v11514 = vunpack.i.h.s16 %v11218
      %v11515 = vunpack.i.l.s16 %v11226
      %v11516 = vunpack.i.l.s16 %v11238
      %v11517 = vunpack.i.h.s16 %v11238
      %v11518 = vunpack.i.l.s16 %v11247
      %v11519 = vunpack.i.h.s16 %v11247
      %v11520 = vunpack.i.l.s16 %v11255
      %v11521 = vunpack.i.h.s16 %v11255
      %v11522 = vunpack.i.l.s16 %v11263
      %v11523 = vunpack.i.h.s16 %v11263
      %v11524 = vunpack.i.l.s16 %v11271
      %v11525 = vunpack.i.h.s16 %v11271
      %v11526 = vunpack.i.l.s16 %v11279
      %v11527 = vunpack.i.l.s16 %v11291
      %v11528 = vunpack.i.h.s16 %v11291
      %v11529 = vunpack.i.l.s16 %v11300
      %v11530 = vunpack.i.h.s16 %v11300
      %v11531 = vunpack.i.l.s16 %v11308
      %v11532 = vunpack.i.h.s16 %v11308
      %v11533 = vunpack.i.l.s16 %v11316
      %v11534 = vunpack.i.h.s16 %v11316
      %v11535 = vunpack.i.l.s16 %v11324
      %v11536 = vunpack.i.h.s16 %v11324
      %v11537 = vunpack.i.l.s16 %v11332
      %v11538 = vunpack.i.l.s16 %v11344
      %v11539 = vunpack.i.h.s16 %v11344
      %v11540 = vunpack.i.l.s16 %v11353
      %v11541 = vunpack.i.h.s16 %v11353
      %v11542 = vunpack.i.l.s16 %v11361
      %v11543 = vunpack.i.h.s16 %v11361
      %v11544 = vunpack.i.l.s16 %v11369
      %v11545 = vunpack.i.h.s16 %v11369
      %v11546 = vunpack.i.l.s16 %v11377
      %v11547 = vunpack.i.h.s16 %v11377
      %v11548 = vunpack.i.l.s16 %v11385
      %v11549 = vunpack.i.l.s16 %v11397
      %v11550 = vunpack.i.h.s16 %v11397
      %v11551 = vunpack.i.l.s16 %v11406
      %v11552 = vunpack.i.h.s16 %v11406
      %v11553 = vunpack.i.l.s16 %v11414
      %v11554 = vunpack.i.h.s16 %v11414
      %v11555 = vunpack.i.l.s16 %v11422
      %v11556 = vunpack.i.h.s16 %v11422
      %v11557 = vunpack.i.l.s16 %v11430
      %v11558 = vunpack.i.h.s16 %v11430
      %v11559 = vunpack.i.l.s16 %v11438
      %v11560 = vld [vmem:[%s3] sm:$0xf]
      %v11561 = vld [vmem:[%s3 + $0x4] sm:$0xf]
      %v11562 = vld [vmem:[%s3 + $0x8] sm:$0xf]
      %v11563 = vld [vmem:[%s3 + $0xc] sm:$0xf]
      %v11564 = vld [vmem:[%s3 + $0x10] sm:$0xf]
      %v11565 = vld [vmem:[%s3 + $0x14] sm:$0xf]
      %v11566 = vld [vmem:[%s3 + $0x18] sm:$0xf]
      %v11567 = vld [vmem:[%s3 + $0x1c] sm:$0xf]
      %v11568 = vld [vmem:[%s3 + $0x20] sm:$0xf]
      %v11569 = vld [vmem:[%s3 + $0x24] sm:$0xf]
      %v11570 = vld [vmem:[%s3 + $0x28] sm:$0xf]
      %v11571 = vld [vmem:[%s3 + $0x2c] sm:$0xf]
      %v11572 = vld [vmem:[%s3 + $0x30] sm:$0xf]
      %v11573 = vld [vmem:[%s3 + $0x34] sm:$0xf]
      %v11574 = vld [vmem:[%s3 + $0x38] sm:$0xf]
      %v11575 = vld [vmem:[%s3 + $0x3c] sm:$0xf]
      %v11576 = vld [vmem:[%s3 + $0x40] sm:$0xf]
      %v11577 = vld [vmem:[%s3 + $0x44] sm:$0xf]
      %v11578 = vld [vmem:[%s3 + $0x48] sm:$0xf]
      %v11579 = vld [vmem:[%s3 + $0x4c] sm:$0xf]
      %v11580 = vld [vmem:[%s3 + $0x50] sm:$0xf]
      %v11581 = vld [vmem:[%s3 + $0x54] sm:$0xf]
      %v11582 = vld [vmem:[%s3 + $0x58] sm:$0xf]
      %v11583 = vld [vmem:[%s3 + $0x5c] sm:$0xf]
      %v11584 = vld [vmem:[%s3 + $0x60] sm:$0xf]
      %v11585 = vld [vmem:[%s3 + $0x64] sm:$0xf]
      %v11586 = vld [vmem:[%s3 + $0x68] sm:$0xf]
      %v11587 = vld [vmem:[%s3 + $0x6c] sm:$0xf]
      %v11588 = vld [vmem:[%s3 + $0x70] sm:$0xf]
      %v11589 = vld [vmem:[%s3 + $0x74] sm:$0xf]
      %v11590 = vld [vmem:[%s3 + $0x78] sm:$0xf]
      %v11591 = vld [vmem:[%s3 + $0x7c] sm:$0xf]
      %v11592 = vld [vmem:[%s3 + $0x80] sm:$0xf]
      %v11593 = vld [vmem:[%s3 + $0x84] sm:$0xf]
      %v11594 = vld [vmem:[%s3 + $0x88] sm:$0xf]
      %v11595 = vld [vmem:[%s3 + $0x8c] sm:$0xf]
      %v11596 = vld [vmem:[%s3 + $0x90] sm:$0xf]
      %v11597 = vld [vmem:[%s3 + $0x94] sm:$0xf]
      %v11598 = vld [vmem:[%s3 + $0x98] sm:$0xf]
      %v11599 = vld [vmem:[%s3 + $0x9c] sm:$0xf]
      %v11600 = vld [vmem:[%s3 + $0xa0] sm:$0xf]
      %v11601 = vld [vmem:[%s3 + $0xa4] sm:$0xf]
      %v11602 = vld [vmem:[%s3 + $0xa8] sm:$0xf]
      %v11603 = vld [vmem:[%s3 + $0xac] sm:$0xf]
      %v11604 = vld [vmem:[%s3 + $0xb0] sm:$0xf]
      %v11605 = vld [vmem:[%s3 + $0xb4] sm:$0xf]
      %v11606 = vld [vmem:[%s3 + $0xb8] sm:$0xf]
      %v11607 = vld [vmem:[%s3 + $0xbc] sm:$0xf]
      %v11608 = vld [vmem:[%s3 + $0xc0] sm:$0xf]
      %v11609 = vld [vmem:[%s3 + $0xc4] sm:$0xf]
      %v11610 = vld [vmem:[%s3 + $0xc8] sm:$0xf]
      %v11611 = vld [vmem:[%s3 + $0xcc] sm:$0xf]
      %v11612 = vld [vmem:[%s3 + $0xd0] sm:$0xf]
      %v11613 = vld [vmem:[%s3 + $0xd4] sm:$0xf]
      %v11614 = vld [vmem:[%s3 + $0xd8] sm:$0xf]
      %v11615 = vld [vmem:[%s3 + $0xdc] sm:$0xf]
      %v11616 = vld [vmem:[%s3 + $0xe0] sm:$0xf]
      %v11617 = vld [vmem:[%s3 + $0xe4] sm:$0xf]
      %v11618 = vld [vmem:[%s3 + $0xe8] sm:$0xf]
      %v11619 = vld [vmem:[%s3 + $0xec] sm:$0xf]
      %v11620 = vld [vmem:[%s3 + $0xf0] sm:$0xf]
      %v11621 = vld [vmem:[%s3 + $0xf4] sm:$0xf]
      %v11622 = vld [vmem:[%s3 + $0xf8] sm:$0xf]
      %v11623 = vld [vmem:[%s3 + $0xfc] sm:$0xf]
      %v11624 = vld [vmem:[%s3 + $0x100] sm:$0xf]
      %v11625 = vld [vmem:[%s3 + $0x104] sm:$0xf]
      %v11626 = vld [vmem:[%s3 + $0x108] sm:$0xf]
      %v11627 = vld [vmem:[%s3 + $0x10c] sm:$0xf]
      %v11628 = vld [vmem:[%s3 + $0x110] sm:$0xf]
      %v11629 = vld [vmem:[%s3 + $0x114] sm:$0xf]
      %v11630 = vld [vmem:[%s3 + $0x118] sm:$0xf]
      %v11631 = vld [vmem:[%s3 + $0x11c] sm:$0xf]
      %v11632 = vld [vmem:[%s3 + $0x120] sm:$0xf]
      %v11633 = vld [vmem:[%s3 + $0x124] sm:$0xf]
      %v11634 = vld [vmem:[%s3 + $0x128] sm:$0xf]
      %v11635 = vld [vmem:[%s3 + $0x12c] sm:$0xf]
      %v11636 = vld [vmem:[%s3 + $0x130] sm:$0xf]
      %v11637 = vld [vmem:[%s3 + $0x134] sm:$0xf]
      %v11638 = vld [vmem:[%s3 + $0x138] sm:$0xf]
      %v11639 = vld [vmem:[%s3 + $0x13c] sm:$0xf]
      %v11640 = vld [vmem:[%s3 + $0x140] sm:$0xf]
      %v11641 = vld [vmem:[%s3 + $0x144] sm:$0xf]
      %v11642 = vld [vmem:[%s3 + $0x148] sm:$0xf]
      %v11643 = vld [vmem:[%s3 + $0x14c] sm:$0xf]
      %v11644 = vld [vmem:[%s3 + $0x150] sm:$0xf]
      %v11645 = vld [vmem:[%s3 + $0x154] sm:$0xf]
      %v11646 = vld [vmem:[%s3 + $0x158] sm:$0xf]
      %v11647 = vld [vmem:[%s3 + $0x15c] sm:$0xf]
      %v11648 = vld [vmem:[%s3 + $0x160] sm:$0xf]
      %v11649 = vld [vmem:[%s3 + $0x164] sm:$0xf]
      %v11650 = vld [vmem:[%s3 + $0x168] sm:$0xf]
      %v11651 = vld [vmem:[%s3 + $0x16c] sm:$0xf]
      %v11652 = vld [vmem:[%s3 + $0x170] sm:$0xf]
      %v11653 = vld [vmem:[%s3 + $0x174] sm:$0xf]
      %v11654 = vld [vmem:[%s3 + $0x178] sm:$0xf]
      %v11655 = vld [vmem:[%s3 + $0x17c] sm:$0xf]
      %v11656 = vld [vmem:[%s3 + $0x180] sm:$0xf]
      %v11657 = vld [vmem:[%s3 + $0x184] sm:$0xf]
      %v11658 = vld [vmem:[%s3 + $0x188] sm:$0xf]
      %v11659 = vld [vmem:[%s3 + $0x18c] sm:$0xf]
      %v11660 = vld [vmem:[%s4] sm:$0x1]
      %v11662 = vperm.slane %v11660, 0
      %v11664 = vpack.i.b16 %v11440, %v11439
      %v11665 = vpack.i.b16 %v11442, %v11441
      %v11666 = vpack.i.b16 %v11444, %v11443
      %v11667 = vpack.i.b16 %v11446, %v11445
      %v11668 = vpack.i.b16 %v11448, %v11447
      %v11669 = vpack.i.b16 %v11450, %v11449
      %v11670 = vpack.i.b16 %v11452, %v11451
      %v11671 = vpack.i.b16 %v11454, %v11453
      %v11672 = vpack.i.b16 %v11456, %v11455
      %v11673 = vpack.i.b16 %v11458, %v11457
      %v11674 = vpack.i.b16 %v11460, %v11459
      %v11675 = vpack.i.b16 %v11462, %v11461
      %v11676 = vpack.i.b16 %v11464, %v11463
      %v11677 = vpack.i.b16 %v11466, %v11465
      %v11678 = vpack.i.b16 %v11468, %v11467
      %v11679 = vpack.i.b16 %v11470, %v11469
      %v11680 = vpack.i.b16 %v11472, %v11471
      %v11681 = vpack.i.b16 %v11474, %v11473
      %v11682 = vpack.i.b16 %v11476, %v11475
      %v11683 = vpack.i.b16 %v11478, %v11477
      %v11684 = vpack.i.b16 %v11480, %v11479
      %v11685 = vpack.i.b16 %v11482, %v11481
      %v11686 = vpack.i.b16 %v11484, %v11483
      %v11687 = vpack.i.b16 %v11486, %v11485
      %v11688 = vpack.i.b16 %v11488, %v11487
      %v11689 = vpack.i.b16 %v11490, %v11489
      %v11690 = vpack.i.b16 %v11492, %v11491
      %v11691 = vpack.i.b16 %v11494, %v11493
      %v11692 = vpack.i.b16 %v11496, %v11495
      %v11693 = vpack.i.b16 %v11498, %v11497
      %v11694 = vpack.i.b16 %v11500, %v11499
      %v11695 = vpack.i.b16 %v11502, %v11501
      %v11696 = vpack.i.b16 %v11504, %v11503
      %v11697 = vpack.i.b16 %v11506, %v11505
      %v11698 = vpack.i.b16 %v11508, %v11507
      %v11699 = vpack.i.b16 %v11510, %v11509
      %v11700 = vpack.i.b16 %v11512, %v11511
      %v11701 = vpack.i.b16 %v11514, %v11513
      %v11702 = vpack.i.b16 %v11516, %v11515
      %v11703 = vpack.i.b16 %v11518, %v11517
      %v11704 = vpack.i.b16 %v11520, %v11519
      %v11705 = vpack.i.b16 %v11522, %v11521
      %v11706 = vpack.i.b16 %v11524, %v11523
      %v11707 = vpack.i.b16 %v11526, %v11525
      %v11708 = vpack.i.b16 %v11528, %v11527
      %v11709 = vpack.i.b16 %v11530, %v11529
      %v11710 = vpack.i.b16 %v11532, %v11531
      %v11711 = vpack.i.b16 %v11534, %v11533
      %v11712 = vpack.i.b16 %v11536, %v11535
      %v11713 = vpack.i.b16 %v11538, %v11537
      %v11714 = vpack.i.b16 %v11540, %v11539
      %v11715 = vpack.i.b16 %v11542, %v11541
      %v11716 = vpack.i.b16 %v11544, %v11543
      %v11717 = vpack.i.b16 %v11546, %v11545
      %v11718 = vpack.i.b16 %v11548, %v11547
      %v11719 = vpack.i.b16 %v11550, %v11549
      %v11720 = vpack.i.b16 %v11552, %v11551
      %v11721 = vpack.i.b16 %v11554, %v11553
      %v11722 = vpack.i.b16 %v11556, %v11555
      %v11723 = vpack.i.b16 %v11558, %v11557
      %11726 = vst [vmem:[#allocation1] ss:$9 sm:$0xff] %v11664
      %s11728 = scalar_lea.vmem [#allocation1], 1
      %11729 = vst [vmem:[%s11728] ss:$9 sm:$0xff] %v11665
      %s11731 = scalar_lea.vmem [#allocation1], 2
      %11732 = vst [vmem:[%s11731] ss:$9 sm:$0xff] %v11666
      %s11734 = scalar_lea.vmem [#allocation1], 3
      %11735 = vst [vmem:[%s11734] ss:$9 sm:$0xff] %v11667
      %s11737 = scalar_lea.vmem [#allocation1], 4
      %11738 = vst [vmem:[%s11737] ss:$9 sm:$0xff] %v11668
      %s11740 = scalar_lea.vmem [#allocation1], 5
      %11741 = vst [vmem:[%s11740] ss:$9 sm:$0xff] %v11669
      %s11743 = scalar_lea.vmem [#allocation1], 6
      %11744 = vst [vmem:[%s11743] ss:$9 sm:$0xff] %v11670
      %s11746 = scalar_lea.vmem [#allocation1], 7
      %11747 = vst [vmem:[%s11746] ss:$9 sm:$0xff] %v11671
      %v11748 = vld [vmem:[#allocation1] sm:$0xff]
      %v11749 = vld [vmem:[#allocation1 + $0x9] sm:$0xff]
      %v11750 = vld [vmem:[#allocation1 + $0x12] sm:$0xff]
      %v11751 = vld [vmem:[#allocation1 + $0x1b] sm:$0xff]
      %v11752 = vld [vmem:[#allocation1 + $0x24] sm:$0xff]
      %v11753 = vld [vmem:[#allocation1 + $0x2d] sm:$0xff]
      %v11754 = vld [vmem:[#allocation1 + $0x36] sm:$0xff]
      %11756 = vst [vmem:[#allocation1] ss:$9 sm:$0xff] %v11672
      %11758 = vst [vmem:[%s11728] ss:$9 sm:$0xff] %v11673
      %11760 = vst [vmem:[%s11731] ss:$9 sm:$0xff] %v11674
      %11762 = vst [vmem:[%s11734] ss:$9 sm:$0xff] %v11675
      %11764 = vst [vmem:[%s11737] ss:$9 sm:$0xff] %v11676
      %11766 = vst [vmem:[%s11740] ss:$9 sm:$0xff] %v11677
      %11768 = vst [vmem:[%s11743] ss:$9 sm:$0xff] %v11678
      %11770 = vst [vmem:[%s11746] ss:$9 sm:$0xff] %v11679
      %v11771 = vld [vmem:[#allocation1] sm:$0xff]
      %v11772 = vld [vmem:[#allocation1 + $0x9] sm:$0xff]
      %v11773 = vld [vmem:[#allocation1 + $0x12] sm:$0xff]
      %v11774 = vld [vmem:[#allocation1 + $0x1b] sm:$0xff]
      %v11775 = vld [vmem:[#allocation1 + $0x24] sm:$0xff]
      %v11776 = vld [vmem:[#allocation1 + $0x2d] sm:$0xff]
      %v11777 = vld [vmem:[#allocation1 + $0x36] sm:$0xff]
      %11779 = vst [vmem:[#allocation1] ss:$9 sm:$0xff] %v11680
      %11781 = vst [vmem:[%s11728] ss:$9 sm:$0xff] %v11681
      %11783 = vst [vmem:[%s11731] ss:$9 sm:$0xff] %v11682
      %11785 = vst [vmem:[%s11734] ss:$9 sm:$0xff] %v11683
      %11787 = vst [vmem:[%s11737] ss:$9 sm:$0xff] %v11684
      %11789 = vst [vmem:[%s11740] ss:$9 sm:$0xff] %v11685
      %11791 = vst [vmem:[%s11743] ss:$9 sm:$0xff] %v11686
      %11793 = vst [vmem:[%s11746] ss:$9 sm:$0xff] %v11687
      %v11794 = vld [vmem:[#allocation1] sm:$0xff]
      %v11795 = vld [vmem:[#allocation1 + $0x9] sm:$0xff]
      %v11796 = vld [vmem:[#allocation1 + $0x12] sm:$0xff]
      %v11797 = vld [vmem:[#allocation1 + $0x1b] sm:$0xff]
      %v11798 = vld [vmem:[#allocation1 + $0x24] sm:$0xff]
      %v11799 = vld [vmem:[#allocation1 + $0x2d] sm:$0xff]
      %v11800 = vld [vmem:[#allocation1 + $0x36] sm:$0xff]
      %11802 = vst [vmem:[#allocation1] ss:$9 sm:$0xff] %v11688
      %11804 = vst [vmem:[%s11728] ss:$9 sm:$0xff] %v11689
      %11806 = vst [vmem:[%s11731] ss:$9 sm:$0xff] %v11690
      %11808 = vst [vmem:[%s11734] ss:$9 sm:$0xff] %v11691
      %11810 = vst [vmem:[%s11737] ss:$9 sm:$0xff] %v11692
      %11812 = vst [vmem:[%s11740] ss:$9 sm:$0xff] %v11693
      %11814 = vst [vmem:[%s11743] ss:$9 sm:$0xff] %v11694
      %11816 = vst [vmem:[%s11746] ss:$9 sm:$0xff] %v11695
      %v11817 = vld [vmem:[#allocation1] sm:$0xff]
      %v11818 = vld [vmem:[#allocation1 + $0x9] sm:$0xff]
      %v11819 = vld [vmem:[#allocation1 + $0x12] sm:$0xff]
      %v11820 = vld [vmem:[#allocation1 + $0x1b] sm:$0xff]
      %v11821 = vld [vmem:[#allocation1 + $0x24] sm:$0xff]
      %v11822 = vld [vmem:[#allocation1 + $0x2d] sm:$0xff]
      %v11823 = vld [vmem:[#allocation1 + $0x36] sm:$0xff]
      %11825 = vst [vmem:[#allocation1] ss:$9 sm:$0xff] %v11696
      %11827 = vst [vmem:[%s11728] ss:$9 sm:$0xff] %v11697
      %11829 = vst [vmem:[%s11731] ss:$9 sm:$0xff] %v11698
      %11831 = vst [vmem:[%s11734] ss:$9 sm:$0xff] %v11699
      %11833 = vst [vmem:[%s11737] ss:$9 sm:$0xff] %v11700
      %11835 = vst [vmem:[%s11740] ss:$9 sm:$0xff] %v11701
      %11837 = vst [vmem:[%s11743] ss:$9 sm:$0xff] %v11702
      %11839 = vst [vmem:[%s11746] ss:$9 sm:$0xff] %v11703
      %v11840 = vld [vmem:[#allocation1] sm:$0xff]
      %v11841 = vld [vmem:[#allocation1 + $0x9] sm:$0xff]
      %v11842 = vld [vmem:[#allocation1 + $0x12] sm:$0xff]
      %v11843 = vld [vmem:[#allocation1 + $0x1b] sm:$0xff]
      %v11844 = vld [vmem:[#allocation1 + $0x24] sm:$0xff]
      %v11845 = vld [vmem:[#allocation1 + $0x2d] sm:$0xff]
      %v11846 = vld [vmem:[#allocation1 + $0x36] sm:$0xff]
      %11848 = vst [vmem:[#allocation1] ss:$9 sm:$0xff] %v11704
      %11850 = vst [vmem:[%s11728] ss:$9 sm:$0xff] %v11705
      %11852 = vst [vmem:[%s11731] ss:$9 sm:$0xff] %v11706
      %11854 = vst [vmem:[%s11734] ss:$9 sm:$0xff] %v11707
      %11856 = vst [vmem:[%s11737] ss:$9 sm:$0xff] %v11708
      %11858 = vst [vmem:[%s11740] ss:$9 sm:$0xff] %v11709
      %11860 = vst [vmem:[%s11743] ss:$9 sm:$0xff] %v11710
      %11862 = vst [vmem:[%s11746] ss:$9 sm:$0xff] %v11711
      %v11863 = vld [vmem:[#allocation1] sm:$0xff]
      %v11864 = vld [vmem:[#allocation1 + $0x9] sm:$0xff]
      %v11865 = vld [vmem:[#allocation1 + $0x12] sm:$0xff]
      %v11866 = vld [vmem:[#allocation1 + $0x1b] sm:$0xff]
      %v11867 = vld [vmem:[#allocation1 + $0x24] sm:$0xff]
      %v11868 = vld [vmem:[#allocation1 + $0x2d] sm:$0xff]
      %v11869 = vld [vmem:[#allocation1 + $0x36] sm:$0xff]
      %11871 = vst [vmem:[#allocation1] ss:$9 sm:$0xff] %v11712
      %11873 = vst [vmem:[%s11728] ss:$9 sm:$0xff] %v11713
      %11875 = vst [vmem:[%s11731] ss:$9 sm:$0xff] %v11714
      %11877 = vst [vmem:[%s11734] ss:$9 sm:$0xff] %v11715
      %11879 = vst [vmem:[%s11737] ss:$9 sm:$0xff] %v11716
      %11881 = vst [vmem:[%s11740] ss:$9 sm:$0xff] %v11717
      %11883 = vst [vmem:[%s11743] ss:$9 sm:$0xff] %v11718
      %11885 = vst [vmem:[%s11746] ss:$9 sm:$0xff] %v11719
      %v11886 = vld [vmem:[#allocation1] sm:$0xff]
      %v11887 = vld [vmem:[#allocation1 + $0x9] sm:$0xff]
      %v11888 = vld [vmem:[#allocation1 + $0x12] sm:$0xff]
      %v11889 = vld [vmem:[#allocation1 + $0x1b] sm:$0xff]
      %v11890 = vld [vmem:[#allocation1 + $0x24] sm:$0xff]
      %v11891 = vld [vmem:[#allocation1 + $0x2d] sm:$0xff]
      %v11892 = vld [vmem:[#allocation1 + $0x36] sm:$0xff]
      %11894 = vst [vmem:[#allocation1] ss:$9 sm:$0xff] %v11720
      %11896 = vst [vmem:[%s11728] ss:$9 sm:$0xff] %v11721
      %11898 = vst [vmem:[%s11731] ss:$9 sm:$0xff] %v11722
      %11900 = vst [vmem:[%s11734] ss:$9 sm:$0xff] %v11723
      %11902 = vst [vmem:[%s11737] ss:$9 sm:$0xff] %v11559
      %v11903 = vld [vmem:[#allocation1] sm:$0xff]
      %v11904 = vld [vmem:[#allocation1 + $0x9] sm:$0xff]
      %v11905 = vld [vmem:[#allocation1 + $0x12] sm:$0xff]
      %v11906 = vld [vmem:[#allocation1 + $0x1b] sm:$0xff]
      %v11907 = vld [vmem:[#allocation1 + $0x24] sm:$0xff]
      %v11908 = vld [vmem:[#allocation1 + $0x2d] sm:$0xff]
      %v11909 = vld [vmem:[#allocation1 + $0x36] sm:$0xff]
      %v12058 = vunpack.c.l.b16 %v11560
      %v12059 = vunpack.c.l.b16 %v11561
      %v12060 = vunpack.c.l.b16 %v11562
      %v12061 = vunpack.c.l.b16 %v11563
      %v12062 = vunpack.c.l.b16 %v11564
      %v12063 = vunpack.c.l.b16 %v11565
      %v12064 = vunpack.c.l.b16 %v11566
      %v12065 = vunpack.c.l.b16 %v11567
      %v12066 = vunpack.c.l.b16 %v11568
      %v12067 = vunpack.c.l.b16 %v11569
      %v12068 = vunpack.c.l.b16 %v11570
      %v12069 = vunpack.c.l.b16 %v11571
      %v12070 = vunpack.c.l.b16 %v11572
      %v12071 = vunpack.c.l.b16 %v11573
      %v12072 = vunpack.c.l.b16 %v11574
      %v12073 = vunpack.c.l.b16 %v11575
      %v12074 = vunpack.c.l.b16 %v11576
      %v12075 = vunpack.c.l.b16 %v11577
      %v12076 = vunpack.c.l.b16 %v11578
      %v12077 = vunpack.c.l.b16 %v11579
      %v12078 = vunpack.c.l.b16 %v11580
      %v12079 = vunpack.c.l.b16 %v11581
      %v12080 = vunpack.c.l.b16 %v11582
      %v12081 = vunpack.c.l.b16 %v11583
      %v12082 = vunpack.c.l.b16 %v11584
      %v12083 = vunpack.c.l.b16 %v11585
      %v12084 = vunpack.c.l.b16 %v11586
      %v12085 = vunpack.c.l.b16 %v11587
      %v12086 = vunpack.c.l.b16 %v11588
      %v12087 = vunpack.c.l.b16 %v11589
      %v12088 = vunpack.c.l.b16 %v11590
      %v12089 = vunpack.c.l.b16 %v11591
      %v12090 = vunpack.c.l.b16 %v11592
      %v12091 = vunpack.c.l.b16 %v11593
      %v12092 = vunpack.c.l.b16 %v11594
      %v12093 = vunpack.c.l.b16 %v11595
      %v12094 = vunpack.c.l.b16 %v11596
      %v12095 = vunpack.c.l.b16 %v11597
      %v12096 = vunpack.c.l.b16 %v11598
      %v12097 = vunpack.c.l.b16 %v11599
      %v12098 = vunpack.c.l.b16 %v11600
      %v12099 = vunpack.c.l.b16 %v11601
      %v12100 = vunpack.c.l.b16 %v11602
      %v12101 = vunpack.c.l.b16 %v11603
      %v12102 = vunpack.c.l.b16 %v11604
      %v12103 = vunpack.c.l.b16 %v11605
      %v12104 = vunpack.c.l.b16 %v11606
      %v12105 = vunpack.c.l.b16 %v11607
      %v12106 = vunpack.c.l.b16 %v11608
      %v12107 = vunpack.c.l.b16 %v11609
      %v12108 = vunpack.c.l.b16 %v11610
      %v12109 = vunpack.c.l.b16 %v11611
      %v12110 = vunpack.c.l.b16 %v11612
      %v12111 = vunpack.c.l.b16 %v11613
      %v12112 = vunpack.c.l.b16 %v11614
      %v12113 = vunpack.c.l.b16 %v11615
      %v12114 = vunpack.c.l.b16 %v11616
      %v12115 = vunpack.c.l.b16 %v11617
      %v12116 = vunpack.c.l.b16 %v11618
      %v12117 = vunpack.c.l.b16 %v11619
      %v12118 = vunpack.c.l.b16 %v11620
      %v12119 = vunpack.c.l.b16 %v11621
      %v12120 = vunpack.c.l.b16 %v11622
      %v12121 = vunpack.c.l.b16 %v11623
      %v12122 = vunpack.c.l.b16 %v11624
      %v12123 = vunpack.c.l.b16 %v11625
      %v12124 = vunpack.c.l.b16 %v11626
      %v12125 = vunpack.c.l.b16 %v11627
      %v12126 = vunpack.c.l.b16 %v11628
      %v12127 = vunpack.c.l.b16 %v11629
      %v12128 = vunpack.c.l.b16 %v11630
      %v12129 = vunpack.c.l.b16 %v11631
      %v12130 = vunpack.c.l.b16 %v11632
      %v12131 = vunpack.c.l.b16 %v11633
      %v12132 = vunpack.c.l.b16 %v11634
      %v12133 = vunpack.c.l.b16 %v11635
      %v12134 = vunpack.c.l.b16 %v11636
      %v12135 = vunpack.c.l.b16 %v11637
      %v12136 = vunpack.c.l.b16 %v11638
      %v12137 = vunpack.c.l.b16 %v11639
      %v12138 = vunpack.c.l.b16 %v11640
      %v12139 = vunpack.c.l.b16 %v11641
      %v12140 = vunpack.c.l.b16 %v11642
      %v12141 = vunpack.c.l.b16 %v11643
      %v12142 = vunpack.c.l.b16 %v11644
      %v12143 = vunpack.c.l.b16 %v11645
      %v12144 = vunpack.c.l.b16 %v11646
      %v12145 = vunpack.c.l.b16 %v11647
      %v12146 = vunpack.c.l.b16 %v11648
      %v12147 = vunpack.c.l.b16 %v11649
      %v12148 = vunpack.c.l.b16 %v11650
      %v12149 = vunpack.c.l.b16 %v11651
      %v12150 = vunpack.c.l.b16 %v11652
      %v12151 = vunpack.c.l.b16 %v11653
      %v12152 = vunpack.c.l.b16 %v11654
      %v12153 = vunpack.c.l.b16 %v11655
      %v12154 = vunpack.c.l.b16 %v11656
      %v12155 = vunpack.c.l.b16 %v11657
      %v12156 = vunpack.c.l.b16 %v11658
      %v12157 = vunpack.c.l.b16 %v11659
      %v12158 = vpack.c.b16 %v12059, %v12058
      %v12159 = vpack.c.b16 %v12061, %v12060
      %v12160 = vpack.c.b16 %v12063, %v12062
      %v12161 = vpack.c.b16 %v12065, %v12064
      %v12162 = vpack.c.b16 %v12067, %v12066
      %v12163 = vpack.c.b16 %v12069, %v12068
      %v12164 = vpack.c.b16 %v12071, %v12070
      %v12165 = vpack.c.b16 %v12073, %v12072
      %v12166 = vpack.c.b16 %v12075, %v12074
      %v12167 = vpack.c.b16 %v12077, %v12076
      %v12168 = vpack.c.b16 %v12079, %v12078
      %v12169 = vpack.c.b16 %v12081, %v12080
      %v12170 = vpack.c.b16 %v12083, %v12082
      %v12171 = vpack.c.b16 %v12085, %v12084
      %v12172 = vpack.c.b16 %v12087, %v12086
      %v12173 = vpack.c.b16 %v12089, %v12088
      %v12174 = vpack.c.b16 %v12091, %v12090
      %v12175 = vpack.c.b16 %v12093, %v12092
      %v12176 = vpack.c.b16 %v12095, %v12094
      %v12177 = vpack.c.b16 %v12097, %v12096
      %v12178 = vpack.c.b16 %v12099, %v12098
      %v12179 = vpack.c.b16 %v12101, %v12100
      %v12180 = vpack.c.b16 %v12103, %v12102
      %v12181 = vpack.c.b16 %v12105, %v12104
      %v12182 = vpack.c.b16 %v12107, %v12106
      %v12183 = vpack.c.b16 %v12109, %v12108
      %v12184 = vpack.c.b16 %v12111, %v12110
      %v12185 = vpack.c.b16 %v12113, %v12112
      %v12186 = vpack.c.b16 %v12115, %v12114
      %v12187 = vpack.c.b16 %v12117, %v12116
      %v12188 = vpack.c.b16 %v12119, %v12118
      %v12189 = vpack.c.b16 %v12121, %v12120
      %v12190 = vpack.c.b16 %v12123, %v12122
      %v12191 = vpack.c.b16 %v12125, %v12124
      %v12192 = vpack.c.b16 %v12127, %v12126
      %v12193 = vpack.c.b16 %v12129, %v12128
      %v12194 = vpack.c.b16 %v12131, %v12130
      %v12195 = vpack.c.b16 %v12133, %v12132
      %v12196 = vpack.c.b16 %v12135, %v12134
      %v12197 = vpack.c.b16 %v12137, %v12136
      %v12198 = vpack.c.b16 %v12139, %v12138
      %v12199 = vpack.c.b16 %v12141, %v12140
      %v12200 = vpack.c.b16 %v12143, %v12142
      %v12201 = vpack.c.b16 %v12145, %v12144
      %v12202 = vpack.c.b16 %v12147, %v12146
      %v12203 = vpack.c.b16 %v12149, %v12148
      %v12204 = vpack.c.b16 %v12151, %v12150
      %v12205 = vpack.c.b16 %v12153, %v12152
      %v12206 = vpack.c.b16 %v12155, %v12154
      %v12207 = vpack.c.b16 %v12157, %v12156
      %v12258 = vsel %vm4850, %v11754, 0
      %v12260 = vsel %vm4850, %v11777, 0
      %v12262 = vsel %vm4850, %v11800, 0
      %v12264 = vsel %vm4850, %v11823, 0
      %v12266 = vsel %vm4850, %v11846, 0
      %v12268 = vsel %vm4850, %v11869, 0
      %v12270 = vsel %vm4850, %v11892, 0
      %v12272 = vsel %vm4850, %v11909, 0
      %12274 = vmatpush.bf16.msra.mxu0 %v12165
      %12275 = vmatpush.bf16.msra.mxu0 %v12164
      %12276 = vmatpush.bf16.msra.mxu0 %v12163
      %12277 = vmatpush.bf16.msra.mxu0 %v12162
      %12278 = vmatpush.bf16.msra.mxu0 %v12161
      %12279 = vmatpush.bf16.msra.mxu0 %v12160
      %12280 = vmatpush.bf16.msra.mxu0 %v12159
      %12281 = vmatpush.bf16.msra.mxu0 %v12158
      %12282 = vmatmul.bf16.gmra.mxu0 %v11748
      %v12283 = vpop.f32.mrf.mxu0
      %v12284 = vadd.f32 %v11662, %v12283
      %v12285 = vpop.f32.mrf.mxu0
      %v12286 = vadd.f32 %v11662, %v12285
      %12287 = vmatmul.bf16.gmra.mxu0 %v11771
      %v12288 = vpop.f32.mrf.mxu0
      %v12289 = vadd.f32 %v11662, %v12288
      %v12290 = vpop.f32.mrf.mxu0
      %v12291 = vadd.f32 %v11662, %v12290
      %12292 = vmatmul.bf16.gmra.mxu0 %v11794
      %v12293 = vpop.f32.mrf.mxu0
      %v12294 = vadd.f32 %v11662, %v12293
      %v12295 = vpop.f32.mrf.mxu0
      %v12296 = vadd.f32 %v11662, %v12295
      %12297 = vmatmul.bf16.gmra.mxu0 %v11817
      %v12298 = vpop.f32.mrf.mxu0
      %v12299 = vadd.f32 %v11662, %v12298
      %v12300 = vpop.f32.mrf.mxu0
      %v12301 = vadd.f32 %v11662, %v12300
      %12302 = vmatmul.bf16.gmra.mxu0 %v11840
      %v12303 = vpop.f32.mrf.mxu0
      %v12304 = vadd.f32 %v11662, %v12303
      %v12305 = vpop.f32.mrf.mxu0
      %v12306 = vadd.f32 %v11662, %v12305
      %12307 = vmatmul.bf16.gmra.mxu0 %v11863
      %v12308 = vpop.f32.mrf.mxu0
      %v12309 = vadd.f32 %v11662, %v12308
      %v12310 = vpop.f32.mrf.mxu0
      %v12311 = vadd.f32 %v11662, %v12310
      %12312 = vmatmul.bf16.gmra.mxu0 %v11886
      %v12313 = vpop.f32.mrf.mxu0
      %v12314 = vadd.f32 %v11662, %v12313
      %v12315 = vpop.f32.mrf.mxu0
      %v12316 = vadd.f32 %v11662, %v12315
      %12317 = vmatmul.bf16.gmra.mxu0 %v11903
      %v12318 = vpop.f32.mrf.mxu0
      %v12319 = vpop.f32.mrf.mxu0
      %12320 = vdwg.mxu0
      %12321 = vmatpush.bf16.msra.mxu0 %v12173
      %12322 = vmatpush.bf16.msra.mxu0 %v12172
      %12323 = vmatpush.bf16.msra.mxu0 %v12171
      %12324 = vmatpush.bf16.msra.mxu0 %v12170
      %12325 = vmatpush.bf16.msra.mxu0 %v12169
      %12326 = vmatpush.bf16.msra.mxu0 %v12168
      %12327 = vmatpush.bf16.msra.mxu0 %v12167
      %12328 = vmatpush.bf16.msra.mxu0 %v12166
      %12329 = vmatmul.bf16.gmra.mxu0 %v11749
      %v12330 = vpop.f32.mrf.mxu0
      %v12331 = vadd.f32 %v12284, %v12330
      %v12332 = vpop.f32.mrf.mxu0
      %v12333 = vadd.f32 %v12286, %v12332
      %12334 = vmatmul.bf16.gmra.mxu0 %v11772
      %v12335 = vpop.f32.mrf.mxu0
      %v12336 = vadd.f32 %v12289, %v12335
      %v12337 = vpop.f32.mrf.mxu0
      %v12338 = vadd.f32 %v12291, %v12337
      %12339 = vmatmul.bf16.gmra.mxu0 %v11795
      %v12340 = vpop.f32.mrf.mxu0
      %v12341 = vadd.f32 %v12294, %v12340
      %v12342 = vpop.f32.mrf.mxu0
      %v12343 = vadd.f32 %v12296, %v12342
      %12344 = vmatmul.bf16.gmra.mxu0 %v11818
      %v12345 = vpop.f32.mrf.mxu0
      %v12346 = vadd.f32 %v12299, %v12345
      %v12347 = vpop.f32.mrf.mxu0
      %v12348 = vadd.f32 %v12301, %v12347
      %12349 = vmatmul.bf16.gmra.mxu0 %v11841
      %v12350 = vpop.f32.mrf.mxu0
      %v12351 = vadd.f32 %v12304, %v12350
      %v12352 = vpop.f32.mrf.mxu0
      %v12353 = vadd.f32 %v12306, %v12352
      %12354 = vmatmul.bf16.gmra.mxu0 %v11864
      %v12355 = vpop.f32.mrf.mxu0
      %v12356 = vadd.f32 %v12309, %v12355
      %v12357 = vpop.f32.mrf.mxu0
      %v12358 = vadd.f32 %v12311, %v12357
      %12359 = vmatmul.bf16.gmra.mxu0 %v11887
      %v12360 = vpop.f32.mrf.mxu0
      %v12361 = vadd.f32 %v12314, %v12360
      %v12362 = vpop.f32.mrf.mxu0
      %v12363 = vadd.f32 %v12316, %v12362
      %12364 = vmatmul.bf16.gmra.mxu0 %v11904
      %v12365 = vpop.f32.mrf.mxu0
      %v12366 = vpop.f32.mrf.mxu0
      %12367 = vdwg.mxu0
      %12368 = vmatpush.bf16.msra.mxu0 %v12181
      %12369 = vmatpush.bf16.msra.mxu0 %v12180
      %12370 = vmatpush.bf16.msra.mxu0 %v12179
      %12371 = vmatpush.bf16.msra.mxu0 %v12178
      %12372 = vmatpush.bf16.msra.mxu0 %v12177
      %12373 = vmatpush.bf16.msra.mxu0 %v12176
      %12374 = vmatpush.bf16.msra.mxu0 %v12175
      %12375 = vmatpush.bf16.msra.mxu0 %v12174
      %12376 = vmatmul.bf16.gmra.mxu0 %v11750
      %v12377 = vpop.f32.mrf.mxu0
      %v12378 = vadd.f32 %v12331, %v12377
      %v12379 = vpop.f32.mrf.mxu0
      %v12380 = vadd.f32 %v12333, %v12379
      %12381 = vmatmul.bf16.gmra.mxu0 %v11773
      %v12382 = vpop.f32.mrf.mxu0
      %v12383 = vadd.f32 %v12336, %v12382
      %v12384 = vpop.f32.mrf.mxu0
      %v12385 = vadd.f32 %v12338, %v12384
      %12386 = vmatmul.bf16.gmra.mxu0 %v11796
      %v12387 = vpop.f32.mrf.mxu0
      %v12388 = vadd.f32 %v12341, %v12387
      %v12389 = vpop.f32.mrf.mxu0
      %v12390 = vadd.f32 %v12343, %v12389
      %12391 = vmatmul.bf16.gmra.mxu0 %v11819
      %v12392 = vpop.f32.mrf.mxu0
      %v12393 = vadd.f32 %v12346, %v12392
      %v12394 = vpop.f32.mrf.mxu0
      %v12395 = vadd.f32 %v12348, %v12394
      %12396 = vmatmul.bf16.gmra.mxu0 %v11842
      %v12397 = vpop.f32.mrf.mxu0
      %v12398 = vadd.f32 %v12351, %v12397
      %v12399 = vpop.f32.mrf.mxu0
      %v12400 = vadd.f32 %v12353, %v12399
      %12401 = vmatmul.bf16.gmra.mxu0 %v11865
      %v12402 = vpop.f32.mrf.mxu0
      %v12403 = vadd.f32 %v12356, %v12402
      %v12404 = vpop.f32.mrf.mxu0
      %v12405 = vadd.f32 %v12358, %v12404
      %12406 = vmatmul.bf16.gmra.mxu0 %v11888
      %v12407 = vpop.f32.mrf.mxu0
      %v12408 = vadd.f32 %v12361, %v12407
      %v12409 = vpop.f32.mrf.mxu0
      %v12410 = vadd.f32 %v12363, %v12409
      %12411 = vmatmul.bf16.gmra.mxu0 %v11905
      %v12412 = vpop.f32.mrf.mxu0
      %v12413 = vpop.f32.mrf.mxu0
      %12414 = vdwg.mxu0
      %12415 = vmatpush.bf16.msra.mxu0 %v12189
      %12416 = vmatpush.bf16.msra.mxu0 %v12188
      %12417 = vmatpush.bf16.msra.mxu0 %v12187
      %12418 = vmatpush.bf16.msra.mxu0 %v12186
      %12419 = vmatpush.bf16.msra.mxu0 %v12185
      %12420 = vmatpush.bf16.msra.mxu0 %v12184
      %12421 = vmatpush.bf16.msra.mxu0 %v12183
      %12422 = vmatpush.bf16.msra.mxu0 %v12182
      %12423 = vmatmul.bf16.gmra.mxu0 %v11751
      %v12424 = vpop.f32.mrf.mxu0
      %v12425 = vadd.f32 %v12378, %v12424
      %v12426 = vpop.f32.mrf.mxu0
      %v12427 = vadd.f32 %v12380, %v12426
      %12428 = vmatmul.bf16.gmra.mxu0 %v11774
      %v12429 = vpop.f32.mrf.mxu0
      %v12430 = vadd.f32 %v12383, %v12429
      %v12431 = vpop.f32.mrf.mxu0
      %v12432 = vadd.f32 %v12385, %v12431
      %12433 = vmatmul.bf16.gmra.mxu0 %v11797
      %v12434 = vpop.f32.mrf.mxu0
      %v12435 = vadd.f32 %v12388, %v12434
      %v12436 = vpop.f32.mrf.mxu0
      %v12437 = vadd.f32 %v12390, %v12436
      %12438 = vmatmul.bf16.gmra.mxu0 %v11820
      %v12439 = vpop.f32.mrf.mxu0
      %v12440 = vadd.f32 %v12393, %v12439
      %v12441 = vpop.f32.mrf.mxu0
      %v12442 = vadd.f32 %v12395, %v12441
      %12443 = vmatmul.bf16.gmra.mxu0 %v11843
      %v12444 = vpop.f32.mrf.mxu0
      %v12445 = vadd.f32 %v12398, %v12444
      %v12446 = vpop.f32.mrf.mxu0
      %v12447 = vadd.f32 %v12400, %v12446
      %12448 = vmatmul.bf16.gmra.mxu0 %v11866
      %v12449 = vpop.f32.mrf.mxu0
      %v12450 = vadd.f32 %v12403, %v12449
      %v12451 = vpop.f32.mrf.mxu0
      %v12452 = vadd.f32 %v12405, %v12451
      %12453 = vmatmul.bf16.gmra.mxu0 %v11889
      %v12454 = vpop.f32.mrf.mxu0
      %v12455 = vadd.f32 %v12408, %v12454
      %v12456 = vpop.f32.mrf.mxu0
      %v12457 = vadd.f32 %v12410, %v12456
      %12458 = vmatmul.bf16.gmra.mxu0 %v11906
      %v12459 = vpop.f32.mrf.mxu0
      %v12460 = vpop.f32.mrf.mxu0
      %12461 = vdwg.mxu0
      %12462 = vmatpush.bf16.msra.mxu0 %v12197
      %12463 = vmatpush.bf16.msra.mxu0 %v12196
      %12464 = vmatpush.bf16.msra.mxu0 %v12195
      %12465 = vmatpush.bf16.msra.mxu0 %v12194
      %12466 = vmatpush.bf16.msra.mxu0 %v12193
      %12467 = vmatpush.bf16.msra.mxu0 %v12192
      %12468 = vmatpush.bf16.msra.mxu0 %v12191
      %12469 = vmatpush.bf16.msra.mxu0 %v12190
      %12470 = vmatmul.bf16.gmra.mxu0 %v11752
      %v12471 = vpop.f32.mrf.mxu0
      %v12472 = vadd.f32 %v12425, %v12471
      %v12473 = vpop.f32.mrf.mxu0
      %v12474 = vadd.f32 %v12427, %v12473
      %12475 = vmatmul.bf16.gmra.mxu0 %v11775
      %v12476 = vpop.f32.mrf.mxu0
      %v12477 = vadd.f32 %v12430, %v12476
      %v12478 = vpop.f32.mrf.mxu0
      %v12479 = vadd.f32 %v12432, %v12478
      %12480 = vmatmul.bf16.gmra.mxu0 %v11798
      %v12481 = vpop.f32.mrf.mxu0
      %v12482 = vadd.f32 %v12435, %v12481
      %v12483 = vpop.f32.mrf.mxu0
      %v12484 = vadd.f32 %v12437, %v12483
      %12485 = vmatmul.bf16.gmra.mxu0 %v11821
      %v12486 = vpop.f32.mrf.mxu0
      %v12487 = vadd.f32 %v12440, %v12486
      %v12488 = vpop.f32.mrf.mxu0
      %v12489 = vadd.f32 %v12442, %v12488
      %12490 = vmatmul.bf16.gmra.mxu0 %v11844
      %v12491 = vpop.f32.mrf.mxu0
      %v12492 = vadd.f32 %v12445, %v12491
      %v12493 = vpop.f32.mrf.mxu0
      %v12494 = vadd.f32 %v12447, %v12493
      %12495 = vmatmul.bf16.gmra.mxu0 %v11867
      %v12496 = vpop.f32.mrf.mxu0
      %v12497 = vadd.f32 %v12450, %v12496
      %v12498 = vpop.f32.mrf.mxu0
      %v12499 = vadd.f32 %v12452, %v12498
      %12500 = vmatmul.bf16.gmra.mxu0 %v11890
      %v12501 = vpop.f32.mrf.mxu0
      %v12502 = vadd.f32 %v12455, %v12501
      %v12503 = vpop.f32.mrf.mxu0
      %v12504 = vadd.f32 %v12457, %v12503
      %12505 = vmatmul.bf16.gmra.mxu0 %v11907
      %v12506 = vpop.f32.mrf.mxu0
      %v12507 = vpop.f32.mrf.mxu0
      %12508 = vdwg.mxu0
      %12509 = vmatpush.bf16.msra.mxu0 %v12205
      %12510 = vmatpush.bf16.msra.mxu0 %v12204
      %12511 = vmatpush.bf16.msra.mxu0 %v12203
      %12512 = vmatpush.bf16.msra.mxu0 %v12202
      %12513 = vmatpush.bf16.msra.mxu0 %v12201
      %12514 = vmatpush.bf16.msra.mxu0 %v12200
      %12515 = vmatpush.bf16.msra.mxu0 %v12199
      %12516 = vmatpush.bf16.msra.mxu0 %v12198
      %12517 = vmatmul.bf16.gmra.mxu0 %v11753
      %v12518 = vpop.f32.mrf.mxu0
      %v12519 = vadd.f32 %v12472, %v12518
      %v12520 = vpop.f32.mrf.mxu0
      %v12521 = vadd.f32 %v12474, %v12520
      %12522 = vmatmul.bf16.gmra.mxu0 %v11776
      %v12523 = vpop.f32.mrf.mxu0
      %v12524 = vadd.f32 %v12477, %v12523
      %v12525 = vpop.f32.mrf.mxu0
      %v12526 = vadd.f32 %v12479, %v12525
      %12527 = vmatmul.bf16.gmra.mxu0 %v11799
      %v12528 = vpop.f32.mrf.mxu0
      %v12529 = vadd.f32 %v12482, %v12528
      %v12530 = vpop.f32.mrf.mxu0
      %v12531 = vadd.f32 %v12484, %v12530
      %12532 = vmatmul.bf16.gmra.mxu0 %v11822
      %v12533 = vpop.f32.mrf.mxu0
      %v12534 = vadd.f32 %v12487, %v12533
      %v12535 = vpop.f32.mrf.mxu0
      %v12536 = vadd.f32 %v12489, %v12535
      %12537 = vmatmul.bf16.gmra.mxu0 %v11845
      %v12538 = vpop.f32.mrf.mxu0
      %v12539 = vadd.f32 %v12492, %v12538
      %v12540 = vpop.f32.mrf.mxu0
      %v12541 = vadd.f32 %v12494, %v12540
      %12542 = vmatmul.bf16.gmra.mxu0 %v11868
      %v12543 = vpop.f32.mrf.mxu0
      %v12544 = vadd.f32 %v12497, %v12543
      %v12545 = vpop.f32.mrf.mxu0
      %v12546 = vadd.f32 %v12499, %v12545
      %12547 = vmatmul.bf16.gmra.mxu0 %v11891
      %v12548 = vpop.f32.mrf.mxu0
      %v12549 = vadd.f32 %v12502, %v12548
      %v12550 = vpop.f32.mrf.mxu0
      %v12551 = vadd.f32 %v12504, %v12550
      %12552 = vmatmul.bf16.gmra.mxu0 %v11908
      %v12553 = vpop.f32.mrf.mxu0
      %v12554 = vpop.f32.mrf.mxu0
      %12555 = vdwg.mxu0
      %12556 = vmatpush.bf16.msra.mxu0 0
      %12557 = vmatpush.bf16.msra.mxu0 0
      %12558 = vmatpush.bf16.msra.mxu0 0
      %12559 = vmatpush.bf16.msra.mxu0 0
      %12560 = vmatpush.bf16.msra.mxu0 0
      %12561 = vmatpush.bf16.msra.mxu0 0
      %12562 = vmatpush.bf16.msra.mxu0 %v12207
      %12563 = vmatpush.bf16.msra.mxu0 %v12206
      %12564 = vmatmul.bf16.gmra.mxu0 %v12258
      %v12565 = vpop.f32.mrf.mxu0
      %v12566 = vadd.f32 %v12519, %v12565
      %v12567 = vpop.f32.mrf.mxu0
      %v12568 = vadd.f32 %v12521, %v12567
      %12569 = vmatmul.bf16.gmra.mxu0 %v12260
      %v12570 = vpop.f32.mrf.mxu0
      %v12571 = vadd.f32 %v12524, %v12570
      %v12572 = vpop.f32.mrf.mxu0
      %v12573 = vadd.f32 %v12526, %v12572
      %12574 = vmatmul.bf16.gmra.mxu0 %v12262
      %v12575 = vpop.f32.mrf.mxu0
      %v12576 = vadd.f32 %v12529, %v12575
      %v12577 = vpop.f32.mrf.mxu0
      %v12578 = vadd.f32 %v12531, %v12577
      %12579 = vmatmul.bf16.gmra.mxu0 %v12264
      %v12580 = vpop.f32.mrf.mxu0
      %v12581 = vadd.f32 %v12534, %v12580
      %v12582 = vpop.f32.mrf.mxu0
      %v12583 = vadd.f32 %v12536, %v12582
      %12584 = vmatmul.bf16.gmra.mxu0 %v12266
      %v12585 = vpop.f32.mrf.mxu0
      %v12586 = vadd.f32 %v12539, %v12585
      %v12587 = vpop.f32.mrf.mxu0
      %v12588 = vadd.f32 %v12541, %v12587
      %12589 = vmatmul.bf16.gmra.mxu0 %v12268
      %v12590 = vpop.f32.mrf.mxu0
      %v12591 = vadd.f32 %v12544, %v12590
      %v12592 = vpop.f32.mrf.mxu0
      %v12593 = vadd.f32 %v12546, %v12592
      %12594 = vmatmul.bf16.gmra.mxu0 %v12270
      %v12595 = vpop.f32.mrf.mxu0
      %v12596 = vadd.f32 %v12549, %v12595
      %v12597 = vpop.f32.mrf.mxu0
      %v12598 = vadd.f32 %v12551, %v12597
      %12599 = vmatmul.bf16.gmra.mxu0 %v12272
      %v12600 = vpop.f32.mrf.mxu0
      %v12601 = vpop.f32.mrf.mxu0
      %12602 = vdwg.mxu0
      %v12617 = vrot.slane %v12566, 1
      %v12618 = vrot.slane %v12566, 2
      %v12619 = vrot.slane %v12566, 3
      %v12620 = vrot.slane %v12566, 4
      %v12621 = vrot.slane %v12566, 5
      %v12622 = vrot.slane %v12566, 6
      %v12623 = vrot.slane %v12566, 7
      %v12624 = vrot.slane %v12568, 1
      %v12625 = vrot.slane %v12568, 3
      %v12626 = vrot.slane %v12568, 4
      %v12627 = vrot.slane %v12568, 5
      %v12628 = vrot.slane %v12568, 6
      %v12629 = vrot.slane %v12568, 7
      %v12630 = vrot.slane %v12571, 1
      %v12631 = vrot.slane %v12571, 2
      %v12632 = vrot.slane %v12571, 3
      %v12633 = vrot.slane %v12571, 4
      %v12634 = vrot.slane %v12571, 6
      %v12635 = vrot.slane %v12571, 7
      %v12636 = vrot.slane %v12573, 1
      %v12637 = vrot.slane %v12573, 2
      %v12638 = vrot.slane %v12573, 3
      %v12639 = vrot.slane %v12573, 4
      %v12640 = vrot.slane %v12573, 5
      %v12641 = vrot.slane %v12573, 6
      %v12642 = vrot.slane %v12573, 7
      %v12643 = vrot.slane %v12576, 1
      %v12644 = vrot.slane %v12576, 2
      %v12645 = vrot.slane %v12576, 3
      %v12646 = vrot.slane %v12576, 4
      %v12647 = vrot.slane %v12576, 5
      %v12648 = vrot.slane %v12576, 6
      %v12649 = vrot.slane %v12576, 7
      %v12650 = vrot.slane %v12578, 1
      %v12651 = vrot.slane %v12578, 2
      %v12652 = vrot.slane %v12578, 4
      %v12653 = vrot.slane %v12578, 5
      %v12654 = vrot.slane %v12578, 6
      %v12655 = vrot.slane %v12578, 7
      %v12656 = vrot.slane %v12581, 1
      %v12657 = vrot.slane %v12581, 2
      %v12658 = vrot.slane %v12581, 3
      %v12659 = vrot.slane %v12581, 4
      %v12660 = vrot.slane %v12581, 5
      %v12661 = vrot.slane %v12581, 7
      %v12662 = vrot.slane %v12583, 1
      %v12663 = vrot.slane %v12583, 2
      %v12664 = vrot.slane %v12583, 3
      %v12665 = vrot.slane %v12583, 4
      %v12666 = vrot.slane %v12583, 5
      %v12667 = vrot.slane %v12583, 6
      %v12668 = vrot.slane %v12583, 7
      %v12669 = vrot.slane %v12586, 2
      %v12670 = vrot.slane %v12586, 3
      %v12671 = vrot.slane %v12586, 4
      %v12672 = vrot.slane %v12586, 5
      %v12673 = vrot.slane %v12586, 6
      %v12674 = vrot.slane %v12586, 7
      %v12675 = vrot.slane %v12588, 1
      %v12676 = vrot.slane %v12588, 2
      %v12677 = vrot.slane %v12588, 3
      %v12678 = vrot.slane %v12588, 5
      %v12679 = vrot.slane %v12588, 6
      %v12680 = vrot.slane %v12588, 7
      %v12681 = vrot.slane %v12591, 1
      %v12682 = vrot.slane %v12591, 2
      %v12683 = vrot.slane %v12591, 3
      %v12684 = vrot.slane %v12591, 4
      %v12685 = vrot.slane %v12591, 5
      %v12686 = vrot.slane %v12591, 6
      %v12687 = vrot.slane %v12593, 1
      %v12688 = vrot.slane %v12593, 2
      %v12689 = vrot.slane %v12593, 3
      %v12690 = vrot.slane %v12593, 4
      %v12691 = vrot.slane %v12593, 5
      %v12692 = vrot.slane %v12593, 6
      %v12693 = vrot.slane %v12593, 7
      %v12694 = vrot.slane %v12596, 1
      %v12695 = vrot.slane %v12596, 3
      %v12696 = vrot.slane %v12596, 4
      %v12697 = vrot.slane %v12596, 5
      %v12698 = vrot.slane %v12596, 6
      %v12699 = vrot.slane %v12596, 7
      %v12700 = vrot.slane %v12598, 1
      %v12701 = vrot.slane %v12598, 2
      %v12702 = vrot.slane %v12598, 3
      %v12703 = vrot.slane %v12598, 4
      %12704 = vst [vmem:[#allocation1] ss:$9 sm:$0xff] %v12566
      %s12705 = scalar_lea.vmem [#allocation1], 1
      %12706 = vst [vmem:[%s12705] ss:$9 sm:$0xff] %v12617
      %s12707 = scalar_lea.vmem [#allocation1], 2
      %12708 = vst [vmem:[%s12707] ss:$9 sm:$0xff] %v12618
      %s12709 = scalar_lea.vmem [#allocation1], 3
      %12710 = vst [vmem:[%s12709] ss:$9 sm:$0xff] %v12619
      %s12711 = scalar_lea.vmem [#allocation1], 4
      %12712 = vst [vmem:[%s12711] ss:$9 sm:$0xff] %v12620
      %s12713 = scalar_lea.vmem [#allocation1], 5
      %12714 = vst [vmem:[%s12713] ss:$9 sm:$0xff] %v12621
      %s12715 = scalar_lea.vmem [#allocation1], 6
      %12716 = vst [vmem:[%s12715] ss:$9 sm:$0xff] %v12622
      %s12717 = scalar_lea.vmem [#allocation1], 7
      %12718 = vst [vmem:[%s12717] ss:$9 sm:$0xff] %v12623
      %v12719 = vld [vmem:[#allocation1] sm:$0xff]
      %12720 = vst [vmem:[#allocation1] ss:$9 sm:$0xff] %v12568
      %12721 = vst [vmem:[%s12705] ss:$9 sm:$0xff] %v12624
      %v12722 = vld [vmem:[#allocation1] sm:$0xff]
      %12723 = vst [vmem:[#allocation1] ss:$9 sm:$0xff] %v12625
      %12724 = vst [vmem:[%s12705] ss:$9 sm:$0xff] %v12626
      %12725 = vst [vmem:[%s12707] ss:$9 sm:$0xff] %v12627
      %12726 = vst [vmem:[%s12709] ss:$9 sm:$0xff] %v12628
      %12727 = vst [vmem:[%s12711] ss:$9 sm:$0xff] %v12629
      %12728 = vst [vmem:[%s12713] ss:$9 sm:$0xff] %v12571
      %12729 = vst [vmem:[%s12715] ss:$9 sm:$0xff] %v12630
      %12730 = vst [vmem:[%s12717] ss:$9 sm:$0xff] %v12631
      %v12731 = vld [vmem:[#allocation1] sm:$0xff]
      %12732 = vst [vmem:[#allocation1] ss:$9 sm:$0xff] %v12632
      %12733 = vst [vmem:[%s12705] ss:$9 sm:$0xff] %v12633
      %v12734 = vld [vmem:[#allocation1] sm:$0xff]
      %12735 = vst [vmem:[#allocation1] ss:$9 sm:$0xff] %v12634
      %12736 = vst [vmem:[%s12705] ss:$9 sm:$0xff] %v12635
      %12737 = vst [vmem:[%s12707] ss:$9 sm:$0xff] %v12573
      %12738 = vst [vmem:[%s12709] ss:$9 sm:$0xff] %v12636
      %12739 = vst [vmem:[%s12711] ss:$9 sm:$0xff] %v12637
      %12740 = vst [vmem:[%s12713] ss:$9 sm:$0xff] %v12638
      %12741 = vst [vmem:[%s12715] ss:$9 sm:$0xff] %v12639
      %12742 = vst [vmem:[%s12717] ss:$9 sm:$0xff] %v12640
      %v12743 = vld [vmem:[#allocation1] sm:$0xff]
      %12744 = vst [vmem:[#allocation1] ss:$9 sm:$0xff] %v12641
      %12745 = vst [vmem:[%s12705] ss:$9 sm:$0xff] %v12642
      %v12746 = vld [vmem:[#allocation1] sm:$0xff]
      %12747 = vst [vmem:[#allocation1] ss:$9 sm:$0xff] %v12643
      %12748 = vst [vmem:[%s12705] ss:$9 sm:$0xff] %v12644
      %12749 = vst [vmem:[%s12707] ss:$9 sm:$0xff] %v12645
      %12750 = vst [vmem:[%s12709] ss:$9 sm:$0xff] %v12646
      %12751 = vst [vmem:[%s12711] ss:$9 sm:$0xff] %v12647
      %12752 = vst [vmem:[%s12713] ss:$9 sm:$0xff] %v12648
      %12753 = vst [vmem:[%s12715] ss:$9 sm:$0xff] %v12649
      %12754 = vst [vmem:[%s12717] ss:$9 sm:$0xff] %v12578
      %v12755 = vld [vmem:[#allocation1] sm:$0xff]
      %12756 = vst [vmem:[#allocation1] ss:$9 sm:$0xff] %v12650
      %12757 = vst [vmem:[%s12705] ss:$9 sm:$0xff] %v12651
      %v12758 = vld [vmem:[#allocation1] sm:$0xff]
      %12759 = vst [vmem:[#allocation1] ss:$9 sm:$0xff] %v12652
      %12760 = vst [vmem:[%s12705] ss:$9 sm:$0xff] %v12653
      %12761 = vst [vmem:[%s12707] ss:$9 sm:$0xff] %v12654
      %12762 = vst [vmem:[%s12709] ss:$9 sm:$0xff] %v12655
      %12763 = vst [vmem:[%s12711] ss:$9 sm:$0xff] %v12581
      %12764 = vst [vmem:[%s12713] ss:$9 sm:$0xff] %v12656
      %12765 = vst [vmem:[%s12715] ss:$9 sm:$0xff] %v12657
      %12766 = vst [vmem:[%s12717] ss:$9 sm:$0xff] %v12658
      %v12767 = vld [vmem:[#allocation1] sm:$0xff]
      %12768 = vst [vmem:[#allocation1] ss:$9 sm:$0xff] %v12659
      %12769 = vst [vmem:[%s12705] ss:$9 sm:$0xff] %v12660
      %v12770 = vld [vmem:[#allocation1] sm:$0xff]
      %12771 = vst [vmem:[#allocation1] ss:$9 sm:$0xff] %v12661
      %12772 = vst [vmem:[%s12705] ss:$9 sm:$0xff] %v12583
      %12773 = vst [vmem:[%s12707] ss:$9 sm:$0xff] %v12662
      %12774 = vst [vmem:[%s12709] ss:$9 sm:$0xff] %v12663
      %12775 = vst [vmem:[%s12711] ss:$9 sm:$0xff] %v12664
      %12776 = vst [vmem:[%s12713] ss:$9 sm:$0xff] %v12665
      %12777 = vst [vmem:[%s12715] ss:$9 sm:$0xff] %v12666
      %12778 = vst [vmem:[%s12717] ss:$9 sm:$0xff] %v12667
      %v12779 = vld [vmem:[#allocation1] sm:$0xff]
      %12780 = vst [vmem:[#allocation1] ss:$9 sm:$0xff] %v12668
      %12781 = vst [vmem:[%s12705] ss:$9 sm:$0xff] %v12586
      %v12782 = vld [vmem:[#allocation1] sm:$0xff]
      %12783 = vst [vmem:[#allocation1] ss:$9 sm:$0xff] %v12669
      %12784 = vst [vmem:[%s12705] ss:$9 sm:$0xff] %v12670
      %12785 = vst [vmem:[%s12707] ss:$9 sm:$0xff] %v12671
      %12786 = vst [vmem:[%s12709] ss:$9 sm:$0xff] %v12672
      %12787 = vst [vmem:[%s12711] ss:$9 sm:$0xff] %v12673
      %12788 = vst [vmem:[%s12713] ss:$9 sm:$0xff] %v12674
      %12789 = vst [vmem:[%s12715] ss:$9 sm:$0xff] %v12588
      %12790 = vst [vmem:[%s12717] ss:$9 sm:$0xff] %v12675
      %v12791 = vld [vmem:[#allocation1] sm:$0xff]
      %12792 = vst [vmem:[#allocation1] ss:$9 sm:$0xff] %v12676
      %12793 = vst [vmem:[%s12705] ss:$9 sm:$0xff] %v12677
      %v12794 = vld [vmem:[#allocation1] sm:$0xff]
      %12795 = vst [vmem:[#allocation1] ss:$9 sm:$0xff] %v12678
      %12796 = vst [vmem:[%s12705] ss:$9 sm:$0xff] %v12679
      %12797 = vst [vmem:[%s12707] ss:$9 sm:$0xff] %v12680
      %12798 = vst [vmem:[%s12709] ss:$9 sm:$0xff] %v12591
      %12799 = vst [vmem:[%s12711] ss:$9 sm:$0xff] %v12681
      %12800 = vst [vmem:[%s12713] ss:$9 sm:$0xff] %v12682
      %12801 = vst [vmem:[%s12715] ss:$9 sm:$0xff] %v12683
      %12802 = vst [vmem:[%s12717] ss:$9 sm:$0xff] %v12684
      %v12803 = vld [vmem:[#allocation1] sm:$0xff]
      %12804 = vst [vmem:[#allocation1] ss:$9 sm:$0xff] %v12685
      %12805 = vst [vmem:[%s12705] ss:$9 sm:$0xff] %v12686
      %v12806 = vld [vmem:[#allocation1] sm:$0xff]
      %12807 = vst [vmem:[#allocation1] ss:$9 sm:$0xff] %v12593
      %12808 = vst [vmem:[%s12705] ss:$9 sm:$0xff] %v12687
      %12809 = vst [vmem:[%s12707] ss:$9 sm:$0xff] %v12688
      %12810 = vst [vmem:[%s12709] ss:$9 sm:$0xff] %v12689
      %12811 = vst [vmem:[%s12711] ss:$9 sm:$0xff] %v12690
      %12812 = vst [vmem:[%s12713] ss:$9 sm:$0xff] %v12691
      %12813 = vst [vmem:[%s12715] ss:$9 sm:$0xff] %v12692
      %12814 = vst [vmem:[%s12717] ss:$9 sm:$0xff] %v12693
      %v12815 = vld [vmem:[#allocation1] sm:$0xff]
      %12816 = vst [vmem:[#allocation1] ss:$9 sm:$0xff] %v12596
      %12817 = vst [vmem:[%s12705] ss:$9 sm:$0xff] %v12694
      %v12818 = vld [vmem:[#allocation1] sm:$0xff]
      %12819 = vst [vmem:[#allocation1] ss:$9 sm:$0xff] %v12695
      %12820 = vst [vmem:[%s12705] ss:$9 sm:$0xff] %v12696
      %12821 = vst [vmem:[%s12707] ss:$9 sm:$0xff] %v12697
      %12822 = vst [vmem:[%s12709] ss:$9 sm:$0xff] %v12698
      %12823 = vst [vmem:[%s12711] ss:$9 sm:$0xff] %v12699
      %12824 = vst [vmem:[%s12713] ss:$9 sm:$0xff] %v12598
      %12825 = vst [vmem:[%s12715] ss:$9 sm:$0xff] %v12700
      %12826 = vst [vmem:[%s12717] ss:$9 sm:$0xff] %v12701
      %v12827 = vld [vmem:[#allocation1] sm:$0xff]
      %12828 = vst [vmem:[#allocation1] ss:$9 sm:$0xff] %v12702
      %12829 = vst [vmem:[%s12705] ss:$9 sm:$0xff] %v12703
      %v12830 = vld [vmem:[#allocation1] sm:$0xff]
      %v12851 = vsel %vm10002, %v12719, -inf
      %vm12852 = vcmask 517120
      %v12853 = vsel %vm12852, %v12722, -inf
      %v12854 = vsel %vm10002, %v12731, -inf
      %v12855 = vsel %vm12852, %v12734, -inf
      %v12856 = vsel %vm10002, %v12743, -inf
      %v12857 = vmax.f32 %v12851, %v12856
      %v12858 = vsel %vm12852, %v12746, -inf
      %v12859 = vmax.f32 %v12853, %v12858
      %v12860 = vsel %vm10002, %v12755, -inf
      %v12861 = vmax.f32 %v12854, %v12860
      %v12862 = vsel %vm12852, %v12758, -inf
      %v12863 = vmax.f32 %v12855, %v12862
      %v12864 = vsel %vm10002, %v12767, -inf
      %v12865 = vmax.f32 %v12857, %v12864
      %v12866 = vsel %vm12852, %v12770, -inf
      %v12867 = vmax.f32 %v12859, %v12866
      %v12868 = vsel %vm10002, %v12779, -inf
      %v12869 = vmax.f32 %v12861, %v12868
      %v12870 = vsel %vm12852, %v12782, -inf
      %v12871 = vmax.f32 %v12863, %v12870
      %v12872 = vsel %vm10002, %v12791, -inf
      %v12873 = vmax.f32 %v12865, %v12872
      %v12874 = vsel %vm12852, %v12794, -inf
      %v12875 = vmax.f32 %v12867, %v12874
      %v12876 = vsel %vm10002, %v12803, -inf
      %v12877 = vmax.f32 %v12869, %v12876
      %v12878 = vsel %vm12852, %v12806, -inf
      %v12879 = vmax.f32 %v12871, %v12878
      %v12880 = vsel %vm10002, %v12815, -inf
      %v12881 = vmax.f32 %v12873, %v12880
      %v12882 = vsel %vm12852, %v12818, -inf
      %v12883 = vmax.f32 %v12875, %v12882
      %v12884 = vsel %vm10002, %v12827, -inf
      %v12885 = vmax.f32 %v12877, %v12884
      %v12886 = vsel %vm12852, %v12830, -inf
      %v12887 = vmax.f32 %v12879, %v12886
      %v12888 = vmax.f32 %v12881, %v12883
      %v12889 = vmax.f32 %v12885, %v12887
      %v12890 = vmax.f32 %v12888, %v12889
      %v12891 = vrot.slane %v12890, 4
      %v12892 = vmax.f32 %v12890, %v12891
      %v12893 = vrot.slane %v12892, 2
      %v12894 = vmax.f32 %v12892, %v12893
      %v12895 = vrot.slane %v12894, 1
      %v12896 = vmax.f32 %v12894, %v12895
      %v12897 = vpack.c.bf16 %v12896, %v12896
      %v12898 = vld [vmem:[%s5] sm:$0xf]
      %v12899 = vld [vmem:[%s5 + $0x4] sm:$0xf]
      %v12900 = vld [vmem:[%s5 + $0x8] sm:$0xf]
      %v12901 = vld [vmem:[%s5 + $0xc] sm:$0xf]
      %v12902 = vld [vmem:[%s5 + $0x10] sm:$0xf]
      %v12903 = vld [vmem:[%s5 + $0x14] sm:$0xf]
      %v12904 = vld [vmem:[%s5 + $0x18] sm:$0xf]
      %v12905 = vld [vmem:[%s5 + $0x1c] sm:$0xf]
      %v12906 = vld [vmem:[%s6] sm:$0x1]
      %v12915 = vunpack.c.l.b16 %v12898
      %v12916 = vunpack.c.l.b16 %v12899
      %v12917 = vunpack.c.l.b16 %v12900
      %v12918 = vunpack.c.l.b16 %v12901
      %v12919 = vunpack.c.l.b16 %v12902
      %v12920 = vunpack.c.l.b16 %v12903
      %v12921 = vunpack.c.l.b16 %v12904
      %v12922 = vunpack.c.l.b16 %v12905
      %v12923 = vpack.c.b16 %v12916, %v12915
      %v12924 = vpack.c.b16 %v12918, %v12917
      %v12925 = vpack.c.b16 %v12920, %v12919
      %v12926 = vpack.c.b16 %v12922, %v12921
      %v12932 = vsel %vm10002, %v12897, 0
      %12934 = vmatpush.bf16.msra.mxu0 0
      %12935 = vmatpush.bf16.msra.mxu0 0
      %12936 = vmatpush.bf16.msra.mxu0 0
      %12937 = vmatpush.bf16.msra.mxu0 0
      %12938 = vmatpush.bf16.msra.mxu0 %v12926
      %12939 = vmatpush.bf16.msra.mxu0 %v12925
      %12940 = vmatpush.bf16.msra.mxu0 %v12924
      %12941 = vmatpush.bf16.msra.mxu0 %v12923
      %12942 = vmatmul.bf16.gmra.mxu0 %v12932
      %v12943 = vpop.f32.mrf.mxu0
      %v12944 = vadd.f32 %v12906, %v12943
      %v12945 = vpop.f32.mrf.mxu0
      %12946 = vdwg.mxu0
      %v12947 = vmax.f32 %v12944, 0.0
      %v12948 = vld [vmem:[%s7] sm:$0x1]
      %v12949 = vmul.f32 %v12947, %v12948
      %vm12950 = vcmask 253952
      %v12951 = vsel %vm12950, %v12949, 0.0
      %12952 = vadd.xlane.f32.xlu0 %v12951
      %v12953 = vpop.xlane.xlu0 %12952
      %v12954 = vld [vmem:[#allocation2] sm:$0x1]
      %v12955 = vadd.f32 %v12953, %v12954
      %v12956 = vxor.u32 %v12955, 2147483648
      %v12957 = vmul.f32 %v12956, 1.442695
      %v12958 = vpow.pop %v12957
      %v12959 = vadd.f32 %v12958, 1.0
      %v12960 = vrcp.pop %v12959
      %v12961 = vmul.f32 %v12959, %v12960
      %v12962 = vsub.f32 1.0, %v12961
      %v12963 = vmul.f32 %v12960, %v12962
      %v12964 = vadd.f32 %v12960, %v12963
      %vm12965 = vweird.f32 %v12959
      %vm12966 = vweird.f32 %v12960
      %vm12967 = vmor %vm12965, %vm12966
      %v12968 = vsel %vm12967, %v12960, %v12964
      %v12969 = vand.u32 2147483647, %v12959
      %vm12970 = vcmp.eq.f32.partialorder %v12969, 8.507059e+37
      %v12971 = vand.u32 %v12959, 2147483648
      %v12972 = vor.u32 1.1754944e-38, %v12971
      %v12973 = vsel %vm12970, %v12972, %v12968
      %v12974 = vmul.f32 1.0, %v12973
      %vm12975 = vcmask 0
      %12976 = vst.msk [vmem:[%s330] sm:$0x1] %vm12975, %v12974
      %p12977 = scmp.lt.s32.totalorder %s22, 1
      %s12978 = scalar_select %p12977, %s22, 1
      %s12979 = scalar_lea.vmem %s9, %s12978
      // Predicated region
      $region57: #{net_forward.1} parent=55 // pred_check
        %p12980 = pneg %p234
      $region58: #{net_forward.1} parent=55 // pred_check_branch
        %12982 = sbr.rel (%p12980) target = $region60
      $region59: #{net_forward.1} parent=55 // pred_region
        _
      $region60: #{net_forward.1} parent=55 // pred_fallthru
        _
    $region56: #{net_forward.1} parent=5 // pred_fallthru
      _
    %p12983 = scmp.le.s32.totalorder 2, %s17
    // Predicated region
    $region61: #{net_forward.1} parent=5 // pred_check
      %p12984 = pneg %p12983
    $region62: #{net_forward.1} parent=5 // pred_check_branch
      %12986 = sbr.rel (%p12984) target = $region64
    $region63: #{net_forward.1} parent=5 // pred_region
      %s12987 = ssub.s32 %s17, 2
      // Predicated region
      $region65: #{net_forward.1} parent=63 // pred_check
        %p12988 = pneg %p240
      $region66: #{net_forward.1} parent=63 // pred_check_branch
        %12990 = sbr.rel (%p12988) target = $region68
      $region67: #{net_forward.1} parent=63 // pred_region
        %p12991 = scmp.lt.s32.totalorder %s23, 1
        %s12992 = scalar_select %p12991, %s23, 1
        %s12993 = scalar_lea.vmem %s9, %s12992
      $region68: #{net_forward.1} parent=63 // pred_fallthru
        _
    $region64: #{net_forward.1} parent=5 // pred_fallthru
      _
  $region6: #{net_forward.1} parent=0 // loop_footer
    %s21 = sadd.s32 1, %s17
  $region7: #{net_forward.1} parent=0 // loop_footer_branch
    %16 = sbr.rel target = $region3
  $region8: #{net_forward.1} parent=0 // loop_exit
    _

</llo_original>
